<compile_context>
chip_gen: v7x
topology: tpu7x:2x2x1
jax: 0.10.0
libtpu: 0.0.40
codegen_flags: <defaults>
</compile_context>

<pallas_src>
import math

import jax
import jax.numpy as jnp
import numpy as np
from jax.experimental import pallas as pl
from jax.experimental.pallas import tpu as pltpu

# ----------------------------- model config ---------------------------------
B = 2            # batch
L = 8            # sequence length
H = 32           # "bert_hidden_size"
NH = 2           # attention heads
DH = H // NH     # head dim
FF = 64          # transformer FFN width
VOCAB = 100
NUM_HID = 64     # num_features_layer hidden
NUM_OUT = 32     # num_features_layer output
CLS_HID = 64     # classifier hidden
N_CLASSES = 3
BL = B * L

# --------------------- packed-operand slab layout ----------------------------
# Embedding slab (VMEM, H lanes wide): rows 0..VOCAB-1 = word embeddings,
# rows VOCAB..VOCAB+L-1 = (position embedding + token-type-0 embedding), pre-summed offline.
EMB_POS_OFF = VOCAB
EMB_ROWS = ((VOCAB + L + 7) // 8) * 8            # 112
EMB_SLAB_SHAPE = (EMB_ROWS, H)

# MXU weight slab: each matrix [K, N] occupies K rows (8-row aligned) x full 128 lanes.
W_QKV_OFF = 0                                    # [H, 3H]
W_O_OFF   = W_QKV_OFF + H                        # [H, H]
W_FF1_OFF = W_O_OFF + H                          # [H, FF]
W_FF2_OFF = W_FF1_OFF + H                        # [FF, H]
W_P_OFF   = W_FF2_OFF + FF                       # [H, H]
W_N2_OFF  = W_P_OFF + H                          # [NUM_HID, NUM_OUT]
W_C1_OFF  = W_N2_OFF + NUM_HID                   # [H+NUM_OUT, CLS_HID] (text rows, num rows)
W_C2_OFF  = W_C1_OFF + (H + NUM_OUT)             # [CLS_HID, N_CLASSES]
W_ROWS    = W_C2_OFF + CLS_HID                   # 384
W_SLAB_SHAPE = (W_ROWS, 128)                     # 192 KiB f32

# Vector slab: one 128-lane row per bias / LayerNorm parameter / VPU-FMA weight row.
(R_LN_E_G, R_LN_E_B, R_BQKV, R_BO, R_LN_A_G, R_LN_A_B, R_B1, R_B2,
 R_LN_F_G, R_LN_F_B, R_BP, R_WN1_0, R_WN1_1, R_BN1, R_BN2, R_BC1, R_BC2) = range(17)
V_SLAB_SHAPE = (24, 128)


# ------------------------------- kernel -------------------------------------
def review_kernel(ids_ref, mask_ref, nf_ref, emb_ref, w_ref, v_ref, out_ref):
    def wmat(off, rows):
        # sublane-aligned rows, FULL 128 lanes (padding columns are zero and never read)
        return w_ref[off:off + rows, :]

    def vrow(r):                                  # [1, 128] bias / FMA-weight row
        return v_ref[r:r + 1, :]

    def vrow_n(r, n):                             # LayerNorm params need logical width
        return v_ref[r:r + 1, 0:n]

    def layernorm(x, gr, br):                     # x: [rows, H]
        mu = jnp.mean(x, axis=-1, keepdims=True)
        var = jnp.mean((x - mu) ** 2, axis=-1, keepdims=True)
        return (x - mu) * jax.lax.rsqrt(var + 1e-12) * vrow_n(gr, H) + vrow_n(br, H)

    def gelu(x):                                  # tanh-approximation GELU
        c = 0.7978845608028654
        return 0.5 * x * (1.0 + jnp.tanh(c * (x + 0.044715 * x * x * x)))

    def mm(x, w):
        return jnp.dot(x, w, preferred_element_type=jnp.float32)

    # ---- in-kernel embedding lookup: token ids from SMEM drive dynamic row gathers;
    #      position+token-type rows were pre-summed into the same slab offline ----
    rows = []
    for b in range(B):
        for l in range(L):
            tok = emb_ref[pl.ds(ids_ref[b, l], 1), :]                       # [1, H]
            rows.append(tok + emb_ref[EMB_POS_OFF + l:EMB_POS_OFF + l + 1, :])
    x0 = layernorm(jnp.concatenate(rows, axis=0), R_LN_E_G, R_LN_E_B)       # [BL, H]

    # ---- fused QKV projection: one MXU op, full-lane slot + full-lane bias ----
    qkv = mm(x0, wmat(W_QKV_OFF, H)) + vrow(R_BQKV)                         # [BL, 128]

    # ---- self-attention: heads stacked on the batch axis -> 2 batched einsums total ----
    def stack_heads(col0):
        return jnp.concatenate(
            [qkv[:, col0 + h * DH:col0 + (h + 1) * DH].reshape(B, L, DH) for h in range(NH)],
            axis=0)                                                          # [NH*B, L, DH]

    q_bh, k_bh, v_bh = stack_heads(0), stack_heads(H), stack_heads(2 * H)

    addm = (1.0 - mask_ref[...]) * -10000.0                                  # [B, L] (in-kernel)
    maskb = jnp.concatenate([addm[:, None, :]] * NH, axis=0)                 # [NH*B, 1, L]

    s = jnp.einsum('bqd,bkd->bqk', q_bh, k_bh,
                   preferred_element_type=jnp.float32) * (1.0 / math.sqrt(DH)) + maskb
    s = s - jnp.max(s, axis=-1, keepdims=True)
    p = jnp.exp(s)
    # exact reciprocal: approx=True could drift past the numeric check at these scales
    p = p * pl.reciprocal(jnp.sum(p, axis=-1, keepdims=True), approx=False)
    ctx_bh = jnp.einsum('bqk,bkd->bqd', p, v_bh,
                        preferred_element_type=jnp.float32)                  # [NH*B, L, DH]
    ctx = jnp.concatenate(
        [ctx_bh[h * B:(h + 1) * B].reshape(BL, DH) for h in range(NH)], axis=-1)  # [BL, H]

    attn = mm(ctx, wmat(W_O_OFF, H)) + vrow(R_BO)                            # [BL, 128]
    x1 = layernorm(x0 + attn[:, 0:H], R_LN_A_G, R_LN_A_B)

    # ---- FFN ----
    hdn = gelu(mm(x1, wmat(W_FF1_OFF, H)) + vrow(R_B1))                      # [BL, 128]
    ff = mm(hdn[:, 0:FF], wmat(W_FF2_OFF, FF)) + vrow(R_B2)
    x2 = layernorm(x1 + ff[:, 0:H], R_LN_F_G, R_LN_F_B)                      # [BL, H]

    # ---- BERT pooler on the CLS rows (single reshape, no per-row gather) ----
    cls = x2.reshape(B, L, H)[:, 0, :]                                       # [B, H]
    pooled = jnp.tanh(mm(cls, wmat(W_P_OFF, H)) + vrow(R_BP))                # [B, 128]

    # ---- num_features_layer: Linear(2,64) as two VPU broadcast FMAs -> ReLU -> Linear(64,32) ----
    nf = nf_ref[...]                                                         # [B, 2]
    h1 = jnp.maximum(nf[:, 0:1] * vrow(R_WN1_0)
                     + nf[:, 1:2] * vrow(R_WN1_1) + vrow(R_BN1), 0.0)        # [B, 128]
    numf = mm(h1[:, 0:NUM_HID], wmat(W_N2_OFF, NUM_HID)) + vrow(R_BN2)       # [B, 128]

    # ---- classifier on torch.cat((text_features, num_features), dim=1) ----
    comb = jnp.concatenate([pooled[:, 0:H], numf[:, 0:NUM_OUT]], axis=-1)    # [B, H+32]
    ch = jnp.maximum(mm(comb, wmat(W_C1_OFF, H + NUM_OUT)) + vrow(R_BC1), 0.0)
    # lane-dense store: logits live in lanes 0:N_CLASSES, wrapper crops
    out_ref[...] = mm(ch[:, 0:CLS_HID], wmat(W_C2_OFF, CLS_HID)) + vrow(R_BC2)


# ------------------------------ wrapper --------------------------------------
@jax.jit
def review_model_forward(input_ids, attention_mask, numerical_features, packed):
    smem = pl.BlockSpec(memory_space=pltpu.MemorySpace.SMEM)
    vmem = pl.BlockSpec(memory_space=pltpu.MemorySpace.VMEM)
    # TODO(synk): if this forward is called repeatedly, lift the micro-batch into a pallas
    #             grid with constant index_maps for emb/w/v slabs (weights stay VMEM-resident)
    #             and only then mark the batch axis "parallel" so v7x's second TC is used.
    logits = pl.pallas_call(
        review_kernel,
        out_shape=jax.ShapeDtypeStruct((B, 128), jnp.float32),
        in_specs=[smem, vmem, vmem, vmem, vmem, vmem],
        out_specs=vmem,
        compiler_params=pltpu.CompilerParams(vmem_limit_bytes=4 * 1024 * 1024),
    )(input_ids.astype(jnp.int32),
      attention_mask.astype(jnp.float32),
      numerical_features.astype(jnp.float32),
      packed["emb_slab"], packed["w_slab"], packed["v_slab"])
    return logits[:, :N_CLASSES]


# --------------------------- parameter init / packing -------------------------
def init_params(key):
    names_shapes = {
        "word_emb": (VOCAB, H), "pos_emb": (L, H), "type_emb": (2, H),
        "wq": (H, H), "wk": (H, H), "wv": (H, H), "wo": (H, H),
        "w1": (H, FF), "w2": (FF, H),
        "wp": (H, H),
        "wn1": (2, NUM_HID), "wn2": (NUM_HID, NUM_OUT),
        "wc1t": (H, CLS_HID), "wc1n": (NUM_OUT, CLS_HID), "wc2": (CLS_HID, N_CLASSES),
    }
    params = {}
    keys = jax.random.split(key, len(names_shapes))
    for (name, shape), k in zip(names_shapes.items(), keys):
        params[name] = (0.02 * jax.random.normal(k, shape)).astype(jnp.float32)
    zeros = lambda n: jnp.zeros((1, n), jnp.float32)
    ones = lambda n: jnp.ones((1, n), jnp.float32)
    params.update({
        "bq": zeros(H), "bk": zeros(H), "bv": zeros(H), "bo": zeros(H),
        "b1": zeros(FF), "b2": zeros(H), "bp": zeros(H),
        "bn1": zeros(NUM_HID), "bn2": zeros(NUM_OUT),
        "bc1": zeros(CLS_HID), "bc2": zeros(N_CLASSES),
        "ln_e_g": ones(H), "ln_e_b": zeros(H),
        "ln_a_g": ones(H), "ln_a_b": zeros(H),
        "ln_f_g": ones(H), "ln_f_b": zeros(H),
    })
    return params


def pack_params(p):
    """Pack all parameters into 3 slabs (done once, offline)."""
    # MXU weight slab
    w_slab = np.zeros(W_SLAB_SHAPE, np.float32)

    def put_w(off, w):
        w = np.asarray(w, np.float32)
        w_slab[off:off + w.shape[0], :w.shape[1]] = w

    put_w(W_QKV_OFF, np.concatenate([p["wq"], p["wk"], p["wv"]], axis=1))    # [32, 96]
    put_w(W_O_OFF, p["wo"])
    put_w(W_FF1_OFF, p["w1"])
    put_w(W_FF2_OFF, p["w2"])
    put_w(W_P_OFF, p["wp"])
    put_w(W_N2_OFF, p["wn2"])
    put_w(W_C1_OFF, np.concatenate([p["wc1t"], p["wc1n"]], axis=0))          # [64, 64]
    put_w(W_C2_OFF, p["wc2"])

    # vector slab (biases, LN params, the 2-row numeric-MLP weight for VPU FMAs)
    v_slab = np.zeros(V_SLAB_SHAPE, np.float32)

    def put_v(r, v):
        v = np.asarray(v, np.float32).reshape(-1)
        v_slab[r, :v.shape[0]] = v

    put_v(R_LN_E_G, p["ln_e_g"]); put_v(R_LN_E_B, p["ln_e_b"])
    put_v(R_BQKV, np.concatenate([np.asarray(p["bq"]), np.asarray(p["bk"]),
                                  np.asarray(p["bv"])], axis=1))
    put_v(R_BO, p["bo"])
    put_v(R_LN_A_G, p["ln_a_g"]); put_v(R_LN_A_B, p["ln_a_b"])
    put_v(R_B1, p["b1"]); put_v(R_B2, p["b2"])
    put_v(R_LN_F_G, p["ln_f_g"]); put_v(R_LN_F_B, p["ln_f_b"])
    put_v(R_BP, p["bp"])
    put_v(R_WN1_0, np.asarray(p["wn1"])[0]); put_v(R_WN1_1, np.asarray(p["wn1"])[1])
    put_v(R_BN1, p["bn1"]); put_v(R_BN2, p["bn2"])
    put_v(R_BC1, p["bc1"]); put_v(R_BC2, p["bc2"])

    # embedding slab: word rows + (position + token-type-0) rows, pre-summed
    emb_slab = np.zeros(EMB_SLAB_SHAPE, np.float32)
    emb_slab[:VOCAB, :] = np.asarray(p["word_emb"], np.float32)
    emb_slab[EMB_POS_OFF:EMB_POS_OFF + L, :] = (
        np.asarray(p["pos_emb"], np.float32)[:L]
        + np.asarray(p["type_emb"], np.float32)[0][None, :])

    return {"emb_slab": jnp.asarray(emb_slab),
            "w_slab": jnp.asarray(w_slab),
            "v_slab": jnp.asarray(v_slab)}


# ------------------------- pure-JAX reference ---------------------------------
def reference_forward(input_ids, attention_mask, nf, p):
    ln = lambda x, g, b: (x - x.mean(-1, keepdims=True)) / jnp.sqrt(
        x.var(-1, keepdims=True) + 1e-12) * g + b
    gelu = lambda x: 0.5 * x * (1.0 + jnp.tanh(0.7978845608028654 * (x + 0.044715 * x ** 3)))
    emb = (p["word_emb"][input_ids] + p["pos_emb"][jnp.arange(L)][None]
           + p["type_emb"][0][None, None])
    x = ln(emb, p["ln_e_g"], p["ln_e_b"])
    q = x @ p["wq"] + p["bq"]; k = x @ p["wk"] + p["bk"]; v = x @ p["wv"] + p["bv"]
    mask = ((1.0 - attention_mask.astype(jnp.float32)) * -10000.0)[:, None, :]
    outs = []
    for hd in range(NH):
        sl = slice(hd * DH, (hd + 1) * DH)
        s = jnp.einsum('bqd,bkd->bqk', q[..., sl], k[..., sl]) / math.sqrt(DH) + mask
        pr = jax.nn.softmax(s, axis=-1)
        outs.append(jnp.einsum('bqk,bkd->bqd', pr, v[..., sl]) @ p["wo"][sl, :])
    x1 = ln(x + sum(outs) + p["bo"], p["ln_a_g"], p["ln_a_b"])
    ff = gelu(x1 @ p["w1"] + p["b1"]) @ p["w2"] + p["b2"]
    x2 = ln(x1 + ff, p["ln_f_g"], p["ln_f_b"])
    pooled = jnp.tanh(x2[:, 0, :] @ p["wp"] + p["bp"])
    numf = jnp.maximum(nf @ p["wn1"] + p["bn1"], 0.0) @ p["wn2"] + p["bn2"]
    ch = jnp.maximum(pooled @ p["wc1t"] + numf @ p["wc1n"] + p["bc1"], 0.0)
    return ch @ p["wc2"] + p["bc2"]


# --------------------------------- main ----------------------------------------
if __name__ == "__main__":
    # make the XLA reference dots full-precision f32 so the comparison is meaningful
    jax.config.update("jax_default_matmul_precision", "highest")

    key = jax.random.PRNGKey(0)
    k_par, k_ids, k_nf = jax.random.split(key, 3)

    params = init_params(k_par)
    packed = pack_params(params)

    input_ids = jax.random.randint(k_ids, (B, L), 0, VOCAB, dtype=jnp.int32)
    attention_mask = jnp.array([[1] * L, [1] * (L - 2) + [0, 0]], dtype=jnp.int32)
    numerical_features = jax.random.normal(k_nf, (B, 2), dtype=jnp.float32)

    out = review_model_forward(input_ids, attention_mask, numerical_features, packed)
    out = jax.block_until_ready(out)
    assert out.shape == (B, N_CLASSES) and out.dtype == jnp.float32

    ref = reference_forward(input_ids, attention_mask, numerical_features, params)
    np.testing.assert_allclose(np.asarray(out), np.asarray(ref), atol=1e-3, rtol=1e-3)

    print("KERNEL_OK")
</pallas_src>

<mosaic_0001>
module attributes {stable_mosaic.version = 11 : i64} {
  func.func @review_kernel(%arg0: memref<2x8xi32, #tpu.memory_space<smem>>, %arg1: memref<2x8xf32, #tpu.memory_space<vmem>>, %arg2: memref<2x2xf32, #tpu.memory_space<vmem>>, %arg3: memref<112x32xf32, #tpu.memory_space<vmem>>, %arg4: memref<384x128xf32, #tpu.memory_space<vmem>>, %arg5: memref<24x128xf32, #tpu.memory_space<vmem>>, %arg6: memref<2x128xf32, #tpu.memory_space<vmem>>) attributes {dimension_semantics = [], scalar_prefetch = 0 : i64, scratch_operands = 0 : i64, tpu.core_type = #tpu.core_type<tc>} {
    %c0 = arith.constant 0 : index
    %c0_0 = arith.constant 0 : index
    %0 = memref.load %arg0[%c0, %c0_0] : memref<2x8xi32, #tpu.memory_space<smem>>
    %1 = arith.index_cast %0 : i32 to index
    %c0_1 = arith.constant 0 : index
    %2 = vector.load %arg3[%1, %c0_1] : memref<112x32xf32, #tpu.memory_space<vmem>>, vector<1x32xf32>
    %c100 = arith.constant 100 : index
    %c0_2 = arith.constant 0 : index
    %3 = vector.load %arg3[%c100, %c0_2] : memref<112x32xf32, #tpu.memory_space<vmem>>, vector<1x32xf32>
    %4 = arith.addf %2, %3 : vector<1x32xf32>
    %c0_3 = arith.constant 0 : index
    %c1 = arith.constant 1 : index
    %5 = memref.load %arg0[%c0_3, %c1] : memref<2x8xi32, #tpu.memory_space<smem>>
    %6 = arith.index_cast %5 : i32 to index
    %c0_4 = arith.constant 0 : index
    %7 = vector.load %arg3[%6, %c0_4] : memref<112x32xf32, #tpu.memory_space<vmem>>, vector<1x32xf32>
    %c101 = arith.constant 101 : index
    %c0_5 = arith.constant 0 : index
    %8 = vector.load %arg3[%c101, %c0_5] : memref<112x32xf32, #tpu.memory_space<vmem>>, vector<1x32xf32>
    %9 = arith.addf %7, %8 : vector<1x32xf32>
    %c0_6 = arith.constant 0 : index
    %c2 = arith.constant 2 : index
    %10 = memref.load %arg0[%c0_6, %c2] : memref<2x8xi32, #tpu.memory_space<smem>>
    %11 = arith.index_cast %10 : i32 to index
    %c0_7 = arith.constant 0 : index
    %12 = vector.load %arg3[%11, %c0_7] : memref<112x32xf32, #tpu.memory_space<vmem>>, vector<1x32xf32>
    %c102 = arith.constant 102 : index
    %c0_8 = arith.constant 0 : index
    %13 = vector.load %arg3[%c102, %c0_8] : memref<112x32xf32, #tpu.memory_space<vmem>>, vector<1x32xf32>
    %14 = arith.addf %12, %13 : vector<1x32xf32>
    %c0_9 = arith.constant 0 : index
    %c3 = arith.constant 3 : index
    %15 = memref.load %arg0[%c0_9, %c3] : memref<2x8xi32, #tpu.memory_space<smem>>
    %16 = arith.index_cast %15 : i32 to index
    %c0_10 = arith.constant 0 : index
    %17 = vector.load %arg3[%16, %c0_10] : memref<112x32xf32, #tpu.memory_space<vmem>>, vector<1x32xf32>
    %c103 = arith.constant 103 : index
    %c0_11 = arith.constant 0 : index
    %18 = vector.load %arg3[%c103, %c0_11] : memref<112x32xf32, #tpu.memory_space<vmem>>, vector<1x32xf32>
    %19 = arith.addf %17, %18 : vector<1x32xf32>
    %c0_12 = arith.constant 0 : index
    %c4 = arith.constant 4 : index
    %20 = memref.load %arg0[%c0_12, %c4] : memref<2x8xi32, #tpu.memory_space<smem>>
    %21 = arith.index_cast %20 : i32 to index
    %c0_13 = arith.constant 0 : index
    %22 = vector.load %arg3[%21, %c0_13] : memref<112x32xf32, #tpu.memory_space<vmem>>, vector<1x32xf32>
    %c104 = arith.constant 104 : index
    %c0_14 = arith.constant 0 : index
    %23 = vector.load %arg3[%c104, %c0_14] : memref<112x32xf32, #tpu.memory_space<vmem>>, vector<1x32xf32>
    %24 = arith.addf %22, %23 : vector<1x32xf32>
    %c0_15 = arith.constant 0 : index
    %c5 = arith.constant 5 : index
    %25 = memref.load %arg0[%c0_15, %c5] : memref<2x8xi32, #tpu.memory_space<smem>>
    %26 = arith.index_cast %25 : i32 to index
    %c0_16 = arith.constant 0 : index
    %27 = vector.load %arg3[%26, %c0_16] : memref<112x32xf32, #tpu.memory_space<vmem>>, vector<1x32xf32>
    %c105 = arith.constant 105 : index
    %c0_17 = arith.constant 0 : index
    %28 = vector.load %arg3[%c105, %c0_17] : memref<112x32xf32, #tpu.memory_space<vmem>>, vector<1x32xf32>
    %29 = arith.addf %27, %28 : vector<1x32xf32>
    %c0_18 = arith.constant 0 : index
    %c6 = arith.constant 6 : index
    %30 = memref.load %arg0[%c0_18, %c6] : memref<2x8xi32, #tpu.memory_space<smem>>
    %31 = arith.index_cast %30 : i32 to index
    %c0_19 = arith.constant 0 : index
    %32 = vector.load %arg3[%31, %c0_19] : memref<112x32xf32, #tpu.memory_space<vmem>>, vector<1x32xf32>
    %c106 = arith.constant 106 : index
    %c0_20 = arith.constant 0 : index
    %33 = vector.load %arg3[%c106, %c0_20] : memref<112x32xf32, #tpu.memory_space<vmem>>, vector<1x32xf32>
    %34 = arith.addf %32, %33 : vector<1x32xf32>
    %c0_21 = arith.constant 0 : index
    %c7 = arith.constant 7 : index
    %35 = memref.load %arg0[%c0_21, %c7] : memref<2x8xi32, #tpu.memory_space<smem>>
    %36 = arith.index_cast %35 : i32 to index
    %c0_22 = arith.constant 0 : index
    %37 = vector.load %arg3[%36, %c0_22] : memref<112x32xf32, #tpu.memory_space<vmem>>, vector<1x32xf32>
    %c107 = arith.constant 107 : index
    %c0_23 = arith.constant 0 : index
    %38 = vector.load %arg3[%c107, %c0_23] : memref<112x32xf32, #tpu.memory_space<vmem>>, vector<1x32xf32>
    %39 = arith.addf %37, %38 : vector<1x32xf32>
    %c1_24 = arith.constant 1 : index
    %c0_25 = arith.constant 0 : index
    %40 = memref.load %arg0[%c1_24, %c0_25] : memref<2x8xi32, #tpu.memory_space<smem>>
    %41 = arith.index_cast %40 : i32 to index
    %c0_26 = arith.constant 0 : index
    %42 = vector.load %arg3[%41, %c0_26] : memref<112x32xf32, #tpu.memory_space<vmem>>, vector<1x32xf32>
    %c100_27 = arith.constant 100 : index
    %c0_28 = arith.constant 0 : index
    %43 = vector.load %arg3[%c100_27, %c0_28] : memref<112x32xf32, #tpu.memory_space<vmem>>, vector<1x32xf32>
    %44 = arith.addf %42, %43 : vector<1x32xf32>
    %c1_29 = arith.constant 1 : index
    %c1_30 = arith.constant 1 : index
    %45 = memref.load %arg0[%c1_29, %c1_30] : memref<2x8xi32, #tpu.memory_space<smem>>
    %46 = arith.index_cast %45 : i32 to index
    %c0_31 = arith.constant 0 : index
    %47 = vector.load %arg3[%46, %c0_31] : memref<112x32xf32, #tpu.memory_space<vmem>>, vector<1x32xf32>
    %c101_32 = arith.constant 101 : index
    %c0_33 = arith.constant 0 : index
    %48 = vector.load %arg3[%c101_32, %c0_33] : memref<112x32xf32, #tpu.memory_space<vmem>>, vector<1x32xf32>
    %49 = arith.addf %47, %48 : vector<1x32xf32>
    %c1_34 = arith.constant 1 : index
    %c2_35 = arith.constant 2 : index
    %50 = memref.load %arg0[%c1_34, %c2_35] : memref<2x8xi32, #tpu.memory_space<smem>>
    %51 = arith.index_cast %50 : i32 to index
    %c0_36 = arith.constant 0 : index
    %52 = vector.load %arg3[%51, %c0_36] : memref<112x32xf32, #tpu.memory_space<vmem>>, vector<1x32xf32>
    %c102_37 = arith.constant 102 : index
    %c0_38 = arith.constant 0 : index
    %53 = vector.load %arg3[%c102_37, %c0_38] : memref<112x32xf32, #tpu.memory_space<vmem>>, vector<1x32xf32>
    %54 = arith.addf %52, %53 : vector<1x32xf32>
    %c1_39 = arith.constant 1 : index
    %c3_40 = arith.constant 3 : index
    %55 = memref.load %arg0[%c1_39, %c3_40] : memref<2x8xi32, #tpu.memory_space<smem>>
    %56 = arith.index_cast %55 : i32 to index
    %c0_41 = arith.constant 0 : index
    %57 = vector.load %arg3[%56, %c0_41] : memref<112x32xf32, #tpu.memory_space<vmem>>, vector<1x32xf32>
    %c103_42 = arith.constant 103 : index
    %c0_43 = arith.constant 0 : index
    %58 = vector.load %arg3[%c103_42, %c0_43] : memref<112x32xf32, #tpu.memory_space<vmem>>, vector<1x32xf32>
    %59 = arith.addf %57, %58 : vector<1x32xf32>
    %c1_44 = arith.constant 1 : index
    %c4_45 = arith.constant 4 : index
    %60 = memref.load %arg0[%c1_44, %c4_45] : memref<2x8xi32, #tpu.memory_space<smem>>
    %61 = arith.index_cast %60 : i32 to index
    %c0_46 = arith.constant 0 : index
    %62 = vector.load %arg3[%61, %c0_46] : memref<112x32xf32, #tpu.memory_space<vmem>>, vector<1x32xf32>
    %c104_47 = arith.constant 104 : index
    %c0_48 = arith.constant 0 : index
    %63 = vector.load %arg3[%c104_47, %c0_48] : memref<112x32xf32, #tpu.memory_space<vmem>>, vector<1x32xf32>
    %64 = arith.addf %62, %63 : vector<1x32xf32>
    %c1_49 = arith.constant 1 : index
    %c5_50 = arith.constant 5 : index
    %65 = memref.load %arg0[%c1_49, %c5_50] : memref<2x8xi32, #tpu.memory_space<smem>>
    %66 = arith.index_cast %65 : i32 to index
    %c0_51 = arith.constant 0 : index
    %67 = vector.load %arg3[%66, %c0_51] : memref<112x32xf32, #tpu.memory_space<vmem>>, vector<1x32xf32>
    %c105_52 = arith.constant 105 : index
    %c0_53 = arith.constant 0 : index
    %68 = vector.load %arg3[%c105_52, %c0_53] : memref<112x32xf32, #tpu.memory_space<vmem>>, vector<1x32xf32>
    %69 = arith.addf %67, %68 : vector<1x32xf32>
    %c1_54 = arith.constant 1 : index
    %c6_55 = arith.constant 6 : index
    %70 = memref.load %arg0[%c1_54, %c6_55] : memref<2x8xi32, #tpu.memory_space<smem>>
    %71 = arith.index_cast %70 : i32 to index
    %c0_56 = arith.constant 0 : index
    %72 = vector.load %arg3[%71, %c0_56] : memref<112x32xf32, #tpu.memory_space<vmem>>, vector<1x32xf32>
    %c106_57 = arith.constant 106 : index
    %c0_58 = arith.constant 0 : index
    %73 = vector.load %arg3[%c106_57, %c0_58] : memref<112x32xf32, #tpu.memory_space<vmem>>, vector<1x32xf32>
    %74 = arith.addf %72, %73 : vector<1x32xf32>
    %c1_59 = arith.constant 1 : index
    %c7_60 = arith.constant 7 : index
    %75 = memref.load %arg0[%c1_59, %c7_60] : memref<2x8xi32, #tpu.memory_space<smem>>
    %76 = arith.index_cast %75 : i32 to index
    %c0_61 = arith.constant 0 : index
    %77 = vector.load %arg3[%76, %c0_61] : memref<112x32xf32, #tpu.memory_space<vmem>>, vector<1x32xf32>
    %c107_62 = arith.constant 107 : index
    %c0_63 = arith.constant 0 : index
    %78 = vector.load %arg3[%c107_62, %c0_63] : memref<112x32xf32, #tpu.memory_space<vmem>>, vector<1x32xf32>
    %79 = arith.addf %77, %78 : vector<1x32xf32>
    %80 = tpu.concatenate %4, %9, %14, %19, %24, %29, %34, %39, %44, %49, %54, %59, %64, %69, %74, %79 in 0 : vector<1x32xf32>, vector<1x32xf32>, vector<1x32xf32>, vector<1x32xf32>, vector<1x32xf32>, vector<1x32xf32>, vector<1x32xf32>, vector<1x32xf32>, vector<1x32xf32>, vector<1x32xf32>, vector<1x32xf32>, vector<1x32xf32>, vector<1x32xf32>, vector<1x32xf32>, vector<1x32xf32>, vector<1x32xf32> -> vector<16x32xf32>
    %cst = arith.constant dense<0.000000e+00> : vector<16xf32>
    %81 = vector.multi_reduction <add>, %80, %cst [1] : vector<16x32xf32> to vector<16xf32>
    %82 = vector.shape_cast %81 : vector<16xf32> to vector<16x1xf32>
    %cst_64 = arith.constant 3.200000e+01 : f32
    %83 = vector.broadcast %cst_64 : f32 to vector<16x1xf32>
    %84 = arith.divf %82, %83 : vector<16x1xf32>
    %85 = vector.broadcast %84 : vector<16x1xf32> to vector<16x32xf32>
    %86 = arith.subf %80, %85 : vector<16x32xf32>
    %87 = arith.mulf %86, %86 : vector<16x32xf32>
    %cst_65 = arith.constant dense<0.000000e+00> : vector<16xf32>
    %88 = vector.multi_reduction <add>, %87, %cst_65 [1] : vector<16x32xf32> to vector<16xf32>
    %89 = vector.shape_cast %88 : vector<16xf32> to vector<16x1xf32>
    %cst_66 = arith.constant 3.200000e+01 : f32
    %90 = vector.broadcast %cst_66 : f32 to vector<16x1xf32>
    %91 = arith.divf %89, %90 : vector<16x1xf32>
    %92 = vector.broadcast %84 : vector<16x1xf32> to vector<16x32xf32>
    %93 = arith.subf %80, %92 : vector<16x32xf32>
    %cst_67 = arith.constant 9.99999996E-13 : f32
    %94 = vector.broadcast %cst_67 : f32 to vector<16x1xf32>
    %95 = arith.addf %91, %94 : vector<16x1xf32>
    %96 = math.rsqrt %95 : vector<16x1xf32>
    %97 = vector.broadcast %96 : vector<16x1xf32> to vector<16x32xf32>
    %98 = arith.mulf %93, %97 : vector<16x32xf32>
    %c0_68 = arith.constant 0 : index
    %c0_69 = arith.constant 0 : index
    %99 = vector.load %arg5[%c0_68, %c0_69] : memref<24x128xf32, #tpu.memory_space<vmem>>, vector<1x32xf32>
    %100 = vector.broadcast %99 : vector<1x32xf32> to vector<16x32xf32>
    %101 = arith.mulf %98, %100 : vector<16x32xf32>
    %c1_70 = arith.constant 1 : index
    %c0_71 = arith.constant 0 : index
    %102 = vector.load %arg5[%c1_70, %c0_71] : memref<24x128xf32, #tpu.memory_space<vmem>>, vector<1x32xf32>
    %103 = vector.broadcast %102 : vector<1x32xf32> to vector<16x32xf32>
    %104 = arith.addf %101, %103 : vector<16x32xf32>
    %c0_72 = arith.constant 0 : index
    %c0_73 = arith.constant 0 : index
    %105 = vector.load %arg4[%c0_72, %c0_73] : memref<384x128xf32, #tpu.memory_space<vmem>>, vector<32x128xf32>
    %cst_74 = arith.constant dense<0.000000e+00> : vector<16x128xf32>
    %106 = tpu.matmul %104, %105, %cst_74 {dimension_numbers = #tpu.dot_dimension_numbers<[1], [0], [0], [1], [0, 0, 1, 1], [], []>, precision = #tpu.contract_precision<fp32>} : vector<16x32xf32>, vector<32x128xf32>, vector<16x128xf32> -> vector<16x128xf32>
    %c2_75 = arith.constant 2 : index
    %c0_76 = arith.constant 0 : index
    %107 = vector.load %arg5[%c2_75, %c0_76] : memref<24x128xf32, #tpu.memory_space<vmem>>, vector<1x128xf32>
    %108 = vector.broadcast %107 : vector<1x128xf32> to vector<16x128xf32>
    %109 = arith.addf %106, %108 : vector<16x128xf32>
    %110 = vector.extract_strided_slice %109 {offsets = [0, 0], sizes = [16, 16], strides = [1, 1]} : vector<16x128xf32> to vector<16x16xf32>
    %111 = vector.shape_cast %110 : vector<16x16xf32> to vector<2x8x16xf32>
    %112 = vector.extract_strided_slice %109 {offsets = [0, 16], sizes = [16, 16], strides = [1, 1]} : vector<16x128xf32> to vector<16x16xf32>
    %113 = vector.shape_cast %112 : vector<16x16xf32> to vector<2x8x16xf32>
    %114 = tpu.concatenate %111, %113 in 0 : vector<2x8x16xf32>, vector<2x8x16xf32> -> vector<4x8x16xf32>
    %115 = vector.extract_strided_slice %109 {offsets = [0, 32], sizes = [16, 16], strides = [1, 1]} : vector<16x128xf32> to vector<16x16xf32>
    %116 = vector.shape_cast %115 : vector<16x16xf32> to vector<2x8x16xf32>
    %117 = vector.extract_strided_slice %109 {offsets = [0, 48], sizes = [16, 16], strides = [1, 1]} : vector<16x128xf32> to vector<16x16xf32>
    %118 = vector.shape_cast %117 : vector<16x16xf32> to vector<2x8x16xf32>
    %119 = tpu.concatenate %116, %118 in 0 : vector<2x8x16xf32>, vector<2x8x16xf32> -> vector<4x8x16xf32>
    %120 = vector.extract_strided_slice %109 {offsets = [0, 64], sizes = [16, 16], strides = [1, 1]} : vector<16x128xf32> to vector<16x16xf32>
    %121 = vector.shape_cast %120 : vector<16x16xf32> to vector<2x8x16xf32>
    %122 = vector.extract_strided_slice %109 {offsets = [0, 80], sizes = [16, 16], strides = [1, 1]} : vector<16x128xf32> to vector<16x16xf32>
    %123 = vector.shape_cast %122 : vector<16x16xf32> to vector<2x8x16xf32>
    %124 = tpu.concatenate %121, %123 in 0 : vector<2x8x16xf32>, vector<2x8x16xf32> -> vector<4x8x16xf32>
    %c0_77 = arith.constant 0 : index
    %c0_78 = arith.constant 0 : index
    %125 = vector.load %arg1[%c0_77, %c0_78] : memref<2x8xf32, #tpu.memory_space<vmem>>, vector<2x8xf32>
    %cst_79 = arith.constant 1.000000e+00 : f32
    %126 = vector.broadcast %cst_79 : f32 to vector<2x8xf32>
    %127 = arith.subf %126, %125 : vector<2x8xf32>
    %cst_80 = arith.constant -1.000000e+04 : f32
    %128 = vector.broadcast %cst_80 : f32 to vector<2x8xf32>
    %129 = arith.mulf %127, %128 : vector<2x8xf32>
    %130 = vector.shape_cast %129 : vector<2x8xf32> to vector<2x1x8xf32>
    %131 = tpu.concatenate %130, %130 in 0 : vector<2x1x8xf32>, vector<2x1x8xf32> -> vector<4x1x8xf32>
    "tpu.trace_start"() <{level = 10 : i32, message = "bqd,bkd->bqk"}> : () -> ()
    %cst_81 = arith.constant dense<0.000000e+00> : vector<4x8x8xf32>
    %132 = tpu.matmul %114, %119, %cst_81 {dimension_numbers = #tpu.dot_dimension_numbers<[2], [2], [1], [1], [0, 0, 0, 1, 1, 1], [0], [0]>, precision = #tpu.contract_precision<fp32>} : vector<4x8x16xf32>, vector<4x8x16xf32>, vector<4x8x8xf32> -> vector<4x8x8xf32>
    "tpu.trace_stop"() : () -> ()
    %cst_82 = arith.constant 2.500000e-01 : f32
    %133 = vector.broadcast %cst_82 : f32 to vector<4x8x8xf32>
    %134 = arith.mulf %132, %133 : vector<4x8x8xf32>
    %135 = vector.broadcast %131 : vector<4x1x8xf32> to vector<4x8x8xf32>
    %136 = arith.addf %134, %135 : vector<4x8x8xf32>
    %cst_83 = arith.constant dense<0xFF800000> : vector<4x8xf32>
    %137 = vector.multi_reduction <maximumf>, %136, %cst_83 [2] : vector<4x8x8xf32> to vector<4x8xf32>
    %138 = vector.shape_cast %137 : vector<4x8xf32> to vector<4x8x1xf32>
    %139 = vector.broadcast %138 : vector<4x8x1xf32> to vector<4x8x8xf32>
    %140 = arith.subf %136, %139 : vector<4x8x8xf32>
    %141 = math.exp %140 : vector<4x8x8xf32>
    %cst_84 = arith.constant dense<0.000000e+00> : vector<4x8xf32>
    %142 = vector.multi_reduction <add>, %141, %cst_84 [2] : vector<4x8x8xf32> to vector<4x8xf32>
    %143 = vector.shape_cast %142 : vector<4x8xf32> to vector<4x8x1xf32>
    %144 = tpu.reciprocal %143 : vector<4x8x1xf32> -> vector<4x8x1xf32>
    %145 = vector.broadcast %144 : vector<4x8x1xf32> to vector<4x8x8xf32>
    %146 = arith.mulf %141, %145 : vector<4x8x8xf32>
    "tpu.trace_start"() <{level = 10 : i32, message = "bqk,bkd->bqd"}> : () -> ()
    %cst_85 = arith.constant dense<0.000000e+00> : vector<4x8x16xf32>
    %147 = tpu.matmul %146, %124, %cst_85 {dimension_numbers = #tpu.dot_dimension_numbers<[2], [1], [1], [2], [0, 0, 0, 1, 1, 2], [0], [0]>, precision = #tpu.contract_precision<fp32>} : vector<4x8x8xf32>, vector<4x8x16xf32>, vector<4x8x16xf32> -> vector<4x8x16xf32>
    "tpu.trace_stop"() : () -> ()
    %148 = vector.extract_strided_slice %147 {offsets = [0, 0, 0], sizes = [2, 8, 16], strides = [1, 1, 1]} : vector<4x8x16xf32> to vector<2x8x16xf32>
    %149 = vector.shape_cast %148 : vector<2x8x16xf32> to vector<16x16xf32>
    %150 = vector.extract_strided_slice %147 {offsets = [2, 0, 0], sizes = [2, 8, 16], strides = [1, 1, 1]} : vector<4x8x16xf32> to vector<2x8x16xf32>
    %151 = vector.shape_cast %150 : vector<2x8x16xf32> to vector<16x16xf32>
    %152 = tpu.concatenate %149, %151 in 1 : vector<16x16xf32>, vector<16x16xf32> -> vector<16x32xf32>
    %c32 = arith.constant 32 : index
    %c0_86 = arith.constant 0 : index
    %153 = vector.load %arg4[%c32, %c0_86] : memref<384x128xf32, #tpu.memory_space<vmem>>, vector<32x128xf32>
    %cst_87 = arith.constant dense<0.000000e+00> : vector<16x128xf32>
    %154 = tpu.matmul %152, %153, %cst_87 {dimension_numbers = #tpu.dot_dimension_numbers<[1], [0], [0], [1], [0, 0, 1, 1], [], []>, precision = #tpu.contract_precision<fp32>} : vector<16x32xf32>, vector<32x128xf32>, vector<16x128xf32> -> vector<16x128xf32>
    %c3_88 = arith.constant 3 : index
    %c0_89 = arith.constant 0 : index
    %155 = vector.load %arg5[%c3_88, %c0_89] : memref<24x128xf32, #tpu.memory_space<vmem>>, vector<1x128xf32>
    %156 = vector.broadcast %155 : vector<1x128xf32> to vector<16x128xf32>
    %157 = arith.addf %154, %156 : vector<16x128xf32>
    %158 = vector.extract_strided_slice %157 {offsets = [0, 0], sizes = [16, 32], strides = [1, 1]} : vector<16x128xf32> to vector<16x32xf32>
    %159 = arith.addf %104, %158 : vector<16x32xf32>
    %cst_90 = arith.constant dense<0.000000e+00> : vector<16xf32>
    %160 = vector.multi_reduction <add>, %159, %cst_90 [1] : vector<16x32xf32> to vector<16xf32>
    %161 = vector.shape_cast %160 : vector<16xf32> to vector<16x1xf32>
    %cst_91 = arith.constant 3.200000e+01 : f32
    %162 = vector.broadcast %cst_91 : f32 to vector<16x1xf32>
    %163 = arith.divf %161, %162 : vector<16x1xf32>
    %164 = vector.broadcast %163 : vector<16x1xf32> to vector<16x32xf32>
    %165 = arith.subf %159, %164 : vector<16x32xf32>
    %166 = arith.mulf %165, %165 : vector<16x32xf32>
    %cst_92 = arith.constant dense<0.000000e+00> : vector<16xf32>
    %167 = vector.multi_reduction <add>, %166, %cst_92 [1] : vector<16x32xf32> to vector<16xf32>
    %168 = vector.shape_cast %167 : vector<16xf32> to vector<16x1xf32>
    %cst_93 = arith.constant 3.200000e+01 : f32
    %169 = vector.broadcast %cst_93 : f32 to vector<16x1xf32>
    %170 = arith.divf %168, %169 : vector<16x1xf32>
    %171 = vector.broadcast %163 : vector<16x1xf32> to vector<16x32xf32>
    %172 = arith.subf %159, %171 : vector<16x32xf32>
    %cst_94 = arith.constant 9.99999996E-13 : f32
    %173 = vector.broadcast %cst_94 : f32 to vector<16x1xf32>
    %174 = arith.addf %170, %173 : vector<16x1xf32>
    %175 = math.rsqrt %174 : vector<16x1xf32>
    %176 = vector.broadcast %175 : vector<16x1xf32> to vector<16x32xf32>
    %177 = arith.mulf %172, %176 : vector<16x32xf32>
    %c4_95 = arith.constant 4 : index
    %c0_96 = arith.constant 0 : index
    %178 = vector.load %arg5[%c4_95, %c0_96] : memref<24x128xf32, #tpu.memory_space<vmem>>, vector<1x32xf32>
    %179 = vector.broadcast %178 : vector<1x32xf32> to vector<16x32xf32>
    %180 = arith.mulf %177, %179 : vector<16x32xf32>
    %c5_97 = arith.constant 5 : index
    %c0_98 = arith.constant 0 : index
    %181 = vector.load %arg5[%c5_97, %c0_98] : memref<24x128xf32, #tpu.memory_space<vmem>>, vector<1x32xf32>
    %182 = vector.broadcast %181 : vector<1x32xf32> to vector<16x32xf32>
    %183 = arith.addf %180, %182 : vector<16x32xf32>
    %c64 = arith.constant 64 : index
    %c0_99 = arith.constant 0 : index
    %184 = vector.load %arg4[%c64, %c0_99] : memref<384x128xf32, #tpu.memory_space<vmem>>, vector<32x128xf32>
    %cst_100 = arith.constant dense<0.000000e+00> : vector<16x128xf32>
    %185 = tpu.matmul %183, %184, %cst_100 {dimension_numbers = #tpu.dot_dimension_numbers<[1], [0], [0], [1], [0, 0, 1, 1], [], []>, precision = #tpu.contract_precision<fp32>} : vector<16x32xf32>, vector<32x128xf32>, vector<16x128xf32> -> vector<16x128xf32>
    %c6_101 = arith.constant 6 : index
    %c0_102 = arith.constant 0 : index
    %186 = vector.load %arg5[%c6_101, %c0_102] : memref<24x128xf32, #tpu.memory_space<vmem>>, vector<1x128xf32>
    %187 = vector.broadcast %186 : vector<1x128xf32> to vector<16x128xf32>
    %188 = arith.addf %185, %187 : vector<16x128xf32>
    %cst_103 = arith.constant 5.000000e-01 : f32
    %189 = vector.broadcast %cst_103 : f32 to vector<16x128xf32>
    %190 = arith.mulf %189, %188 : vector<16x128xf32>
    %cst_104 = arith.constant 4.471500e-02 : f32
    %191 = vector.broadcast %cst_104 : f32 to vector<16x128xf32>
    %192 = arith.mulf %191, %188 : vector<16x128xf32>
    %193 = arith.mulf %192, %188 : vector<16x128xf32>
    %194 = arith.mulf %193, %188 : vector<16x128xf32>
    %195 = arith.addf %188, %194 : vector<16x128xf32>
    %cst_105 = arith.constant 0.797884583 : f32
    %196 = vector.broadcast %cst_105 : f32 to vector<16x128xf32>
    %197 = arith.mulf %196, %195 : vector<16x128xf32>
    %198 = math.tanh %197 : vector<16x128xf32>
    %cst_106 = arith.constant 1.000000e+00 : f32
    %199 = vector.broadcast %cst_106 : f32 to vector<16x128xf32>
    %200 = arith.addf %199, %198 : vector<16x128xf32>
    %201 = arith.mulf %190, %200 : vector<16x128xf32>
    %202 = vector.extract_strided_slice %201 {offsets = [0, 0], sizes = [16, 64], strides = [1, 1]} : vector<16x128xf32> to vector<16x64xf32>
    %c96 = arith.constant 96 : index
    %c0_107 = arith.constant 0 : index
    %203 = vector.load %arg4[%c96, %c0_107] : memref<384x128xf32, #tpu.memory_space<vmem>>, vector<64x128xf32>
    %cst_108 = arith.constant dense<0.000000e+00> : vector<16x128xf32>
    %204 = tpu.matmul %202, %203, %cst_108 {dimension_numbers = #tpu.dot_dimension_numbers<[1], [0], [0], [1], [0, 0, 1, 1], [], []>, precision = #tpu.contract_precision<fp32>} : vector<16x64xf32>, vector<64x128xf32>, vector<16x128xf32> -> vector<16x128xf32>
    %c7_109 = arith.constant 7 : index
    %c0_110 = arith.constant 0 : index
    %205 = vector.load %arg5[%c7_109, %c0_110] : memref<24x128xf32, #tpu.memory_space<vmem>>, vector<1x128xf32>
    %206 = vector.broadcast %205 : vector<1x128xf32> to vector<16x128xf32>
    %207 = arith.addf %204, %206 : vector<16x128xf32>
    %208 = vector.extract_strided_slice %207 {offsets = [0, 0], sizes = [16, 32], strides = [1, 1]} : vector<16x128xf32> to vector<16x32xf32>
    %209 = arith.addf %183, %208 : vector<16x32xf32>
    %cst_111 = arith.constant dense<0.000000e+00> : vector<16xf32>
    %210 = vector.multi_reduction <add>, %209, %cst_111 [1] : vector<16x32xf32> to vector<16xf32>
    %211 = vector.shape_cast %210 : vector<16xf32> to vector<16x1xf32>
    %cst_112 = arith.constant 3.200000e+01 : f32
    %212 = vector.broadcast %cst_112 : f32 to vector<16x1xf32>
    %213 = arith.divf %211, %212 : vector<16x1xf32>
    %214 = vector.broadcast %213 : vector<16x1xf32> to vector<16x32xf32>
    %215 = arith.subf %209, %214 : vector<16x32xf32>
    %216 = arith.mulf %215, %215 : vector<16x32xf32>
    %cst_113 = arith.constant dense<0.000000e+00> : vector<16xf32>
    %217 = vector.multi_reduction <add>, %216, %cst_113 [1] : vector<16x32xf32> to vector<16xf32>
    %218 = vector.shape_cast %217 : vector<16xf32> to vector<16x1xf32>
    %cst_114 = arith.constant 3.200000e+01 : f32
    %219 = vector.broadcast %cst_114 : f32 to vector<16x1xf32>
    %220 = arith.divf %218, %219 : vector<16x1xf32>
    %221 = vector.broadcast %213 : vector<16x1xf32> to vector<16x32xf32>
    %222 = arith.subf %209, %221 : vector<16x32xf32>
    %cst_115 = arith.constant 9.99999996E-13 : f32
    %223 = vector.broadcast %cst_115 : f32 to vector<16x1xf32>
    %224 = arith.addf %220, %223 : vector<16x1xf32>
    %225 = math.rsqrt %224 : vector<16x1xf32>
    %226 = vector.broadcast %225 : vector<16x1xf32> to vector<16x32xf32>
    %227 = arith.mulf %222, %226 : vector<16x32xf32>
    %c8 = arith.constant 8 : index
    %c0_116 = arith.constant 0 : index
    %228 = vector.load %arg5[%c8, %c0_116] : memref<24x128xf32, #tpu.memory_space<vmem>>, vector<1x32xf32>
    %229 = vector.broadcast %228 : vector<1x32xf32> to vector<16x32xf32>
    %230 = arith.mulf %227, %229 : vector<16x32xf32>
    %c9 = arith.constant 9 : index
    %c0_117 = arith.constant 0 : index
    %231 = vector.load %arg5[%c9, %c0_117] : memref<24x128xf32, #tpu.memory_space<vmem>>, vector<1x32xf32>
    %232 = vector.broadcast %231 : vector<1x32xf32> to vector<16x32xf32>
    %233 = arith.addf %230, %232 : vector<16x32xf32>
    %234 = vector.shape_cast %233 : vector<16x32xf32> to vector<2x8x32xf32>
    %235 = vector.extract_strided_slice %234 {offsets = [0, 0, 0], sizes = [2, 1, 32], strides = [1, 1, 1]} : vector<2x8x32xf32> to vector<2x1x32xf32>
    %236 = vector.shape_cast %235 : vector<2x1x32xf32> to vector<2x32xf32>
    %c160 = arith.constant 160 : index
    %c0_118 = arith.constant 0 : index
    %237 = vector.load %arg4[%c160, %c0_118] : memref<384x128xf32, #tpu.memory_space<vmem>>, vector<32x128xf32>
    %cst_119 = arith.constant dense<0.000000e+00> : vector<2x128xf32>
    %238 = tpu.matmul %236, %237, %cst_119 {dimension_numbers = #tpu.dot_dimension_numbers<[1], [0], [0], [1], [0, 0, 1, 1], [], []>, precision = #tpu.contract_precision<fp32>} : vector<2x32xf32>, vector<32x128xf32>, vector<2x128xf32> -> vector<2x128xf32>
    %c10 = arith.constant 10 : index
    %c0_120 = arith.constant 0 : index
    %239 = vector.load %arg5[%c10, %c0_120] : memref<24x128xf32, #tpu.memory_space<vmem>>, vector<1x128xf32>
    %240 = vector.broadcast %239 : vector<1x128xf32> to vector<2x128xf32>
    %241 = arith.addf %238, %240 : vector<2x128xf32>
    %242 = math.tanh %241 : vector<2x128xf32>
    %c0_121 = arith.constant 0 : index
    %c0_122 = arith.constant 0 : index
    %243 = vector.load %arg2[%c0_121, %c0_122] : memref<2x2xf32, #tpu.memory_space<vmem>>, vector<2x2xf32>
    %244 = vector.extract_strided_slice %243 {offsets = [0, 0], sizes = [2, 1], strides = [1, 1]} : vector<2x2xf32> to vector<2x1xf32>
    %c11 = arith.constant 11 : index
    %c0_123 = arith.constant 0 : index
    %245 = vector.load %arg5[%c11, %c0_123] : memref<24x128xf32, #tpu.memory_space<vmem>>, vector<1x128xf32>
    %246 = vector.broadcast %244 : vector<2x1xf32> to vector<2x128xf32>
    %247 = vector.broadcast %245 : vector<1x128xf32> to vector<2x128xf32>
    %248 = arith.mulf %246, %247 : vector<2x128xf32>
    %249 = vector.extract_strided_slice %243 {offsets = [0, 1], sizes = [2, 1], strides = [1, 1]} : vector<2x2xf32> to vector<2x1xf32>
    %c12 = arith.constant 12 : index
    %c0_124 = arith.constant 0 : index
    %250 = vector.load %arg5[%c12, %c0_124] : memref<24x128xf32, #tpu.memory_space<vmem>>, vector<1x128xf32>
    %251 = vector.broadcast %249 : vector<2x1xf32> to vector<2x128xf32>
    %252 = vector.broadcast %250 : vector<1x128xf32> to vector<2x128xf32>
    %253 = arith.mulf %251, %252 : vector<2x128xf32>
    %254 = arith.addf %248, %253 : vector<2x128xf32>
    %c13 = arith.constant 13 : index
    %c0_125 = arith.constant 0 : index
    %255 = vector.load %arg5[%c13, %c0_125] : memref<24x128xf32, #tpu.memory_space<vmem>>, vector<1x128xf32>
    %256 = vector.broadcast %255 : vector<1x128xf32> to vector<2x128xf32>
    %257 = arith.addf %254, %256 : vector<2x128xf32>
    %cst_126 = arith.constant 0.000000e+00 : f32
    %258 = vector.broadcast %cst_126 : f32 to vector<2x128xf32>
    %259 = arith.maximumf %257, %258 : vector<2x128xf32>
    %260 = vector.extract_strided_slice %259 {offsets = [0, 0], sizes = [2, 64], strides = [1, 1]} : vector<2x128xf32> to vector<2x64xf32>
    %c192 = arith.constant 192 : index
    %c0_127 = arith.constant 0 : index
    %261 = vector.load %arg4[%c192, %c0_127] : memref<384x128xf32, #tpu.memory_space<vmem>>, vector<64x128xf32>
    %cst_128 = arith.constant dense<0.000000e+00> : vector<2x128xf32>
    %262 = tpu.matmul %260, %261, %cst_128 {dimension_numbers = #tpu.dot_dimension_numbers<[1], [0], [0], [1], [0, 0, 1, 1], [], []>, precision = #tpu.contract_precision<fp32>} : vector<2x64xf32>, vector<64x128xf32>, vector<2x128xf32> -> vector<2x128xf32>
    %c14 = arith.constant 14 : index
    %c0_129 = arith.constant 0 : index
    %263 = vector.load %arg5[%c14, %c0_129] : memref<24x128xf32, #tpu.memory_space<vmem>>, vector<1x128xf32>
    %264 = vector.broadcast %263 : vector<1x128xf32> to vector<2x128xf32>
    %265 = arith.addf %262, %264 : vector<2x128xf32>
    %266 = vector.extract_strided_slice %242 {offsets = [0, 0], sizes = [2, 32], strides = [1, 1]} : vector<2x128xf32> to vector<2x32xf32>
    %267 = vector.extract_strided_slice %265 {offsets = [0, 0], sizes = [2, 32], strides = [1, 1]} : vector<2x128xf32> to vector<2x32xf32>
    %268 = tpu.concatenate %266, %267 in 1 : vector<2x32xf32>, vector<2x32xf32> -> vector<2x64xf32>
    %c256 = arith.constant 256 : index
    %c0_130 = arith.constant 0 : index
    %269 = vector.load %arg4[%c256, %c0_130] : memref<384x128xf32, #tpu.memory_space<vmem>>, vector<64x128xf32>
    %cst_131 = arith.constant dense<0.000000e+00> : vector<2x128xf32>
    %270 = tpu.matmul %268, %269, %cst_131 {dimension_numbers = #tpu.dot_dimension_numbers<[1], [0], [0], [1], [0, 0, 1, 1], [], []>, precision = #tpu.contract_precision<fp32>} : vector<2x64xf32>, vector<64x128xf32>, vector<2x128xf32> -> vector<2x128xf32>
    %c15 = arith.constant 15 : index
    %c0_132 = arith.constant 0 : index
    %271 = vector.load %arg5[%c15, %c0_132] : memref<24x128xf32, #tpu.memory_space<vmem>>, vector<1x128xf32>
    %272 = vector.broadcast %271 : vector<1x128xf32> to vector<2x128xf32>
    %273 = arith.addf %270, %272 : vector<2x128xf32>
    %cst_133 = arith.constant 0.000000e+00 : f32
    %274 = vector.broadcast %cst_133 : f32 to vector<2x128xf32>
    %275 = arith.maximumf %273, %274 : vector<2x128xf32>
    %276 = vector.extract_strided_slice %275 {offsets = [0, 0], sizes = [2, 64], strides = [1, 1]} : vector<2x128xf32> to vector<2x64xf32>
    %c320 = arith.constant 320 : index
    %c0_134 = arith.constant 0 : index
    %277 = vector.load %arg4[%c320, %c0_134] : memref<384x128xf32, #tpu.memory_space<vmem>>, vector<64x128xf32>
    %cst_135 = arith.constant dense<0.000000e+00> : vector<2x128xf32>
    %278 = tpu.matmul %276, %277, %cst_135 {dimension_numbers = #tpu.dot_dimension_numbers<[1], [0], [0], [1], [0, 0, 1, 1], [], []>, precision = #tpu.contract_precision<fp32>} : vector<2x64xf32>, vector<64x128xf32>, vector<2x128xf32> -> vector<2x128xf32>
    %c16 = arith.constant 16 : index
    %c0_136 = arith.constant 0 : index
    %279 = vector.load %arg5[%c16, %c0_136] : memref<24x128xf32, #tpu.memory_space<vmem>>, vector<1x128xf32>
    %280 = vector.broadcast %279 : vector<1x128xf32> to vector<2x128xf32>
    %281 = arith.addf %278, %280 : vector<2x128xf32>
    %c0_137 = arith.constant 0 : index
    %c0_138 = arith.constant 0 : index
    %282 = vector.load %arg6[%c0_137, %c0_138] : memref<2x128xf32, #tpu.memory_space<vmem>>, vector<2x128xf32>
    tpu.vector_store %arg6[%c0_137, %c0_138], %281 {strides = array<i32>} : memref<2x128xf32, #tpu.memory_space<vmem>>, vector<2x128xf32>,
    return
  }
}

</mosaic_0001>

<llo_original>
// kernel: review_model_forward.1
$region0: #{review_model_forward.1}
  #allocation0 [shape = 'u32[]', space=smem, size = 0x4, offset = 0x4, fixed_abs, tag = 'smem constant byte address 0x4 - core index']
  #allocation1 [shape = 'u32[144,128]{1,0:T(1,128)}', space=vmem, size = 0x12000, scoped, tag = 'internal scratch']
  %s0 = inlined_call_operand.vmem [shape: s32[2,8], index: 0, kind: input, shape index: {}]
  %s1 = inlined_call_operand.vmem [shape: f32[2,8], index: 1, kind: input, shape index: {}]
  %s2 = inlined_call_operand.vmem [shape: f32[2,2], index: 2, kind: input, shape index: {}]
  %s3 = inlined_call_operand.vmem [shape: f32[112,32], index: 3, kind: input, shape index: {}]
  %s4 = inlined_call_operand.hbm [shape: f32[384,128], index: 4, kind: input, shape index: {}]
  %s5 = inlined_call_operand.vmem [shape: f32[24,128], index: 5, kind: input, shape index: {}]
  %s6 = inlined_call_operand.hbm [shape: f32[2,128], index: 6, kind: output, shape index: {}]
  %s7 = sld [smem:[#allocation0]]
  $region42: #{review_model_forward.1} parent=0
    _
  %s9 = ssub.s32 1, %s7
  %s10 = scalar_select 0, %s9, %s7
  $region1: #{review_model_forward.1} parent=0
    #allocation2 [shape = 'u8[1024]{0}', space=smem, size = 0x400, scoped, tag = 'input window, operand 0, single buffered']
    #allocation3 [shape = 's32[1]{0}', space=sflag, size = 0x4, scoped, tag = 'scoped memory for review_model_forward.1']
    #allocation4 [shape = 's32[1]{0}', space=sflag, size = 0x4, scoped, tag = 'scoped memory for review_model_forward.1']
    #allocation5 [shape = 's32[1]{0}', space=sflag, size = 0x4, scoped, tag = 'scoped memory for review_model_forward.1']
    #allocation6 [shape = 'u8[196608]{0}', space=vmem, size = 0x30000, scoped, tag = 'input window, operand 4, single buffered']
    #allocation7 [shape = 'u8[1024]{0}', space=vmem, size = 0x400, scoped, tag = 'output window, operand 0, single buffered']
    %11 = vsyncpa [#allocation5], 0
    %12 = vsyncpa [#allocation3], 0
    %13 = vsyncpa [#allocation4], 0
    // Predicated region
    $region2: #{review_model_forward.1} parent=1 // pred_check
      _
    $region3: #{review_model_forward.1} parent=1 // pred_check_branch
      %15 = sbr.rel (0) target = $region5
    $region4: #{review_model_forward.1} parent=1 // pred_region
      %s17 = ssub.s32 32, 32
      %18 = vsyncadd [#allocation5], %s17
      %s20 = sshll.u32 %s0, 4
      %s21 = int_to_ptr.vmem [resolvable:$true] %s20
      %23 = dma.vmem_to_smem %s21, 32, [#allocation2], [#allocation5]
    $region5: #{review_model_forward.1} parent=1 // pred_fallthru
      _
    // Predicated region
    $region6: #{review_model_forward.1} parent=1 // pred_check
      _
    $region7: #{review_model_forward.1} parent=1 // pred_check_branch
      %25 = sbr.rel (0) target = $region9
    $region8: #{review_model_forward.1} parent=1 // pred_region
      _
    $region9: #{review_model_forward.1} parent=1 // pred_fallthru
      _
    // Predicated region
    $region10: #{review_model_forward.1} parent=1 // pred_check
      _
    $region11: #{review_model_forward.1} parent=1 // pred_check_branch
      %27 = sbr.rel (0) target = $region13
    $region12: #{review_model_forward.1} parent=1 // pred_region
      _
    $region13: #{review_model_forward.1} parent=1 // pred_fallthru
      _
    // Predicated region
    $region14: #{review_model_forward.1} parent=1 // pred_check
      _
    $region15: #{review_model_forward.1} parent=1 // pred_check_branch
      %29 = sbr.rel (0) target = $region17
    $region16: #{review_model_forward.1} parent=1 // pred_region
      _
    $region17: #{review_model_forward.1} parent=1 // pred_fallthru
      _
    // Predicated region
    $region18: #{review_model_forward.1} parent=1 // pred_check
      _
    $region19: #{review_model_forward.1} parent=1 // pred_check_branch
      %31 = sbr.rel (0) target = $region21
    $region20: #{review_model_forward.1} parent=1 // pred_region
      %s33 = ssub.s32 6144, 6144
      %34 = vsyncadd [#allocation3], %s33
      %s35 = sshll.u32 [#allocation6], 4
      %s36 = int_to_ptr.vmem [resolvable:$true] %s35
      %41 = dma.hbm_to_vmem [thread:$0]  %s4, 6144, %s36, [#allocation3], 128, 128, 8
    $region21: #{review_model_forward.1} parent=1 // pred_fallthru
      _
    // Predicated region
    $region22: #{review_model_forward.1} parent=1 // pred_check
      _
    $region23: #{review_model_forward.1} parent=1 // pred_check_branch
      %43 = sbr.rel (0) target = $region25
    $region24: #{review_model_forward.1} parent=1 // pred_region
      _
    $region25: #{review_model_forward.1} parent=1 // pred_fallthru
      _
    // Predicated region
    $region26: #{review_model_forward.1} parent=1 // pred_check
      _
    $region27: #{review_model_forward.1} parent=1 // pred_check_branch
      %45 = sbr.rel (0) target = $region29
    $region28: #{review_model_forward.1} parent=1 // pred_region
      %46 = dma.done [#allocation5], 32
    $region29: #{review_model_forward.1} parent=1 // pred_fallthru
      _
    // Predicated region
    $region30: #{review_model_forward.1} parent=1 // pred_check
      _
    $region31: #{review_model_forward.1} parent=1 // pred_check_branch
      %48 = sbr.rel (0) target = $region33
    $region32: #{review_model_forward.1} parent=1 // pred_region
      %49 = dma.done [#allocation3], 6144
    $region33: #{review_model_forward.1} parent=1 // pred_fallthru
      _
    %50 = sfence
    %s51 = sld [smem:[#allocation2]]
    %s52 = scalar_lea.vmem %s3, %s51
    %v53 = vld [vmem:[%s52] sm:$0x1]
    %v54 = vld [vmem:[%s3 + $0x64] sm:$0x1]
    %v55 = vadd.f32 %v53, %v54
    %s56 = sld [smem:[#allocation2 + $0x1]]
    %s57 = scalar_lea.vmem %s3, %s56
    %v58 = vld [vmem:[%s57] sm:$0x1]
    %v59 = vld [vmem:[%s3 + $0x65] sm:$0x1]
    %v60 = vadd.f32 %v58, %v59
    %s61 = sld [smem:[#allocation2 + $0x2]]
    %s62 = scalar_lea.vmem %s3, %s61
    %v63 = vld [vmem:[%s62] sm:$0x1]
    %v64 = vld [vmem:[%s3 + $0x66] sm:$0x1]
    %v65 = vadd.f32 %v63, %v64
    %s66 = sld [smem:[#allocation2 + $0x3]]
    %s67 = scalar_lea.vmem %s3, %s66
    %v68 = vld [vmem:[%s67] sm:$0x1]
    %v69 = vld [vmem:[%s3 + $0x67] sm:$0x1]
    %v70 = vadd.f32 %v68, %v69
    %s71 = sld [smem:[#allocation2 + $0x4]]
    %s72 = scalar_lea.vmem %s3, %s71
    %v73 = vld [vmem:[%s72] sm:$0x1]
    %v74 = vld [vmem:[%s3 + $0x68] sm:$0x1]
    %v75 = vadd.f32 %v73, %v74
    %s76 = sld [smem:[#allocation2 + $0x5]]
    %s77 = scalar_lea.vmem %s3, %s76
    %v78 = vld [vmem:[%s77] sm:$0x1]
    %v79 = vld [vmem:[%s3 + $0x69] sm:$0x1]
    %v80 = vadd.f32 %v78, %v79
    %s81 = sld [smem:[#allocation2 + $0x6]]
    %s82 = scalar_lea.vmem %s3, %s81
    %v83 = vld [vmem:[%s82] sm:$0x1]
    %v84 = vld [vmem:[%s3 + $0x6a] sm:$0x1]
    %v85 = vadd.f32 %v83, %v84
    %s86 = sld [smem:[#allocation2 + $0x7]]
    %s87 = scalar_lea.vmem %s3, %s86
    %v88 = vld [vmem:[%s87] sm:$0x1]
    %v89 = vld [vmem:[%s3 + $0x6b] sm:$0x1]
    %v90 = vadd.f32 %v88, %v89
    %s91 = sld [smem:[#allocation2 + $0x80]]
    %s92 = scalar_lea.vmem %s3, %s91
    %v93 = vld [vmem:[%s92] sm:$0x1]
    %v94 = vadd.f32 %v93, %v54
    %s95 = sld [smem:[#allocation2 + $0x81]]
    %s96 = scalar_lea.vmem %s3, %s95
    %v97 = vld [vmem:[%s96] sm:$0x1]
    %v98 = vadd.f32 %v97, %v59
    %s99 = sld [smem:[#allocation2 + $0x82]]
    %s100 = scalar_lea.vmem %s3, %s99
    %v101 = vld [vmem:[%s100] sm:$0x1]
    %v102 = vadd.f32 %v101, %v64
    %s103 = sld [smem:[#allocation2 + $0x83]]
    %s104 = scalar_lea.vmem %s3, %s103
    %v105 = vld [vmem:[%s104] sm:$0x1]
    %v106 = vadd.f32 %v105, %v69
    %s107 = sld [smem:[#allocation2 + $0x84]]
    %s108 = scalar_lea.vmem %s3, %s107
    %v109 = vld [vmem:[%s108] sm:$0x1]
    %v110 = vadd.f32 %v109, %v74
    %s111 = sld [smem:[#allocation2 + $0x85]]
    %s112 = scalar_lea.vmem %s3, %s111
    %v113 = vld [vmem:[%s112] sm:$0x1]
    %v114 = vadd.f32 %v113, %v79
    %s115 = sld [smem:[#allocation2 + $0x86]]
    %s116 = scalar_lea.vmem %s3, %s115
    %v117 = vld [vmem:[%s116] sm:$0x1]
    %v118 = vadd.f32 %v117, %v84
    %s119 = sld [smem:[#allocation2 + $0x87]]
    %s120 = scalar_lea.vmem %s3, %s119
    %v121 = vld [vmem:[%s120] sm:$0x1]
    %v122 = vadd.f32 %v121, %v89
    %v124 = vrot.slane %v60, 7
    %v127 = vrot.slane %v65, 6
    %v130 = vrot.slane %v70, 5
    %v133 = vrot.slane %v75, 4
    %v136 = vrot.slane %v80, 3
    %v139 = vrot.slane %v85, 2
    %v142 = vrot.slane %v90, 1
    %v145 = vrot.slane %v98, 7
    %v148 = vrot.slane %v102, 6
    %v151 = vrot.slane %v106, 5
    %v154 = vrot.slane %v110, 4
    %v157 = vrot.slane %v114, 3
    %v160 = vrot.slane %v118, 2
    %v163 = vrot.slane %v122, 1
    %vm165 = vcmask 1040384
    %v166 = vsel %vm165, %v55, %v124
    %vm167 = vcmask 1041408
    %v168 = vsel %vm167, %v166, %v127
    %vm169 = vcmask 1042432
    %v170 = vsel %vm169, %v168, %v130
    %vm171 = vcmask 1043456
    %v172 = vsel %vm171, %v170, %v133
    %vm173 = vcmask 1044480
    %v174 = vsel %vm173, %v172, %v136
    %vm175 = vcmask 1045504
    %v176 = vsel %vm175, %v174, %v139
    %vm177 = vcmask 1046528
    %v178 = vsel %vm177, %v176, %v142
    %v179 = vsel %vm165, %v94, %v145
    %v180 = vsel %vm167, %v179, %v148
    %v181 = vsel %vm169, %v180, %v151
    %v182 = vsel %vm171, %v181, %v154
    %v183 = vsel %vm173, %v182, %v157
    %v184 = vsel %vm175, %v183, %v160
    %v185 = vsel %vm177, %v184, %v163
    %vm186 = vcmask 261120
    %v187 = vsel %vm186, %v178, 0.0
    %188 = vadd.xlane.f32.xlu0 %v187
    %v189 = vpop.xlane.xlu0 %188
    %v190 = vsel %vm186, %v185, 0.0
    %191 = vadd.xlane.f32.xlu0 %v190
    %v192 = vpop.xlane.xlu0 %191
    %v193 = vrcp.pop 32.0
    %v194 = vmul.f32 %v189, %v193
    %v195 = vmul.f32 %v192, %v193
    %v196 = vsub.f32 %v178, %v194
    %v197 = vsub.f32 %v185, %v195
    %v198 = vmul.f32 %v196, %v196
    %v199 = vmul.f32 %v197, %v197
    %v200 = vsel %vm186, %v198, 0.0
    %201 = vadd.xlane.f32.xlu0 %v200
    %v202 = vpop.xlane.xlu0 %201
    %v203 = vsel %vm186, %v199, 0.0
    %204 = vadd.xlane.f32.xlu0 %v203
    %v205 = vpop.xlane.xlu0 %204
    %v206 = vmul.f32 %v202, %v193
    %v207 = vmul.f32 %v205, %v193
    %v208 = vadd.f32 %v206, 1e-12
    %v209 = vadd.f32 %v207, 1e-12
    %v210 = vrsqrt.pop %v208
    %v211 = vrsqrt.pop %v209
    %v212 = vmul.f32 %v196, %v210
    %v213 = vmul.f32 %v197, %v211
    %v214 = vld [vmem:[%s5] sm:$0x1]
    %v215 = vlaneseq
    %v216 = vshrl.u32 %v215, 7
    %v217 = vsub.s32 0, %v216
    %v218 = vrot.slane %v214, %v217
    %v219 = vmul.f32 %v212, %v218
    %v220 = vmul.f32 %v213, %v218
    %v221 = vld [vmem:[%s5 + $0x1] sm:$0x1]
    %v222 = vlaneseq
    %v223 = vshrl.u32 %v222, 7
    %v224 = vsub.s32 0, %v223
    %v225 = vrot.slane %v221, %v224
    %v226 = vadd.f32 %v219, %v225
    %v227 = vadd.f32 %v220, %v225
    %v228 = vld [vmem:[#allocation6] sm:$0xff]
    %v229 = vld [vmem:[#allocation6 + $0x8] sm:$0xff]
    %v230 = vld [vmem:[#allocation6 + $0x10] sm:$0xff]
    %v231 = vld [vmem:[#allocation6 + $0x18] sm:$0xff]
    %v232 = vld [vmem:[%s5 + $0x2] sm:$0x1]
    %v233 = vlaneseq
    %v234 = vshrl.u32 %v233, 7
    %v235 = vsub.s32 0, %v234
    %v236 = vrot.slane %v232, %v235
    %v238 = vsel %vm186, %v226, 0
    %v241 = vsel %vm186, %v227, 0
    %243 = vmatprep.subr.mxu0 0.0
    %v244 = vand.u32 %v228, 4294901760
    %245 = vmatpush1.msra.mxu0 %v244
    %246 = vmatprep.subr.mxu0 0.0
    %v247 = vand.u32 %v229, 4294901760
    %248 = vmatpush1.msra.mxu0 %v247
    %249 = vmatprep.subr.mxu0 0.0
    %v250 = vand.u32 %v230, 4294901760
    %251 = vmatpush1.msra.mxu0 %v250
    %252 = vmatprep.subr.mxu0 0.0
    %v253 = vand.u32 %v231, 4294901760
    %254 = vmatpush1.msra.mxu0 %v253
    %255 = vmatprep.subr.mxu0 0.0
    %256 = vmatpush1.msra.mxu0 0.0
    %257 = vmatprep.subr.mxu0 0.0
    %258 = vmatpush1.msra.mxu0 0.0
    %259 = vmatprep.subr.mxu0 0.0
    %260 = vmatpush1.msra.mxu0 0.0
    %261 = vmatprep.subr.mxu0 0.0
    %262 = vmatpush1.msra.mxu0 0.0
    %263 = vmatprep.subr.mxu0 0.0
    %264 = vmatpush1.msra.mxu0 0.0
    %265 = vmatprep.subr.mxu0 0.0
    %266 = vmatpush1.msra.mxu0 0.0
    %267 = vmatprep.subr.mxu0 0.0
    %268 = vmatpush1.msra.mxu0 0.0
    %269 = vmatprep.subr.mxu0 0.0
    %270 = vmatpush1.msra.mxu0 0.0
    %271 = vmatprep.subr.mxu0 0.0
    %272 = vmatpush1.msra.mxu0 0.0
    %273 = vmatprep.subr.mxu0 0.0
    %274 = vmatpush1.msra.mxu0 0.0
    %275 = vmatprep.subr.mxu0 0.0
    %276 = vmatpush1.msra.mxu0 0.0
    %277 = vmatprep.subr.mxu0 0.0
    %278 = vmatpush1.msra.mxu0 0.0
    %279 = vmatprep.subr.mxu0 0.0
    %280 = vmatpush1.msra.mxu0 0.0
    %281 = vmatprep.subr.mxu0 0.0
    %282 = vmatpush1.msra.mxu0 0.0
    %283 = vmatprep.subr.mxu0 0.0
    %284 = vmatpush1.msra.mxu0 0.0
    %285 = vmatprep.subr.mxu0 0.0
    %286 = vmatpush1.msra.mxu0 0.0
    %287 = vmatprep.subr.mxu0 0.0
    %288 = vmatpush1.msra.mxu0 0.0
    %289 = vmatprep.subr.mxu0 0.0
    %290 = vmatpush1.msra.mxu0 0.0
    %291 = vmatprep.subr.mxu0 0.0
    %292 = vmatpush1.msra.mxu0 0.0
    %293 = vmatprep.subr.mxu0 0.0
    %294 = vmatpush1.msra.mxu0 0.0
    %295 = vmatprep.subr.mxu0 0.0
    %296 = vmatpush1.msra.mxu0 0.0
    %297 = vmatprep.subr.mxu0 0.0
    %298 = vmatpush1.msra.mxu0 0.0
    %299 = vmatprep.subr.mxu0 0.0
    %300 = vmatpush1.msra.mxu0 0.0
    %301 = vmatprep.subr.mxu0 0.0
    %302 = vmatpush1.msra.mxu0 0.0
    %303 = vmatprep.subr.mxu0 0.0
    %304 = vmatpush1.msra.mxu0 0.0
    %305 = vmatprep.subr.mxu0 0.0
    %306 = vmatpush1.msra.mxu0 0.0
    %307 = vmatprep.subr.mxu0 0.0
    %308 = vmatpush1.msra.mxu0 0.0
    %309 = vmatprep.subr.mxu0 0.0
    %310 = vmatpush1.msra.mxu0 0.0
    %311 = vmatprep.mubr.f32.mxu0 0.0
    %v312 = vand.u32 %v238, 4294901760
    %v313 = vsub.f32 %v238, %v312
    %v314 = vand.u32 %v313, 4294901760
    %v315 = vsub.f32 %v313, %v314
    %v316 = vand.u32 %v315, 4294901760
    %317 = vmatmul.mubr.f32.gmra.mrb[0].mxu0 %v316
    %v318 = vpop.f32.mrb[0].mxu0
    %v319 = vadd.f32 %v236, %v318
    %v320 = vpop.f32.mrb[0].mxu0
    %321 = vmatprep.mubr.f32.mxu0 0.0
    %v322 = vand.u32 %v241, 4294901760
    %v323 = vsub.f32 %v241, %v322
    %v324 = vand.u32 %v323, 4294901760
    %v325 = vsub.f32 %v323, %v324
    %v326 = vand.u32 %v325, 4294901760
    %327 = vmatmul.mubr.f32.gmra.mrb[0].mxu0 %v326
    %v328 = vpop.f32.mrb[0].mxu0
    %v329 = vadd.f32 %v236, %v328
    %v330 = vpop.f32.mrb[0].mxu0
    %331 = vdwg.mxu0
    %332 = vmatprep.subr.mxu0 0.0
    %v333 = vand.u32 %v228, 4294901760
    %v334 = vsub.f32 %v228, %v333
    %v335 = vand.u32 %v334, 4294901760
    %v336 = vsub.f32 %v334, %v335
    %v337 = vand.u32 %v336, 4294901760
    %338 = vmatpush1.msra.mxu0 %v337
    %339 = vmatprep.subr.mxu0 0.0
    %v340 = vand.u32 %v229, 4294901760
    %v341 = vsub.f32 %v229, %v340
    %v342 = vand.u32 %v341, 4294901760
    %v343 = vsub.f32 %v341, %v342
    %v344 = vand.u32 %v343, 4294901760
    %345 = vmatpush1.msra.mxu0 %v344
    %346 = vmatprep.subr.mxu0 0.0
    %v347 = vand.u32 %v230, 4294901760
    %v348 = vsub.f32 %v230, %v347
    %v349 = vand.u32 %v348, 4294901760
    %v350 = vsub.f32 %v348, %v349
    %v351 = vand.u32 %v350, 4294901760
    %352 = vmatpush1.msra.mxu0 %v351
    %353 = vmatprep.subr.mxu0 0.0
    %v354 = vand.u32 %v231, 4294901760
    %v355 = vsub.f32 %v231, %v354
    %v356 = vand.u32 %v355, 4294901760
    %v357 = vsub.f32 %v355, %v356
    %v358 = vand.u32 %v357, 4294901760
    %359 = vmatpush1.msra.mxu0 %v358
    %360 = vmatprep.subr.mxu0 0.0
    %361 = vmatpush1.msra.mxu0 0.0
    %362 = vmatprep.subr.mxu0 0.0
    %363 = vmatpush1.msra.mxu0 0.0
    %364 = vmatprep.subr.mxu0 0.0
    %365 = vmatpush1.msra.mxu0 0.0
    %366 = vmatprep.subr.mxu0 0.0
    %367 = vmatpush1.msra.mxu0 0.0
    %368 = vmatprep.subr.mxu0 0.0
    %369 = vmatpush1.msra.mxu0 0.0
    %370 = vmatprep.subr.mxu0 0.0
    %371 = vmatpush1.msra.mxu0 0.0
    %372 = vmatprep.subr.mxu0 0.0
    %373 = vmatpush1.msra.mxu0 0.0
    %374 = vmatprep.subr.mxu0 0.0
    %375 = vmatpush1.msra.mxu0 0.0
    %376 = vmatprep.subr.mxu0 0.0
    %377 = vmatpush1.msra.mxu0 0.0
    %378 = vmatprep.subr.mxu0 0.0
    %379 = vmatpush1.msra.mxu0 0.0
    %380 = vmatprep.subr.mxu0 0.0
    %381 = vmatpush1.msra.mxu0 0.0
    %382 = vmatprep.subr.mxu0 0.0
    %383 = vmatpush1.msra.mxu0 0.0
    %384 = vmatprep.subr.mxu0 0.0
    %385 = vmatpush1.msra.mxu0 0.0
    %386 = vmatprep.subr.mxu0 0.0
    %387 = vmatpush1.msra.mxu0 0.0
    %388 = vmatprep.subr.mxu0 0.0
    %389 = vmatpush1.msra.mxu0 0.0
    %390 = vmatprep.subr.mxu0 0.0
    %391 = vmatpush1.msra.mxu0 0.0
    %392 = vmatprep.subr.mxu0 0.0
    %393 = vmatpush1.msra.mxu0 0.0
    %394 = vmatprep.subr.mxu0 0.0
    %395 = vmatpush1.msra.mxu0 0.0
    %396 = vmatprep.subr.mxu0 0.0
    %397 = vmatpush1.msra.mxu0 0.0
    %398 = vmatprep.subr.mxu0 0.0
    %399 = vmatpush1.msra.mxu0 0.0
    %400 = vmatprep.subr.mxu0 0.0
    %401 = vmatpush1.msra.mxu0 0.0
    %402 = vmatprep.subr.mxu0 0.0
    %403 = vmatpush1.msra.mxu0 0.0
    %404 = vmatprep.subr.mxu0 0.0
    %405 = vmatpush1.msra.mxu0 0.0
    %406 = vmatprep.subr.mxu0 0.0
    %407 = vmatpush1.msra.mxu0 0.0
    %408 = vmatprep.subr.mxu0 0.0
    %409 = vmatpush1.msra.mxu0 0.0
    %410 = vmatprep.subr.mxu0 0.0
    %411 = vmatpush1.msra.mxu0 0.0
    %412 = vmatprep.subr.mxu0 0.0
    %413 = vmatpush1.msra.mxu0 0.0
    %414 = vmatprep.subr.mxu0 0.0
    %415 = vmatpush1.msra.mxu0 0.0
    %416 = vmatprep.mubr.f32.mxu0 0.0
    %v417 = vand.u32 %v238, 4294901760
    %418 = vmatmul.mubr.f32.gmra.mrb[0].mxu0 %v417
    %v419 = vpop.f32.mrb[0].mxu0
    %v420 = vadd.f32 %v319, %v419
    %v421 = vpop.f32.mrb[0].mxu0
    %422 = vmatprep.mubr.f32.mxu0 0.0
    %v423 = vand.u32 %v241, 4294901760
    %424 = vmatmul.mubr.f32.gmra.mrb[0].mxu0 %v423
    %v425 = vpop.f32.mrb[0].mxu0
    %v426 = vadd.f32 %v329, %v425
    %v427 = vpop.f32.mrb[0].mxu0
    %428 = vdwg.mxu0
    %429 = vmatprep.subr.mxu0 0.0
    %v430 = vand.u32 %v228, 4294901760
    %v431 = vsub.f32 %v228, %v430
    %432 = vmatpush1.msra.mxu0 %v431
    %433 = vmatprep.subr.mxu0 0.0
    %v434 = vand.u32 %v229, 4294901760
    %v435 = vsub.f32 %v229, %v434
    %436 = vmatpush1.msra.mxu0 %v435
    %437 = vmatprep.subr.mxu0 0.0
    %v438 = vand.u32 %v230, 4294901760
    %v439 = vsub.f32 %v230, %v438
    %440 = vmatpush1.msra.mxu0 %v439
    %441 = vmatprep.subr.mxu0 0.0
    %v442 = vand.u32 %v231, 4294901760
    %v443 = vsub.f32 %v231, %v442
    %444 = vmatpush1.msra.mxu0 %v443
    %445 = vmatprep.subr.mxu0 0.0
    %446 = vmatpush1.msra.mxu0 0.0
    %447 = vmatprep.subr.mxu0 0.0
    %448 = vmatpush1.msra.mxu0 0.0
    %449 = vmatprep.subr.mxu0 0.0
    %450 = vmatpush1.msra.mxu0 0.0
    %451 = vmatprep.subr.mxu0 0.0
    %452 = vmatpush1.msra.mxu0 0.0
    %453 = vmatprep.subr.mxu0 0.0
    %454 = vmatpush1.msra.mxu0 0.0
    %455 = vmatprep.subr.mxu0 0.0
    %456 = vmatpush1.msra.mxu0 0.0
    %457 = vmatprep.subr.mxu0 0.0
    %458 = vmatpush1.msra.mxu0 0.0
    %459 = vmatprep.subr.mxu0 0.0
    %460 = vmatpush1.msra.mxu0 0.0
    %461 = vmatprep.subr.mxu0 0.0
    %462 = vmatpush1.msra.mxu0 0.0
    %463 = vmatprep.subr.mxu0 0.0
    %464 = vmatpush1.msra.mxu0 0.0
    %465 = vmatprep.subr.mxu0 0.0
    %466 = vmatpush1.msra.mxu0 0.0
    %467 = vmatprep.subr.mxu0 0.0
    %468 = vmatpush1.msra.mxu0 0.0
    %469 = vmatprep.subr.mxu0 0.0
    %470 = vmatpush1.msra.mxu0 0.0
    %471 = vmatprep.subr.mxu0 0.0
    %472 = vmatpush1.msra.mxu0 0.0
    %473 = vmatprep.subr.mxu0 0.0
    %474 = vmatpush1.msra.mxu0 0.0
    %475 = vmatprep.subr.mxu0 0.0
    %476 = vmatpush1.msra.mxu0 0.0
    %477 = vmatprep.subr.mxu0 0.0
    %478 = vmatpush1.msra.mxu0 0.0
    %479 = vmatprep.subr.mxu0 0.0
    %480 = vmatpush1.msra.mxu0 0.0
    %481 = vmatprep.subr.mxu0 0.0
    %482 = vmatpush1.msra.mxu0 0.0
    %483 = vmatprep.subr.mxu0 0.0
    %484 = vmatpush1.msra.mxu0 0.0
    %485 = vmatprep.subr.mxu0 0.0
    %486 = vmatpush1.msra.mxu0 0.0
    %487 = vmatprep.subr.mxu0 0.0
    %488 = vmatpush1.msra.mxu0 0.0
    %489 = vmatprep.subr.mxu0 0.0
    %490 = vmatpush1.msra.mxu0 0.0
    %491 = vmatprep.subr.mxu0 0.0
    %492 = vmatpush1.msra.mxu0 0.0
    %493 = vmatprep.subr.mxu0 0.0
    %494 = vmatpush1.msra.mxu0 0.0
    %495 = vmatprep.subr.mxu0 0.0
    %496 = vmatpush1.msra.mxu0 0.0
    %497 = vmatprep.subr.mxu0 0.0
    %498 = vmatpush1.msra.mxu0 0.0
    %499 = vmatprep.subr.mxu0 0.0
    %500 = vmatpush1.msra.mxu0 0.0
    %501 = vmatprep.mubr.f32.mxu0 0.0
    %v502 = vand.u32 %v238, 4294901760
    %v503 = vsub.f32 %v238, %v502
    %504 = vmatmul.mubr.f32.gmra.mrb[0].mxu0 %v503
    %v505 = vpop.f32.mrb[0].mxu0
    %v506 = vadd.f32 %v420, %v505
    %v507 = vpop.f32.mrb[0].mxu0
    %508 = vmatprep.mubr.f32.mxu0 0.0
    %v509 = vand.u32 %v241, 4294901760
    %v510 = vsub.f32 %v241, %v509
    %511 = vmatmul.mubr.f32.gmra.mrb[0].mxu0 %v510
    %v512 = vpop.f32.mrb[0].mxu0
    %v513 = vadd.f32 %v426, %v512
    %v514 = vpop.f32.mrb[0].mxu0
    %515 = vdwg.mxu0
    %516 = vmatprep.subr.mxu0 0.0
    %v517 = vand.u32 %v228, 4294901760
    %518 = vmatpush1.msra.mxu0 %v517
    %519 = vmatprep.subr.mxu0 0.0
    %v520 = vand.u32 %v229, 4294901760
    %521 = vmatpush1.msra.mxu0 %v520
    %522 = vmatprep.subr.mxu0 0.0
    %v523 = vand.u32 %v230, 4294901760
    %524 = vmatpush1.msra.mxu0 %v523
    %525 = vmatprep.subr.mxu0 0.0
    %v526 = vand.u32 %v231, 4294901760
    %527 = vmatpush1.msra.mxu0 %v526
    %528 = vmatprep.subr.mxu0 0.0
    %529 = vmatpush1.msra.mxu0 0.0
    %530 = vmatprep.subr.mxu0 0.0
    %531 = vmatpush1.msra.mxu0 0.0
    %532 = vmatprep.subr.mxu0 0.0
    %533 = vmatpush1.msra.mxu0 0.0
    %534 = vmatprep.subr.mxu0 0.0
    %535 = vmatpush1.msra.mxu0 0.0
    %536 = vmatprep.subr.mxu0 0.0
    %537 = vmatpush1.msra.mxu0 0.0
    %538 = vmatprep.subr.mxu0 0.0
    %539 = vmatpush1.msra.mxu0 0.0
    %540 = vmatprep.subr.mxu0 0.0
    %541 = vmatpush1.msra.mxu0 0.0
    %542 = vmatprep.subr.mxu0 0.0
    %543 = vmatpush1.msra.mxu0 0.0
    %544 = vmatprep.subr.mxu0 0.0
    %545 = vmatpush1.msra.mxu0 0.0
    %546 = vmatprep.subr.mxu0 0.0
    %547 = vmatpush1.msra.mxu0 0.0
    %548 = vmatprep.subr.mxu0 0.0
    %549 = vmatpush1.msra.mxu0 0.0
    %550 = vmatprep.subr.mxu0 0.0
    %551 = vmatpush1.msra.mxu0 0.0
    %552 = vmatprep.subr.mxu0 0.0
    %553 = vmatpush1.msra.mxu0 0.0
    %554 = vmatprep.subr.mxu0 0.0
    %555 = vmatpush1.msra.mxu0 0.0
    %556 = vmatprep.subr.mxu0 0.0
    %557 = vmatpush1.msra.mxu0 0.0
    %558 = vmatprep.subr.mxu0 0.0
    %559 = vmatpush1.msra.mxu0 0.0
    %560 = vmatprep.subr.mxu0 0.0
    %561 = vmatpush1.msra.mxu0 0.0
    %562 = vmatprep.subr.mxu0 0.0
    %563 = vmatpush1.msra.mxu0 0.0
    %564 = vmatprep.subr.mxu0 0.0
    %565 = vmatpush1.msra.mxu0 0.0
    %566 = vmatprep.subr.mxu0 0.0
    %567 = vmatpush1.msra.mxu0 0.0
    %568 = vmatprep.subr.mxu0 0.0
    %569 = vmatpush1.msra.mxu0 0.0
    %570 = vmatprep.subr.mxu0 0.0
    %571 = vmatpush1.msra.mxu0 0.0
    %572 = vmatprep.subr.mxu0 0.0
    %573 = vmatpush1.msra.mxu0 0.0
    %574 = vmatprep.subr.mxu0 0.0
    %575 = vmatpush1.msra.mxu0 0.0
    %576 = vmatprep.subr.mxu0 0.0
    %577 = vmatpush1.msra.mxu0 0.0
    %578 = vmatprep.subr.mxu0 0.0
    %579 = vmatpush1.msra.mxu0 0.0
    %580 = vmatprep.subr.mxu0 0.0
    %581 = vmatpush1.msra.mxu0 0.0
    %582 = vmatprep.subr.mxu0 0.0
    %583 = vmatpush1.msra.mxu0 0.0
    %584 = vmatprep.mubr.f32.mxu0 0.0
    %v585 = vand.u32 %v238, 4294901760
    %v586 = vsub.f32 %v238, %v585
    %v587 = vand.u32 %v586, 4294901760
    %588 = vmatmul.mubr.f32.gmra.mrb[0].mxu0 %v587
    %v589 = vpop.f32.mrb[0].mxu0
    %v590 = vadd.f32 %v506, %v589
    %v591 = vpop.f32.mrb[0].mxu0
    %592 = vmatprep.mubr.f32.mxu0 0.0
    %v593 = vand.u32 %v241, 4294901760
    %v594 = vsub.f32 %v241, %v593
    %v595 = vand.u32 %v594, 4294901760
    %596 = vmatmul.mubr.f32.gmra.mrb[0].mxu0 %v595
    %v597 = vpop.f32.mrb[0].mxu0
    %v598 = vadd.f32 %v513, %v597
    %v599 = vpop.f32.mrb[0].mxu0
    %600 = vdwg.mxu0
    %601 = vmatprep.subr.mxu0 0.0
    %v602 = vand.u32 %v228, 4294901760
    %v603 = vsub.f32 %v228, %v602
    %v604 = vand.u32 %v603, 4294901760
    %605 = vmatpush1.msra.mxu0 %v604
    %606 = vmatprep.subr.mxu0 0.0
    %v607 = vand.u32 %v229, 4294901760
    %v608 = vsub.f32 %v229, %v607
    %v609 = vand.u32 %v608, 4294901760
    %610 = vmatpush1.msra.mxu0 %v609
    %611 = vmatprep.subr.mxu0 0.0
    %v612 = vand.u32 %v230, 4294901760
    %v613 = vsub.f32 %v230, %v612
    %v614 = vand.u32 %v613, 4294901760
    %615 = vmatpush1.msra.mxu0 %v614
    %616 = vmatprep.subr.mxu0 0.0
    %v617 = vand.u32 %v231, 4294901760
    %v618 = vsub.f32 %v231, %v617
    %v619 = vand.u32 %v618, 4294901760
    %620 = vmatpush1.msra.mxu0 %v619
    %621 = vmatprep.subr.mxu0 0.0
    %622 = vmatpush1.msra.mxu0 0.0
    %623 = vmatprep.subr.mxu0 0.0
    %624 = vmatpush1.msra.mxu0 0.0
    %625 = vmatprep.subr.mxu0 0.0
    %626 = vmatpush1.msra.mxu0 0.0
    %627 = vmatprep.subr.mxu0 0.0
    %628 = vmatpush1.msra.mxu0 0.0
    %629 = vmatprep.subr.mxu0 0.0
    %630 = vmatpush1.msra.mxu0 0.0
    %631 = vmatprep.subr.mxu0 0.0
    %632 = vmatpush1.msra.mxu0 0.0
    %633 = vmatprep.subr.mxu0 0.0
    %634 = vmatpush1.msra.mxu0 0.0
    %635 = vmatprep.subr.mxu0 0.0
    %636 = vmatpush1.msra.mxu0 0.0
    %637 = vmatprep.subr.mxu0 0.0
    %638 = vmatpush1.msra.mxu0 0.0
    %639 = vmatprep.subr.mxu0 0.0
    %640 = vmatpush1.msra.mxu0 0.0
    %641 = vmatprep.subr.mxu0 0.0
    %642 = vmatpush1.msra.mxu0 0.0
    %643 = vmatprep.subr.mxu0 0.0
    %644 = vmatpush1.msra.mxu0 0.0
    %645 = vmatprep.subr.mxu0 0.0
    %646 = vmatpush1.msra.mxu0 0.0
    %647 = vmatprep.subr.mxu0 0.0
    %648 = vmatpush1.msra.mxu0 0.0
    %649 = vmatprep.subr.mxu0 0.0
    %650 = vmatpush1.msra.mxu0 0.0
    %651 = vmatprep.subr.mxu0 0.0
    %652 = vmatpush1.msra.mxu0 0.0
    %653 = vmatprep.subr.mxu0 0.0
    %654 = vmatpush1.msra.mxu0 0.0
    %655 = vmatprep.subr.mxu0 0.0
    %656 = vmatpush1.msra.mxu0 0.0
    %657 = vmatprep.subr.mxu0 0.0
    %658 = vmatpush1.msra.mxu0 0.0
    %659 = vmatprep.subr.mxu0 0.0
    %660 = vmatpush1.msra.mxu0 0.0
    %661 = vmatprep.subr.mxu0 0.0
    %662 = vmatpush1.msra.mxu0 0.0
    %663 = vmatprep.subr.mxu0 0.0
    %664 = vmatpush1.msra.mxu0 0.0
    %665 = vmatprep.subr.mxu0 0.0
    %666 = vmatpush1.msra.mxu0 0.0
    %667 = vmatprep.subr.mxu0 0.0
    %668 = vmatpush1.msra.mxu0 0.0
    %669 = vmatprep.subr.mxu0 0.0
    %670 = vmatpush1.msra.mxu0 0.0
    %671 = vmatprep.subr.mxu0 0.0
    %672 = vmatpush1.msra.mxu0 0.0
    %673 = vmatprep.subr.mxu0 0.0
    %674 = vmatpush1.msra.mxu0 0.0
    %675 = vmatprep.subr.mxu0 0.0
    %676 = vmatpush1.msra.mxu0 0.0
    %677 = vmatprep.mubr.f32.mxu0 0.0
    %v678 = vand.u32 %v238, 4294901760
    %679 = vmatmul.mubr.f32.gmra.mrb[0].mxu0 %v678
    %v680 = vpop.f32.mrb[0].mxu0
    %v681 = vadd.f32 %v590, %v680
    %v682 = vpop.f32.mrb[0].mxu0
    %683 = vmatprep.mubr.f32.mxu0 0.0
    %v684 = vand.u32 %v241, 4294901760
    %685 = vmatmul.mubr.f32.gmra.mrb[0].mxu0 %v684
    %v686 = vpop.f32.mrb[0].mxu0
    %v687 = vadd.f32 %v598, %v686
    %v688 = vpop.f32.mrb[0].mxu0
    %689 = vdwg.mxu0
    %690 = vmatprep.subr.mxu0 0.0
    %v691 = vand.u32 %v228, 4294901760
    %692 = vmatpush1.msra.mxu0 %v691
    %693 = vmatprep.subr.mxu0 0.0
    %v694 = vand.u32 %v229, 4294901760
    %695 = vmatpush1.msra.mxu0 %v694
    %696 = vmatprep.subr.mxu0 0.0
    %v697 = vand.u32 %v230, 4294901760
    %698 = vmatpush1.msra.mxu0 %v697
    %699 = vmatprep.subr.mxu0 0.0
    %v700 = vand.u32 %v231, 4294901760
    %701 = vmatpush1.msra.mxu0 %v700
    %702 = vmatprep.subr.mxu0 0.0
    %703 = vmatpush1.msra.mxu0 0.0
    %704 = vmatprep.subr.mxu0 0.0
    %705 = vmatpush1.msra.mxu0 0.0
    %706 = vmatprep.subr.mxu0 0.0
    %707 = vmatpush1.msra.mxu0 0.0
    %708 = vmatprep.subr.mxu0 0.0
    %709 = vmatpush1.msra.mxu0 0.0
    %710 = vmatprep.subr.mxu0 0.0
    %711 = vmatpush1.msra.mxu0 0.0
    %712 = vmatprep.subr.mxu0 0.0
    %713 = vmatpush1.msra.mxu0 0.0
    %714 = vmatprep.subr.mxu0 0.0
    %715 = vmatpush1.msra.mxu0 0.0
    %716 = vmatprep.subr.mxu0 0.0
    %717 = vmatpush1.msra.mxu0 0.0
    %718 = vmatprep.subr.mxu0 0.0
    %719 = vmatpush1.msra.mxu0 0.0
    %720 = vmatprep.subr.mxu0 0.0
    %721 = vmatpush1.msra.mxu0 0.0
    %722 = vmatprep.subr.mxu0 0.0
    %723 = vmatpush1.msra.mxu0 0.0
    %724 = vmatprep.subr.mxu0 0.0
    %725 = vmatpush1.msra.mxu0 0.0
    %726 = vmatprep.subr.mxu0 0.0
    %727 = vmatpush1.msra.mxu0 0.0
    %728 = vmatprep.subr.mxu0 0.0
    %729 = vmatpush1.msra.mxu0 0.0
    %730 = vmatprep.subr.mxu0 0.0
    %731 = vmatpush1.msra.mxu0 0.0
    %732 = vmatprep.subr.mxu0 0.0
    %733 = vmatpush1.msra.mxu0 0.0
    %734 = vmatprep.subr.mxu0 0.0
    %735 = vmatpush1.msra.mxu0 0.0
    %736 = vmatprep.subr.mxu0 0.0
    %737 = vmatpush1.msra.mxu0 0.0
    %738 = vmatprep.subr.mxu0 0.0
    %739 = vmatpush1.msra.mxu0 0.0
    %740 = vmatprep.subr.mxu0 0.0
    %741 = vmatpush1.msra.mxu0 0.0
    %742 = vmatprep.subr.mxu0 0.0
    %743 = vmatpush1.msra.mxu0 0.0
    %744 = vmatprep.subr.mxu0 0.0
    %745 = vmatpush1.msra.mxu0 0.0
    %746 = vmatprep.subr.mxu0 0.0
    %747 = vmatpush1.msra.mxu0 0.0
    %748 = vmatprep.subr.mxu0 0.0
    %749 = vmatpush1.msra.mxu0 0.0
    %750 = vmatprep.subr.mxu0 0.0
    %751 = vmatpush1.msra.mxu0 0.0
    %752 = vmatprep.subr.mxu0 0.0
    %753 = vmatpush1.msra.mxu0 0.0
    %754 = vmatprep.subr.mxu0 0.0
    %755 = vmatpush1.msra.mxu0 0.0
    %756 = vmatprep.subr.mxu0 0.0
    %757 = vmatpush1.msra.mxu0 0.0
    %758 = vmatprep.mubr.f32.mxu0 0.0
    %v759 = vand.u32 %v238, 4294901760
    %760 = vmatmul.mubr.f32.gmra.mrb[0].mxu0 %v759
    %v761 = vpop.f32.mrb[0].mxu0
    %v762 = vadd.f32 %v681, %v761
    %v763 = vpop.f32.mrb[0].mxu0
    %764 = vmatprep.mubr.f32.mxu0 0.0
    %v765 = vand.u32 %v241, 4294901760
    %766 = vmatmul.mubr.f32.gmra.mrb[0].mxu0 %v765
    %v767 = vpop.f32.mrb[0].mxu0
    %v768 = vadd.f32 %v687, %v767
    %v769 = vpop.f32.mrb[0].mxu0
    %770 = vdwg.mxu0
    %773 = vrot.lane.b32.xlu0 %v762, 112
    %v774 = vpop.permute.xlu0 %773
    %775 = vrot.lane.b32.xlu0 %v768, 112
    %v776 = vpop.permute.xlu0 %775
    %v777 = vld [vmem:[%s1] sm:$0x3]
    %v778 = vsub.f32 1.0, %v777
    %v779 = vmul.f32 %v778, -10000.0
    %v782 = vunpack.c.l.s4 1966171168
    %v783 = vunpack.c.0.s8 %v782
    %v784 = vlaneseq
    %v785 = vshrl.u32 %v784, 7
    %v786 = vsub.s32 %v783, %v785
    %v787 = vrot.slane %v779, %v786
    %v788 = vcombine.high %v787, %v787
    %v790 = vunpack.c.l.s4 1966171168
    %v791 = vunpack.c.0.s8 %v790
    %v792 = vlaneseq
    %v793 = vshrl.u32 %v792, 7
    %v794 = vsub.s32 %v791, %v793
    %v795 = vrot.slane %v787, %v794
    %v797 = vunpack.c.l.s4 1966171168
    %v798 = vunpack.c.0.s8 %v797
    %v799 = vlaneseq
    %v800 = vshrl.u32 %v799, 7
    %v801 = vsub.s32 %v798, %v800
    %v802 = vrot.slane %v788, %v801
    %803 = vrot.lane.b32.xlu0 %v762, 96
    %v804 = vpop.permute.xlu0 %803
    %vm805 = vcmask 130048
    %v806 = vsel %vm805, %v762, 0
    %v808 = vsel %vm805, %v804, 0
    %810 = vmatprep.subr.mxu0 0.0
    %v811 = vand.u32 %v808, 4294901760
    %812 = vmatpush1.xpose.msra.mxu0 %v811
    %813 = vmatprep.subr.mxu0 0.0
    %814 = vmatpush1.xpose.msra.mxu0 0.0
    %815 = vmatprep.subr.mxu0 0.0
    %816 = vmatpush1.xpose.msra.mxu0 0.0
    %817 = vmatprep.subr.mxu0 0.0
    %818 = vmatpush1.xpose.msra.mxu0 0.0
    %819 = vmatprep.subr.mxu0 0.0
    %820 = vmatpush1.xpose.msra.mxu0 0.0
    %821 = vmatprep.subr.mxu0 0.0
    %822 = vmatpush1.xpose.msra.mxu0 0.0
    %823 = vmatprep.subr.mxu0 0.0
    %824 = vmatpush1.xpose.msra.mxu0 0.0
    %825 = vmatprep.subr.mxu0 0.0
    %826 = vmatpush1.xpose.msra.mxu0 0.0
    %827 = vmatprep.subr.mxu0 0.0
    %828 = vmatpush1.xpose.msra.mxu0 0.0
    %829 = vmatprep.subr.mxu0 0.0
    %830 = vmatpush1.xpose.msra.mxu0 0.0
    %831 = vmatprep.subr.mxu0 0.0
    %832 = vmatpush1.xpose.msra.mxu0 0.0
    %833 = vmatprep.subr.mxu0 0.0
    %834 = vmatpush1.xpose.msra.mxu0 0.0
    %835 = vmatprep.subr.mxu0 0.0
    %836 = vmatpush1.xpose.msra.mxu0 0.0
    %837 = vmatprep.subr.mxu0 0.0
    %838 = vmatpush1.xpose.msra.mxu0 0.0
    %839 = vmatprep.subr.mxu0 0.0
    %840 = vmatpush1.xpose.msra.mxu0 0.0
    %841 = vmatprep.subr.mxu0 0.0
    %842 = vmatpush1.xpose.msra.mxu0 0.0
    %843 = vmatprep.subr.mxu0 0.0
    %844 = vmatpush1.xpose.msra.mxu0 0.0
    %845 = vmatprep.subr.mxu0 0.0
    %846 = vmatpush1.xpose.msra.mxu0 0.0
    %847 = vmatprep.subr.mxu0 0.0
    %848 = vmatpush1.xpose.msra.mxu0 0.0
    %849 = vmatprep.subr.mxu0 0.0
    %850 = vmatpush1.xpose.msra.mxu0 0.0
    %851 = vmatprep.subr.mxu0 0.0
    %852 = vmatpush1.xpose.msra.mxu0 0.0
    %853 = vmatprep.subr.mxu0 0.0
    %854 = vmatpush1.xpose.msra.mxu0 0.0
    %855 = vmatprep.subr.mxu0 0.0
    %856 = vmatpush1.xpose.msra.mxu0 0.0
    %857 = vmatprep.subr.mxu0 0.0
    %858 = vmatpush1.xpose.msra.mxu0 0.0
    %859 = vmatprep.subr.mxu0 0.0
    %860 = vmatpush1.xpose.msra.mxu0 0.0
    %861 = vmatprep.subr.mxu0 0.0
    %862 = vmatpush1.xpose.msra.mxu0 0.0
    %863 = vmatprep.subr.mxu0 0.0
    %864 = vmatpush1.xpose.msra.mxu0 0.0
    %865 = vmatprep.subr.mxu0 0.0
    %866 = vmatpush1.xpose.msra.mxu0 0.0
    %867 = vmatprep.subr.mxu0 0.0
    %868 = vmatpush1.xpose.msra.mxu0 0.0
    %869 = vmatprep.subr.mxu0 0.0
    %870 = vmatpush1.xpose.msra.mxu0 0.0
    %871 = vmatprep.subr.mxu0 0.0
    %872 = vmatpush1.xpose.msra.mxu0 0.0
    %873 = vmatprep.subr.mxu0 0.0
    %874 = vmatpush1.xpose.msra.mxu0 0.0
    %875 = vmatprep.mubr.f32.mxu0 0.0
    %v876 = vand.u32 %v806, 4294901760
    %v877 = vsub.f32 %v806, %v876
    %v878 = vand.u32 %v877, 4294901760
    %v879 = vsub.f32 %v877, %v878
    %v880 = vand.u32 %v879, 4294901760
    %881 = vmatmul.mubr.f32.gmra.mrb[0].mxu0 %v880
    %v882 = vpop.f32.mrb[0].mxu0
    %v883 = vadd.f32 0.0, %v882
    %v884 = vpop.f32.mrb[0].mxu0
    %885 = vdwg.mxu0
    %886 = vmatprep.subr.mxu0 0.0
    %v887 = vand.u32 %v808, 4294901760
    %v888 = vsub.f32 %v808, %v887
    %v889 = vand.u32 %v888, 4294901760
    %v890 = vsub.f32 %v888, %v889
    %v891 = vand.u32 %v890, 4294901760
    %892 = vmatpush1.xpose.msra.mxu0 %v891
    %893 = vmatprep.subr.mxu0 0.0
    %894 = vmatpush1.xpose.msra.mxu0 0.0
    %895 = vmatprep.subr.mxu0 0.0
    %896 = vmatpush1.xpose.msra.mxu0 0.0
    %897 = vmatprep.subr.mxu0 0.0
    %898 = vmatpush1.xpose.msra.mxu0 0.0
    %899 = vmatprep.subr.mxu0 0.0
    %900 = vmatpush1.xpose.msra.mxu0 0.0
    %901 = vmatprep.subr.mxu0 0.0
    %902 = vmatpush1.xpose.msra.mxu0 0.0
    %903 = vmatprep.subr.mxu0 0.0
    %904 = vmatpush1.xpose.msra.mxu0 0.0
    %905 = vmatprep.subr.mxu0 0.0
    %906 = vmatpush1.xpose.msra.mxu0 0.0
    %907 = vmatprep.subr.mxu0 0.0
    %908 = vmatpush1.xpose.msra.mxu0 0.0
    %909 = vmatprep.subr.mxu0 0.0
    %910 = vmatpush1.xpose.msra.mxu0 0.0
    %911 = vmatprep.subr.mxu0 0.0
    %912 = vmatpush1.xpose.msra.mxu0 0.0
    %913 = vmatprep.subr.mxu0 0.0
    %914 = vmatpush1.xpose.msra.mxu0 0.0
    %915 = vmatprep.subr.mxu0 0.0
    %916 = vmatpush1.xpose.msra.mxu0 0.0
    %917 = vmatprep.subr.mxu0 0.0
    %918 = vmatpush1.xpose.msra.mxu0 0.0
    %919 = vmatprep.subr.mxu0 0.0
    %920 = vmatpush1.xpose.msra.mxu0 0.0
    %921 = vmatprep.subr.mxu0 0.0
    %922 = vmatpush1.xpose.msra.mxu0 0.0
    %923 = vmatprep.subr.mxu0 0.0
    %924 = vmatpush1.xpose.msra.mxu0 0.0
    %925 = vmatprep.subr.mxu0 0.0
    %926 = vmatpush1.xpose.msra.mxu0 0.0
    %927 = vmatprep.subr.mxu0 0.0
    %928 = vmatpush1.xpose.msra.mxu0 0.0
    %929 = vmatprep.subr.mxu0 0.0
    %930 = vmatpush1.xpose.msra.mxu0 0.0
    %931 = vmatprep.subr.mxu0 0.0
    %932 = vmatpush1.xpose.msra.mxu0 0.0
    %933 = vmatprep.subr.mxu0 0.0
    %934 = vmatpush1.xpose.msra.mxu0 0.0
    %935 = vmatprep.subr.mxu0 0.0
    %936 = vmatpush1.xpose.msra.mxu0 0.0
    %937 = vmatprep.subr.mxu0 0.0
    %938 = vmatpush1.xpose.msra.mxu0 0.0
    %939 = vmatprep.subr.mxu0 0.0
    %940 = vmatpush1.xpose.msra.mxu0 0.0
    %941 = vmatprep.subr.mxu0 0.0
    %942 = vmatpush1.xpose.msra.mxu0 0.0
    %943 = vmatprep.subr.mxu0 0.0
    %944 = vmatpush1.xpose.msra.mxu0 0.0
    %945 = vmatprep.subr.mxu0 0.0
    %946 = vmatpush1.xpose.msra.mxu0 0.0
    %947 = vmatprep.subr.mxu0 0.0
    %948 = vmatpush1.xpose.msra.mxu0 0.0
    %949 = vmatprep.subr.mxu0 0.0
    %950 = vmatpush1.xpose.msra.mxu0 0.0
    %951 = vmatprep.subr.mxu0 0.0
    %952 = vmatpush1.xpose.msra.mxu0 0.0
    %953 = vmatprep.subr.mxu0 0.0
    %954 = vmatpush1.xpose.msra.mxu0 0.0
    %955 = vmatprep.mubr.f32.mxu0 0.0
    %v956 = vand.u32 %v806, 4294901760
    %957 = vmatmul.mubr.f32.gmra.mrb[0].mxu0 %v956
    %v958 = vpop.f32.mrb[0].mxu0
    %v959 = vadd.f32 %v883, %v958
    %v960 = vpop.f32.mrb[0].mxu0
    %961 = vdwg.mxu0
    %962 = vmatprep.subr.mxu0 0.0
    %v963 = vand.u32 %v808, 4294901760
    %v964 = vsub.f32 %v808, %v963
    %965 = vmatpush1.xpose.msra.mxu0 %v964
    %966 = vmatprep.subr.mxu0 0.0
    %967 = vmatpush1.xpose.msra.mxu0 0.0
    %968 = vmatprep.subr.mxu0 0.0
    %969 = vmatpush1.xpose.msra.mxu0 0.0
    %970 = vmatprep.subr.mxu0 0.0
    %971 = vmatpush1.xpose.msra.mxu0 0.0
    %972 = vmatprep.subr.mxu0 0.0
    %973 = vmatpush1.xpose.msra.mxu0 0.0
    %974 = vmatprep.subr.mxu0 0.0
    %975 = vmatpush1.xpose.msra.mxu0 0.0
    %976 = vmatprep.subr.mxu0 0.0
    %977 = vmatpush1.xpose.msra.mxu0 0.0
    %978 = vmatprep.subr.mxu0 0.0
    %979 = vmatpush1.xpose.msra.mxu0 0.0
    %980 = vmatprep.subr.mxu0 0.0
    %981 = vmatpush1.xpose.msra.mxu0 0.0
    %982 = vmatprep.subr.mxu0 0.0
    %983 = vmatpush1.xpose.msra.mxu0 0.0
    %984 = vmatprep.subr.mxu0 0.0
    %985 = vmatpush1.xpose.msra.mxu0 0.0
    %986 = vmatprep.subr.mxu0 0.0
    %987 = vmatpush1.xpose.msra.mxu0 0.0
    %988 = vmatprep.subr.mxu0 0.0
    %989 = vmatpush1.xpose.msra.mxu0 0.0
    %990 = vmatprep.subr.mxu0 0.0
    %991 = vmatpush1.xpose.msra.mxu0 0.0
    %992 = vmatprep.subr.mxu0 0.0
    %993 = vmatpush1.xpose.msra.mxu0 0.0
    %994 = vmatprep.subr.mxu0 0.0
    %995 = vmatpush1.xpose.msra.mxu0 0.0
    %996 = vmatprep.subr.mxu0 0.0
    %997 = vmatpush1.xpose.msra.mxu0 0.0
    %998 = vmatprep.subr.mxu0 0.0
    %999 = vmatpush1.xpose.msra.mxu0 0.0
    %1000 = vmatprep.subr.mxu0 0.0
    %1001 = vmatpush1.xpose.msra.mxu0 0.0
    %1002 = vmatprep.subr.mxu0 0.0
    %1003 = vmatpush1.xpose.msra.mxu0 0.0
    %1004 = vmatprep.subr.mxu0 0.0
    %1005 = vmatpush1.xpose.msra.mxu0 0.0
    %1006 = vmatprep.subr.mxu0 0.0
    %1007 = vmatpush1.xpose.msra.mxu0 0.0
    %1008 = vmatprep.subr.mxu0 0.0
    %1009 = vmatpush1.xpose.msra.mxu0 0.0
    %1010 = vmatprep.subr.mxu0 0.0
    %1011 = vmatpush1.xpose.msra.mxu0 0.0
    %1012 = vmatprep.subr.mxu0 0.0
    %1013 = vmatpush1.xpose.msra.mxu0 0.0
    %1014 = vmatprep.subr.mxu0 0.0
    %1015 = vmatpush1.xpose.msra.mxu0 0.0
    %1016 = vmatprep.subr.mxu0 0.0
    %1017 = vmatpush1.xpose.msra.mxu0 0.0
    %1018 = vmatprep.subr.mxu0 0.0
    %1019 = vmatpush1.xpose.msra.mxu0 0.0
    %1020 = vmatprep.subr.mxu0 0.0
    %1021 = vmatpush1.xpose.msra.mxu0 0.0
    %1022 = vmatprep.subr.mxu0 0.0
    %1023 = vmatpush1.xpose.msra.mxu0 0.0
    %1024 = vmatprep.subr.mxu0 0.0
    %1025 = vmatpush1.xpose.msra.mxu0 0.0
    %1026 = vmatprep.subr.mxu0 0.0
    %1027 = vmatpush1.xpose.msra.mxu0 0.0
    %1028 = vmatprep.mubr.f32.mxu0 0.0
    %v1029 = vand.u32 %v806, 4294901760
    %v1030 = vsub.f32 %v806, %v1029
    %1031 = vmatmul.mubr.f32.gmra.mrb[0].mxu0 %v1030
    %v1032 = vpop.f32.mrb[0].mxu0
    %v1033 = vadd.f32 %v959, %v1032
    %v1034 = vpop.f32.mrb[0].mxu0
    %1035 = vdwg.mxu0
    %1036 = vmatprep.subr.mxu0 0.0
    %v1037 = vand.u32 %v808, 4294901760
    %1038 = vmatpush1.xpose.msra.mxu0 %v1037
    %1039 = vmatprep.subr.mxu0 0.0
    %1040 = vmatpush1.xpose.msra.mxu0 0.0
    %1041 = vmatprep.subr.mxu0 0.0
    %1042 = vmatpush1.xpose.msra.mxu0 0.0
    %1043 = vmatprep.subr.mxu0 0.0
    %1044 = vmatpush1.xpose.msra.mxu0 0.0
    %1045 = vmatprep.subr.mxu0 0.0
    %1046 = vmatpush1.xpose.msra.mxu0 0.0
    %1047 = vmatprep.subr.mxu0 0.0
    %1048 = vmatpush1.xpose.msra.mxu0 0.0
    %1049 = vmatprep.subr.mxu0 0.0
    %1050 = vmatpush1.xpose.msra.mxu0 0.0
    %1051 = vmatprep.subr.mxu0 0.0
    %1052 = vmatpush1.xpose.msra.mxu0 0.0
    %1053 = vmatprep.subr.mxu0 0.0
    %1054 = vmatpush1.xpose.msra.mxu0 0.0
    %1055 = vmatprep.subr.mxu0 0.0
    %1056 = vmatpush1.xpose.msra.mxu0 0.0
    %1057 = vmatprep.subr.mxu0 0.0
    %1058 = vmatpush1.xpose.msra.mxu0 0.0
    %1059 = vmatprep.subr.mxu0 0.0
    %1060 = vmatpush1.xpose.msra.mxu0 0.0
    %1061 = vmatprep.subr.mxu0 0.0
    %1062 = vmatpush1.xpose.msra.mxu0 0.0
    %1063 = vmatprep.subr.mxu0 0.0
    %1064 = vmatpush1.xpose.msra.mxu0 0.0
    %1065 = vmatprep.subr.mxu0 0.0
    %1066 = vmatpush1.xpose.msra.mxu0 0.0
    %1067 = vmatprep.subr.mxu0 0.0
    %1068 = vmatpush1.xpose.msra.mxu0 0.0
    %1069 = vmatprep.subr.mxu0 0.0
    %1070 = vmatpush1.xpose.msra.mxu0 0.0
    %1071 = vmatprep.subr.mxu0 0.0
    %1072 = vmatpush1.xpose.msra.mxu0 0.0
    %1073 = vmatprep.subr.mxu0 0.0
    %1074 = vmatpush1.xpose.msra.mxu0 0.0
    %1075 = vmatprep.subr.mxu0 0.0
    %1076 = vmatpush1.xpose.msra.mxu0 0.0
    %1077 = vmatprep.subr.mxu0 0.0
    %1078 = vmatpush1.xpose.msra.mxu0 0.0
    %1079 = vmatprep.subr.mxu0 0.0
    %1080 = vmatpush1.xpose.msra.mxu0 0.0
    %1081 = vmatprep.subr.mxu0 0.0
    %1082 = vmatpush1.xpose.msra.mxu0 0.0
    %1083 = vmatprep.subr.mxu0 0.0
    %1084 = vmatpush1.xpose.msra.mxu0 0.0
    %1085 = vmatprep.subr.mxu0 0.0
    %1086 = vmatpush1.xpose.msra.mxu0 0.0
    %1087 = vmatprep.subr.mxu0 0.0
    %1088 = vmatpush1.xpose.msra.mxu0 0.0
    %1089 = vmatprep.subr.mxu0 0.0
    %1090 = vmatpush1.xpose.msra.mxu0 0.0
    %1091 = vmatprep.subr.mxu0 0.0
    %1092 = vmatpush1.xpose.msra.mxu0 0.0
    %1093 = vmatprep.subr.mxu0 0.0
    %1094 = vmatpush1.xpose.msra.mxu0 0.0
    %1095 = vmatprep.subr.mxu0 0.0
    %1096 = vmatpush1.xpose.msra.mxu0 0.0
    %1097 = vmatprep.subr.mxu0 0.0
    %1098 = vmatpush1.xpose.msra.mxu0 0.0
    %1099 = vmatprep.subr.mxu0 0.0
    %1100 = vmatpush1.xpose.msra.mxu0 0.0
    %1101 = vmatprep.mubr.f32.mxu0 0.0
    %v1102 = vand.u32 %v806, 4294901760
    %v1103 = vsub.f32 %v806, %v1102
    %v1104 = vand.u32 %v1103, 4294901760
    %1105 = vmatmul.mubr.f32.gmra.mrb[0].mxu0 %v1104
    %v1106 = vpop.f32.mrb[0].mxu0
    %v1107 = vadd.f32 %v1033, %v1106
    %v1108 = vpop.f32.mrb[0].mxu0
    %1109 = vdwg.mxu0
    %1110 = vmatprep.subr.mxu0 0.0
    %v1111 = vand.u32 %v808, 4294901760
    %v1112 = vsub.f32 %v808, %v1111
    %v1113 = vand.u32 %v1112, 4294901760
    %1114 = vmatpush1.xpose.msra.mxu0 %v1113
    %1115 = vmatprep.subr.mxu0 0.0
    %1116 = vmatpush1.xpose.msra.mxu0 0.0
    %1117 = vmatprep.subr.mxu0 0.0
    %1118 = vmatpush1.xpose.msra.mxu0 0.0
    %1119 = vmatprep.subr.mxu0 0.0
    %1120 = vmatpush1.xpose.msra.mxu0 0.0
    %1121 = vmatprep.subr.mxu0 0.0
    %1122 = vmatpush1.xpose.msra.mxu0 0.0
    %1123 = vmatprep.subr.mxu0 0.0
    %1124 = vmatpush1.xpose.msra.mxu0 0.0
    %1125 = vmatprep.subr.mxu0 0.0
    %1126 = vmatpush1.xpose.msra.mxu0 0.0
    %1127 = vmatprep.subr.mxu0 0.0
    %1128 = vmatpush1.xpose.msra.mxu0 0.0
    %1129 = vmatprep.subr.mxu0 0.0
    %1130 = vmatpush1.xpose.msra.mxu0 0.0
    %1131 = vmatprep.subr.mxu0 0.0
    %1132 = vmatpush1.xpose.msra.mxu0 0.0
    %1133 = vmatprep.subr.mxu0 0.0
    %1134 = vmatpush1.xpose.msra.mxu0 0.0
    %1135 = vmatprep.subr.mxu0 0.0
    %1136 = vmatpush1.xpose.msra.mxu0 0.0
    %1137 = vmatprep.subr.mxu0 0.0
    %1138 = vmatpush1.xpose.msra.mxu0 0.0
    %1139 = vmatprep.subr.mxu0 0.0
    %1140 = vmatpush1.xpose.msra.mxu0 0.0
    %1141 = vmatprep.subr.mxu0 0.0
    %1142 = vmatpush1.xpose.msra.mxu0 0.0
    %1143 = vmatprep.subr.mxu0 0.0
    %1144 = vmatpush1.xpose.msra.mxu0 0.0
    %1145 = vmatprep.subr.mxu0 0.0
    %1146 = vmatpush1.xpose.msra.mxu0 0.0
    %1147 = vmatprep.subr.mxu0 0.0
    %1148 = vmatpush1.xpose.msra.mxu0 0.0
    %1149 = vmatprep.subr.mxu0 0.0
    %1150 = vmatpush1.xpose.msra.mxu0 0.0
    %1151 = vmatprep.subr.mxu0 0.0
    %1152 = vmatpush1.xpose.msra.mxu0 0.0
    %1153 = vmatprep.subr.mxu0 0.0
    %1154 = vmatpush1.xpose.msra.mxu0 0.0
    %1155 = vmatprep.subr.mxu0 0.0
    %1156 = vmatpush1.xpose.msra.mxu0 0.0
    %1157 = vmatprep.subr.mxu0 0.0
    %1158 = vmatpush1.xpose.msra.mxu0 0.0
    %1159 = vmatprep.subr.mxu0 0.0
    %1160 = vmatpush1.xpose.msra.mxu0 0.0
    %1161 = vmatprep.subr.mxu0 0.0
    %1162 = vmatpush1.xpose.msra.mxu0 0.0
    %1163 = vmatprep.subr.mxu0 0.0
    %1164 = vmatpush1.xpose.msra.mxu0 0.0
    %1165 = vmatprep.subr.mxu0 0.0
    %1166 = vmatpush1.xpose.msra.mxu0 0.0
    %1167 = vmatprep.subr.mxu0 0.0
    %1168 = vmatpush1.xpose.msra.mxu0 0.0
    %1169 = vmatprep.subr.mxu0 0.0
    %1170 = vmatpush1.xpose.msra.mxu0 0.0
    %1171 = vmatprep.subr.mxu0 0.0
    %1172 = vmatpush1.xpose.msra.mxu0 0.0
    %1173 = vmatprep.subr.mxu0 0.0
    %1174 = vmatpush1.xpose.msra.mxu0 0.0
    %1175 = vmatprep.subr.mxu0 0.0
    %1176 = vmatpush1.xpose.msra.mxu0 0.0
    %1177 = vmatprep.mubr.f32.mxu0 0.0
    %v1178 = vand.u32 %v806, 4294901760
    %1179 = vmatmul.mubr.f32.gmra.mrb[0].mxu0 %v1178
    %v1180 = vpop.f32.mrb[0].mxu0
    %v1181 = vadd.f32 %v1107, %v1180
    %v1182 = vpop.f32.mrb[0].mxu0
    %1183 = vdwg.mxu0
    %1184 = vmatprep.subr.mxu0 0.0
    %v1185 = vand.u32 %v808, 4294901760
    %1186 = vmatpush1.xpose.msra.mxu0 %v1185
    %1187 = vmatprep.subr.mxu0 0.0
    %1188 = vmatpush1.xpose.msra.mxu0 0.0
    %1189 = vmatprep.subr.mxu0 0.0
    %1190 = vmatpush1.xpose.msra.mxu0 0.0
    %1191 = vmatprep.subr.mxu0 0.0
    %1192 = vmatpush1.xpose.msra.mxu0 0.0
    %1193 = vmatprep.subr.mxu0 0.0
    %1194 = vmatpush1.xpose.msra.mxu0 0.0
    %1195 = vmatprep.subr.mxu0 0.0
    %1196 = vmatpush1.xpose.msra.mxu0 0.0
    %1197 = vmatprep.subr.mxu0 0.0
    %1198 = vmatpush1.xpose.msra.mxu0 0.0
    %1199 = vmatprep.subr.mxu0 0.0
    %1200 = vmatpush1.xpose.msra.mxu0 0.0
    %1201 = vmatprep.subr.mxu0 0.0
    %1202 = vmatpush1.xpose.msra.mxu0 0.0
    %1203 = vmatprep.subr.mxu0 0.0
    %1204 = vmatpush1.xpose.msra.mxu0 0.0
    %1205 = vmatprep.subr.mxu0 0.0
    %1206 = vmatpush1.xpose.msra.mxu0 0.0
    %1207 = vmatprep.subr.mxu0 0.0
    %1208 = vmatpush1.xpose.msra.mxu0 0.0
    %1209 = vmatprep.subr.mxu0 0.0
    %1210 = vmatpush1.xpose.msra.mxu0 0.0
    %1211 = vmatprep.subr.mxu0 0.0
    %1212 = vmatpush1.xpose.msra.mxu0 0.0
    %1213 = vmatprep.subr.mxu0 0.0
    %1214 = vmatpush1.xpose.msra.mxu0 0.0
    %1215 = vmatprep.subr.mxu0 0.0
    %1216 = vmatpush1.xpose.msra.mxu0 0.0
    %1217 = vmatprep.subr.mxu0 0.0
    %1218 = vmatpush1.xpose.msra.mxu0 0.0
    %1219 = vmatprep.subr.mxu0 0.0
    %1220 = vmatpush1.xpose.msra.mxu0 0.0
    %1221 = vmatprep.subr.mxu0 0.0
    %1222 = vmatpush1.xpose.msra.mxu0 0.0
    %1223 = vmatprep.subr.mxu0 0.0
    %1224 = vmatpush1.xpose.msra.mxu0 0.0
    %1225 = vmatprep.subr.mxu0 0.0
    %1226 = vmatpush1.xpose.msra.mxu0 0.0
    %1227 = vmatprep.subr.mxu0 0.0
    %1228 = vmatpush1.xpose.msra.mxu0 0.0
    %1229 = vmatprep.subr.mxu0 0.0
    %1230 = vmatpush1.xpose.msra.mxu0 0.0
    %1231 = vmatprep.subr.mxu0 0.0
    %1232 = vmatpush1.xpose.msra.mxu0 0.0
    %1233 = vmatprep.subr.mxu0 0.0
    %1234 = vmatpush1.xpose.msra.mxu0 0.0
    %1235 = vmatprep.subr.mxu0 0.0
    %1236 = vmatpush1.xpose.msra.mxu0 0.0
    %1237 = vmatprep.subr.mxu0 0.0
    %1238 = vmatpush1.xpose.msra.mxu0 0.0
    %1239 = vmatprep.subr.mxu0 0.0
    %1240 = vmatpush1.xpose.msra.mxu0 0.0
    %1241 = vmatprep.subr.mxu0 0.0
    %1242 = vmatpush1.xpose.msra.mxu0 0.0
    %1243 = vmatprep.subr.mxu0 0.0
    %1244 = vmatpush1.xpose.msra.mxu0 0.0
    %1245 = vmatprep.subr.mxu0 0.0
    %1246 = vmatpush1.xpose.msra.mxu0 0.0
    %1247 = vmatprep.subr.mxu0 0.0
    %1248 = vmatpush1.xpose.msra.mxu0 0.0
    %1249 = vmatprep.mubr.f32.mxu0 0.0
    %v1250 = vand.u32 %v806, 4294901760
    %1251 = vmatmul.mubr.f32.gmra.mrb[0].mxu0 %v1250
    %v1252 = vpop.f32.mrb[0].mxu0
    %v1253 = vadd.f32 %v1181, %v1252
    %v1254 = vpop.f32.mrb[0].mxu0
    %1255 = vdwg.mxu0
    %1256 = vrot.lane.b32.xlu0 %v768, 96
    %v1257 = vpop.permute.xlu0 %1256
    %v1258 = vsel %vm805, %v768, 0
    %v1260 = vsel %vm805, %v1257, 0
    %1262 = vmatprep.subr.mxu0 0.0
    %v1263 = vand.u32 %v1260, 4294901760
    %1264 = vmatpush1.xpose.msra.mxu0 %v1263
    %1265 = vmatprep.subr.mxu0 0.0
    %1266 = vmatpush1.xpose.msra.mxu0 0.0
    %1267 = vmatprep.subr.mxu0 0.0
    %1268 = vmatpush1.xpose.msra.mxu0 0.0
    %1269 = vmatprep.subr.mxu0 0.0
    %1270 = vmatpush1.xpose.msra.mxu0 0.0
    %1271 = vmatprep.subr.mxu0 0.0
    %1272 = vmatpush1.xpose.msra.mxu0 0.0
    %1273 = vmatprep.subr.mxu0 0.0
    %1274 = vmatpush1.xpose.msra.mxu0 0.0
    %1275 = vmatprep.subr.mxu0 0.0
    %1276 = vmatpush1.xpose.msra.mxu0 0.0
    %1277 = vmatprep.subr.mxu0 0.0
    %1278 = vmatpush1.xpose.msra.mxu0 0.0
    %1279 = vmatprep.subr.mxu0 0.0
    %1280 = vmatpush1.xpose.msra.mxu0 0.0
    %1281 = vmatprep.subr.mxu0 0.0
    %1282 = vmatpush1.xpose.msra.mxu0 0.0
    %1283 = vmatprep.subr.mxu0 0.0
    %1284 = vmatpush1.xpose.msra.mxu0 0.0
    %1285 = vmatprep.subr.mxu0 0.0
    %1286 = vmatpush1.xpose.msra.mxu0 0.0
    %1287 = vmatprep.subr.mxu0 0.0
    %1288 = vmatpush1.xpose.msra.mxu0 0.0
    %1289 = vmatprep.subr.mxu0 0.0
    %1290 = vmatpush1.xpose.msra.mxu0 0.0
    %1291 = vmatprep.subr.mxu0 0.0
    %1292 = vmatpush1.xpose.msra.mxu0 0.0
    %1293 = vmatprep.subr.mxu0 0.0
    %1294 = vmatpush1.xpose.msra.mxu0 0.0
    %1295 = vmatprep.subr.mxu0 0.0
    %1296 = vmatpush1.xpose.msra.mxu0 0.0
    %1297 = vmatprep.subr.mxu0 0.0
    %1298 = vmatpush1.xpose.msra.mxu0 0.0
    %1299 = vmatprep.subr.mxu0 0.0
    %1300 = vmatpush1.xpose.msra.mxu0 0.0
    %1301 = vmatprep.subr.mxu0 0.0
    %1302 = vmatpush1.xpose.msra.mxu0 0.0
    %1303 = vmatprep.subr.mxu0 0.0
    %1304 = vmatpush1.xpose.msra.mxu0 0.0
    %1305 = vmatprep.subr.mxu0 0.0
    %1306 = vmatpush1.xpose.msra.mxu0 0.0
    %1307 = vmatprep.subr.mxu0 0.0
    %1308 = vmatpush1.xpose.msra.mxu0 0.0
    %1309 = vmatprep.subr.mxu0 0.0
    %1310 = vmatpush1.xpose.msra.mxu0 0.0
    %1311 = vmatprep.subr.mxu0 0.0
    %1312 = vmatpush1.xpose.msra.mxu0 0.0
    %1313 = vmatprep.subr.mxu0 0.0
    %1314 = vmatpush1.xpose.msra.mxu0 0.0
    %1315 = vmatprep.subr.mxu0 0.0
    %1316 = vmatpush1.xpose.msra.mxu0 0.0
    %1317 = vmatprep.subr.mxu0 0.0
    %1318 = vmatpush1.xpose.msra.mxu0 0.0
    %1319 = vmatprep.subr.mxu0 0.0
    %1320 = vmatpush1.xpose.msra.mxu0 0.0
    %1321 = vmatprep.subr.mxu0 0.0
    %1322 = vmatpush1.xpose.msra.mxu0 0.0
    %1323 = vmatprep.subr.mxu0 0.0
    %1324 = vmatpush1.xpose.msra.mxu0 0.0
    %1325 = vmatprep.subr.mxu0 0.0
    %1326 = vmatpush1.xpose.msra.mxu0 0.0
    %1327 = vmatprep.mubr.f32.mxu0 0.0
    %v1328 = vand.u32 %v1258, 4294901760
    %v1329 = vsub.f32 %v1258, %v1328
    %v1330 = vand.u32 %v1329, 4294901760
    %v1331 = vsub.f32 %v1329, %v1330
    %v1332 = vand.u32 %v1331, 4294901760
    %1333 = vmatmul.mubr.f32.gmra.mrb[0].mxu0 %v1332
    %v1334 = vpop.f32.mrb[0].mxu0
    %v1335 = vadd.f32 0.0, %v1334
    %v1336 = vpop.f32.mrb[0].mxu0
    %1337 = vdwg.mxu0
    %1338 = vmatprep.subr.mxu0 0.0
    %v1339 = vand.u32 %v1260, 4294901760
    %v1340 = vsub.f32 %v1260, %v1339
    %v1341 = vand.u32 %v1340, 4294901760
    %v1342 = vsub.f32 %v1340, %v1341
    %v1343 = vand.u32 %v1342, 4294901760
    %1344 = vmatpush1.xpose.msra.mxu0 %v1343
    %1345 = vmatprep.subr.mxu0 0.0
    %1346 = vmatpush1.xpose.msra.mxu0 0.0
    %1347 = vmatprep.subr.mxu0 0.0
    %1348 = vmatpush1.xpose.msra.mxu0 0.0
    %1349 = vmatprep.subr.mxu0 0.0
    %1350 = vmatpush1.xpose.msra.mxu0 0.0
    %1351 = vmatprep.subr.mxu0 0.0
    %1352 = vmatpush1.xpose.msra.mxu0 0.0
    %1353 = vmatprep.subr.mxu0 0.0
    %1354 = vmatpush1.xpose.msra.mxu0 0.0
    %1355 = vmatprep.subr.mxu0 0.0
    %1356 = vmatpush1.xpose.msra.mxu0 0.0
    %1357 = vmatprep.subr.mxu0 0.0
    %1358 = vmatpush1.xpose.msra.mxu0 0.0
    %1359 = vmatprep.subr.mxu0 0.0
    %1360 = vmatpush1.xpose.msra.mxu0 0.0
    %1361 = vmatprep.subr.mxu0 0.0
    %1362 = vmatpush1.xpose.msra.mxu0 0.0
    %1363 = vmatprep.subr.mxu0 0.0
    %1364 = vmatpush1.xpose.msra.mxu0 0.0
    %1365 = vmatprep.subr.mxu0 0.0
    %1366 = vmatpush1.xpose.msra.mxu0 0.0
    %1367 = vmatprep.subr.mxu0 0.0
    %1368 = vmatpush1.xpose.msra.mxu0 0.0
    %1369 = vmatprep.subr.mxu0 0.0
    %1370 = vmatpush1.xpose.msra.mxu0 0.0
    %1371 = vmatprep.subr.mxu0 0.0
    %1372 = vmatpush1.xpose.msra.mxu0 0.0
    %1373 = vmatprep.subr.mxu0 0.0
    %1374 = vmatpush1.xpose.msra.mxu0 0.0
    %1375 = vmatprep.subr.mxu0 0.0
    %1376 = vmatpush1.xpose.msra.mxu0 0.0
    %1377 = vmatprep.subr.mxu0 0.0
    %1378 = vmatpush1.xpose.msra.mxu0 0.0
    %1379 = vmatprep.subr.mxu0 0.0
    %1380 = vmatpush1.xpose.msra.mxu0 0.0
    %1381 = vmatprep.subr.mxu0 0.0
    %1382 = vmatpush1.xpose.msra.mxu0 0.0
    %1383 = vmatprep.subr.mxu0 0.0
    %1384 = vmatpush1.xpose.msra.mxu0 0.0
    %1385 = vmatprep.subr.mxu0 0.0
    %1386 = vmatpush1.xpose.msra.mxu0 0.0
    %1387 = vmatprep.subr.mxu0 0.0
    %1388 = vmatpush1.xpose.msra.mxu0 0.0
    %1389 = vmatprep.subr.mxu0 0.0
    %1390 = vmatpush1.xpose.msra.mxu0 0.0
    %1391 = vmatprep.subr.mxu0 0.0
    %1392 = vmatpush1.xpose.msra.mxu0 0.0
    %1393 = vmatprep.subr.mxu0 0.0
    %1394 = vmatpush1.xpose.msra.mxu0 0.0
    %1395 = vmatprep.subr.mxu0 0.0
    %1396 = vmatpush1.xpose.msra.mxu0 0.0
    %1397 = vmatprep.subr.mxu0 0.0
    %1398 = vmatpush1.xpose.msra.mxu0 0.0
    %1399 = vmatprep.subr.mxu0 0.0
    %1400 = vmatpush1.xpose.msra.mxu0 0.0
    %1401 = vmatprep.subr.mxu0 0.0
    %1402 = vmatpush1.xpose.msra.mxu0 0.0
    %1403 = vmatprep.subr.mxu0 0.0
    %1404 = vmatpush1.xpose.msra.mxu0 0.0
    %1405 = vmatprep.subr.mxu0 0.0
    %1406 = vmatpush1.xpose.msra.mxu0 0.0
    %1407 = vmatprep.mubr.f32.mxu0 0.0
    %v1408 = vand.u32 %v1258, 4294901760
    %1409 = vmatmul.mubr.f32.gmra.mrb[0].mxu0 %v1408
    %v1410 = vpop.f32.mrb[0].mxu0
    %v1411 = vadd.f32 %v1335, %v1410
    %v1412 = vpop.f32.mrb[0].mxu0
    %1413 = vdwg.mxu0
    %1414 = vmatprep.subr.mxu0 0.0
    %v1415 = vand.u32 %v1260, 4294901760
    %v1416 = vsub.f32 %v1260, %v1415
    %1417 = vmatpush1.xpose.msra.mxu0 %v1416
    %1418 = vmatprep.subr.mxu0 0.0
    %1419 = vmatpush1.xpose.msra.mxu0 0.0
    %1420 = vmatprep.subr.mxu0 0.0
    %1421 = vmatpush1.xpose.msra.mxu0 0.0
    %1422 = vmatprep.subr.mxu0 0.0
    %1423 = vmatpush1.xpose.msra.mxu0 0.0
    %1424 = vmatprep.subr.mxu0 0.0
    %1425 = vmatpush1.xpose.msra.mxu0 0.0
    %1426 = vmatprep.subr.mxu0 0.0
    %1427 = vmatpush1.xpose.msra.mxu0 0.0
    %1428 = vmatprep.subr.mxu0 0.0
    %1429 = vmatpush1.xpose.msra.mxu0 0.0
    %1430 = vmatprep.subr.mxu0 0.0
    %1431 = vmatpush1.xpose.msra.mxu0 0.0
    %1432 = vmatprep.subr.mxu0 0.0
    %1433 = vmatpush1.xpose.msra.mxu0 0.0
    %1434 = vmatprep.subr.mxu0 0.0
    %1435 = vmatpush1.xpose.msra.mxu0 0.0
    %1436 = vmatprep.subr.mxu0 0.0
    %1437 = vmatpush1.xpose.msra.mxu0 0.0
    %1438 = vmatprep.subr.mxu0 0.0
    %1439 = vmatpush1.xpose.msra.mxu0 0.0
    %1440 = vmatprep.subr.mxu0 0.0
    %1441 = vmatpush1.xpose.msra.mxu0 0.0
    %1442 = vmatprep.subr.mxu0 0.0
    %1443 = vmatpush1.xpose.msra.mxu0 0.0
    %1444 = vmatprep.subr.mxu0 0.0
    %1445 = vmatpush1.xpose.msra.mxu0 0.0
    %1446 = vmatprep.subr.mxu0 0.0
    %1447 = vmatpush1.xpose.msra.mxu0 0.0
    %1448 = vmatprep.subr.mxu0 0.0
    %1449 = vmatpush1.xpose.msra.mxu0 0.0
    %1450 = vmatprep.subr.mxu0 0.0
    %1451 = vmatpush1.xpose.msra.mxu0 0.0
    %1452 = vmatprep.subr.mxu0 0.0
    %1453 = vmatpush1.xpose.msra.mxu0 0.0
    %1454 = vmatprep.subr.mxu0 0.0
    %1455 = vmatpush1.xpose.msra.mxu0 0.0
    %1456 = vmatprep.subr.mxu0 0.0
    %1457 = vmatpush1.xpose.msra.mxu0 0.0
    %1458 = vmatprep.subr.mxu0 0.0
    %1459 = vmatpush1.xpose.msra.mxu0 0.0
    %1460 = vmatprep.subr.mxu0 0.0
    %1461 = vmatpush1.xpose.msra.mxu0 0.0
    %1462 = vmatprep.subr.mxu0 0.0
    %1463 = vmatpush1.xpose.msra.mxu0 0.0
    %1464 = vmatprep.subr.mxu0 0.0
    %1465 = vmatpush1.xpose.msra.mxu0 0.0
    %1466 = vmatprep.subr.mxu0 0.0
    %1467 = vmatpush1.xpose.msra.mxu0 0.0
    %1468 = vmatprep.subr.mxu0 0.0
    %1469 = vmatpush1.xpose.msra.mxu0 0.0
    %1470 = vmatprep.subr.mxu0 0.0
    %1471 = vmatpush1.xpose.msra.mxu0 0.0
    %1472 = vmatprep.subr.mxu0 0.0
    %1473 = vmatpush1.xpose.msra.mxu0 0.0
    %1474 = vmatprep.subr.mxu0 0.0
    %1475 = vmatpush1.xpose.msra.mxu0 0.0
    %1476 = vmatprep.subr.mxu0 0.0
    %1477 = vmatpush1.xpose.msra.mxu0 0.0
    %1478 = vmatprep.subr.mxu0 0.0
    %1479 = vmatpush1.xpose.msra.mxu0 0.0
    %1480 = vmatprep.mubr.f32.mxu0 0.0
    %v1481 = vand.u32 %v1258, 4294901760
    %v1482 = vsub.f32 %v1258, %v1481
    %1483 = vmatmul.mubr.f32.gmra.mrb[0].mxu0 %v1482
    %v1484 = vpop.f32.mrb[0].mxu0
    %v1485 = vadd.f32 %v1411, %v1484
    %v1486 = vpop.f32.mrb[0].mxu0
    %1487 = vdwg.mxu0
    %1488 = vmatprep.subr.mxu0 0.0
    %v1489 = vand.u32 %v1260, 4294901760
    %1490 = vmatpush1.xpose.msra.mxu0 %v1489
    %1491 = vmatprep.subr.mxu0 0.0
    %1492 = vmatpush1.xpose.msra.mxu0 0.0
    %1493 = vmatprep.subr.mxu0 0.0
    %1494 = vmatpush1.xpose.msra.mxu0 0.0
    %1495 = vmatprep.subr.mxu0 0.0
    %1496 = vmatpush1.xpose.msra.mxu0 0.0
    %1497 = vmatprep.subr.mxu0 0.0
    %1498 = vmatpush1.xpose.msra.mxu0 0.0
    %1499 = vmatprep.subr.mxu0 0.0
    %1500 = vmatpush1.xpose.msra.mxu0 0.0
    %1501 = vmatprep.subr.mxu0 0.0
    %1502 = vmatpush1.xpose.msra.mxu0 0.0
    %1503 = vmatprep.subr.mxu0 0.0
    %1504 = vmatpush1.xpose.msra.mxu0 0.0
    %1505 = vmatprep.subr.mxu0 0.0
    %1506 = vmatpush1.xpose.msra.mxu0 0.0
    %1507 = vmatprep.subr.mxu0 0.0
    %1508 = vmatpush1.xpose.msra.mxu0 0.0
    %1509 = vmatprep.subr.mxu0 0.0
    %1510 = vmatpush1.xpose.msra.mxu0 0.0
    %1511 = vmatprep.subr.mxu0 0.0
    %1512 = vmatpush1.xpose.msra.mxu0 0.0
    %1513 = vmatprep.subr.mxu0 0.0
    %1514 = vmatpush1.xpose.msra.mxu0 0.0
    %1515 = vmatprep.subr.mxu0 0.0
    %1516 = vmatpush1.xpose.msra.mxu0 0.0
    %1517 = vmatprep.subr.mxu0 0.0
    %1518 = vmatpush1.xpose.msra.mxu0 0.0
    %1519 = vmatprep.subr.mxu0 0.0
    %1520 = vmatpush1.xpose.msra.mxu0 0.0
    %1521 = vmatprep.subr.mxu0 0.0
    %1522 = vmatpush1.xpose.msra.mxu0 0.0
    %1523 = vmatprep.subr.mxu0 0.0
    %1524 = vmatpush1.xpose.msra.mxu0 0.0
    %1525 = vmatprep.subr.mxu0 0.0
    %1526 = vmatpush1.xpose.msra.mxu0 0.0
    %1527 = vmatprep.subr.mxu0 0.0
    %1528 = vmatpush1.xpose.msra.mxu0 0.0
    %1529 = vmatprep.subr.mxu0 0.0
    %1530 = vmatpush1.xpose.msra.mxu0 0.0
    %1531 = vmatprep.subr.mxu0 0.0
    %1532 = vmatpush1.xpose.msra.mxu0 0.0
    %1533 = vmatprep.subr.mxu0 0.0
    %1534 = vmatpush1.xpose.msra.mxu0 0.0
    %1535 = vmatprep.subr.mxu0 0.0
    %1536 = vmatpush1.xpose.msra.mxu0 0.0
    %1537 = vmatprep.subr.mxu0 0.0
    %1538 = vmatpush1.xpose.msra.mxu0 0.0
    %1539 = vmatprep.subr.mxu0 0.0
    %1540 = vmatpush1.xpose.msra.mxu0 0.0
    %1541 = vmatprep.subr.mxu0 0.0
    %1542 = vmatpush1.xpose.msra.mxu0 0.0
    %1543 = vmatprep.subr.mxu0 0.0
    %1544 = vmatpush1.xpose.msra.mxu0 0.0
    %1545 = vmatprep.subr.mxu0 0.0
    %1546 = vmatpush1.xpose.msra.mxu0 0.0
    %1547 = vmatprep.subr.mxu0 0.0
    %1548 = vmatpush1.xpose.msra.mxu0 0.0
    %1549 = vmatprep.subr.mxu0 0.0
    %1550 = vmatpush1.xpose.msra.mxu0 0.0
    %1551 = vmatprep.subr.mxu0 0.0
    %1552 = vmatpush1.xpose.msra.mxu0 0.0
    %1553 = vmatprep.mubr.f32.mxu0 0.0
    %v1554 = vand.u32 %v1258, 4294901760
    %v1555 = vsub.f32 %v1258, %v1554
    %v1556 = vand.u32 %v1555, 4294901760
    %1557 = vmatmul.mubr.f32.gmra.mrb[0].mxu0 %v1556
    %v1558 = vpop.f32.mrb[0].mxu0
    %v1559 = vadd.f32 %v1485, %v1558
    %v1560 = vpop.f32.mrb[0].mxu0
    %1561 = vdwg.mxu0
    %1562 = vmatprep.subr.mxu0 0.0
    %v1563 = vand.u32 %v1260, 4294901760
    %v1564 = vsub.f32 %v1260, %v1563
    %v1565 = vand.u32 %v1564, 4294901760
    %1566 = vmatpush1.xpose.msra.mxu0 %v1565
    %1567 = vmatprep.subr.mxu0 0.0
    %1568 = vmatpush1.xpose.msra.mxu0 0.0
    %1569 = vmatprep.subr.mxu0 0.0
    %1570 = vmatpush1.xpose.msra.mxu0 0.0
    %1571 = vmatprep.subr.mxu0 0.0
    %1572 = vmatpush1.xpose.msra.mxu0 0.0
    %1573 = vmatprep.subr.mxu0 0.0
    %1574 = vmatpush1.xpose.msra.mxu0 0.0
    %1575 = vmatprep.subr.mxu0 0.0
    %1576 = vmatpush1.xpose.msra.mxu0 0.0
    %1577 = vmatprep.subr.mxu0 0.0
    %1578 = vmatpush1.xpose.msra.mxu0 0.0
    %1579 = vmatprep.subr.mxu0 0.0
    %1580 = vmatpush1.xpose.msra.mxu0 0.0
    %1581 = vmatprep.subr.mxu0 0.0
    %1582 = vmatpush1.xpose.msra.mxu0 0.0
    %1583 = vmatprep.subr.mxu0 0.0
    %1584 = vmatpush1.xpose.msra.mxu0 0.0
    %1585 = vmatprep.subr.mxu0 0.0
    %1586 = vmatpush1.xpose.msra.mxu0 0.0
    %1587 = vmatprep.subr.mxu0 0.0
    %1588 = vmatpush1.xpose.msra.mxu0 0.0
    %1589 = vmatprep.subr.mxu0 0.0
    %1590 = vmatpush1.xpose.msra.mxu0 0.0
    %1591 = vmatprep.subr.mxu0 0.0
    %1592 = vmatpush1.xpose.msra.mxu0 0.0
    %1593 = vmatprep.subr.mxu0 0.0
    %1594 = vmatpush1.xpose.msra.mxu0 0.0
    %1595 = vmatprep.subr.mxu0 0.0
    %1596 = vmatpush1.xpose.msra.mxu0 0.0
    %1597 = vmatprep.subr.mxu0 0.0
    %1598 = vmatpush1.xpose.msra.mxu0 0.0
    %1599 = vmatprep.subr.mxu0 0.0
    %1600 = vmatpush1.xpose.msra.mxu0 0.0
    %1601 = vmatprep.subr.mxu0 0.0
    %1602 = vmatpush1.xpose.msra.mxu0 0.0
    %1603 = vmatprep.subr.mxu0 0.0
    %1604 = vmatpush1.xpose.msra.mxu0 0.0
    %1605 = vmatprep.subr.mxu0 0.0
    %1606 = vmatpush1.xpose.msra.mxu0 0.0
    %1607 = vmatprep.subr.mxu0 0.0
    %1608 = vmatpush1.xpose.msra.mxu0 0.0
    %1609 = vmatprep.subr.mxu0 0.0
    %1610 = vmatpush1.xpose.msra.mxu0 0.0
    %1611 = vmatprep.subr.mxu0 0.0
    %1612 = vmatpush1.xpose.msra.mxu0 0.0
    %1613 = vmatprep.subr.mxu0 0.0
    %1614 = vmatpush1.xpose.msra.mxu0 0.0
    %1615 = vmatprep.subr.mxu0 0.0
    %1616 = vmatpush1.xpose.msra.mxu0 0.0
    %1617 = vmatprep.subr.mxu0 0.0
    %1618 = vmatpush1.xpose.msra.mxu0 0.0
    %1619 = vmatprep.subr.mxu0 0.0
    %1620 = vmatpush1.xpose.msra.mxu0 0.0
    %1621 = vmatprep.subr.mxu0 0.0
    %1622 = vmatpush1.xpose.msra.mxu0 0.0
    %1623 = vmatprep.subr.mxu0 0.0
    %1624 = vmatpush1.xpose.msra.mxu0 0.0
    %1625 = vmatprep.subr.mxu0 0.0
    %1626 = vmatpush1.xpose.msra.mxu0 0.0
    %1627 = vmatprep.subr.mxu0 0.0
    %1628 = vmatpush1.xpose.msra.mxu0 0.0
    %1629 = vmatprep.mubr.f32.mxu0 0.0
    %v1630 = vand.u32 %v1258, 4294901760
    %1631 = vmatmul.mubr.f32.gmra.mrb[0].mxu0 %v1630
    %v1632 = vpop.f32.mrb[0].mxu0
    %v1633 = vadd.f32 %v1559, %v1632
    %v1634 = vpop.f32.mrb[0].mxu0
    %1635 = vdwg.mxu0
    %1636 = vmatprep.subr.mxu0 0.0
    %v1637 = vand.u32 %v1260, 4294901760
    %1638 = vmatpush1.xpose.msra.mxu0 %v1637
    %1639 = vmatprep.subr.mxu0 0.0
    %1640 = vmatpush1.xpose.msra.mxu0 0.0
    %1641 = vmatprep.subr.mxu0 0.0
    %1642 = vmatpush1.xpose.msra.mxu0 0.0
    %1643 = vmatprep.subr.mxu0 0.0
    %1644 = vmatpush1.xpose.msra.mxu0 0.0
    %1645 = vmatprep.subr.mxu0 0.0
    %1646 = vmatpush1.xpose.msra.mxu0 0.0
    %1647 = vmatprep.subr.mxu0 0.0
    %1648 = vmatpush1.xpose.msra.mxu0 0.0
    %1649 = vmatprep.subr.mxu0 0.0
    %1650 = vmatpush1.xpose.msra.mxu0 0.0
    %1651 = vmatprep.subr.mxu0 0.0
    %1652 = vmatpush1.xpose.msra.mxu0 0.0
    %1653 = vmatprep.subr.mxu0 0.0
    %1654 = vmatpush1.xpose.msra.mxu0 0.0
    %1655 = vmatprep.subr.mxu0 0.0
    %1656 = vmatpush1.xpose.msra.mxu0 0.0
    %1657 = vmatprep.subr.mxu0 0.0
    %1658 = vmatpush1.xpose.msra.mxu0 0.0
    %1659 = vmatprep.subr.mxu0 0.0
    %1660 = vmatpush1.xpose.msra.mxu0 0.0
    %1661 = vmatprep.subr.mxu0 0.0
    %1662 = vmatpush1.xpose.msra.mxu0 0.0
    %1663 = vmatprep.subr.mxu0 0.0
    %1664 = vmatpush1.xpose.msra.mxu0 0.0
    %1665 = vmatprep.subr.mxu0 0.0
    %1666 = vmatpush1.xpose.msra.mxu0 0.0
    %1667 = vmatprep.subr.mxu0 0.0
    %1668 = vmatpush1.xpose.msra.mxu0 0.0
    %1669 = vmatprep.subr.mxu0 0.0
    %1670 = vmatpush1.xpose.msra.mxu0 0.0
    %1671 = vmatprep.subr.mxu0 0.0
    %1672 = vmatpush1.xpose.msra.mxu0 0.0
    %1673 = vmatprep.subr.mxu0 0.0
    %1674 = vmatpush1.xpose.msra.mxu0 0.0
    %1675 = vmatprep.subr.mxu0 0.0
    %1676 = vmatpush1.xpose.msra.mxu0 0.0
    %1677 = vmatprep.subr.mxu0 0.0
    %1678 = vmatpush1.xpose.msra.mxu0 0.0
    %1679 = vmatprep.subr.mxu0 0.0
    %1680 = vmatpush1.xpose.msra.mxu0 0.0
    %1681 = vmatprep.subr.mxu0 0.0
    %1682 = vmatpush1.xpose.msra.mxu0 0.0
    %1683 = vmatprep.subr.mxu0 0.0
    %1684 = vmatpush1.xpose.msra.mxu0 0.0
    %1685 = vmatprep.subr.mxu0 0.0
    %1686 = vmatpush1.xpose.msra.mxu0 0.0
    %1687 = vmatprep.subr.mxu0 0.0
    %1688 = vmatpush1.xpose.msra.mxu0 0.0
    %1689 = vmatprep.subr.mxu0 0.0
    %1690 = vmatpush1.xpose.msra.mxu0 0.0
    %1691 = vmatprep.subr.mxu0 0.0
    %1692 = vmatpush1.xpose.msra.mxu0 0.0
    %1693 = vmatprep.subr.mxu0 0.0
    %1694 = vmatpush1.xpose.msra.mxu0 0.0
    %1695 = vmatprep.subr.mxu0 0.0
    %1696 = vmatpush1.xpose.msra.mxu0 0.0
    %1697 = vmatprep.subr.mxu0 0.0
    %1698 = vmatpush1.xpose.msra.mxu0 0.0
    %1699 = vmatprep.subr.mxu0 0.0
    %1700 = vmatpush1.xpose.msra.mxu0 0.0
    %1701 = vmatprep.mubr.f32.mxu0 0.0
    %v1702 = vand.u32 %v1258, 4294901760
    %1703 = vmatmul.mubr.f32.gmra.mrb[0].mxu0 %v1702
    %v1704 = vpop.f32.mrb[0].mxu0
    %v1705 = vadd.f32 %v1633, %v1704
    %v1706 = vpop.f32.mrb[0].mxu0
    %1707 = vdwg.mxu0
    %1708 = vrot.lane.b32.xlu0 %v774, 96
    %v1709 = vpop.permute.xlu0 %1708
    %v1710 = vsel %vm805, %v774, 0
    %v1712 = vsel %vm805, %v1709, 0
    %1714 = vmatprep.subr.mxu0 0.0
    %v1715 = vand.u32 %v1712, 4294901760
    %1716 = vmatpush1.xpose.msra.mxu0 %v1715
    %1717 = vmatprep.subr.mxu0 0.0
    %1718 = vmatpush1.xpose.msra.mxu0 0.0
    %1719 = vmatprep.subr.mxu0 0.0
    %1720 = vmatpush1.xpose.msra.mxu0 0.0
    %1721 = vmatprep.subr.mxu0 0.0
    %1722 = vmatpush1.xpose.msra.mxu0 0.0
    %1723 = vmatprep.subr.mxu0 0.0
    %1724 = vmatpush1.xpose.msra.mxu0 0.0
    %1725 = vmatprep.subr.mxu0 0.0
    %1726 = vmatpush1.xpose.msra.mxu0 0.0
    %1727 = vmatprep.subr.mxu0 0.0
    %1728 = vmatpush1.xpose.msra.mxu0 0.0
    %1729 = vmatprep.subr.mxu0 0.0
    %1730 = vmatpush1.xpose.msra.mxu0 0.0
    %1731 = vmatprep.subr.mxu0 0.0
    %1732 = vmatpush1.xpose.msra.mxu0 0.0
    %1733 = vmatprep.subr.mxu0 0.0
    %1734 = vmatpush1.xpose.msra.mxu0 0.0
    %1735 = vmatprep.subr.mxu0 0.0
    %1736 = vmatpush1.xpose.msra.mxu0 0.0
    %1737 = vmatprep.subr.mxu0 0.0
    %1738 = vmatpush1.xpose.msra.mxu0 0.0
    %1739 = vmatprep.subr.mxu0 0.0
    %1740 = vmatpush1.xpose.msra.mxu0 0.0
    %1741 = vmatprep.subr.mxu0 0.0
    %1742 = vmatpush1.xpose.msra.mxu0 0.0
    %1743 = vmatprep.subr.mxu0 0.0
    %1744 = vmatpush1.xpose.msra.mxu0 0.0
    %1745 = vmatprep.subr.mxu0 0.0
    %1746 = vmatpush1.xpose.msra.mxu0 0.0
    %1747 = vmatprep.subr.mxu0 0.0
    %1748 = vmatpush1.xpose.msra.mxu0 0.0
    %1749 = vmatprep.subr.mxu0 0.0
    %1750 = vmatpush1.xpose.msra.mxu0 0.0
    %1751 = vmatprep.subr.mxu0 0.0
    %1752 = vmatpush1.xpose.msra.mxu0 0.0
    %1753 = vmatprep.subr.mxu0 0.0
    %1754 = vmatpush1.xpose.msra.mxu0 0.0
    %1755 = vmatprep.subr.mxu0 0.0
    %1756 = vmatpush1.xpose.msra.mxu0 0.0
    %1757 = vmatprep.subr.mxu0 0.0
    %1758 = vmatpush1.xpose.msra.mxu0 0.0
    %1759 = vmatprep.subr.mxu0 0.0
    %1760 = vmatpush1.xpose.msra.mxu0 0.0
    %1761 = vmatprep.subr.mxu0 0.0
    %1762 = vmatpush1.xpose.msra.mxu0 0.0
    %1763 = vmatprep.subr.mxu0 0.0
    %1764 = vmatpush1.xpose.msra.mxu0 0.0
    %1765 = vmatprep.subr.mxu0 0.0
    %1766 = vmatpush1.xpose.msra.mxu0 0.0
    %1767 = vmatprep.subr.mxu0 0.0
    %1768 = vmatpush1.xpose.msra.mxu0 0.0
    %1769 = vmatprep.subr.mxu0 0.0
    %1770 = vmatpush1.xpose.msra.mxu0 0.0
    %1771 = vmatprep.subr.mxu0 0.0
    %1772 = vmatpush1.xpose.msra.mxu0 0.0
    %1773 = vmatprep.subr.mxu0 0.0
    %1774 = vmatpush1.xpose.msra.mxu0 0.0
    %1775 = vmatprep.subr.mxu0 0.0
    %1776 = vmatpush1.xpose.msra.mxu0 0.0
    %1777 = vmatprep.subr.mxu0 0.0
    %1778 = vmatpush1.xpose.msra.mxu0 0.0
    %1779 = vmatprep.mubr.f32.mxu0 0.0
    %v1780 = vand.u32 %v1710, 4294901760
    %v1781 = vsub.f32 %v1710, %v1780
    %v1782 = vand.u32 %v1781, 4294901760
    %v1783 = vsub.f32 %v1781, %v1782
    %v1784 = vand.u32 %v1783, 4294901760
    %1785 = vmatmul.mubr.f32.gmra.mrb[0].mxu0 %v1784
    %v1786 = vpop.f32.mrb[0].mxu0
    %v1787 = vadd.f32 0.0, %v1786
    %v1788 = vpop.f32.mrb[0].mxu0
    %1789 = vdwg.mxu0
    %1790 = vmatprep.subr.mxu0 0.0
    %v1791 = vand.u32 %v1712, 4294901760
    %v1792 = vsub.f32 %v1712, %v1791
    %v1793 = vand.u32 %v1792, 4294901760
    %v1794 = vsub.f32 %v1792, %v1793
    %v1795 = vand.u32 %v1794, 4294901760
    %1796 = vmatpush1.xpose.msra.mxu0 %v1795
    %1797 = vmatprep.subr.mxu0 0.0
    %1798 = vmatpush1.xpose.msra.mxu0 0.0
    %1799 = vmatprep.subr.mxu0 0.0
    %1800 = vmatpush1.xpose.msra.mxu0 0.0
    %1801 = vmatprep.subr.mxu0 0.0
    %1802 = vmatpush1.xpose.msra.mxu0 0.0
    %1803 = vmatprep.subr.mxu0 0.0
    %1804 = vmatpush1.xpose.msra.mxu0 0.0
    %1805 = vmatprep.subr.mxu0 0.0
    %1806 = vmatpush1.xpose.msra.mxu0 0.0
    %1807 = vmatprep.subr.mxu0 0.0
    %1808 = vmatpush1.xpose.msra.mxu0 0.0
    %1809 = vmatprep.subr.mxu0 0.0
    %1810 = vmatpush1.xpose.msra.mxu0 0.0
    %1811 = vmatprep.subr.mxu0 0.0
    %1812 = vmatpush1.xpose.msra.mxu0 0.0
    %1813 = vmatprep.subr.mxu0 0.0
    %1814 = vmatpush1.xpose.msra.mxu0 0.0
    %1815 = vmatprep.subr.mxu0 0.0
    %1816 = vmatpush1.xpose.msra.mxu0 0.0
    %1817 = vmatprep.subr.mxu0 0.0
    %1818 = vmatpush1.xpose.msra.mxu0 0.0
    %1819 = vmatprep.subr.mxu0 0.0
    %1820 = vmatpush1.xpose.msra.mxu0 0.0
    %1821 = vmatprep.subr.mxu0 0.0
    %1822 = vmatpush1.xpose.msra.mxu0 0.0
    %1823 = vmatprep.subr.mxu0 0.0
    %1824 = vmatpush1.xpose.msra.mxu0 0.0
    %1825 = vmatprep.subr.mxu0 0.0
    %1826 = vmatpush1.xpose.msra.mxu0 0.0
    %1827 = vmatprep.subr.mxu0 0.0
    %1828 = vmatpush1.xpose.msra.mxu0 0.0
    %1829 = vmatprep.subr.mxu0 0.0
    %1830 = vmatpush1.xpose.msra.mxu0 0.0
    %1831 = vmatprep.subr.mxu0 0.0
    %1832 = vmatpush1.xpose.msra.mxu0 0.0
    %1833 = vmatprep.subr.mxu0 0.0
    %1834 = vmatpush1.xpose.msra.mxu0 0.0
    %1835 = vmatprep.subr.mxu0 0.0
    %1836 = vmatpush1.xpose.msra.mxu0 0.0
    %1837 = vmatprep.subr.mxu0 0.0
    %1838 = vmatpush1.xpose.msra.mxu0 0.0
    %1839 = vmatprep.subr.mxu0 0.0
    %1840 = vmatpush1.xpose.msra.mxu0 0.0
    %1841 = vmatprep.subr.mxu0 0.0
    %1842 = vmatpush1.xpose.msra.mxu0 0.0
    %1843 = vmatprep.subr.mxu0 0.0
    %1844 = vmatpush1.xpose.msra.mxu0 0.0
    %1845 = vmatprep.subr.mxu0 0.0
    %1846 = vmatpush1.xpose.msra.mxu0 0.0
    %1847 = vmatprep.subr.mxu0 0.0
    %1848 = vmatpush1.xpose.msra.mxu0 0.0
    %1849 = vmatprep.subr.mxu0 0.0
    %1850 = vmatpush1.xpose.msra.mxu0 0.0
    %1851 = vmatprep.subr.mxu0 0.0
    %1852 = vmatpush1.xpose.msra.mxu0 0.0
    %1853 = vmatprep.subr.mxu0 0.0
    %1854 = vmatpush1.xpose.msra.mxu0 0.0
    %1855 = vmatprep.subr.mxu0 0.0
    %1856 = vmatpush1.xpose.msra.mxu0 0.0
    %1857 = vmatprep.subr.mxu0 0.0
    %1858 = vmatpush1.xpose.msra.mxu0 0.0
    %1859 = vmatprep.mubr.f32.mxu0 0.0
    %v1860 = vand.u32 %v1710, 4294901760
    %1861 = vmatmul.mubr.f32.gmra.mrb[0].mxu0 %v1860
    %v1862 = vpop.f32.mrb[0].mxu0
    %v1863 = vadd.f32 %v1787, %v1862
    %v1864 = vpop.f32.mrb[0].mxu0
    %1865 = vdwg.mxu0
    %1866 = vmatprep.subr.mxu0 0.0
    %v1867 = vand.u32 %v1712, 4294901760
    %v1868 = vsub.f32 %v1712, %v1867
    %1869 = vmatpush1.xpose.msra.mxu0 %v1868
    %1870 = vmatprep.subr.mxu0 0.0
    %1871 = vmatpush1.xpose.msra.mxu0 0.0
    %1872 = vmatprep.subr.mxu0 0.0
    %1873 = vmatpush1.xpose.msra.mxu0 0.0
    %1874 = vmatprep.subr.mxu0 0.0
    %1875 = vmatpush1.xpose.msra.mxu0 0.0
    %1876 = vmatprep.subr.mxu0 0.0
    %1877 = vmatpush1.xpose.msra.mxu0 0.0
    %1878 = vmatprep.subr.mxu0 0.0
    %1879 = vmatpush1.xpose.msra.mxu0 0.0
    %1880 = vmatprep.subr.mxu0 0.0
    %1881 = vmatpush1.xpose.msra.mxu0 0.0
    %1882 = vmatprep.subr.mxu0 0.0
    %1883 = vmatpush1.xpose.msra.mxu0 0.0
    %1884 = vmatprep.subr.mxu0 0.0
    %1885 = vmatpush1.xpose.msra.mxu0 0.0
    %1886 = vmatprep.subr.mxu0 0.0
    %1887 = vmatpush1.xpose.msra.mxu0 0.0
    %1888 = vmatprep.subr.mxu0 0.0
    %1889 = vmatpush1.xpose.msra.mxu0 0.0
    %1890 = vmatprep.subr.mxu0 0.0
    %1891 = vmatpush1.xpose.msra.mxu0 0.0
    %1892 = vmatprep.subr.mxu0 0.0
    %1893 = vmatpush1.xpose.msra.mxu0 0.0
    %1894 = vmatprep.subr.mxu0 0.0
    %1895 = vmatpush1.xpose.msra.mxu0 0.0
    %1896 = vmatprep.subr.mxu0 0.0
    %1897 = vmatpush1.xpose.msra.mxu0 0.0
    %1898 = vmatprep.subr.mxu0 0.0
    %1899 = vmatpush1.xpose.msra.mxu0 0.0
    %1900 = vmatprep.subr.mxu0 0.0
    %1901 = vmatpush1.xpose.msra.mxu0 0.0
    %1902 = vmatprep.subr.mxu0 0.0
    %1903 = vmatpush1.xpose.msra.mxu0 0.0
    %1904 = vmatprep.subr.mxu0 0.0
    %1905 = vmatpush1.xpose.msra.mxu0 0.0
    %1906 = vmatprep.subr.mxu0 0.0
    %1907 = vmatpush1.xpose.msra.mxu0 0.0
    %1908 = vmatprep.subr.mxu0 0.0
    %1909 = vmatpush1.xpose.msra.mxu0 0.0
    %1910 = vmatprep.subr.mxu0 0.0
    %1911 = vmatpush1.xpose.msra.mxu0 0.0
    %1912 = vmatprep.subr.mxu0 0.0
    %1913 = vmatpush1.xpose.msra.mxu0 0.0
    %1914 = vmatprep.subr.mxu0 0.0
    %1915 = vmatpush1.xpose.msra.mxu0 0.0
    %1916 = vmatprep.subr.mxu0 0.0
    %1917 = vmatpush1.xpose.msra.mxu0 0.0
    %1918 = vmatprep.subr.mxu0 0.0
    %1919 = vmatpush1.xpose.msra.mxu0 0.0
    %1920 = vmatprep.subr.mxu0 0.0
    %1921 = vmatpush1.xpose.msra.mxu0 0.0
    %1922 = vmatprep.subr.mxu0 0.0
    %1923 = vmatpush1.xpose.msra.mxu0 0.0
    %1924 = vmatprep.subr.mxu0 0.0
    %1925 = vmatpush1.xpose.msra.mxu0 0.0
    %1926 = vmatprep.subr.mxu0 0.0
    %1927 = vmatpush1.xpose.msra.mxu0 0.0
    %1928 = vmatprep.subr.mxu0 0.0
    %1929 = vmatpush1.xpose.msra.mxu0 0.0
    %1930 = vmatprep.subr.mxu0 0.0
    %1931 = vmatpush1.xpose.msra.mxu0 0.0
    %1932 = vmatprep.mubr.f32.mxu0 0.0
    %v1933 = vand.u32 %v1710, 4294901760
    %v1934 = vsub.f32 %v1710, %v1933
    %1935 = vmatmul.mubr.f32.gmra.mrb[0].mxu0 %v1934
    %v1936 = vpop.f32.mrb[0].mxu0
    %v1937 = vadd.f32 %v1863, %v1936
    %v1938 = vpop.f32.mrb[0].mxu0
    %1939 = vdwg.mxu0
    %1940 = vmatprep.subr.mxu0 0.0
    %v1941 = vand.u32 %v1712, 4294901760
    %1942 = vmatpush1.xpose.msra.mxu0 %v1941
    %1943 = vmatprep.subr.mxu0 0.0
    %1944 = vmatpush1.xpose.msra.mxu0 0.0
    %1945 = vmatprep.subr.mxu0 0.0
    %1946 = vmatpush1.xpose.msra.mxu0 0.0
    %1947 = vmatprep.subr.mxu0 0.0
    %1948 = vmatpush1.xpose.msra.mxu0 0.0
    %1949 = vmatprep.subr.mxu0 0.0
    %1950 = vmatpush1.xpose.msra.mxu0 0.0
    %1951 = vmatprep.subr.mxu0 0.0
    %1952 = vmatpush1.xpose.msra.mxu0 0.0
    %1953 = vmatprep.subr.mxu0 0.0
    %1954 = vmatpush1.xpose.msra.mxu0 0.0
    %1955 = vmatprep.subr.mxu0 0.0
    %1956 = vmatpush1.xpose.msra.mxu0 0.0
    %1957 = vmatprep.subr.mxu0 0.0
    %1958 = vmatpush1.xpose.msra.mxu0 0.0
    %1959 = vmatprep.subr.mxu0 0.0
    %1960 = vmatpush1.xpose.msra.mxu0 0.0
    %1961 = vmatprep.subr.mxu0 0.0
    %1962 = vmatpush1.xpose.msra.mxu0 0.0
    %1963 = vmatprep.subr.mxu0 0.0
    %1964 = vmatpush1.xpose.msra.mxu0 0.0
    %1965 = vmatprep.subr.mxu0 0.0
    %1966 = vmatpush1.xpose.msra.mxu0 0.0
    %1967 = vmatprep.subr.mxu0 0.0
    %1968 = vmatpush1.xpose.msra.mxu0 0.0
    %1969 = vmatprep.subr.mxu0 0.0
    %1970 = vmatpush1.xpose.msra.mxu0 0.0
    %1971 = vmatprep.subr.mxu0 0.0
    %1972 = vmatpush1.xpose.msra.mxu0 0.0
    %1973 = vmatprep.subr.mxu0 0.0
    %1974 = vmatpush1.xpose.msra.mxu0 0.0
    %1975 = vmatprep.subr.mxu0 0.0
    %1976 = vmatpush1.xpose.msra.mxu0 0.0
    %1977 = vmatprep.subr.mxu0 0.0
    %1978 = vmatpush1.xpose.msra.mxu0 0.0
    %1979 = vmatprep.subr.mxu0 0.0
    %1980 = vmatpush1.xpose.msra.mxu0 0.0
    %1981 = vmatprep.subr.mxu0 0.0
    %1982 = vmatpush1.xpose.msra.mxu0 0.0
    %1983 = vmatprep.subr.mxu0 0.0
    %1984 = vmatpush1.xpose.msra.mxu0 0.0
    %1985 = vmatprep.subr.mxu0 0.0
    %1986 = vmatpush1.xpose.msra.mxu0 0.0
    %1987 = vmatprep.subr.mxu0 0.0
    %1988 = vmatpush1.xpose.msra.mxu0 0.0
    %1989 = vmatprep.subr.mxu0 0.0
    %1990 = vmatpush1.xpose.msra.mxu0 0.0
    %1991 = vmatprep.subr.mxu0 0.0
    %1992 = vmatpush1.xpose.msra.mxu0 0.0
    %1993 = vmatprep.subr.mxu0 0.0
    %1994 = vmatpush1.xpose.msra.mxu0 0.0
    %1995 = vmatprep.subr.mxu0 0.0
    %1996 = vmatpush1.xpose.msra.mxu0 0.0
    %1997 = vmatprep.subr.mxu0 0.0
    %1998 = vmatpush1.xpose.msra.mxu0 0.0
    %1999 = vmatprep.subr.mxu0 0.0
    %2000 = vmatpush1.xpose.msra.mxu0 0.0
    %2001 = vmatprep.subr.mxu0 0.0
    %2002 = vmatpush1.xpose.msra.mxu0 0.0
    %2003 = vmatprep.subr.mxu0 0.0
    %2004 = vmatpush1.xpose.msra.mxu0 0.0
    %2005 = vmatprep.mubr.f32.mxu0 0.0
    %v2006 = vand.u32 %v1710, 4294901760
    %v2007 = vsub.f32 %v1710, %v2006
    %v2008 = vand.u32 %v2007, 4294901760
    %2009 = vmatmul.mubr.f32.gmra.mrb[0].mxu0 %v2008
    %v2010 = vpop.f32.mrb[0].mxu0
    %v2011 = vadd.f32 %v1937, %v2010
    %v2012 = vpop.f32.mrb[0].mxu0
    %2013 = vdwg.mxu0
    %2014 = vmatprep.subr.mxu0 0.0
    %v2015 = vand.u32 %v1712, 4294901760
    %v2016 = vsub.f32 %v1712, %v2015
    %v2017 = vand.u32 %v2016, 4294901760
    %2018 = vmatpush1.xpose.msra.mxu0 %v2017
    %2019 = vmatprep.subr.mxu0 0.0
    %2020 = vmatpush1.xpose.msra.mxu0 0.0
    %2021 = vmatprep.subr.mxu0 0.0
    %2022 = vmatpush1.xpose.msra.mxu0 0.0
    %2023 = vmatprep.subr.mxu0 0.0
    %2024 = vmatpush1.xpose.msra.mxu0 0.0
    %2025 = vmatprep.subr.mxu0 0.0
    %2026 = vmatpush1.xpose.msra.mxu0 0.0
    %2027 = vmatprep.subr.mxu0 0.0
    %2028 = vmatpush1.xpose.msra.mxu0 0.0
    %2029 = vmatprep.subr.mxu0 0.0
    %2030 = vmatpush1.xpose.msra.mxu0 0.0
    %2031 = vmatprep.subr.mxu0 0.0
    %2032 = vmatpush1.xpose.msra.mxu0 0.0
    %2033 = vmatprep.subr.mxu0 0.0
    %2034 = vmatpush1.xpose.msra.mxu0 0.0
    %2035 = vmatprep.subr.mxu0 0.0
    %2036 = vmatpush1.xpose.msra.mxu0 0.0
    %2037 = vmatprep.subr.mxu0 0.0
    %2038 = vmatpush1.xpose.msra.mxu0 0.0
    %2039 = vmatprep.subr.mxu0 0.0
    %2040 = vmatpush1.xpose.msra.mxu0 0.0
    %2041 = vmatprep.subr.mxu0 0.0
    %2042 = vmatpush1.xpose.msra.mxu0 0.0
    %2043 = vmatprep.subr.mxu0 0.0
    %2044 = vmatpush1.xpose.msra.mxu0 0.0
    %2045 = vmatprep.subr.mxu0 0.0
    %2046 = vmatpush1.xpose.msra.mxu0 0.0
    %2047 = vmatprep.subr.mxu0 0.0
    %2048 = vmatpush1.xpose.msra.mxu0 0.0
    %2049 = vmatprep.subr.mxu0 0.0
    %2050 = vmatpush1.xpose.msra.mxu0 0.0
    %2051 = vmatprep.subr.mxu0 0.0
    %2052 = vmatpush1.xpose.msra.mxu0 0.0
    %2053 = vmatprep.subr.mxu0 0.0
    %2054 = vmatpush1.xpose.msra.mxu0 0.0
    %2055 = vmatprep.subr.mxu0 0.0
    %2056 = vmatpush1.xpose.msra.mxu0 0.0
    %2057 = vmatprep.subr.mxu0 0.0
    %2058 = vmatpush1.xpose.msra.mxu0 0.0
    %2059 = vmatprep.subr.mxu0 0.0
    %2060 = vmatpush1.xpose.msra.mxu0 0.0
    %2061 = vmatprep.subr.mxu0 0.0
    %2062 = vmatpush1.xpose.msra.mxu0 0.0
    %2063 = vmatprep.subr.mxu0 0.0
    %2064 = vmatpush1.xpose.msra.mxu0 0.0
    %2065 = vmatprep.subr.mxu0 0.0
    %2066 = vmatpush1.xpose.msra.mxu0 0.0
    %2067 = vmatprep.subr.mxu0 0.0
    %2068 = vmatpush1.xpose.msra.mxu0 0.0
    %2069 = vmatprep.subr.mxu0 0.0
    %2070 = vmatpush1.xpose.msra.mxu0 0.0
    %2071 = vmatprep.subr.mxu0 0.0
    %2072 = vmatpush1.xpose.msra.mxu0 0.0
    %2073 = vmatprep.subr.mxu0 0.0
    %2074 = vmatpush1.xpose.msra.mxu0 0.0
    %2075 = vmatprep.subr.mxu0 0.0
    %2076 = vmatpush1.xpose.msra.mxu0 0.0
    %2077 = vmatprep.subr.mxu0 0.0
    %2078 = vmatpush1.xpose.msra.mxu0 0.0
    %2079 = vmatprep.subr.mxu0 0.0
    %2080 = vmatpush1.xpose.msra.mxu0 0.0
    %2081 = vmatprep.mubr.f32.mxu0 0.0
    %v2082 = vand.u32 %v1710, 4294901760
    %2083 = vmatmul.mubr.f32.gmra.mrb[0].mxu0 %v2082
    %v2084 = vpop.f32.mrb[0].mxu0
    %v2085 = vadd.f32 %v2011, %v2084
    %v2086 = vpop.f32.mrb[0].mxu0
    %2087 = vdwg.mxu0
    %2088 = vmatprep.subr.mxu0 0.0
    %v2089 = vand.u32 %v1712, 4294901760
    %2090 = vmatpush1.xpose.msra.mxu0 %v2089
    %2091 = vmatprep.subr.mxu0 0.0
    %2092 = vmatpush1.xpose.msra.mxu0 0.0
    %2093 = vmatprep.subr.mxu0 0.0
    %2094 = vmatpush1.xpose.msra.mxu0 0.0
    %2095 = vmatprep.subr.mxu0 0.0
    %2096 = vmatpush1.xpose.msra.mxu0 0.0
    %2097 = vmatprep.subr.mxu0 0.0
    %2098 = vmatpush1.xpose.msra.mxu0 0.0
    %2099 = vmatprep.subr.mxu0 0.0
    %2100 = vmatpush1.xpose.msra.mxu0 0.0
    %2101 = vmatprep.subr.mxu0 0.0
    %2102 = vmatpush1.xpose.msra.mxu0 0.0
    %2103 = vmatprep.subr.mxu0 0.0
    %2104 = vmatpush1.xpose.msra.mxu0 0.0
    %2105 = vmatprep.subr.mxu0 0.0
    %2106 = vmatpush1.xpose.msra.mxu0 0.0
    %2107 = vmatprep.subr.mxu0 0.0
    %2108 = vmatpush1.xpose.msra.mxu0 0.0
    %2109 = vmatprep.subr.mxu0 0.0
    %2110 = vmatpush1.xpose.msra.mxu0 0.0
    %2111 = vmatprep.subr.mxu0 0.0
    %2112 = vmatpush1.xpose.msra.mxu0 0.0
    %2113 = vmatprep.subr.mxu0 0.0
    %2114 = vmatpush1.xpose.msra.mxu0 0.0
    %2115 = vmatprep.subr.mxu0 0.0
    %2116 = vmatpush1.xpose.msra.mxu0 0.0
    %2117 = vmatprep.subr.mxu0 0.0
    %2118 = vmatpush1.xpose.msra.mxu0 0.0
    %2119 = vmatprep.subr.mxu0 0.0
    %2120 = vmatpush1.xpose.msra.mxu0 0.0
    %2121 = vmatprep.subr.mxu0 0.0
    %2122 = vmatpush1.xpose.msra.mxu0 0.0
    %2123 = vmatprep.subr.mxu0 0.0
    %2124 = vmatpush1.xpose.msra.mxu0 0.0
    %2125 = vmatprep.subr.mxu0 0.0
    %2126 = vmatpush1.xpose.msra.mxu0 0.0
    %2127 = vmatprep.subr.mxu0 0.0
    %2128 = vmatpush1.xpose.msra.mxu0 0.0
    %2129 = vmatprep.subr.mxu0 0.0
    %2130 = vmatpush1.xpose.msra.mxu0 0.0
    %2131 = vmatprep.subr.mxu0 0.0
    %2132 = vmatpush1.xpose.msra.mxu0 0.0
    %2133 = vmatprep.subr.mxu0 0.0
    %2134 = vmatpush1.xpose.msra.mxu0 0.0
    %2135 = vmatprep.subr.mxu0 0.0
    %2136 = vmatpush1.xpose.msra.mxu0 0.0
    %2137 = vmatprep.subr.mxu0 0.0
    %2138 = vmatpush1.xpose.msra.mxu0 0.0
    %2139 = vmatprep.subr.mxu0 0.0
    %2140 = vmatpush1.xpose.msra.mxu0 0.0
    %2141 = vmatprep.subr.mxu0 0.0
    %2142 = vmatpush1.xpose.msra.mxu0 0.0
    %2143 = vmatprep.subr.mxu0 0.0
    %2144 = vmatpush1.xpose.msra.mxu0 0.0
    %2145 = vmatprep.subr.mxu0 0.0
    %2146 = vmatpush1.xpose.msra.mxu0 0.0
    %2147 = vmatprep.subr.mxu0 0.0
    %2148 = vmatpush1.xpose.msra.mxu0 0.0
    %2149 = vmatprep.subr.mxu0 0.0
    %2150 = vmatpush1.xpose.msra.mxu0 0.0
    %2151 = vmatprep.subr.mxu0 0.0
    %2152 = vmatpush1.xpose.msra.mxu0 0.0
    %2153 = vmatprep.mubr.f32.mxu0 0.0
    %v2154 = vand.u32 %v1710, 4294901760
    %2155 = vmatmul.mubr.f32.gmra.mrb[0].mxu0 %v2154
    %v2156 = vpop.f32.mrb[0].mxu0
    %v2157 = vadd.f32 %v2085, %v2156
    %v2158 = vpop.f32.mrb[0].mxu0
    %2159 = vdwg.mxu0
    %2160 = vrot.lane.b32.xlu0 %v776, 96
    %v2161 = vpop.permute.xlu0 %2160
    %v2162 = vsel %vm805, %v776, 0
    %v2164 = vsel %vm805, %v2161, 0
    %2166 = vmatprep.subr.mxu0 0.0
    %v2167 = vand.u32 %v2164, 4294901760
    %2168 = vmatpush1.xpose.msra.mxu0 %v2167
    %2169 = vmatprep.subr.mxu0 0.0
    %2170 = vmatpush1.xpose.msra.mxu0 0.0
    %2171 = vmatprep.subr.mxu0 0.0
    %2172 = vmatpush1.xpose.msra.mxu0 0.0
    %2173 = vmatprep.subr.mxu0 0.0
    %2174 = vmatpush1.xpose.msra.mxu0 0.0
    %2175 = vmatprep.subr.mxu0 0.0
    %2176 = vmatpush1.xpose.msra.mxu0 0.0
    %2177 = vmatprep.subr.mxu0 0.0
    %2178 = vmatpush1.xpose.msra.mxu0 0.0
    %2179 = vmatprep.subr.mxu0 0.0
    %2180 = vmatpush1.xpose.msra.mxu0 0.0
    %2181 = vmatprep.subr.mxu0 0.0
    %2182 = vmatpush1.xpose.msra.mxu0 0.0
    %2183 = vmatprep.subr.mxu0 0.0
    %2184 = vmatpush1.xpose.msra.mxu0 0.0
    %2185 = vmatprep.subr.mxu0 0.0
    %2186 = vmatpush1.xpose.msra.mxu0 0.0
    %2187 = vmatprep.subr.mxu0 0.0
    %2188 = vmatpush1.xpose.msra.mxu0 0.0
    %2189 = vmatprep.subr.mxu0 0.0
    %2190 = vmatpush1.xpose.msra.mxu0 0.0
    %2191 = vmatprep.subr.mxu0 0.0
    %2192 = vmatpush1.xpose.msra.mxu0 0.0
    %2193 = vmatprep.subr.mxu0 0.0
    %2194 = vmatpush1.xpose.msra.mxu0 0.0
    %2195 = vmatprep.subr.mxu0 0.0
    %2196 = vmatpush1.xpose.msra.mxu0 0.0
    %2197 = vmatprep.subr.mxu0 0.0
    %2198 = vmatpush1.xpose.msra.mxu0 0.0
    %2199 = vmatprep.subr.mxu0 0.0
    %2200 = vmatpush1.xpose.msra.mxu0 0.0
    %2201 = vmatprep.subr.mxu0 0.0
    %2202 = vmatpush1.xpose.msra.mxu0 0.0
    %2203 = vmatprep.subr.mxu0 0.0
    %2204 = vmatpush1.xpose.msra.mxu0 0.0
    %2205 = vmatprep.subr.mxu0 0.0
    %2206 = vmatpush1.xpose.msra.mxu0 0.0
    %2207 = vmatprep.subr.mxu0 0.0
    %2208 = vmatpush1.xpose.msra.mxu0 0.0
    %2209 = vmatprep.subr.mxu0 0.0
    %2210 = vmatpush1.xpose.msra.mxu0 0.0
    %2211 = vmatprep.subr.mxu0 0.0
    %2212 = vmatpush1.xpose.msra.mxu0 0.0
    %2213 = vmatprep.subr.mxu0 0.0
    %2214 = vmatpush1.xpose.msra.mxu0 0.0
    %2215 = vmatprep.subr.mxu0 0.0
    %2216 = vmatpush1.xpose.msra.mxu0 0.0
    %2217 = vmatprep.subr.mxu0 0.0
    %2218 = vmatpush1.xpose.msra.mxu0 0.0
    %2219 = vmatprep.subr.mxu0 0.0
    %2220 = vmatpush1.xpose.msra.mxu0 0.0
    %2221 = vmatprep.subr.mxu0 0.0
    %2222 = vmatpush1.xpose.msra.mxu0 0.0
    %2223 = vmatprep.subr.mxu0 0.0
    %2224 = vmatpush1.xpose.msra.mxu0 0.0
    %2225 = vmatprep.subr.mxu0 0.0
    %2226 = vmatpush1.xpose.msra.mxu0 0.0
    %2227 = vmatprep.subr.mxu0 0.0
    %2228 = vmatpush1.xpose.msra.mxu0 0.0
    %2229 = vmatprep.subr.mxu0 0.0
    %2230 = vmatpush1.xpose.msra.mxu0 0.0
    %2231 = vmatprep.mubr.f32.mxu0 0.0
    %v2232 = vand.u32 %v2162, 4294901760
    %v2233 = vsub.f32 %v2162, %v2232
    %v2234 = vand.u32 %v2233, 4294901760
    %v2235 = vsub.f32 %v2233, %v2234
    %v2236 = vand.u32 %v2235, 4294901760
    %2237 = vmatmul.mubr.f32.gmra.mrb[0].mxu0 %v2236
    %v2238 = vpop.f32.mrb[0].mxu0
    %v2239 = vadd.f32 0.0, %v2238
    %v2240 = vpop.f32.mrb[0].mxu0
    %2241 = vdwg.mxu0
    %2242 = vmatprep.subr.mxu0 0.0
    %v2243 = vand.u32 %v2164, 4294901760
    %v2244 = vsub.f32 %v2164, %v2243
    %v2245 = vand.u32 %v2244, 4294901760
    %v2246 = vsub.f32 %v2244, %v2245
    %v2247 = vand.u32 %v2246, 4294901760
    %2248 = vmatpush1.xpose.msra.mxu0 %v2247
    %2249 = vmatprep.subr.mxu0 0.0
    %2250 = vmatpush1.xpose.msra.mxu0 0.0
    %2251 = vmatprep.subr.mxu0 0.0
    %2252 = vmatpush1.xpose.msra.mxu0 0.0
    %2253 = vmatprep.subr.mxu0 0.0
    %2254 = vmatpush1.xpose.msra.mxu0 0.0
    %2255 = vmatprep.subr.mxu0 0.0
    %2256 = vmatpush1.xpose.msra.mxu0 0.0
    %2257 = vmatprep.subr.mxu0 0.0
    %2258 = vmatpush1.xpose.msra.mxu0 0.0
    %2259 = vmatprep.subr.mxu0 0.0
    %2260 = vmatpush1.xpose.msra.mxu0 0.0
    %2261 = vmatprep.subr.mxu0 0.0
    %2262 = vmatpush1.xpose.msra.mxu0 0.0
    %2263 = vmatprep.subr.mxu0 0.0
    %2264 = vmatpush1.xpose.msra.mxu0 0.0
    %2265 = vmatprep.subr.mxu0 0.0
    %2266 = vmatpush1.xpose.msra.mxu0 0.0
    %2267 = vmatprep.subr.mxu0 0.0
    %2268 = vmatpush1.xpose.msra.mxu0 0.0
    %2269 = vmatprep.subr.mxu0 0.0
    %2270 = vmatpush1.xpose.msra.mxu0 0.0
    %2271 = vmatprep.subr.mxu0 0.0
    %2272 = vmatpush1.xpose.msra.mxu0 0.0
    %2273 = vmatprep.subr.mxu0 0.0
    %2274 = vmatpush1.xpose.msra.mxu0 0.0
    %2275 = vmatprep.subr.mxu0 0.0
    %2276 = vmatpush1.xpose.msra.mxu0 0.0
    %2277 = vmatprep.subr.mxu0 0.0
    %2278 = vmatpush1.xpose.msra.mxu0 0.0
    %2279 = vmatprep.subr.mxu0 0.0
    %2280 = vmatpush1.xpose.msra.mxu0 0.0
    %2281 = vmatprep.subr.mxu0 0.0
    %2282 = vmatpush1.xpose.msra.mxu0 0.0
    %2283 = vmatprep.subr.mxu0 0.0
    %2284 = vmatpush1.xpose.msra.mxu0 0.0
    %2285 = vmatprep.subr.mxu0 0.0
    %2286 = vmatpush1.xpose.msra.mxu0 0.0
    %2287 = vmatprep.subr.mxu0 0.0
    %2288 = vmatpush1.xpose.msra.mxu0 0.0
    %2289 = vmatprep.subr.mxu0 0.0
    %2290 = vmatpush1.xpose.msra.mxu0 0.0
    %2291 = vmatprep.subr.mxu0 0.0
    %2292 = vmatpush1.xpose.msra.mxu0 0.0
    %2293 = vmatprep.subr.mxu0 0.0
    %2294 = vmatpush1.xpose.msra.mxu0 0.0
    %2295 = vmatprep.subr.mxu0 0.0
    %2296 = vmatpush1.xpose.msra.mxu0 0.0
    %2297 = vmatprep.subr.mxu0 0.0
    %2298 = vmatpush1.xpose.msra.mxu0 0.0
    %2299 = vmatprep.subr.mxu0 0.0
    %2300 = vmatpush1.xpose.msra.mxu0 0.0
    %2301 = vmatprep.subr.mxu0 0.0
    %2302 = vmatpush1.xpose.msra.mxu0 0.0
    %2303 = vmatprep.subr.mxu0 0.0
    %2304 = vmatpush1.xpose.msra.mxu0 0.0
    %2305 = vmatprep.subr.mxu0 0.0
    %2306 = vmatpush1.xpose.msra.mxu0 0.0
    %2307 = vmatprep.subr.mxu0 0.0
    %2308 = vmatpush1.xpose.msra.mxu0 0.0
    %2309 = vmatprep.subr.mxu0 0.0
    %2310 = vmatpush1.xpose.msra.mxu0 0.0
    %2311 = vmatprep.mubr.f32.mxu0 0.0
    %v2312 = vand.u32 %v2162, 4294901760
    %2313 = vmatmul.mubr.f32.gmra.mrb[0].mxu0 %v2312
    %v2314 = vpop.f32.mrb[0].mxu0
    %v2315 = vadd.f32 %v2239, %v2314
    %v2316 = vpop.f32.mrb[0].mxu0
    %2317 = vdwg.mxu0
    %2318 = vmatprep.subr.mxu0 0.0
    %v2319 = vand.u32 %v2164, 4294901760
    %v2320 = vsub.f32 %v2164, %v2319
    %2321 = vmatpush1.xpose.msra.mxu0 %v2320
    %2322 = vmatprep.subr.mxu0 0.0
    %2323 = vmatpush1.xpose.msra.mxu0 0.0
    %2324 = vmatprep.subr.mxu0 0.0
    %2325 = vmatpush1.xpose.msra.mxu0 0.0
    %2326 = vmatprep.subr.mxu0 0.0
    %2327 = vmatpush1.xpose.msra.mxu0 0.0
    %2328 = vmatprep.subr.mxu0 0.0
    %2329 = vmatpush1.xpose.msra.mxu0 0.0
    %2330 = vmatprep.subr.mxu0 0.0
    %2331 = vmatpush1.xpose.msra.mxu0 0.0
    %2332 = vmatprep.subr.mxu0 0.0
    %2333 = vmatpush1.xpose.msra.mxu0 0.0
    %2334 = vmatprep.subr.mxu0 0.0
    %2335 = vmatpush1.xpose.msra.mxu0 0.0
    %2336 = vmatprep.subr.mxu0 0.0
    %2337 = vmatpush1.xpose.msra.mxu0 0.0
    %2338 = vmatprep.subr.mxu0 0.0
    %2339 = vmatpush1.xpose.msra.mxu0 0.0
    %2340 = vmatprep.subr.mxu0 0.0
    %2341 = vmatpush1.xpose.msra.mxu0 0.0
    %2342 = vmatprep.subr.mxu0 0.0
    %2343 = vmatpush1.xpose.msra.mxu0 0.0
    %2344 = vmatprep.subr.mxu0 0.0
    %2345 = vmatpush1.xpose.msra.mxu0 0.0
    %2346 = vmatprep.subr.mxu0 0.0
    %2347 = vmatpush1.xpose.msra.mxu0 0.0
    %2348 = vmatprep.subr.mxu0 0.0
    %2349 = vmatpush1.xpose.msra.mxu0 0.0
    %2350 = vmatprep.subr.mxu0 0.0
    %2351 = vmatpush1.xpose.msra.mxu0 0.0
    %2352 = vmatprep.subr.mxu0 0.0
    %2353 = vmatpush1.xpose.msra.mxu0 0.0
    %2354 = vmatprep.subr.mxu0 0.0
    %2355 = vmatpush1.xpose.msra.mxu0 0.0
    %2356 = vmatprep.subr.mxu0 0.0
    %2357 = vmatpush1.xpose.msra.mxu0 0.0
    %2358 = vmatprep.subr.mxu0 0.0
    %2359 = vmatpush1.xpose.msra.mxu0 0.0
    %2360 = vmatprep.subr.mxu0 0.0
    %2361 = vmatpush1.xpose.msra.mxu0 0.0
    %2362 = vmatprep.subr.mxu0 0.0
    %2363 = vmatpush1.xpose.msra.mxu0 0.0
    %2364 = vmatprep.subr.mxu0 0.0
    %2365 = vmatpush1.xpose.msra.mxu0 0.0
    %2366 = vmatprep.subr.mxu0 0.0
    %2367 = vmatpush1.xpose.msra.mxu0 0.0
    %2368 = vmatprep.subr.mxu0 0.0
    %2369 = vmatpush1.xpose.msra.mxu0 0.0
    %2370 = vmatprep.subr.mxu0 0.0
    %2371 = vmatpush1.xpose.msra.mxu0 0.0
    %2372 = vmatprep.subr.mxu0 0.0
    %2373 = vmatpush1.xpose.msra.mxu0 0.0
    %2374 = vmatprep.subr.mxu0 0.0
    %2375 = vmatpush1.xpose.msra.mxu0 0.0
    %2376 = vmatprep.subr.mxu0 0.0
    %2377 = vmatpush1.xpose.msra.mxu0 0.0
    %2378 = vmatprep.subr.mxu0 0.0
    %2379 = vmatpush1.xpose.msra.mxu0 0.0
    %2380 = vmatprep.subr.mxu0 0.0
    %2381 = vmatpush1.xpose.msra.mxu0 0.0
    %2382 = vmatprep.subr.mxu0 0.0
    %2383 = vmatpush1.xpose.msra.mxu0 0.0
    %2384 = vmatprep.mubr.f32.mxu0 0.0
    %v2385 = vand.u32 %v2162, 4294901760
    %v2386 = vsub.f32 %v2162, %v2385
    %2387 = vmatmul.mubr.f32.gmra.mrb[0].mxu0 %v2386
    %v2388 = vpop.f32.mrb[0].mxu0
    %v2389 = vadd.f32 %v2315, %v2388
    %v2390 = vpop.f32.mrb[0].mxu0
    %2391 = vdwg.mxu0
    %2392 = vmatprep.subr.mxu0 0.0
    %v2393 = vand.u32 %v2164, 4294901760
    %2394 = vmatpush1.xpose.msra.mxu0 %v2393
    %2395 = vmatprep.subr.mxu0 0.0
    %2396 = vmatpush1.xpose.msra.mxu0 0.0
    %2397 = vmatprep.subr.mxu0 0.0
    %2398 = vmatpush1.xpose.msra.mxu0 0.0
    %2399 = vmatprep.subr.mxu0 0.0
    %2400 = vmatpush1.xpose.msra.mxu0 0.0
    %2401 = vmatprep.subr.mxu0 0.0
    %2402 = vmatpush1.xpose.msra.mxu0 0.0
    %2403 = vmatprep.subr.mxu0 0.0
    %2404 = vmatpush1.xpose.msra.mxu0 0.0
    %2405 = vmatprep.subr.mxu0 0.0
    %2406 = vmatpush1.xpose.msra.mxu0 0.0
    %2407 = vmatprep.subr.mxu0 0.0
    %2408 = vmatpush1.xpose.msra.mxu0 0.0
    %2409 = vmatprep.subr.mxu0 0.0
    %2410 = vmatpush1.xpose.msra.mxu0 0.0
    %2411 = vmatprep.subr.mxu0 0.0
    %2412 = vmatpush1.xpose.msra.mxu0 0.0
    %2413 = vmatprep.subr.mxu0 0.0
    %2414 = vmatpush1.xpose.msra.mxu0 0.0
    %2415 = vmatprep.subr.mxu0 0.0
    %2416 = vmatpush1.xpose.msra.mxu0 0.0
    %2417 = vmatprep.subr.mxu0 0.0
    %2418 = vmatpush1.xpose.msra.mxu0 0.0
    %2419 = vmatprep.subr.mxu0 0.0
    %2420 = vmatpush1.xpose.msra.mxu0 0.0
    %2421 = vmatprep.subr.mxu0 0.0
    %2422 = vmatpush1.xpose.msra.mxu0 0.0
    %2423 = vmatprep.subr.mxu0 0.0
    %2424 = vmatpush1.xpose.msra.mxu0 0.0
    %2425 = vmatprep.subr.mxu0 0.0
    %2426 = vmatpush1.xpose.msra.mxu0 0.0
    %2427 = vmatprep.subr.mxu0 0.0
    %2428 = vmatpush1.xpose.msra.mxu0 0.0
    %2429 = vmatprep.subr.mxu0 0.0
    %2430 = vmatpush1.xpose.msra.mxu0 0.0
    %2431 = vmatprep.subr.mxu0 0.0
    %2432 = vmatpush1.xpose.msra.mxu0 0.0
    %2433 = vmatprep.subr.mxu0 0.0
    %2434 = vmatpush1.xpose.msra.mxu0 0.0
    %2435 = vmatprep.subr.mxu0 0.0
    %2436 = vmatpush1.xpose.msra.mxu0 0.0
    %2437 = vmatprep.subr.mxu0 0.0
    %2438 = vmatpush1.xpose.msra.mxu0 0.0
    %2439 = vmatprep.subr.mxu0 0.0
    %2440 = vmatpush1.xpose.msra.mxu0 0.0
    %2441 = vmatprep.subr.mxu0 0.0
    %2442 = vmatpush1.xpose.msra.mxu0 0.0
    %2443 = vmatprep.subr.mxu0 0.0
    %2444 = vmatpush1.xpose.msra.mxu0 0.0
    %2445 = vmatprep.subr.mxu0 0.0
    %2446 = vmatpush1.xpose.msra.mxu0 0.0
    %2447 = vmatprep.subr.mxu0 0.0
    %2448 = vmatpush1.xpose.msra.mxu0 0.0
    %2449 = vmatprep.subr.mxu0 0.0
    %2450 = vmatpush1.xpose.msra.mxu0 0.0
    %2451 = vmatprep.subr.mxu0 0.0
    %2452 = vmatpush1.xpose.msra.mxu0 0.0
    %2453 = vmatprep.subr.mxu0 0.0
    %2454 = vmatpush1.xpose.msra.mxu0 0.0
    %2455 = vmatprep.subr.mxu0 0.0
    %2456 = vmatpush1.xpose.msra.mxu0 0.0
    %2457 = vmatprep.mubr.f32.mxu0 0.0
    %v2458 = vand.u32 %v2162, 4294901760
    %v2459 = vsub.f32 %v2162, %v2458
    %v2460 = vand.u32 %v2459, 4294901760
    %2461 = vmatmul.mubr.f32.gmra.mrb[0].mxu0 %v2460
    %v2462 = vpop.f32.mrb[0].mxu0
    %v2463 = vadd.f32 %v2389, %v2462
    %v2464 = vpop.f32.mrb[0].mxu0
    %2465 = vdwg.mxu0
    %2466 = vmatprep.subr.mxu0 0.0
    %v2467 = vand.u32 %v2164, 4294901760
    %v2468 = vsub.f32 %v2164, %v2467
    %v2469 = vand.u32 %v2468, 4294901760
    %2470 = vmatpush1.xpose.msra.mxu0 %v2469
    %2471 = vmatprep.subr.mxu0 0.0
    %2472 = vmatpush1.xpose.msra.mxu0 0.0
    %2473 = vmatprep.subr.mxu0 0.0
    %2474 = vmatpush1.xpose.msra.mxu0 0.0
    %2475 = vmatprep.subr.mxu0 0.0
    %2476 = vmatpush1.xpose.msra.mxu0 0.0
    %2477 = vmatprep.subr.mxu0 0.0
    %2478 = vmatpush1.xpose.msra.mxu0 0.0
    %2479 = vmatprep.subr.mxu0 0.0
    %2480 = vmatpush1.xpose.msra.mxu0 0.0
    %2481 = vmatprep.subr.mxu0 0.0
    %2482 = vmatpush1.xpose.msra.mxu0 0.0
    %2483 = vmatprep.subr.mxu0 0.0
    %2484 = vmatpush1.xpose.msra.mxu0 0.0
    %2485 = vmatprep.subr.mxu0 0.0
    %2486 = vmatpush1.xpose.msra.mxu0 0.0
    %2487 = vmatprep.subr.mxu0 0.0
    %2488 = vmatpush1.xpose.msra.mxu0 0.0
    %2489 = vmatprep.subr.mxu0 0.0
    %2490 = vmatpush1.xpose.msra.mxu0 0.0
    %2491 = vmatprep.subr.mxu0 0.0
    %2492 = vmatpush1.xpose.msra.mxu0 0.0
    %2493 = vmatprep.subr.mxu0 0.0
    %2494 = vmatpush1.xpose.msra.mxu0 0.0
    %2495 = vmatprep.subr.mxu0 0.0
    %2496 = vmatpush1.xpose.msra.mxu0 0.0
    %2497 = vmatprep.subr.mxu0 0.0
    %2498 = vmatpush1.xpose.msra.mxu0 0.0
    %2499 = vmatprep.subr.mxu0 0.0
    %2500 = vmatpush1.xpose.msra.mxu0 0.0
    %2501 = vmatprep.subr.mxu0 0.0
    %2502 = vmatpush1.xpose.msra.mxu0 0.0
    %2503 = vmatprep.subr.mxu0 0.0
    %2504 = vmatpush1.xpose.msra.mxu0 0.0
    %2505 = vmatprep.subr.mxu0 0.0
    %2506 = vmatpush1.xpose.msra.mxu0 0.0
    %2507 = vmatprep.subr.mxu0 0.0
    %2508 = vmatpush1.xpose.msra.mxu0 0.0
    %2509 = vmatprep.subr.mxu0 0.0
    %2510 = vmatpush1.xpose.msra.mxu0 0.0
    %2511 = vmatprep.subr.mxu0 0.0
    %2512 = vmatpush1.xpose.msra.mxu0 0.0
    %2513 = vmatprep.subr.mxu0 0.0
    %2514 = vmatpush1.xpose.msra.mxu0 0.0
    %2515 = vmatprep.subr.mxu0 0.0
    %2516 = vmatpush1.xpose.msra.mxu0 0.0
    %2517 = vmatprep.subr.mxu0 0.0
    %2518 = vmatpush1.xpose.msra.mxu0 0.0
    %2519 = vmatprep.subr.mxu0 0.0
    %2520 = vmatpush1.xpose.msra.mxu0 0.0
    %2521 = vmatprep.subr.mxu0 0.0
    %2522 = vmatpush1.xpose.msra.mxu0 0.0
    %2523 = vmatprep.subr.mxu0 0.0
    %2524 = vmatpush1.xpose.msra.mxu0 0.0
    %2525 = vmatprep.subr.mxu0 0.0
    %2526 = vmatpush1.xpose.msra.mxu0 0.0
    %2527 = vmatprep.subr.mxu0 0.0
    %2528 = vmatpush1.xpose.msra.mxu0 0.0
    %2529 = vmatprep.subr.mxu0 0.0
    %2530 = vmatpush1.xpose.msra.mxu0 0.0
    %2531 = vmatprep.subr.mxu0 0.0
    %2532 = vmatpush1.xpose.msra.mxu0 0.0
    %2533 = vmatprep.mubr.f32.mxu0 0.0
    %v2534 = vand.u32 %v2162, 4294901760
    %2535 = vmatmul.mubr.f32.gmra.mrb[0].mxu0 %v2534
    %v2536 = vpop.f32.mrb[0].mxu0
    %v2537 = vadd.f32 %v2463, %v2536
    %v2538 = vpop.f32.mrb[0].mxu0
    %2539 = vdwg.mxu0
    %2540 = vmatprep.subr.mxu0 0.0
    %v2541 = vand.u32 %v2164, 4294901760
    %2542 = vmatpush1.xpose.msra.mxu0 %v2541
    %2543 = vmatprep.subr.mxu0 0.0
    %2544 = vmatpush1.xpose.msra.mxu0 0.0
    %2545 = vmatprep.subr.mxu0 0.0
    %2546 = vmatpush1.xpose.msra.mxu0 0.0
    %2547 = vmatprep.subr.mxu0 0.0
    %2548 = vmatpush1.xpose.msra.mxu0 0.0
    %2549 = vmatprep.subr.mxu0 0.0
    %2550 = vmatpush1.xpose.msra.mxu0 0.0
    %2551 = vmatprep.subr.mxu0 0.0
    %2552 = vmatpush1.xpose.msra.mxu0 0.0
    %2553 = vmatprep.subr.mxu0 0.0
    %2554 = vmatpush1.xpose.msra.mxu0 0.0
    %2555 = vmatprep.subr.mxu0 0.0
    %2556 = vmatpush1.xpose.msra.mxu0 0.0
    %2557 = vmatprep.subr.mxu0 0.0
    %2558 = vmatpush1.xpose.msra.mxu0 0.0
    %2559 = vmatprep.subr.mxu0 0.0
    %2560 = vmatpush1.xpose.msra.mxu0 0.0
    %2561 = vmatprep.subr.mxu0 0.0
    %2562 = vmatpush1.xpose.msra.mxu0 0.0
    %2563 = vmatprep.subr.mxu0 0.0
    %2564 = vmatpush1.xpose.msra.mxu0 0.0
    %2565 = vmatprep.subr.mxu0 0.0
    %2566 = vmatpush1.xpose.msra.mxu0 0.0
    %2567 = vmatprep.subr.mxu0 0.0
    %2568 = vmatpush1.xpose.msra.mxu0 0.0
    %2569 = vmatprep.subr.mxu0 0.0
    %2570 = vmatpush1.xpose.msra.mxu0 0.0
    %2571 = vmatprep.subr.mxu0 0.0
    %2572 = vmatpush1.xpose.msra.mxu0 0.0
    %2573 = vmatprep.subr.mxu0 0.0
    %2574 = vmatpush1.xpose.msra.mxu0 0.0
    %2575 = vmatprep.subr.mxu0 0.0
    %2576 = vmatpush1.xpose.msra.mxu0 0.0
    %2577 = vmatprep.subr.mxu0 0.0
    %2578 = vmatpush1.xpose.msra.mxu0 0.0
    %2579 = vmatprep.subr.mxu0 0.0
    %2580 = vmatpush1.xpose.msra.mxu0 0.0
    %2581 = vmatprep.subr.mxu0 0.0
    %2582 = vmatpush1.xpose.msra.mxu0 0.0
    %2583 = vmatprep.subr.mxu0 0.0
    %2584 = vmatpush1.xpose.msra.mxu0 0.0
    %2585 = vmatprep.subr.mxu0 0.0
    %2586 = vmatpush1.xpose.msra.mxu0 0.0
    %2587 = vmatprep.subr.mxu0 0.0
    %2588 = vmatpush1.xpose.msra.mxu0 0.0
    %2589 = vmatprep.subr.mxu0 0.0
    %2590 = vmatpush1.xpose.msra.mxu0 0.0
    %2591 = vmatprep.subr.mxu0 0.0
    %2592 = vmatpush1.xpose.msra.mxu0 0.0
    %2593 = vmatprep.subr.mxu0 0.0
    %2594 = vmatpush1.xpose.msra.mxu0 0.0
    %2595 = vmatprep.subr.mxu0 0.0
    %2596 = vmatpush1.xpose.msra.mxu0 0.0
    %2597 = vmatprep.subr.mxu0 0.0
    %2598 = vmatpush1.xpose.msra.mxu0 0.0
    %2599 = vmatprep.subr.mxu0 0.0
    %2600 = vmatpush1.xpose.msra.mxu0 0.0
    %2601 = vmatprep.subr.mxu0 0.0
    %2602 = vmatpush1.xpose.msra.mxu0 0.0
    %2603 = vmatprep.subr.mxu0 0.0
    %2604 = vmatpush1.xpose.msra.mxu0 0.0
    %2605 = vmatprep.mubr.f32.mxu0 0.0
    %v2606 = vand.u32 %v2162, 4294901760
    %2607 = vmatmul.mubr.f32.gmra.mrb[0].mxu0 %v2606
    %v2608 = vpop.f32.mrb[0].mxu0
    %v2609 = vadd.f32 %v2537, %v2608
    %v2610 = vpop.f32.mrb[0].mxu0
    %2611 = vdwg.mxu0
    %v2612 = vmul.f32 %v1253, 0.25
    %v2613 = vmul.f32 %v1705, 0.25
    %v2614 = vmul.f32 %v2157, 0.25
    %v2615 = vmul.f32 %v2609, 0.25
    %v2616 = vlaneseq
    %v2617 = vshrl.u32 %v2616, 7
    %v2618 = vsub.s32 0, %v2617
    %v2619 = vrot.slane %v795, %v2618
    %v2620 = vlaneseq
    %v2621 = vshrl.u32 %v2620, 7
    %v2622 = vsub.s32 0, %v2621
    %v2623 = vrot.slane %v802, %v2622
    %v2626 = vadd.f32 %v2612, %v2619
    %v2627 = vadd.f32 %v2613, %v2623
    %v2628 = vadd.f32 %v2614, %v2619
    %v2629 = vadd.f32 %v2615, %v2623
    %vm2630 = vcmask 64512
    %v2631 = vsel %vm2630, %v2626, -inf
    %2632 = vmax.xlane.f32.xlu0 %v2631
    %v2633 = vpop.xlane.xlu0 %2632
    %v2634 = vsel %vm2630, %v2627, -inf
    %2635 = vmax.xlane.f32.xlu0 %v2634
    %v2636 = vpop.xlane.xlu0 %2635
    %v2637 = vsel %vm2630, %v2628, -inf
    %2638 = vmax.xlane.f32.xlu0 %v2637
    %v2639 = vpop.xlane.xlu0 %2638
    %v2640 = vsel %vm2630, %v2629, -inf
    %2641 = vmax.xlane.f32.xlu0 %v2640
    %v2642 = vpop.xlane.xlu0 %2641
    %v2643 = vsub.f32 %v2626, %v2633
    %v2644 = vsub.f32 %v2627, %v2636
    %v2645 = vsub.f32 %v2628, %v2639
    %v2646 = vsub.f32 %v2629, %v2642
    %v2647 = vmul.f32 %v2643, 1.442695
    %v2648 = vpow.pop %v2647
    %v2649 = vmul.f32 %v2644, 1.442695
    %v2650 = vpow.pop %v2649
    %v2651 = vmul.f32 %v2645, 1.442695
    %v2652 = vpow.pop %v2651
    %v2653 = vmul.f32 %v2646, 1.442695
    %v2654 = vpow.pop %v2653
    %v2655 = vsel %vm2630, %v2648, 0.0
    %2656 = vadd.xlane.f32.xlu0 %v2655
    %v2657 = vpop.xlane.xlu0 %2656
    %v2658 = vsel %vm2630, %v2650, 0.0
    %2659 = vadd.xlane.f32.xlu0 %v2658
    %v2660 = vpop.xlane.xlu0 %2659
    %v2661 = vsel %vm2630, %v2652, 0.0
    %2662 = vadd.xlane.f32.xlu0 %v2661
    %v2663 = vpop.xlane.xlu0 %2662
    %v2664 = vsel %vm2630, %v2654, 0.0
    %2665 = vadd.xlane.f32.xlu0 %v2664
    %v2666 = vpop.xlane.xlu0 %2665
    %v2667 = vrcp.pop %v2657
    %v2668 = vrcp.pop %v2660
    %v2669 = vrcp.pop %v2663
    %v2670 = vrcp.pop %v2666
    %v2671 = vmul.f32 %v2648, %v2667
    %v2672 = vmul.f32 %v2650, %v2668
    %v2673 = vmul.f32 %v2652, %v2669
    %v2674 = vmul.f32 %v2654, %v2670
    %2675 = vrot.lane.b32.xlu0 %v762, 64
    %v2676 = vpop.permute.xlu0 %2675
    %v2679 = vsel %vm2630, %v2671, 0
    %2681 = vmatprep.subr.mxu0 0.0
    %v2682 = vand.u32 %v2676, 4294901760
    %2683 = vmatpush1.msra.mxu0 %v2682
    %2684 = vmatprep.subr.mxu0 0.0
    %2685 = vmatpush1.msra.mxu0 0.0
    %2686 = vmatprep.subr.mxu0 0.0
    %2687 = vmatpush1.msra.mxu0 0.0
    %2688 = vmatprep.subr.mxu0 0.0
    %2689 = vmatpush1.msra.mxu0 0.0
    %2690 = vmatprep.subr.mxu0 0.0
    %2691 = vmatpush1.msra.mxu0 0.0
    %2692 = vmatprep.subr.mxu0 0.0
    %2693 = vmatpush1.msra.mxu0 0.0
    %2694 = vmatprep.subr.mxu0 0.0
    %2695 = vmatpush1.msra.mxu0 0.0
    %2696 = vmatprep.subr.mxu0 0.0
    %2697 = vmatpush1.msra.mxu0 0.0
    %2698 = vmatprep.subr.mxu0 0.0
    %2699 = vmatpush1.msra.mxu0 0.0
    %2700 = vmatprep.subr.mxu0 0.0
    %2701 = vmatpush1.msra.mxu0 0.0
    %2702 = vmatprep.subr.mxu0 0.0
    %2703 = vmatpush1.msra.mxu0 0.0
    %2704 = vmatprep.subr.mxu0 0.0
    %2705 = vmatpush1.msra.mxu0 0.0
    %2706 = vmatprep.subr.mxu0 0.0
    %2707 = vmatpush1.msra.mxu0 0.0
    %2708 = vmatprep.subr.mxu0 0.0
    %2709 = vmatpush1.msra.mxu0 0.0
    %2710 = vmatprep.subr.mxu0 0.0
    %2711 = vmatpush1.msra.mxu0 0.0
    %2712 = vmatprep.subr.mxu0 0.0
    %2713 = vmatpush1.msra.mxu0 0.0
    %2714 = vmatprep.subr.mxu0 0.0
    %2715 = vmatpush1.msra.mxu0 0.0
    %2716 = vmatprep.subr.mxu0 0.0
    %2717 = vmatpush1.msra.mxu0 0.0
    %2718 = vmatprep.subr.mxu0 0.0
    %2719 = vmatpush1.msra.mxu0 0.0
    %2720 = vmatprep.subr.mxu0 0.0
    %2721 = vmatpush1.msra.mxu0 0.0
    %2722 = vmatprep.subr.mxu0 0.0
    %2723 = vmatpush1.msra.mxu0 0.0
    %2724 = vmatprep.subr.mxu0 0.0
    %2725 = vmatpush1.msra.mxu0 0.0
    %2726 = vmatprep.subr.mxu0 0.0
    %2727 = vmatpush1.msra.mxu0 0.0
    %2728 = vmatprep.subr.mxu0 0.0
    %2729 = vmatpush1.msra.mxu0 0.0
    %2730 = vmatprep.subr.mxu0 0.0
    %2731 = vmatpush1.msra.mxu0 0.0
    %2732 = vmatprep.subr.mxu0 0.0
    %2733 = vmatpush1.msra.mxu0 0.0
    %2734 = vmatprep.subr.mxu0 0.0
    %2735 = vmatpush1.msra.mxu0 0.0
    %2736 = vmatprep.subr.mxu0 0.0
    %2737 = vmatpush1.msra.mxu0 0.0
    %2738 = vmatprep.subr.mxu0 0.0
    %2739 = vmatpush1.msra.mxu0 0.0
    %2740 = vmatprep.subr.mxu0 0.0
    %2741 = vmatpush1.msra.mxu0 0.0
    %2742 = vmatprep.subr.mxu0 0.0
    %2743 = vmatpush1.msra.mxu0 0.0
    %2744 = vmatprep.subr.mxu0 0.0
    %2745 = vmatpush1.msra.mxu0 0.0
    %2746 = vmatprep.mubr.f32.mxu0 0.0
    %v2747 = vand.u32 %v2679, 4294901760
    %v2748 = vsub.f32 %v2679, %v2747
    %v2749 = vand.u32 %v2748, 4294901760
    %v2750 = vsub.f32 %v2748, %v2749
    %v2751 = vand.u32 %v2750, 4294901760
    %2752 = vmatmul.mubr.f32.gmra.mrb[0].mxu0 %v2751
    %v2753 = vpop.f32.mrb[0].mxu0
    %v2754 = vadd.f32 0.0, %v2753
    %v2755 = vpop.f32.mrb[0].mxu0
    %2756 = vdwg.mxu0
    %2757 = vmatprep.subr.mxu0 0.0
    %v2758 = vand.u32 %v2676, 4294901760
    %v2759 = vsub.f32 %v2676, %v2758
    %v2760 = vand.u32 %v2759, 4294901760
    %v2761 = vsub.f32 %v2759, %v2760
    %v2762 = vand.u32 %v2761, 4294901760
    %2763 = vmatpush1.msra.mxu0 %v2762
    %2764 = vmatprep.subr.mxu0 0.0
    %2765 = vmatpush1.msra.mxu0 0.0
    %2766 = vmatprep.subr.mxu0 0.0
    %2767 = vmatpush1.msra.mxu0 0.0
    %2768 = vmatprep.subr.mxu0 0.0
    %2769 = vmatpush1.msra.mxu0 0.0
    %2770 = vmatprep.subr.mxu0 0.0
    %2771 = vmatpush1.msra.mxu0 0.0
    %2772 = vmatprep.subr.mxu0 0.0
    %2773 = vmatpush1.msra.mxu0 0.0
    %2774 = vmatprep.subr.mxu0 0.0
    %2775 = vmatpush1.msra.mxu0 0.0
    %2776 = vmatprep.subr.mxu0 0.0
    %2777 = vmatpush1.msra.mxu0 0.0
    %2778 = vmatprep.subr.mxu0 0.0
    %2779 = vmatpush1.msra.mxu0 0.0
    %2780 = vmatprep.subr.mxu0 0.0
    %2781 = vmatpush1.msra.mxu0 0.0
    %2782 = vmatprep.subr.mxu0 0.0
    %2783 = vmatpush1.msra.mxu0 0.0
    %2784 = vmatprep.subr.mxu0 0.0
    %2785 = vmatpush1.msra.mxu0 0.0
    %2786 = vmatprep.subr.mxu0 0.0
    %2787 = vmatpush1.msra.mxu0 0.0
    %2788 = vmatprep.subr.mxu0 0.0
    %2789 = vmatpush1.msra.mxu0 0.0
    %2790 = vmatprep.subr.mxu0 0.0
    %2791 = vmatpush1.msra.mxu0 0.0
    %2792 = vmatprep.subr.mxu0 0.0
    %2793 = vmatpush1.msra.mxu0 0.0
    %2794 = vmatprep.subr.mxu0 0.0
    %2795 = vmatpush1.msra.mxu0 0.0
    %2796 = vmatprep.subr.mxu0 0.0
    %2797 = vmatpush1.msra.mxu0 0.0
    %2798 = vmatprep.subr.mxu0 0.0
    %2799 = vmatpush1.msra.mxu0 0.0
    %2800 = vmatprep.subr.mxu0 0.0
    %2801 = vmatpush1.msra.mxu0 0.0
    %2802 = vmatprep.subr.mxu0 0.0
    %2803 = vmatpush1.msra.mxu0 0.0
    %2804 = vmatprep.subr.mxu0 0.0
    %2805 = vmatpush1.msra.mxu0 0.0
    %2806 = vmatprep.subr.mxu0 0.0
    %2807 = vmatpush1.msra.mxu0 0.0
    %2808 = vmatprep.subr.mxu0 0.0
    %2809 = vmatpush1.msra.mxu0 0.0
    %2810 = vmatprep.subr.mxu0 0.0
    %2811 = vmatpush1.msra.mxu0 0.0
    %2812 = vmatprep.subr.mxu0 0.0
    %2813 = vmatpush1.msra.mxu0 0.0
    %2814 = vmatprep.subr.mxu0 0.0
    %2815 = vmatpush1.msra.mxu0 0.0
    %2816 = vmatprep.subr.mxu0 0.0
    %2817 = vmatpush1.msra.mxu0 0.0
    %2818 = vmatprep.subr.mxu0 0.0
    %2819 = vmatpush1.msra.mxu0 0.0
    %2820 = vmatprep.subr.mxu0 0.0
    %2821 = vmatpush1.msra.mxu0 0.0
    %2822 = vmatprep.subr.mxu0 0.0
    %2823 = vmatpush1.msra.mxu0 0.0
    %2824 = vmatprep.subr.mxu0 0.0
    %2825 = vmatpush1.msra.mxu0 0.0
    %2826 = vmatprep.mubr.f32.mxu0 0.0
    %v2827 = vand.u32 %v2679, 4294901760
    %2828 = vmatmul.mubr.f32.gmra.mrb[0].mxu0 %v2827
    %v2829 = vpop.f32.mrb[0].mxu0
    %v2830 = vadd.f32 %v2754, %v2829
    %v2831 = vpop.f32.mrb[0].mxu0
    %2832 = vdwg.mxu0
    %2833 = vmatprep.subr.mxu0 0.0
    %v2834 = vand.u32 %v2676, 4294901760
    %v2835 = vsub.f32 %v2676, %v2834
    %2836 = vmatpush1.msra.mxu0 %v2835
    %2837 = vmatprep.subr.mxu0 0.0
    %2838 = vmatpush1.msra.mxu0 0.0
    %2839 = vmatprep.subr.mxu0 0.0
    %2840 = vmatpush1.msra.mxu0 0.0
    %2841 = vmatprep.subr.mxu0 0.0
    %2842 = vmatpush1.msra.mxu0 0.0
    %2843 = vmatprep.subr.mxu0 0.0
    %2844 = vmatpush1.msra.mxu0 0.0
    %2845 = vmatprep.subr.mxu0 0.0
    %2846 = vmatpush1.msra.mxu0 0.0
    %2847 = vmatprep.subr.mxu0 0.0
    %2848 = vmatpush1.msra.mxu0 0.0
    %2849 = vmatprep.subr.mxu0 0.0
    %2850 = vmatpush1.msra.mxu0 0.0
    %2851 = vmatprep.subr.mxu0 0.0
    %2852 = vmatpush1.msra.mxu0 0.0
    %2853 = vmatprep.subr.mxu0 0.0
    %2854 = vmatpush1.msra.mxu0 0.0
    %2855 = vmatprep.subr.mxu0 0.0
    %2856 = vmatpush1.msra.mxu0 0.0
    %2857 = vmatprep.subr.mxu0 0.0
    %2858 = vmatpush1.msra.mxu0 0.0
    %2859 = vmatprep.subr.mxu0 0.0
    %2860 = vmatpush1.msra.mxu0 0.0
    %2861 = vmatprep.subr.mxu0 0.0
    %2862 = vmatpush1.msra.mxu0 0.0
    %2863 = vmatprep.subr.mxu0 0.0
    %2864 = vmatpush1.msra.mxu0 0.0
    %2865 = vmatprep.subr.mxu0 0.0
    %2866 = vmatpush1.msra.mxu0 0.0
    %2867 = vmatprep.subr.mxu0 0.0
    %2868 = vmatpush1.msra.mxu0 0.0
    %2869 = vmatprep.subr.mxu0 0.0
    %2870 = vmatpush1.msra.mxu0 0.0
    %2871 = vmatprep.subr.mxu0 0.0
    %2872 = vmatpush1.msra.mxu0 0.0
    %2873 = vmatprep.subr.mxu0 0.0
    %2874 = vmatpush1.msra.mxu0 0.0
    %2875 = vmatprep.subr.mxu0 0.0
    %2876 = vmatpush1.msra.mxu0 0.0
    %2877 = vmatprep.subr.mxu0 0.0
    %2878 = vmatpush1.msra.mxu0 0.0
    %2879 = vmatprep.subr.mxu0 0.0
    %2880 = vmatpush1.msra.mxu0 0.0
    %2881 = vmatprep.subr.mxu0 0.0
    %2882 = vmatpush1.msra.mxu0 0.0
    %2883 = vmatprep.subr.mxu0 0.0
    %2884 = vmatpush1.msra.mxu0 0.0
    %2885 = vmatprep.subr.mxu0 0.0
    %2886 = vmatpush1.msra.mxu0 0.0
    %2887 = vmatprep.subr.mxu0 0.0
    %2888 = vmatpush1.msra.mxu0 0.0
    %2889 = vmatprep.subr.mxu0 0.0
    %2890 = vmatpush1.msra.mxu0 0.0
    %2891 = vmatprep.subr.mxu0 0.0
    %2892 = vmatpush1.msra.mxu0 0.0
    %2893 = vmatprep.subr.mxu0 0.0
    %2894 = vmatpush1.msra.mxu0 0.0
    %2895 = vmatprep.subr.mxu0 0.0
    %2896 = vmatpush1.msra.mxu0 0.0
    %2897 = vmatprep.subr.mxu0 0.0
    %2898 = vmatpush1.msra.mxu0 0.0
    %2899 = vmatprep.mubr.f32.mxu0 0.0
    %v2900 = vand.u32 %v2679, 4294901760
    %v2901 = vsub.f32 %v2679, %v2900
    %2902 = vmatmul.mubr.f32.gmra.mrb[0].mxu0 %v2901
    %v2903 = vpop.f32.mrb[0].mxu0
    %v2904 = vadd.f32 %v2830, %v2903
    %v2905 = vpop.f32.mrb[0].mxu0
    %2906 = vdwg.mxu0
    %2907 = vmatprep.subr.mxu0 0.0
    %v2908 = vand.u32 %v2676, 4294901760
    %2909 = vmatpush1.msra.mxu0 %v2908
    %2910 = vmatprep.subr.mxu0 0.0
    %2911 = vmatpush1.msra.mxu0 0.0
    %2912 = vmatprep.subr.mxu0 0.0
    %2913 = vmatpush1.msra.mxu0 0.0
    %2914 = vmatprep.subr.mxu0 0.0
    %2915 = vmatpush1.msra.mxu0 0.0
    %2916 = vmatprep.subr.mxu0 0.0
    %2917 = vmatpush1.msra.mxu0 0.0
    %2918 = vmatprep.subr.mxu0 0.0
    %2919 = vmatpush1.msra.mxu0 0.0
    %2920 = vmatprep.subr.mxu0 0.0
    %2921 = vmatpush1.msra.mxu0 0.0
    %2922 = vmatprep.subr.mxu0 0.0
    %2923 = vmatpush1.msra.mxu0 0.0
    %2924 = vmatprep.subr.mxu0 0.0
    %2925 = vmatpush1.msra.mxu0 0.0
    %2926 = vmatprep.subr.mxu0 0.0
    %2927 = vmatpush1.msra.mxu0 0.0
    %2928 = vmatprep.subr.mxu0 0.0
    %2929 = vmatpush1.msra.mxu0 0.0
    %2930 = vmatprep.subr.mxu0 0.0
    %2931 = vmatpush1.msra.mxu0 0.0
    %2932 = vmatprep.subr.mxu0 0.0
    %2933 = vmatpush1.msra.mxu0 0.0
    %2934 = vmatprep.subr.mxu0 0.0
    %2935 = vmatpush1.msra.mxu0 0.0
    %2936 = vmatprep.subr.mxu0 0.0
    %2937 = vmatpush1.msra.mxu0 0.0
    %2938 = vmatprep.subr.mxu0 0.0
    %2939 = vmatpush1.msra.mxu0 0.0
    %2940 = vmatprep.subr.mxu0 0.0
    %2941 = vmatpush1.msra.mxu0 0.0
    %2942 = vmatprep.subr.mxu0 0.0
    %2943 = vmatpush1.msra.mxu0 0.0
    %2944 = vmatprep.subr.mxu0 0.0
    %2945 = vmatpush1.msra.mxu0 0.0
    %2946 = vmatprep.subr.mxu0 0.0
    %2947 = vmatpush1.msra.mxu0 0.0
    %2948 = vmatprep.subr.mxu0 0.0
    %2949 = vmatpush1.msra.mxu0 0.0
    %2950 = vmatprep.subr.mxu0 0.0
    %2951 = vmatpush1.msra.mxu0 0.0
    %2952 = vmatprep.subr.mxu0 0.0
    %2953 = vmatpush1.msra.mxu0 0.0
    %2954 = vmatprep.subr.mxu0 0.0
    %2955 = vmatpush1.msra.mxu0 0.0
    %2956 = vmatprep.subr.mxu0 0.0
    %2957 = vmatpush1.msra.mxu0 0.0
    %2958 = vmatprep.subr.mxu0 0.0
    %2959 = vmatpush1.msra.mxu0 0.0
    %2960 = vmatprep.subr.mxu0 0.0
    %2961 = vmatpush1.msra.mxu0 0.0
    %2962 = vmatprep.subr.mxu0 0.0
    %2963 = vmatpush1.msra.mxu0 0.0
    %2964 = vmatprep.subr.mxu0 0.0
    %2965 = vmatpush1.msra.mxu0 0.0
    %2966 = vmatprep.subr.mxu0 0.0
    %2967 = vmatpush1.msra.mxu0 0.0
    %2968 = vmatprep.subr.mxu0 0.0
    %2969 = vmatpush1.msra.mxu0 0.0
    %2970 = vmatprep.subr.mxu0 0.0
    %2971 = vmatpush1.msra.mxu0 0.0
    %2972 = vmatprep.mubr.f32.mxu0 0.0
    %v2973 = vand.u32 %v2679, 4294901760
    %v2974 = vsub.f32 %v2679, %v2973
    %v2975 = vand.u32 %v2974, 4294901760
    %2976 = vmatmul.mubr.f32.gmra.mrb[0].mxu0 %v2975
    %v2977 = vpop.f32.mrb[0].mxu0
    %v2978 = vadd.f32 %v2904, %v2977
    %v2979 = vpop.f32.mrb[0].mxu0
    %2980 = vdwg.mxu0
    %2981 = vmatprep.subr.mxu0 0.0
    %v2982 = vand.u32 %v2676, 4294901760
    %v2983 = vsub.f32 %v2676, %v2982
    %v2984 = vand.u32 %v2983, 4294901760
    %2985 = vmatpush1.msra.mxu0 %v2984
    %2986 = vmatprep.subr.mxu0 0.0
    %2987 = vmatpush1.msra.mxu0 0.0
    %2988 = vmatprep.subr.mxu0 0.0
    %2989 = vmatpush1.msra.mxu0 0.0
    %2990 = vmatprep.subr.mxu0 0.0
    %2991 = vmatpush1.msra.mxu0 0.0
    %2992 = vmatprep.subr.mxu0 0.0
    %2993 = vmatpush1.msra.mxu0 0.0
    %2994 = vmatprep.subr.mxu0 0.0
    %2995 = vmatpush1.msra.mxu0 0.0
    %2996 = vmatprep.subr.mxu0 0.0
    %2997 = vmatpush1.msra.mxu0 0.0
    %2998 = vmatprep.subr.mxu0 0.0
    %2999 = vmatpush1.msra.mxu0 0.0
    %3000 = vmatprep.subr.mxu0 0.0
    %3001 = vmatpush1.msra.mxu0 0.0
    %3002 = vmatprep.subr.mxu0 0.0
    %3003 = vmatpush1.msra.mxu0 0.0
    %3004 = vmatprep.subr.mxu0 0.0
    %3005 = vmatpush1.msra.mxu0 0.0
    %3006 = vmatprep.subr.mxu0 0.0
    %3007 = vmatpush1.msra.mxu0 0.0
    %3008 = vmatprep.subr.mxu0 0.0
    %3009 = vmatpush1.msra.mxu0 0.0
    %3010 = vmatprep.subr.mxu0 0.0
    %3011 = vmatpush1.msra.mxu0 0.0
    %3012 = vmatprep.subr.mxu0 0.0
    %3013 = vmatpush1.msra.mxu0 0.0
    %3014 = vmatprep.subr.mxu0 0.0
    %3015 = vmatpush1.msra.mxu0 0.0
    %3016 = vmatprep.subr.mxu0 0.0
    %3017 = vmatpush1.msra.mxu0 0.0
    %3018 = vmatprep.subr.mxu0 0.0
    %3019 = vmatpush1.msra.mxu0 0.0
    %3020 = vmatprep.subr.mxu0 0.0
    %3021 = vmatpush1.msra.mxu0 0.0
    %3022 = vmatprep.subr.mxu0 0.0
    %3023 = vmatpush1.msra.mxu0 0.0
    %3024 = vmatprep.subr.mxu0 0.0
    %3025 = vmatpush1.msra.mxu0 0.0
    %3026 = vmatprep.subr.mxu0 0.0
    %3027 = vmatpush1.msra.mxu0 0.0
    %3028 = vmatprep.subr.mxu0 0.0
    %3029 = vmatpush1.msra.mxu0 0.0
    %3030 = vmatprep.subr.mxu0 0.0
    %3031 = vmatpush1.msra.mxu0 0.0
    %3032 = vmatprep.subr.mxu0 0.0
    %3033 = vmatpush1.msra.mxu0 0.0
    %3034 = vmatprep.subr.mxu0 0.0
    %3035 = vmatpush1.msra.mxu0 0.0
    %3036 = vmatprep.subr.mxu0 0.0
    %3037 = vmatpush1.msra.mxu0 0.0
    %3038 = vmatprep.subr.mxu0 0.0
    %3039 = vmatpush1.msra.mxu0 0.0
    %3040 = vmatprep.subr.mxu0 0.0
    %3041 = vmatpush1.msra.mxu0 0.0
    %3042 = vmatprep.subr.mxu0 0.0
    %3043 = vmatpush1.msra.mxu0 0.0
    %3044 = vmatprep.subr.mxu0 0.0
    %3045 = vmatpush1.msra.mxu0 0.0
    %3046 = vmatprep.subr.mxu0 0.0
    %3047 = vmatpush1.msra.mxu0 0.0
    %3048 = vmatprep.mubr.f32.mxu0 0.0
    %v3049 = vand.u32 %v2679, 4294901760
    %3050 = vmatmul.mubr.f32.gmra.mrb[0].mxu0 %v3049
    %v3051 = vpop.f32.mrb[0].mxu0
    %v3052 = vadd.f32 %v2978, %v3051
    %v3053 = vpop.f32.mrb[0].mxu0
    %3054 = vdwg.mxu0
    %3055 = vmatprep.subr.mxu0 0.0
    %v3056 = vand.u32 %v2676, 4294901760
    %3057 = vmatpush1.msra.mxu0 %v3056
    %3058 = vmatprep.subr.mxu0 0.0
    %3059 = vmatpush1.msra.mxu0 0.0
    %3060 = vmatprep.subr.mxu0 0.0
    %3061 = vmatpush1.msra.mxu0 0.0
    %3062 = vmatprep.subr.mxu0 0.0
    %3063 = vmatpush1.msra.mxu0 0.0
    %3064 = vmatprep.subr.mxu0 0.0
    %3065 = vmatpush1.msra.mxu0 0.0
    %3066 = vmatprep.subr.mxu0 0.0
    %3067 = vmatpush1.msra.mxu0 0.0
    %3068 = vmatprep.subr.mxu0 0.0
    %3069 = vmatpush1.msra.mxu0 0.0
    %3070 = vmatprep.subr.mxu0 0.0
    %3071 = vmatpush1.msra.mxu0 0.0
    %3072 = vmatprep.subr.mxu0 0.0
    %3073 = vmatpush1.msra.mxu0 0.0
    %3074 = vmatprep.subr.mxu0 0.0
    %3075 = vmatpush1.msra.mxu0 0.0
    %3076 = vmatprep.subr.mxu0 0.0
    %3077 = vmatpush1.msra.mxu0 0.0
    %3078 = vmatprep.subr.mxu0 0.0
    %3079 = vmatpush1.msra.mxu0 0.0
    %3080 = vmatprep.subr.mxu0 0.0
    %3081 = vmatpush1.msra.mxu0 0.0
    %3082 = vmatprep.subr.mxu0 0.0
    %3083 = vmatpush1.msra.mxu0 0.0
    %3084 = vmatprep.subr.mxu0 0.0
    %3085 = vmatpush1.msra.mxu0 0.0
    %3086 = vmatprep.subr.mxu0 0.0
    %3087 = vmatpush1.msra.mxu0 0.0
    %3088 = vmatprep.subr.mxu0 0.0
    %3089 = vmatpush1.msra.mxu0 0.0
    %3090 = vmatprep.subr.mxu0 0.0
    %3091 = vmatpush1.msra.mxu0 0.0
    %3092 = vmatprep.subr.mxu0 0.0
    %3093 = vmatpush1.msra.mxu0 0.0
    %3094 = vmatprep.subr.mxu0 0.0
    %3095 = vmatpush1.msra.mxu0 0.0
    %3096 = vmatprep.subr.mxu0 0.0
    %3097 = vmatpush1.msra.mxu0 0.0
    %3098 = vmatprep.subr.mxu0 0.0
    %3099 = vmatpush1.msra.mxu0 0.0
    %3100 = vmatprep.subr.mxu0 0.0
    %3101 = vmatpush1.msra.mxu0 0.0
    %3102 = vmatprep.subr.mxu0 0.0
    %3103 = vmatpush1.msra.mxu0 0.0
    %3104 = vmatprep.subr.mxu0 0.0
    %3105 = vmatpush1.msra.mxu0 0.0
    %3106 = vmatprep.subr.mxu0 0.0
    %3107 = vmatpush1.msra.mxu0 0.0
    %3108 = vmatprep.subr.mxu0 0.0
    %3109 = vmatpush1.msra.mxu0 0.0
    %3110 = vmatprep.subr.mxu0 0.0
    %3111 = vmatpush1.msra.mxu0 0.0
    %3112 = vmatprep.subr.mxu0 0.0
    %3113 = vmatpush1.msra.mxu0 0.0
    %3114 = vmatprep.subr.mxu0 0.0
    %3115 = vmatpush1.msra.mxu0 0.0
    %3116 = vmatprep.subr.mxu0 0.0
    %3117 = vmatpush1.msra.mxu0 0.0
    %3118 = vmatprep.subr.mxu0 0.0
    %3119 = vmatpush1.msra.mxu0 0.0
    %3120 = vmatprep.mubr.f32.mxu0 0.0
    %v3121 = vand.u32 %v2679, 4294901760
    %3122 = vmatmul.mubr.f32.gmra.mrb[0].mxu0 %v3121
    %v3123 = vpop.f32.mrb[0].mxu0
    %v3124 = vadd.f32 %v3052, %v3123
    %v3125 = vpop.f32.mrb[0].mxu0
    %3126 = vdwg.mxu0
    %3127 = vrot.lane.b32.xlu0 %v768, 64
    %v3128 = vpop.permute.xlu0 %3127
    %v3131 = vsel %vm2630, %v2672, 0
    %3133 = vmatprep.subr.mxu0 0.0
    %v3134 = vand.u32 %v3128, 4294901760
    %3135 = vmatpush1.msra.mxu0 %v3134
    %3136 = vmatprep.subr.mxu0 0.0
    %3137 = vmatpush1.msra.mxu0 0.0
    %3138 = vmatprep.subr.mxu0 0.0
    %3139 = vmatpush1.msra.mxu0 0.0
    %3140 = vmatprep.subr.mxu0 0.0
    %3141 = vmatpush1.msra.mxu0 0.0
    %3142 = vmatprep.subr.mxu0 0.0
    %3143 = vmatpush1.msra.mxu0 0.0
    %3144 = vmatprep.subr.mxu0 0.0
    %3145 = vmatpush1.msra.mxu0 0.0
    %3146 = vmatprep.subr.mxu0 0.0
    %3147 = vmatpush1.msra.mxu0 0.0
    %3148 = vmatprep.subr.mxu0 0.0
    %3149 = vmatpush1.msra.mxu0 0.0
    %3150 = vmatprep.subr.mxu0 0.0
    %3151 = vmatpush1.msra.mxu0 0.0
    %3152 = vmatprep.subr.mxu0 0.0
    %3153 = vmatpush1.msra.mxu0 0.0
    %3154 = vmatprep.subr.mxu0 0.0
    %3155 = vmatpush1.msra.mxu0 0.0
    %3156 = vmatprep.subr.mxu0 0.0
    %3157 = vmatpush1.msra.mxu0 0.0
    %3158 = vmatprep.subr.mxu0 0.0
    %3159 = vmatpush1.msra.mxu0 0.0
    %3160 = vmatprep.subr.mxu0 0.0
    %3161 = vmatpush1.msra.mxu0 0.0
    %3162 = vmatprep.subr.mxu0 0.0
    %3163 = vmatpush1.msra.mxu0 0.0
    %3164 = vmatprep.subr.mxu0 0.0
    %3165 = vmatpush1.msra.mxu0 0.0
    %3166 = vmatprep.subr.mxu0 0.0
    %3167 = vmatpush1.msra.mxu0 0.0
    %3168 = vmatprep.subr.mxu0 0.0
    %3169 = vmatpush1.msra.mxu0 0.0
    %3170 = vmatprep.subr.mxu0 0.0
    %3171 = vmatpush1.msra.mxu0 0.0
    %3172 = vmatprep.subr.mxu0 0.0
    %3173 = vmatpush1.msra.mxu0 0.0
    %3174 = vmatprep.subr.mxu0 0.0
    %3175 = vmatpush1.msra.mxu0 0.0
    %3176 = vmatprep.subr.mxu0 0.0
    %3177 = vmatpush1.msra.mxu0 0.0
    %3178 = vmatprep.subr.mxu0 0.0
    %3179 = vmatpush1.msra.mxu0 0.0
    %3180 = vmatprep.subr.mxu0 0.0
    %3181 = vmatpush1.msra.mxu0 0.0
    %3182 = vmatprep.subr.mxu0 0.0
    %3183 = vmatpush1.msra.mxu0 0.0
    %3184 = vmatprep.subr.mxu0 0.0
    %3185 = vmatpush1.msra.mxu0 0.0
    %3186 = vmatprep.subr.mxu0 0.0
    %3187 = vmatpush1.msra.mxu0 0.0
    %3188 = vmatprep.subr.mxu0 0.0
    %3189 = vmatpush1.msra.mxu0 0.0
    %3190 = vmatprep.subr.mxu0 0.0
    %3191 = vmatpush1.msra.mxu0 0.0
    %3192 = vmatprep.subr.mxu0 0.0
    %3193 = vmatpush1.msra.mxu0 0.0
    %3194 = vmatprep.subr.mxu0 0.0
    %3195 = vmatpush1.msra.mxu0 0.0
    %3196 = vmatprep.subr.mxu0 0.0
    %3197 = vmatpush1.msra.mxu0 0.0
    %3198 = vmatprep.mubr.f32.mxu0 0.0
    %v3199 = vand.u32 %v3131, 4294901760
    %v3200 = vsub.f32 %v3131, %v3199
    %v3201 = vand.u32 %v3200, 4294901760
    %v3202 = vsub.f32 %v3200, %v3201
    %v3203 = vand.u32 %v3202, 4294901760
    %3204 = vmatmul.mubr.f32.gmra.mrb[0].mxu0 %v3203
    %v3205 = vpop.f32.mrb[0].mxu0
    %v3206 = vadd.f32 0.0, %v3205
    %v3207 = vpop.f32.mrb[0].mxu0
    %3208 = vdwg.mxu0
    %3209 = vmatprep.subr.mxu0 0.0
    %v3210 = vand.u32 %v3128, 4294901760
    %v3211 = vsub.f32 %v3128, %v3210
    %v3212 = vand.u32 %v3211, 4294901760
    %v3213 = vsub.f32 %v3211, %v3212
    %v3214 = vand.u32 %v3213, 4294901760
    %3215 = vmatpush1.msra.mxu0 %v3214
    %3216 = vmatprep.subr.mxu0 0.0
    %3217 = vmatpush1.msra.mxu0 0.0
    %3218 = vmatprep.subr.mxu0 0.0
    %3219 = vmatpush1.msra.mxu0 0.0
    %3220 = vmatprep.subr.mxu0 0.0
    %3221 = vmatpush1.msra.mxu0 0.0
    %3222 = vmatprep.subr.mxu0 0.0
    %3223 = vmatpush1.msra.mxu0 0.0
    %3224 = vmatprep.subr.mxu0 0.0
    %3225 = vmatpush1.msra.mxu0 0.0
    %3226 = vmatprep.subr.mxu0 0.0
    %3227 = vmatpush1.msra.mxu0 0.0
    %3228 = vmatprep.subr.mxu0 0.0
    %3229 = vmatpush1.msra.mxu0 0.0
    %3230 = vmatprep.subr.mxu0 0.0
    %3231 = vmatpush1.msra.mxu0 0.0
    %3232 = vmatprep.subr.mxu0 0.0
    %3233 = vmatpush1.msra.mxu0 0.0
    %3234 = vmatprep.subr.mxu0 0.0
    %3235 = vmatpush1.msra.mxu0 0.0
    %3236 = vmatprep.subr.mxu0 0.0
    %3237 = vmatpush1.msra.mxu0 0.0
    %3238 = vmatprep.subr.mxu0 0.0
    %3239 = vmatpush1.msra.mxu0 0.0
    %3240 = vmatprep.subr.mxu0 0.0
    %3241 = vmatpush1.msra.mxu0 0.0
    %3242 = vmatprep.subr.mxu0 0.0
    %3243 = vmatpush1.msra.mxu0 0.0
    %3244 = vmatprep.subr.mxu0 0.0
    %3245 = vmatpush1.msra.mxu0 0.0
    %3246 = vmatprep.subr.mxu0 0.0
    %3247 = vmatpush1.msra.mxu0 0.0
    %3248 = vmatprep.subr.mxu0 0.0
    %3249 = vmatpush1.msra.mxu0 0.0
    %3250 = vmatprep.subr.mxu0 0.0
    %3251 = vmatpush1.msra.mxu0 0.0
    %3252 = vmatprep.subr.mxu0 0.0
    %3253 = vmatpush1.msra.mxu0 0.0
    %3254 = vmatprep.subr.mxu0 0.0
    %3255 = vmatpush1.msra.mxu0 0.0
    %3256 = vmatprep.subr.mxu0 0.0
    %3257 = vmatpush1.msra.mxu0 0.0
    %3258 = vmatprep.subr.mxu0 0.0
    %3259 = vmatpush1.msra.mxu0 0.0
    %3260 = vmatprep.subr.mxu0 0.0
    %3261 = vmatpush1.msra.mxu0 0.0
    %3262 = vmatprep.subr.mxu0 0.0
    %3263 = vmatpush1.msra.mxu0 0.0
    %3264 = vmatprep.subr.mxu0 0.0
    %3265 = vmatpush1.msra.mxu0 0.0
    %3266 = vmatprep.subr.mxu0 0.0
    %3267 = vmatpush1.msra.mxu0 0.0
    %3268 = vmatprep.subr.mxu0 0.0
    %3269 = vmatpush1.msra.mxu0 0.0
    %3270 = vmatprep.subr.mxu0 0.0
    %3271 = vmatpush1.msra.mxu0 0.0
    %3272 = vmatprep.subr.mxu0 0.0
    %3273 = vmatpush1.msra.mxu0 0.0
    %3274 = vmatprep.subr.mxu0 0.0
    %3275 = vmatpush1.msra.mxu0 0.0
    %3276 = vmatprep.subr.mxu0 0.0
    %3277 = vmatpush1.msra.mxu0 0.0
    %3278 = vmatprep.mubr.f32.mxu0 0.0
    %v3279 = vand.u32 %v3131, 4294901760
    %3280 = vmatmul.mubr.f32.gmra.mrb[0].mxu0 %v3279
    %v3281 = vpop.f32.mrb[0].mxu0
    %v3282 = vadd.f32 %v3206, %v3281
    %v3283 = vpop.f32.mrb[0].mxu0
    %3284 = vdwg.mxu0
    %3285 = vmatprep.subr.mxu0 0.0
    %v3286 = vand.u32 %v3128, 4294901760
    %v3287 = vsub.f32 %v3128, %v3286
    %3288 = vmatpush1.msra.mxu0 %v3287
    %3289 = vmatprep.subr.mxu0 0.0
    %3290 = vmatpush1.msra.mxu0 0.0
    %3291 = vmatprep.subr.mxu0 0.0
    %3292 = vmatpush1.msra.mxu0 0.0
    %3293 = vmatprep.subr.mxu0 0.0
    %3294 = vmatpush1.msra.mxu0 0.0
    %3295 = vmatprep.subr.mxu0 0.0
    %3296 = vmatpush1.msra.mxu0 0.0
    %3297 = vmatprep.subr.mxu0 0.0
    %3298 = vmatpush1.msra.mxu0 0.0
    %3299 = vmatprep.subr.mxu0 0.0
    %3300 = vmatpush1.msra.mxu0 0.0
    %3301 = vmatprep.subr.mxu0 0.0
    %3302 = vmatpush1.msra.mxu0 0.0
    %3303 = vmatprep.subr.mxu0 0.0
    %3304 = vmatpush1.msra.mxu0 0.0
    %3305 = vmatprep.subr.mxu0 0.0
    %3306 = vmatpush1.msra.mxu0 0.0
    %3307 = vmatprep.subr.mxu0 0.0
    %3308 = vmatpush1.msra.mxu0 0.0
    %3309 = vmatprep.subr.mxu0 0.0
    %3310 = vmatpush1.msra.mxu0 0.0
    %3311 = vmatprep.subr.mxu0 0.0
    %3312 = vmatpush1.msra.mxu0 0.0
    %3313 = vmatprep.subr.mxu0 0.0
    %3314 = vmatpush1.msra.mxu0 0.0
    %3315 = vmatprep.subr.mxu0 0.0
    %3316 = vmatpush1.msra.mxu0 0.0
    %3317 = vmatprep.subr.mxu0 0.0
    %3318 = vmatpush1.msra.mxu0 0.0
    %3319 = vmatprep.subr.mxu0 0.0
    %3320 = vmatpush1.msra.mxu0 0.0
    %3321 = vmatprep.subr.mxu0 0.0
    %3322 = vmatpush1.msra.mxu0 0.0
    %3323 = vmatprep.subr.mxu0 0.0
    %3324 = vmatpush1.msra.mxu0 0.0
    %3325 = vmatprep.subr.mxu0 0.0
    %3326 = vmatpush1.msra.mxu0 0.0
    %3327 = vmatprep.subr.mxu0 0.0
    %3328 = vmatpush1.msra.mxu0 0.0
    %3329 = vmatprep.subr.mxu0 0.0
    %3330 = vmatpush1.msra.mxu0 0.0
    %3331 = vmatprep.subr.mxu0 0.0
    %3332 = vmatpush1.msra.mxu0 0.0
    %3333 = vmatprep.subr.mxu0 0.0
    %3334 = vmatpush1.msra.mxu0 0.0
    %3335 = vmatprep.subr.mxu0 0.0
    %3336 = vmatpush1.msra.mxu0 0.0
    %3337 = vmatprep.subr.mxu0 0.0
    %3338 = vmatpush1.msra.mxu0 0.0
    %3339 = vmatprep.subr.mxu0 0.0
    %3340 = vmatpush1.msra.mxu0 0.0
    %3341 = vmatprep.subr.mxu0 0.0
    %3342 = vmatpush1.msra.mxu0 0.0
    %3343 = vmatprep.subr.mxu0 0.0
    %3344 = vmatpush1.msra.mxu0 0.0
    %3345 = vmatprep.subr.mxu0 0.0
    %3346 = vmatpush1.msra.mxu0 0.0
    %3347 = vmatprep.subr.mxu0 0.0
    %3348 = vmatpush1.msra.mxu0 0.0
    %3349 = vmatprep.subr.mxu0 0.0
    %3350 = vmatpush1.msra.mxu0 0.0
    %3351 = vmatprep.mubr.f32.mxu0 0.0
    %v3352 = vand.u32 %v3131, 4294901760
    %v3353 = vsub.f32 %v3131, %v3352
    %3354 = vmatmul.mubr.f32.gmra.mrb[0].mxu0 %v3353
    %v3355 = vpop.f32.mrb[0].mxu0
    %v3356 = vadd.f32 %v3282, %v3355
    %v3357 = vpop.f32.mrb[0].mxu0
    %3358 = vdwg.mxu0
    %3359 = vmatprep.subr.mxu0 0.0
    %v3360 = vand.u32 %v3128, 4294901760
    %3361 = vmatpush1.msra.mxu0 %v3360
    %3362 = vmatprep.subr.mxu0 0.0
    %3363 = vmatpush1.msra.mxu0 0.0
    %3364 = vmatprep.subr.mxu0 0.0
    %3365 = vmatpush1.msra.mxu0 0.0
    %3366 = vmatprep.subr.mxu0 0.0
    %3367 = vmatpush1.msra.mxu0 0.0
    %3368 = vmatprep.subr.mxu0 0.0
    %3369 = vmatpush1.msra.mxu0 0.0
    %3370 = vmatprep.subr.mxu0 0.0
    %3371 = vmatpush1.msra.mxu0 0.0
    %3372 = vmatprep.subr.mxu0 0.0
    %3373 = vmatpush1.msra.mxu0 0.0
    %3374 = vmatprep.subr.mxu0 0.0
    %3375 = vmatpush1.msra.mxu0 0.0
    %3376 = vmatprep.subr.mxu0 0.0
    %3377 = vmatpush1.msra.mxu0 0.0
    %3378 = vmatprep.subr.mxu0 0.0
    %3379 = vmatpush1.msra.mxu0 0.0
    %3380 = vmatprep.subr.mxu0 0.0
    %3381 = vmatpush1.msra.mxu0 0.0
    %3382 = vmatprep.subr.mxu0 0.0
    %3383 = vmatpush1.msra.mxu0 0.0
    %3384 = vmatprep.subr.mxu0 0.0
    %3385 = vmatpush1.msra.mxu0 0.0
    %3386 = vmatprep.subr.mxu0 0.0
    %3387 = vmatpush1.msra.mxu0 0.0
    %3388 = vmatprep.subr.mxu0 0.0
    %3389 = vmatpush1.msra.mxu0 0.0
    %3390 = vmatprep.subr.mxu0 0.0
    %3391 = vmatpush1.msra.mxu0 0.0
    %3392 = vmatprep.subr.mxu0 0.0
    %3393 = vmatpush1.msra.mxu0 0.0
    %3394 = vmatprep.subr.mxu0 0.0
    %3395 = vmatpush1.msra.mxu0 0.0
    %3396 = vmatprep.subr.mxu0 0.0
    %3397 = vmatpush1.msra.mxu0 0.0
    %3398 = vmatprep.subr.mxu0 0.0
    %3399 = vmatpush1.msra.mxu0 0.0
    %3400 = vmatprep.subr.mxu0 0.0
    %3401 = vmatpush1.msra.mxu0 0.0
    %3402 = vmatprep.subr.mxu0 0.0
    %3403 = vmatpush1.msra.mxu0 0.0
    %3404 = vmatprep.subr.mxu0 0.0
    %3405 = vmatpush1.msra.mxu0 0.0
    %3406 = vmatprep.subr.mxu0 0.0
    %3407 = vmatpush1.msra.mxu0 0.0
    %3408 = vmatprep.subr.mxu0 0.0
    %3409 = vmatpush1.msra.mxu0 0.0
    %3410 = vmatprep.subr.mxu0 0.0
    %3411 = vmatpush1.msra.mxu0 0.0
    %3412 = vmatprep.subr.mxu0 0.0
    %3413 = vmatpush1.msra.mxu0 0.0
    %3414 = vmatprep.subr.mxu0 0.0
    %3415 = vmatpush1.msra.mxu0 0.0
    %3416 = vmatprep.subr.mxu0 0.0
    %3417 = vmatpush1.msra.mxu0 0.0
    %3418 = vmatprep.subr.mxu0 0.0
    %3419 = vmatpush1.msra.mxu0 0.0
    %3420 = vmatprep.subr.mxu0 0.0
    %3421 = vmatpush1.msra.mxu0 0.0
    %3422 = vmatprep.subr.mxu0 0.0
    %3423 = vmatpush1.msra.mxu0 0.0
    %3424 = vmatprep.mubr.f32.mxu0 0.0
    %v3425 = vand.u32 %v3131, 4294901760
    %v3426 = vsub.f32 %v3131, %v3425
    %v3427 = vand.u32 %v3426, 4294901760
    %3428 = vmatmul.mubr.f32.gmra.mrb[0].mxu0 %v3427
    %v3429 = vpop.f32.mrb[0].mxu0
    %v3430 = vadd.f32 %v3356, %v3429
    %v3431 = vpop.f32.mrb[0].mxu0
    %3432 = vdwg.mxu0
    %3433 = vmatprep.subr.mxu0 0.0
    %v3434 = vand.u32 %v3128, 4294901760
    %v3435 = vsub.f32 %v3128, %v3434
    %v3436 = vand.u32 %v3435, 4294901760
    %3437 = vmatpush1.msra.mxu0 %v3436
    %3438 = vmatprep.subr.mxu0 0.0
    %3439 = vmatpush1.msra.mxu0 0.0
    %3440 = vmatprep.subr.mxu0 0.0
    %3441 = vmatpush1.msra.mxu0 0.0
    %3442 = vmatprep.subr.mxu0 0.0
    %3443 = vmatpush1.msra.mxu0 0.0
    %3444 = vmatprep.subr.mxu0 0.0
    %3445 = vmatpush1.msra.mxu0 0.0
    %3446 = vmatprep.subr.mxu0 0.0
    %3447 = vmatpush1.msra.mxu0 0.0
    %3448 = vmatprep.subr.mxu0 0.0
    %3449 = vmatpush1.msra.mxu0 0.0
    %3450 = vmatprep.subr.mxu0 0.0
    %3451 = vmatpush1.msra.mxu0 0.0
    %3452 = vmatprep.subr.mxu0 0.0
    %3453 = vmatpush1.msra.mxu0 0.0
    %3454 = vmatprep.subr.mxu0 0.0
    %3455 = vmatpush1.msra.mxu0 0.0
    %3456 = vmatprep.subr.mxu0 0.0
    %3457 = vmatpush1.msra.mxu0 0.0
    %3458 = vmatprep.subr.mxu0 0.0
    %3459 = vmatpush1.msra.mxu0 0.0
    %3460 = vmatprep.subr.mxu0 0.0
    %3461 = vmatpush1.msra.mxu0 0.0
    %3462 = vmatprep.subr.mxu0 0.0
    %3463 = vmatpush1.msra.mxu0 0.0
    %3464 = vmatprep.subr.mxu0 0.0
    %3465 = vmatpush1.msra.mxu0 0.0
    %3466 = vmatprep.subr.mxu0 0.0
    %3467 = vmatpush1.msra.mxu0 0.0
    %3468 = vmatprep.subr.mxu0 0.0
    %3469 = vmatpush1.msra.mxu0 0.0
    %3470 = vmatprep.subr.mxu0 0.0
    %3471 = vmatpush1.msra.mxu0 0.0
    %3472 = vmatprep.subr.mxu0 0.0
    %3473 = vmatpush1.msra.mxu0 0.0
    %3474 = vmatprep.subr.mxu0 0.0
    %3475 = vmatpush1.msra.mxu0 0.0
    %3476 = vmatprep.subr.mxu0 0.0
    %3477 = vmatpush1.msra.mxu0 0.0
    %3478 = vmatprep.subr.mxu0 0.0
    %3479 = vmatpush1.msra.mxu0 0.0
    %3480 = vmatprep.subr.mxu0 0.0
    %3481 = vmatpush1.msra.mxu0 0.0
    %3482 = vmatprep.subr.mxu0 0.0
    %3483 = vmatpush1.msra.mxu0 0.0
    %3484 = vmatprep.subr.mxu0 0.0
    %3485 = vmatpush1.msra.mxu0 0.0
    %3486 = vmatprep.subr.mxu0 0.0
    %3487 = vmatpush1.msra.mxu0 0.0
    %3488 = vmatprep.subr.mxu0 0.0
    %3489 = vmatpush1.msra.mxu0 0.0
    %3490 = vmatprep.subr.mxu0 0.0
    %3491 = vmatpush1.msra.mxu0 0.0
    %3492 = vmatprep.subr.mxu0 0.0
    %3493 = vmatpush1.msra.mxu0 0.0
    %3494 = vmatprep.subr.mxu0 0.0
    %3495 = vmatpush1.msra.mxu0 0.0
    %3496 = vmatprep.subr.mxu0 0.0
    %3497 = vmatpush1.msra.mxu0 0.0
    %3498 = vmatprep.subr.mxu0 0.0
    %3499 = vmatpush1.msra.mxu0 0.0
    %3500 = vmatprep.mubr.f32.mxu0 0.0
    %v3501 = vand.u32 %v3131, 4294901760
    %3502 = vmatmul.mubr.f32.gmra.mrb[0].mxu0 %v3501
    %v3503 = vpop.f32.mrb[0].mxu0
    %v3504 = vadd.f32 %v3430, %v3503
    %v3505 = vpop.f32.mrb[0].mxu0
    %3506 = vdwg.mxu0
    %3507 = vmatprep.subr.mxu0 0.0
    %v3508 = vand.u32 %v3128, 4294901760
    %3509 = vmatpush1.msra.mxu0 %v3508
    %3510 = vmatprep.subr.mxu0 0.0
    %3511 = vmatpush1.msra.mxu0 0.0
    %3512 = vmatprep.subr.mxu0 0.0
    %3513 = vmatpush1.msra.mxu0 0.0
    %3514 = vmatprep.subr.mxu0 0.0
    %3515 = vmatpush1.msra.mxu0 0.0
    %3516 = vmatprep.subr.mxu0 0.0
    %3517 = vmatpush1.msra.mxu0 0.0
    %3518 = vmatprep.subr.mxu0 0.0
    %3519 = vmatpush1.msra.mxu0 0.0
    %3520 = vmatprep.subr.mxu0 0.0
    %3521 = vmatpush1.msra.mxu0 0.0
    %3522 = vmatprep.subr.mxu0 0.0
    %3523 = vmatpush1.msra.mxu0 0.0
    %3524 = vmatprep.subr.mxu0 0.0
    %3525 = vmatpush1.msra.mxu0 0.0
    %3526 = vmatprep.subr.mxu0 0.0
    %3527 = vmatpush1.msra.mxu0 0.0
    %3528 = vmatprep.subr.mxu0 0.0
    %3529 = vmatpush1.msra.mxu0 0.0
    %3530 = vmatprep.subr.mxu0 0.0
    %3531 = vmatpush1.msra.mxu0 0.0
    %3532 = vmatprep.subr.mxu0 0.0
    %3533 = vmatpush1.msra.mxu0 0.0
    %3534 = vmatprep.subr.mxu0 0.0
    %3535 = vmatpush1.msra.mxu0 0.0
    %3536 = vmatprep.subr.mxu0 0.0
    %3537 = vmatpush1.msra.mxu0 0.0
    %3538 = vmatprep.subr.mxu0 0.0
    %3539 = vmatpush1.msra.mxu0 0.0
    %3540 = vmatprep.subr.mxu0 0.0
    %3541 = vmatpush1.msra.mxu0 0.0
    %3542 = vmatprep.subr.mxu0 0.0
    %3543 = vmatpush1.msra.mxu0 0.0
    %3544 = vmatprep.subr.mxu0 0.0
    %3545 = vmatpush1.msra.mxu0 0.0
    %3546 = vmatprep.subr.mxu0 0.0
    %3547 = vmatpush1.msra.mxu0 0.0
    %3548 = vmatprep.subr.mxu0 0.0
    %3549 = vmatpush1.msra.mxu0 0.0
    %3550 = vmatprep.subr.mxu0 0.0
    %3551 = vmatpush1.msra.mxu0 0.0
    %3552 = vmatprep.subr.mxu0 0.0
    %3553 = vmatpush1.msra.mxu0 0.0
    %3554 = vmatprep.subr.mxu0 0.0
    %3555 = vmatpush1.msra.mxu0 0.0
    %3556 = vmatprep.subr.mxu0 0.0
    %3557 = vmatpush1.msra.mxu0 0.0
    %3558 = vmatprep.subr.mxu0 0.0
    %3559 = vmatpush1.msra.mxu0 0.0
    %3560 = vmatprep.subr.mxu0 0.0
    %3561 = vmatpush1.msra.mxu0 0.0
    %3562 = vmatprep.subr.mxu0 0.0
    %3563 = vmatpush1.msra.mxu0 0.0
    %3564 = vmatprep.subr.mxu0 0.0
    %3565 = vmatpush1.msra.mxu0 0.0
    %3566 = vmatprep.subr.mxu0 0.0
    %3567 = vmatpush1.msra.mxu0 0.0
    %3568 = vmatprep.subr.mxu0 0.0
    %3569 = vmatpush1.msra.mxu0 0.0
    %3570 = vmatprep.subr.mxu0 0.0
    %3571 = vmatpush1.msra.mxu0 0.0
    %3572 = vmatprep.mubr.f32.mxu0 0.0
    %v3573 = vand.u32 %v3131, 4294901760
    %3574 = vmatmul.mubr.f32.gmra.mrb[0].mxu0 %v3573
    %v3575 = vpop.f32.mrb[0].mxu0
    %v3576 = vadd.f32 %v3504, %v3575
    %v3577 = vpop.f32.mrb[0].mxu0
    %3578 = vdwg.mxu0
    %3579 = vrot.lane.b32.xlu0 %v774, 64
    %v3580 = vpop.permute.xlu0 %3579
    %v3583 = vsel %vm2630, %v2673, 0
    %3585 = vmatprep.subr.mxu0 0.0
    %v3586 = vand.u32 %v3580, 4294901760
    %3587 = vmatpush1.msra.mxu0 %v3586
    %3588 = vmatprep.subr.mxu0 0.0
    %3589 = vmatpush1.msra.mxu0 0.0
    %3590 = vmatprep.subr.mxu0 0.0
    %3591 = vmatpush1.msra.mxu0 0.0
    %3592 = vmatprep.subr.mxu0 0.0
    %3593 = vmatpush1.msra.mxu0 0.0
    %3594 = vmatprep.subr.mxu0 0.0
    %3595 = vmatpush1.msra.mxu0 0.0
    %3596 = vmatprep.subr.mxu0 0.0
    %3597 = vmatpush1.msra.mxu0 0.0
    %3598 = vmatprep.subr.mxu0 0.0
    %3599 = vmatpush1.msra.mxu0 0.0
    %3600 = vmatprep.subr.mxu0 0.0
    %3601 = vmatpush1.msra.mxu0 0.0
    %3602 = vmatprep.subr.mxu0 0.0
    %3603 = vmatpush1.msra.mxu0 0.0
    %3604 = vmatprep.subr.mxu0 0.0
    %3605 = vmatpush1.msra.mxu0 0.0
    %3606 = vmatprep.subr.mxu0 0.0
    %3607 = vmatpush1.msra.mxu0 0.0
    %3608 = vmatprep.subr.mxu0 0.0
    %3609 = vmatpush1.msra.mxu0 0.0
    %3610 = vmatprep.subr.mxu0 0.0
    %3611 = vmatpush1.msra.mxu0 0.0
    %3612 = vmatprep.subr.mxu0 0.0
    %3613 = vmatpush1.msra.mxu0 0.0
    %3614 = vmatprep.subr.mxu0 0.0
    %3615 = vmatpush1.msra.mxu0 0.0
    %3616 = vmatprep.subr.mxu0 0.0
    %3617 = vmatpush1.msra.mxu0 0.0
    %3618 = vmatprep.subr.mxu0 0.0
    %3619 = vmatpush1.msra.mxu0 0.0
    %3620 = vmatprep.subr.mxu0 0.0
    %3621 = vmatpush1.msra.mxu0 0.0
    %3622 = vmatprep.subr.mxu0 0.0
    %3623 = vmatpush1.msra.mxu0 0.0
    %3624 = vmatprep.subr.mxu0 0.0
    %3625 = vmatpush1.msra.mxu0 0.0
    %3626 = vmatprep.subr.mxu0 0.0
    %3627 = vmatpush1.msra.mxu0 0.0
    %3628 = vmatprep.subr.mxu0 0.0
    %3629 = vmatpush1.msra.mxu0 0.0
    %3630 = vmatprep.subr.mxu0 0.0
    %3631 = vmatpush1.msra.mxu0 0.0
    %3632 = vmatprep.subr.mxu0 0.0
    %3633 = vmatpush1.msra.mxu0 0.0
    %3634 = vmatprep.subr.mxu0 0.0
    %3635 = vmatpush1.msra.mxu0 0.0
    %3636 = vmatprep.subr.mxu0 0.0
    %3637 = vmatpush1.msra.mxu0 0.0
    %3638 = vmatprep.subr.mxu0 0.0
    %3639 = vmatpush1.msra.mxu0 0.0
    %3640 = vmatprep.subr.mxu0 0.0
    %3641 = vmatpush1.msra.mxu0 0.0
    %3642 = vmatprep.subr.mxu0 0.0
    %3643 = vmatpush1.msra.mxu0 0.0
    %3644 = vmatprep.subr.mxu0 0.0
    %3645 = vmatpush1.msra.mxu0 0.0
    %3646 = vmatprep.subr.mxu0 0.0
    %3647 = vmatpush1.msra.mxu0 0.0
    %3648 = vmatprep.subr.mxu0 0.0
    %3649 = vmatpush1.msra.mxu0 0.0
    %3650 = vmatprep.mubr.f32.mxu0 0.0
    %v3651 = vand.u32 %v3583, 4294901760
    %v3652 = vsub.f32 %v3583, %v3651
    %v3653 = vand.u32 %v3652, 4294901760
    %v3654 = vsub.f32 %v3652, %v3653
    %v3655 = vand.u32 %v3654, 4294901760
    %3656 = vmatmul.mubr.f32.gmra.mrb[0].mxu0 %v3655
    %v3657 = vpop.f32.mrb[0].mxu0
    %v3658 = vadd.f32 0.0, %v3657
    %v3659 = vpop.f32.mrb[0].mxu0
    %3660 = vdwg.mxu0
    %3661 = vmatprep.subr.mxu0 0.0
    %v3662 = vand.u32 %v3580, 4294901760
    %v3663 = vsub.f32 %v3580, %v3662
    %v3664 = vand.u32 %v3663, 4294901760
    %v3665 = vsub.f32 %v3663, %v3664
    %v3666 = vand.u32 %v3665, 4294901760
    %3667 = vmatpush1.msra.mxu0 %v3666
    %3668 = vmatprep.subr.mxu0 0.0
    %3669 = vmatpush1.msra.mxu0 0.0
    %3670 = vmatprep.subr.mxu0 0.0
    %3671 = vmatpush1.msra.mxu0 0.0
    %3672 = vmatprep.subr.mxu0 0.0
    %3673 = vmatpush1.msra.mxu0 0.0
    %3674 = vmatprep.subr.mxu0 0.0
    %3675 = vmatpush1.msra.mxu0 0.0
    %3676 = vmatprep.subr.mxu0 0.0
    %3677 = vmatpush1.msra.mxu0 0.0
    %3678 = vmatprep.subr.mxu0 0.0
    %3679 = vmatpush1.msra.mxu0 0.0
    %3680 = vmatprep.subr.mxu0 0.0
    %3681 = vmatpush1.msra.mxu0 0.0
    %3682 = vmatprep.subr.mxu0 0.0
    %3683 = vmatpush1.msra.mxu0 0.0
    %3684 = vmatprep.subr.mxu0 0.0
    %3685 = vmatpush1.msra.mxu0 0.0
    %3686 = vmatprep.subr.mxu0 0.0
    %3687 = vmatpush1.msra.mxu0 0.0
    %3688 = vmatprep.subr.mxu0 0.0
    %3689 = vmatpush1.msra.mxu0 0.0
    %3690 = vmatprep.subr.mxu0 0.0
    %3691 = vmatpush1.msra.mxu0 0.0
    %3692 = vmatprep.subr.mxu0 0.0
    %3693 = vmatpush1.msra.mxu0 0.0
    %3694 = vmatprep.subr.mxu0 0.0
    %3695 = vmatpush1.msra.mxu0 0.0
    %3696 = vmatprep.subr.mxu0 0.0
    %3697 = vmatpush1.msra.mxu0 0.0
    %3698 = vmatprep.subr.mxu0 0.0
    %3699 = vmatpush1.msra.mxu0 0.0
    %3700 = vmatprep.subr.mxu0 0.0
    %3701 = vmatpush1.msra.mxu0 0.0
    %3702 = vmatprep.subr.mxu0 0.0
    %3703 = vmatpush1.msra.mxu0 0.0
    %3704 = vmatprep.subr.mxu0 0.0
    %3705 = vmatpush1.msra.mxu0 0.0
    %3706 = vmatprep.subr.mxu0 0.0
    %3707 = vmatpush1.msra.mxu0 0.0
    %3708 = vmatprep.subr.mxu0 0.0
    %3709 = vmatpush1.msra.mxu0 0.0
    %3710 = vmatprep.subr.mxu0 0.0
    %3711 = vmatpush1.msra.mxu0 0.0
    %3712 = vmatprep.subr.mxu0 0.0
    %3713 = vmatpush1.msra.mxu0 0.0
    %3714 = vmatprep.subr.mxu0 0.0
    %3715 = vmatpush1.msra.mxu0 0.0
    %3716 = vmatprep.subr.mxu0 0.0
    %3717 = vmatpush1.msra.mxu0 0.0
    %3718 = vmatprep.subr.mxu0 0.0
    %3719 = vmatpush1.msra.mxu0 0.0
    %3720 = vmatprep.subr.mxu0 0.0
    %3721 = vmatpush1.msra.mxu0 0.0
    %3722 = vmatprep.subr.mxu0 0.0
    %3723 = vmatpush1.msra.mxu0 0.0
    %3724 = vmatprep.subr.mxu0 0.0
    %3725 = vmatpush1.msra.mxu0 0.0
    %3726 = vmatprep.subr.mxu0 0.0
    %3727 = vmatpush1.msra.mxu0 0.0
    %3728 = vmatprep.subr.mxu0 0.0
    %3729 = vmatpush1.msra.mxu0 0.0
    %3730 = vmatprep.mubr.f32.mxu0 0.0
    %v3731 = vand.u32 %v3583, 4294901760
    %3732 = vmatmul.mubr.f32.gmra.mrb[0].mxu0 %v3731
    %v3733 = vpop.f32.mrb[0].mxu0
    %v3734 = vadd.f32 %v3658, %v3733
    %v3735 = vpop.f32.mrb[0].mxu0
    %3736 = vdwg.mxu0
    %3737 = vmatprep.subr.mxu0 0.0
    %v3738 = vand.u32 %v3580, 4294901760
    %v3739 = vsub.f32 %v3580, %v3738
    %3740 = vmatpush1.msra.mxu0 %v3739
    %3741 = vmatprep.subr.mxu0 0.0
    %3742 = vmatpush1.msra.mxu0 0.0
    %3743 = vmatprep.subr.mxu0 0.0
    %3744 = vmatpush1.msra.mxu0 0.0
    %3745 = vmatprep.subr.mxu0 0.0
    %3746 = vmatpush1.msra.mxu0 0.0
    %3747 = vmatprep.subr.mxu0 0.0
    %3748 = vmatpush1.msra.mxu0 0.0
    %3749 = vmatprep.subr.mxu0 0.0
    %3750 = vmatpush1.msra.mxu0 0.0
    %3751 = vmatprep.subr.mxu0 0.0
    %3752 = vmatpush1.msra.mxu0 0.0
    %3753 = vmatprep.subr.mxu0 0.0
    %3754 = vmatpush1.msra.mxu0 0.0
    %3755 = vmatprep.subr.mxu0 0.0
    %3756 = vmatpush1.msra.mxu0 0.0
    %3757 = vmatprep.subr.mxu0 0.0
    %3758 = vmatpush1.msra.mxu0 0.0
    %3759 = vmatprep.subr.mxu0 0.0
    %3760 = vmatpush1.msra.mxu0 0.0
    %3761 = vmatprep.subr.mxu0 0.0
    %3762 = vmatpush1.msra.mxu0 0.0
    %3763 = vmatprep.subr.mxu0 0.0
    %3764 = vmatpush1.msra.mxu0 0.0
    %3765 = vmatprep.subr.mxu0 0.0
    %3766 = vmatpush1.msra.mxu0 0.0
    %3767 = vmatprep.subr.mxu0 0.0
    %3768 = vmatpush1.msra.mxu0 0.0
    %3769 = vmatprep.subr.mxu0 0.0
    %3770 = vmatpush1.msra.mxu0 0.0
    %3771 = vmatprep.subr.mxu0 0.0
    %3772 = vmatpush1.msra.mxu0 0.0
    %3773 = vmatprep.subr.mxu0 0.0
    %3774 = vmatpush1.msra.mxu0 0.0
    %3775 = vmatprep.subr.mxu0 0.0
    %3776 = vmatpush1.msra.mxu0 0.0
    %3777 = vmatprep.subr.mxu0 0.0
    %3778 = vmatpush1.msra.mxu0 0.0
    %3779 = vmatprep.subr.mxu0 0.0
    %3780 = vmatpush1.msra.mxu0 0.0
    %3781 = vmatprep.subr.mxu0 0.0
    %3782 = vmatpush1.msra.mxu0 0.0
    %3783 = vmatprep.subr.mxu0 0.0
    %3784 = vmatpush1.msra.mxu0 0.0
    %3785 = vmatprep.subr.mxu0 0.0
    %3786 = vmatpush1.msra.mxu0 0.0
    %3787 = vmatprep.subr.mxu0 0.0
    %3788 = vmatpush1.msra.mxu0 0.0
    %3789 = vmatprep.subr.mxu0 0.0
    %3790 = vmatpush1.msra.mxu0 0.0
    %3791 = vmatprep.subr.mxu0 0.0
    %3792 = vmatpush1.msra.mxu0 0.0
    %3793 = vmatprep.subr.mxu0 0.0
    %3794 = vmatpush1.msra.mxu0 0.0
    %3795 = vmatprep.subr.mxu0 0.0
    %3796 = vmatpush1.msra.mxu0 0.0
    %3797 = vmatprep.subr.mxu0 0.0
    %3798 = vmatpush1.msra.mxu0 0.0
    %3799 = vmatprep.subr.mxu0 0.0
    %3800 = vmatpush1.msra.mxu0 0.0
    %3801 = vmatprep.subr.mxu0 0.0
    %3802 = vmatpush1.msra.mxu0 0.0
    %3803 = vmatprep.mubr.f32.mxu0 0.0
    %v3804 = vand.u32 %v3583, 4294901760
    %v3805 = vsub.f32 %v3583, %v3804
    %3806 = vmatmul.mubr.f32.gmra.mrb[0].mxu0 %v3805
    %v3807 = vpop.f32.mrb[0].mxu0
    %v3808 = vadd.f32 %v3734, %v3807
    %v3809 = vpop.f32.mrb[0].mxu0
    %3810 = vdwg.mxu0
    %3811 = vmatprep.subr.mxu0 0.0
    %v3812 = vand.u32 %v3580, 4294901760
    %3813 = vmatpush1.msra.mxu0 %v3812
    %3814 = vmatprep.subr.mxu0 0.0
    %3815 = vmatpush1.msra.mxu0 0.0
    %3816 = vmatprep.subr.mxu0 0.0
    %3817 = vmatpush1.msra.mxu0 0.0
    %3818 = vmatprep.subr.mxu0 0.0
    %3819 = vmatpush1.msra.mxu0 0.0
    %3820 = vmatprep.subr.mxu0 0.0
    %3821 = vmatpush1.msra.mxu0 0.0
    %3822 = vmatprep.subr.mxu0 0.0
    %3823 = vmatpush1.msra.mxu0 0.0
    %3824 = vmatprep.subr.mxu0 0.0
    %3825 = vmatpush1.msra.mxu0 0.0
    %3826 = vmatprep.subr.mxu0 0.0
    %3827 = vmatpush1.msra.mxu0 0.0
    %3828 = vmatprep.subr.mxu0 0.0
    %3829 = vmatpush1.msra.mxu0 0.0
    %3830 = vmatprep.subr.mxu0 0.0
    %3831 = vmatpush1.msra.mxu0 0.0
    %3832 = vmatprep.subr.mxu0 0.0
    %3833 = vmatpush1.msra.mxu0 0.0
    %3834 = vmatprep.subr.mxu0 0.0
    %3835 = vmatpush1.msra.mxu0 0.0
    %3836 = vmatprep.subr.mxu0 0.0
    %3837 = vmatpush1.msra.mxu0 0.0
    %3838 = vmatprep.subr.mxu0 0.0
    %3839 = vmatpush1.msra.mxu0 0.0
    %3840 = vmatprep.subr.mxu0 0.0
    %3841 = vmatpush1.msra.mxu0 0.0
    %3842 = vmatprep.subr.mxu0 0.0
    %3843 = vmatpush1.msra.mxu0 0.0
    %3844 = vmatprep.subr.mxu0 0.0
    %3845 = vmatpush1.msra.mxu0 0.0
    %3846 = vmatprep.subr.mxu0 0.0
    %3847 = vmatpush1.msra.mxu0 0.0
    %3848 = vmatprep.subr.mxu0 0.0
    %3849 = vmatpush1.msra.mxu0 0.0
    %3850 = vmatprep.subr.mxu0 0.0
    %3851 = vmatpush1.msra.mxu0 0.0
    %3852 = vmatprep.subr.mxu0 0.0
    %3853 = vmatpush1.msra.mxu0 0.0
    %3854 = vmatprep.subr.mxu0 0.0
    %3855 = vmatpush1.msra.mxu0 0.0
    %3856 = vmatprep.subr.mxu0 0.0
    %3857 = vmatpush1.msra.mxu0 0.0
    %3858 = vmatprep.subr.mxu0 0.0
    %3859 = vmatpush1.msra.mxu0 0.0
    %3860 = vmatprep.subr.mxu0 0.0
    %3861 = vmatpush1.msra.mxu0 0.0
    %3862 = vmatprep.subr.mxu0 0.0
    %3863 = vmatpush1.msra.mxu0 0.0
    %3864 = vmatprep.subr.mxu0 0.0
    %3865 = vmatpush1.msra.mxu0 0.0
    %3866 = vmatprep.subr.mxu0 0.0
    %3867 = vmatpush1.msra.mxu0 0.0
    %3868 = vmatprep.subr.mxu0 0.0
    %3869 = vmatpush1.msra.mxu0 0.0
    %3870 = vmatprep.subr.mxu0 0.0
    %3871 = vmatpush1.msra.mxu0 0.0
    %3872 = vmatprep.subr.mxu0 0.0
    %3873 = vmatpush1.msra.mxu0 0.0
    %3874 = vmatprep.subr.mxu0 0.0
    %3875 = vmatpush1.msra.mxu0 0.0
    %3876 = vmatprep.mubr.f32.mxu0 0.0
    %v3877 = vand.u32 %v3583, 4294901760
    %v3878 = vsub.f32 %v3583, %v3877
    %v3879 = vand.u32 %v3878, 4294901760
    %3880 = vmatmul.mubr.f32.gmra.mrb[0].mxu0 %v3879
    %v3881 = vpop.f32.mrb[0].mxu0
    %v3882 = vadd.f32 %v3808, %v3881
    %v3883 = vpop.f32.mrb[0].mxu0
    %3884 = vdwg.mxu0
    %3885 = vmatprep.subr.mxu0 0.0
    %v3886 = vand.u32 %v3580, 4294901760
    %v3887 = vsub.f32 %v3580, %v3886
    %v3888 = vand.u32 %v3887, 4294901760
    %3889 = vmatpush1.msra.mxu0 %v3888
    %3890 = vmatprep.subr.mxu0 0.0
    %3891 = vmatpush1.msra.mxu0 0.0
    %3892 = vmatprep.subr.mxu0 0.0
    %3893 = vmatpush1.msra.mxu0 0.0
    %3894 = vmatprep.subr.mxu0 0.0
    %3895 = vmatpush1.msra.mxu0 0.0
    %3896 = vmatprep.subr.mxu0 0.0
    %3897 = vmatpush1.msra.mxu0 0.0
    %3898 = vmatprep.subr.mxu0 0.0
    %3899 = vmatpush1.msra.mxu0 0.0
    %3900 = vmatprep.subr.mxu0 0.0
    %3901 = vmatpush1.msra.mxu0 0.0
    %3902 = vmatprep.subr.mxu0 0.0
    %3903 = vmatpush1.msra.mxu0 0.0
    %3904 = vmatprep.subr.mxu0 0.0
    %3905 = vmatpush1.msra.mxu0 0.0
    %3906 = vmatprep.subr.mxu0 0.0
    %3907 = vmatpush1.msra.mxu0 0.0
    %3908 = vmatprep.subr.mxu0 0.0
    %3909 = vmatpush1.msra.mxu0 0.0
    %3910 = vmatprep.subr.mxu0 0.0
    %3911 = vmatpush1.msra.mxu0 0.0
    %3912 = vmatprep.subr.mxu0 0.0
    %3913 = vmatpush1.msra.mxu0 0.0
    %3914 = vmatprep.subr.mxu0 0.0
    %3915 = vmatpush1.msra.mxu0 0.0
    %3916 = vmatprep.subr.mxu0 0.0
    %3917 = vmatpush1.msra.mxu0 0.0
    %3918 = vmatprep.subr.mxu0 0.0
    %3919 = vmatpush1.msra.mxu0 0.0
    %3920 = vmatprep.subr.mxu0 0.0
    %3921 = vmatpush1.msra.mxu0 0.0
    %3922 = vmatprep.subr.mxu0 0.0
    %3923 = vmatpush1.msra.mxu0 0.0
    %3924 = vmatprep.subr.mxu0 0.0
    %3925 = vmatpush1.msra.mxu0 0.0
    %3926 = vmatprep.subr.mxu0 0.0
    %3927 = vmatpush1.msra.mxu0 0.0
    %3928 = vmatprep.subr.mxu0 0.0
    %3929 = vmatpush1.msra.mxu0 0.0
    %3930 = vmatprep.subr.mxu0 0.0
    %3931 = vmatpush1.msra.mxu0 0.0
    %3932 = vmatprep.subr.mxu0 0.0
    %3933 = vmatpush1.msra.mxu0 0.0
    %3934 = vmatprep.subr.mxu0 0.0
    %3935 = vmatpush1.msra.mxu0 0.0
    %3936 = vmatprep.subr.mxu0 0.0
    %3937 = vmatpush1.msra.mxu0 0.0
    %3938 = vmatprep.subr.mxu0 0.0
    %3939 = vmatpush1.msra.mxu0 0.0
    %3940 = vmatprep.subr.mxu0 0.0
    %3941 = vmatpush1.msra.mxu0 0.0
    %3942 = vmatprep.subr.mxu0 0.0
    %3943 = vmatpush1.msra.mxu0 0.0
    %3944 = vmatprep.subr.mxu0 0.0
    %3945 = vmatpush1.msra.mxu0 0.0
    %3946 = vmatprep.subr.mxu0 0.0
    %3947 = vmatpush1.msra.mxu0 0.0
    %3948 = vmatprep.subr.mxu0 0.0
    %3949 = vmatpush1.msra.mxu0 0.0
    %3950 = vmatprep.subr.mxu0 0.0
    %3951 = vmatpush1.msra.mxu0 0.0
    %3952 = vmatprep.mubr.f32.mxu0 0.0
    %v3953 = vand.u32 %v3583, 4294901760
    %3954 = vmatmul.mubr.f32.gmra.mrb[0].mxu0 %v3953
    %v3955 = vpop.f32.mrb[0].mxu0
    %v3956 = vadd.f32 %v3882, %v3955
    %v3957 = vpop.f32.mrb[0].mxu0
    %3958 = vdwg.mxu0
    %3959 = vmatprep.subr.mxu0 0.0
    %v3960 = vand.u32 %v3580, 4294901760
    %3961 = vmatpush1.msra.mxu0 %v3960
    %3962 = vmatprep.subr.mxu0 0.0
    %3963 = vmatpush1.msra.mxu0 0.0
    %3964 = vmatprep.subr.mxu0 0.0
    %3965 = vmatpush1.msra.mxu0 0.0
    %3966 = vmatprep.subr.mxu0 0.0
    %3967 = vmatpush1.msra.mxu0 0.0
    %3968 = vmatprep.subr.mxu0 0.0
    %3969 = vmatpush1.msra.mxu0 0.0
    %3970 = vmatprep.subr.mxu0 0.0
    %3971 = vmatpush1.msra.mxu0 0.0
    %3972 = vmatprep.subr.mxu0 0.0
    %3973 = vmatpush1.msra.mxu0 0.0
    %3974 = vmatprep.subr.mxu0 0.0
    %3975 = vmatpush1.msra.mxu0 0.0
    %3976 = vmatprep.subr.mxu0 0.0
    %3977 = vmatpush1.msra.mxu0 0.0
    %3978 = vmatprep.subr.mxu0 0.0
    %3979 = vmatpush1.msra.mxu0 0.0
    %3980 = vmatprep.subr.mxu0 0.0
    %3981 = vmatpush1.msra.mxu0 0.0
    %3982 = vmatprep.subr.mxu0 0.0
    %3983 = vmatpush1.msra.mxu0 0.0
    %3984 = vmatprep.subr.mxu0 0.0
    %3985 = vmatpush1.msra.mxu0 0.0
    %3986 = vmatprep.subr.mxu0 0.0
    %3987 = vmatpush1.msra.mxu0 0.0
    %3988 = vmatprep.subr.mxu0 0.0
    %3989 = vmatpush1.msra.mxu0 0.0
    %3990 = vmatprep.subr.mxu0 0.0
    %3991 = vmatpush1.msra.mxu0 0.0
    %3992 = vmatprep.subr.mxu0 0.0
    %3993 = vmatpush1.msra.mxu0 0.0
    %3994 = vmatprep.subr.mxu0 0.0
    %3995 = vmatpush1.msra.mxu0 0.0
    %3996 = vmatprep.subr.mxu0 0.0
    %3997 = vmatpush1.msra.mxu0 0.0
    %3998 = vmatprep.subr.mxu0 0.0
    %3999 = vmatpush1.msra.mxu0 0.0
    %4000 = vmatprep.subr.mxu0 0.0
    %4001 = vmatpush1.msra.mxu0 0.0
    %4002 = vmatprep.subr.mxu0 0.0
    %4003 = vmatpush1.msra.mxu0 0.0
    %4004 = vmatprep.subr.mxu0 0.0
    %4005 = vmatpush1.msra.mxu0 0.0
    %4006 = vmatprep.subr.mxu0 0.0
    %4007 = vmatpush1.msra.mxu0 0.0
    %4008 = vmatprep.subr.mxu0 0.0
    %4009 = vmatpush1.msra.mxu0 0.0
    %4010 = vmatprep.subr.mxu0 0.0
    %4011 = vmatpush1.msra.mxu0 0.0
    %4012 = vmatprep.subr.mxu0 0.0
    %4013 = vmatpush1.msra.mxu0 0.0
    %4014 = vmatprep.subr.mxu0 0.0
    %4015 = vmatpush1.msra.mxu0 0.0
    %4016 = vmatprep.subr.mxu0 0.0
    %4017 = vmatpush1.msra.mxu0 0.0
    %4018 = vmatprep.subr.mxu0 0.0
    %4019 = vmatpush1.msra.mxu0 0.0
    %4020 = vmatprep.subr.mxu0 0.0
    %4021 = vmatpush1.msra.mxu0 0.0
    %4022 = vmatprep.subr.mxu0 0.0
    %4023 = vmatpush1.msra.mxu0 0.0
    %4024 = vmatprep.mubr.f32.mxu0 0.0
    %v4025 = vand.u32 %v3583, 4294901760
    %4026 = vmatmul.mubr.f32.gmra.mrb[0].mxu0 %v4025
    %v4027 = vpop.f32.mrb[0].mxu0
    %v4028 = vadd.f32 %v3956, %v4027
    %v4029 = vpop.f32.mrb[0].mxu0
    %4030 = vdwg.mxu0
    %4031 = vrot.lane.b32.xlu0 %v776, 64
    %v4032 = vpop.permute.xlu0 %4031
    %v4035 = vsel %vm2630, %v2674, 0
    %4037 = vmatprep.subr.mxu0 0.0
    %v4038 = vand.u32 %v4032, 4294901760
    %4039 = vmatpush1.msra.mxu0 %v4038
    %4040 = vmatprep.subr.mxu0 0.0
    %4041 = vmatpush1.msra.mxu0 0.0
    %4042 = vmatprep.subr.mxu0 0.0
    %4043 = vmatpush1.msra.mxu0 0.0
    %4044 = vmatprep.subr.mxu0 0.0
    %4045 = vmatpush1.msra.mxu0 0.0
    %4046 = vmatprep.subr.mxu0 0.0
    %4047 = vmatpush1.msra.mxu0 0.0
    %4048 = vmatprep.subr.mxu0 0.0
    %4049 = vmatpush1.msra.mxu0 0.0
    %4050 = vmatprep.subr.mxu0 0.0
    %4051 = vmatpush1.msra.mxu0 0.0
    %4052 = vmatprep.subr.mxu0 0.0
    %4053 = vmatpush1.msra.mxu0 0.0
    %4054 = vmatprep.subr.mxu0 0.0
    %4055 = vmatpush1.msra.mxu0 0.0
    %4056 = vmatprep.subr.mxu0 0.0
    %4057 = vmatpush1.msra.mxu0 0.0
    %4058 = vmatprep.subr.mxu0 0.0
    %4059 = vmatpush1.msra.mxu0 0.0
    %4060 = vmatprep.subr.mxu0 0.0
    %4061 = vmatpush1.msra.mxu0 0.0
    %4062 = vmatprep.subr.mxu0 0.0
    %4063 = vmatpush1.msra.mxu0 0.0
    %4064 = vmatprep.subr.mxu0 0.0
    %4065 = vmatpush1.msra.mxu0 0.0
    %4066 = vmatprep.subr.mxu0 0.0
    %4067 = vmatpush1.msra.mxu0 0.0
    %4068 = vmatprep.subr.mxu0 0.0
    %4069 = vmatpush1.msra.mxu0 0.0
    %4070 = vmatprep.subr.mxu0 0.0
    %4071 = vmatpush1.msra.mxu0 0.0
    %4072 = vmatprep.subr.mxu0 0.0
    %4073 = vmatpush1.msra.mxu0 0.0
    %4074 = vmatprep.subr.mxu0 0.0
    %4075 = vmatpush1.msra.mxu0 0.0
    %4076 = vmatprep.subr.mxu0 0.0
    %4077 = vmatpush1.msra.mxu0 0.0
    %4078 = vmatprep.subr.mxu0 0.0
    %4079 = vmatpush1.msra.mxu0 0.0
    %4080 = vmatprep.subr.mxu0 0.0
    %4081 = vmatpush1.msra.mxu0 0.0
    %4082 = vmatprep.subr.mxu0 0.0
    %4083 = vmatpush1.msra.mxu0 0.0
    %4084 = vmatprep.subr.mxu0 0.0
    %4085 = vmatpush1.msra.mxu0 0.0
    %4086 = vmatprep.subr.mxu0 0.0
    %4087 = vmatpush1.msra.mxu0 0.0
    %4088 = vmatprep.subr.mxu0 0.0
    %4089 = vmatpush1.msra.mxu0 0.0
    %4090 = vmatprep.subr.mxu0 0.0
    %4091 = vmatpush1.msra.mxu0 0.0
    %4092 = vmatprep.subr.mxu0 0.0
    %4093 = vmatpush1.msra.mxu0 0.0
    %4094 = vmatprep.subr.mxu0 0.0
    %4095 = vmatpush1.msra.mxu0 0.0
    %4096 = vmatprep.subr.mxu0 0.0
    %4097 = vmatpush1.msra.mxu0 0.0
    %4098 = vmatprep.subr.mxu0 0.0
    %4099 = vmatpush1.msra.mxu0 0.0
    %4100 = vmatprep.subr.mxu0 0.0
    %4101 = vmatpush1.msra.mxu0 0.0
    %4102 = vmatprep.mubr.f32.mxu0 0.0
    %v4103 = vand.u32 %v4035, 4294901760
    %v4104 = vsub.f32 %v4035, %v4103
    %v4105 = vand.u32 %v4104, 4294901760
    %v4106 = vsub.f32 %v4104, %v4105
    %v4107 = vand.u32 %v4106, 4294901760
    %4108 = vmatmul.mubr.f32.gmra.mrb[0].mxu0 %v4107
    %v4109 = vpop.f32.mrb[0].mxu0
    %v4110 = vadd.f32 0.0, %v4109
    %v4111 = vpop.f32.mrb[0].mxu0
    %4112 = vdwg.mxu0
    %4113 = vmatprep.subr.mxu0 0.0
    %v4114 = vand.u32 %v4032, 4294901760
    %v4115 = vsub.f32 %v4032, %v4114
    %v4116 = vand.u32 %v4115, 4294901760
    %v4117 = vsub.f32 %v4115, %v4116
    %v4118 = vand.u32 %v4117, 4294901760
    %4119 = vmatpush1.msra.mxu0 %v4118
    %4120 = vmatprep.subr.mxu0 0.0
    %4121 = vmatpush1.msra.mxu0 0.0
    %4122 = vmatprep.subr.mxu0 0.0
    %4123 = vmatpush1.msra.mxu0 0.0
    %4124 = vmatprep.subr.mxu0 0.0
    %4125 = vmatpush1.msra.mxu0 0.0
    %4126 = vmatprep.subr.mxu0 0.0
    %4127 = vmatpush1.msra.mxu0 0.0
    %4128 = vmatprep.subr.mxu0 0.0
    %4129 = vmatpush1.msra.mxu0 0.0
    %4130 = vmatprep.subr.mxu0 0.0
    %4131 = vmatpush1.msra.mxu0 0.0
    %4132 = vmatprep.subr.mxu0 0.0
    %4133 = vmatpush1.msra.mxu0 0.0
    %4134 = vmatprep.subr.mxu0 0.0
    %4135 = vmatpush1.msra.mxu0 0.0
    %4136 = vmatprep.subr.mxu0 0.0
    %4137 = vmatpush1.msra.mxu0 0.0
    %4138 = vmatprep.subr.mxu0 0.0
    %4139 = vmatpush1.msra.mxu0 0.0
    %4140 = vmatprep.subr.mxu0 0.0
    %4141 = vmatpush1.msra.mxu0 0.0
    %4142 = vmatprep.subr.mxu0 0.0
    %4143 = vmatpush1.msra.mxu0 0.0
    %4144 = vmatprep.subr.mxu0 0.0
    %4145 = vmatpush1.msra.mxu0 0.0
    %4146 = vmatprep.subr.mxu0 0.0
    %4147 = vmatpush1.msra.mxu0 0.0
    %4148 = vmatprep.subr.mxu0 0.0
    %4149 = vmatpush1.msra.mxu0 0.0
    %4150 = vmatprep.subr.mxu0 0.0
    %4151 = vmatpush1.msra.mxu0 0.0
    %4152 = vmatprep.subr.mxu0 0.0
    %4153 = vmatpush1.msra.mxu0 0.0
    %4154 = vmatprep.subr.mxu0 0.0
    %4155 = vmatpush1.msra.mxu0 0.0
    %4156 = vmatprep.subr.mxu0 0.0
    %4157 = vmatpush1.msra.mxu0 0.0
    %4158 = vmatprep.subr.mxu0 0.0
    %4159 = vmatpush1.msra.mxu0 0.0
    %4160 = vmatprep.subr.mxu0 0.0
    %4161 = vmatpush1.msra.mxu0 0.0
    %4162 = vmatprep.subr.mxu0 0.0
    %4163 = vmatpush1.msra.mxu0 0.0
    %4164 = vmatprep.subr.mxu0 0.0
    %4165 = vmatpush1.msra.mxu0 0.0
    %4166 = vmatprep.subr.mxu0 0.0
    %4167 = vmatpush1.msra.mxu0 0.0
    %4168 = vmatprep.subr.mxu0 0.0
    %4169 = vmatpush1.msra.mxu0 0.0
    %4170 = vmatprep.subr.mxu0 0.0
    %4171 = vmatpush1.msra.mxu0 0.0
    %4172 = vmatprep.subr.mxu0 0.0
    %4173 = vmatpush1.msra.mxu0 0.0
    %4174 = vmatprep.subr.mxu0 0.0
    %4175 = vmatpush1.msra.mxu0 0.0
    %4176 = vmatprep.subr.mxu0 0.0
    %4177 = vmatpush1.msra.mxu0 0.0
    %4178 = vmatprep.subr.mxu0 0.0
    %4179 = vmatpush1.msra.mxu0 0.0
    %4180 = vmatprep.subr.mxu0 0.0
    %4181 = vmatpush1.msra.mxu0 0.0
    %4182 = vmatprep.mubr.f32.mxu0 0.0
    %v4183 = vand.u32 %v4035, 4294901760
    %4184 = vmatmul.mubr.f32.gmra.mrb[0].mxu0 %v4183
    %v4185 = vpop.f32.mrb[0].mxu0
    %v4186 = vadd.f32 %v4110, %v4185
    %v4187 = vpop.f32.mrb[0].mxu0
    %4188 = vdwg.mxu0
    %4189 = vmatprep.subr.mxu0 0.0
    %v4190 = vand.u32 %v4032, 4294901760
    %v4191 = vsub.f32 %v4032, %v4190
    %4192 = vmatpush1.msra.mxu0 %v4191
    %4193 = vmatprep.subr.mxu0 0.0
    %4194 = vmatpush1.msra.mxu0 0.0
    %4195 = vmatprep.subr.mxu0 0.0
    %4196 = vmatpush1.msra.mxu0 0.0
    %4197 = vmatprep.subr.mxu0 0.0
    %4198 = vmatpush1.msra.mxu0 0.0
    %4199 = vmatprep.subr.mxu0 0.0
    %4200 = vmatpush1.msra.mxu0 0.0
    %4201 = vmatprep.subr.mxu0 0.0
    %4202 = vmatpush1.msra.mxu0 0.0
    %4203 = vmatprep.subr.mxu0 0.0
    %4204 = vmatpush1.msra.mxu0 0.0
    %4205 = vmatprep.subr.mxu0 0.0
    %4206 = vmatpush1.msra.mxu0 0.0
    %4207 = vmatprep.subr.mxu0 0.0
    %4208 = vmatpush1.msra.mxu0 0.0
    %4209 = vmatprep.subr.mxu0 0.0
    %4210 = vmatpush1.msra.mxu0 0.0
    %4211 = vmatprep.subr.mxu0 0.0
    %4212 = vmatpush1.msra.mxu0 0.0
    %4213 = vmatprep.subr.mxu0 0.0
    %4214 = vmatpush1.msra.mxu0 0.0
    %4215 = vmatprep.subr.mxu0 0.0
    %4216 = vmatpush1.msra.mxu0 0.0
    %4217 = vmatprep.subr.mxu0 0.0
    %4218 = vmatpush1.msra.mxu0 0.0
    %4219 = vmatprep.subr.mxu0 0.0
    %4220 = vmatpush1.msra.mxu0 0.0
    %4221 = vmatprep.subr.mxu0 0.0
    %4222 = vmatpush1.msra.mxu0 0.0
    %4223 = vmatprep.subr.mxu0 0.0
    %4224 = vmatpush1.msra.mxu0 0.0
    %4225 = vmatprep.subr.mxu0 0.0
    %4226 = vmatpush1.msra.mxu0 0.0
    %4227 = vmatprep.subr.mxu0 0.0
    %4228 = vmatpush1.msra.mxu0 0.0
    %4229 = vmatprep.subr.mxu0 0.0
    %4230 = vmatpush1.msra.mxu0 0.0
    %4231 = vmatprep.subr.mxu0 0.0
    %4232 = vmatpush1.msra.mxu0 0.0
    %4233 = vmatprep.subr.mxu0 0.0
    %4234 = vmatpush1.msra.mxu0 0.0
    %4235 = vmatprep.subr.mxu0 0.0
    %4236 = vmatpush1.msra.mxu0 0.0
    %4237 = vmatprep.subr.mxu0 0.0
    %4238 = vmatpush1.msra.mxu0 0.0
    %4239 = vmatprep.subr.mxu0 0.0
    %4240 = vmatpush1.msra.mxu0 0.0
    %4241 = vmatprep.subr.mxu0 0.0
    %4242 = vmatpush1.msra.mxu0 0.0
    %4243 = vmatprep.subr.mxu0 0.0
    %4244 = vmatpush1.msra.mxu0 0.0
    %4245 = vmatprep.subr.mxu0 0.0
    %4246 = vmatpush1.msra.mxu0 0.0
    %4247 = vmatprep.subr.mxu0 0.0
    %4248 = vmatpush1.msra.mxu0 0.0
    %4249 = vmatprep.subr.mxu0 0.0
    %4250 = vmatpush1.msra.mxu0 0.0
    %4251 = vmatprep.subr.mxu0 0.0
    %4252 = vmatpush1.msra.mxu0 0.0
    %4253 = vmatprep.subr.mxu0 0.0
    %4254 = vmatpush1.msra.mxu0 0.0
    %4255 = vmatprep.mubr.f32.mxu0 0.0
    %v4256 = vand.u32 %v4035, 4294901760
    %v4257 = vsub.f32 %v4035, %v4256
    %4258 = vmatmul.mubr.f32.gmra.mrb[0].mxu0 %v4257
    %v4259 = vpop.f32.mrb[0].mxu0
    %v4260 = vadd.f32 %v4186, %v4259
    %v4261 = vpop.f32.mrb[0].mxu0
    %4262 = vdwg.mxu0
    %4263 = vmatprep.subr.mxu0 0.0
    %v4264 = vand.u32 %v4032, 4294901760
    %4265 = vmatpush1.msra.mxu0 %v4264
    %4266 = vmatprep.subr.mxu0 0.0
    %4267 = vmatpush1.msra.mxu0 0.0
    %4268 = vmatprep.subr.mxu0 0.0
    %4269 = vmatpush1.msra.mxu0 0.0
    %4270 = vmatprep.subr.mxu0 0.0
    %4271 = vmatpush1.msra.mxu0 0.0
    %4272 = vmatprep.subr.mxu0 0.0
    %4273 = vmatpush1.msra.mxu0 0.0
    %4274 = vmatprep.subr.mxu0 0.0
    %4275 = vmatpush1.msra.mxu0 0.0
    %4276 = vmatprep.subr.mxu0 0.0
    %4277 = vmatpush1.msra.mxu0 0.0
    %4278 = vmatprep.subr.mxu0 0.0
    %4279 = vmatpush1.msra.mxu0 0.0
    %4280 = vmatprep.subr.mxu0 0.0
    %4281 = vmatpush1.msra.mxu0 0.0
    %4282 = vmatprep.subr.mxu0 0.0
    %4283 = vmatpush1.msra.mxu0 0.0
    %4284 = vmatprep.subr.mxu0 0.0
    %4285 = vmatpush1.msra.mxu0 0.0
    %4286 = vmatprep.subr.mxu0 0.0
    %4287 = vmatpush1.msra.mxu0 0.0
    %4288 = vmatprep.subr.mxu0 0.0
    %4289 = vmatpush1.msra.mxu0 0.0
    %4290 = vmatprep.subr.mxu0 0.0
    %4291 = vmatpush1.msra.mxu0 0.0
    %4292 = vmatprep.subr.mxu0 0.0
    %4293 = vmatpush1.msra.mxu0 0.0
    %4294 = vmatprep.subr.mxu0 0.0
    %4295 = vmatpush1.msra.mxu0 0.0
    %4296 = vmatprep.subr.mxu0 0.0
    %4297 = vmatpush1.msra.mxu0 0.0
    %4298 = vmatprep.subr.mxu0 0.0
    %4299 = vmatpush1.msra.mxu0 0.0
    %4300 = vmatprep.subr.mxu0 0.0
    %4301 = vmatpush1.msra.mxu0 0.0
    %4302 = vmatprep.subr.mxu0 0.0
    %4303 = vmatpush1.msra.mxu0 0.0
    %4304 = vmatprep.subr.mxu0 0.0
    %4305 = vmatpush1.msra.mxu0 0.0
    %4306 = vmatprep.subr.mxu0 0.0
    %4307 = vmatpush1.msra.mxu0 0.0
    %4308 = vmatprep.subr.mxu0 0.0
    %4309 = vmatpush1.msra.mxu0 0.0
    %4310 = vmatprep.subr.mxu0 0.0
    %4311 = vmatpush1.msra.mxu0 0.0
    %4312 = vmatprep.subr.mxu0 0.0
    %4313 = vmatpush1.msra.mxu0 0.0
    %4314 = vmatprep.subr.mxu0 0.0
    %4315 = vmatpush1.msra.mxu0 0.0
    %4316 = vmatprep.subr.mxu0 0.0
    %4317 = vmatpush1.msra.mxu0 0.0
    %4318 = vmatprep.subr.mxu0 0.0
    %4319 = vmatpush1.msra.mxu0 0.0
    %4320 = vmatprep.subr.mxu0 0.0
    %4321 = vmatpush1.msra.mxu0 0.0
    %4322 = vmatprep.subr.mxu0 0.0
    %4323 = vmatpush1.msra.mxu0 0.0
    %4324 = vmatprep.subr.mxu0 0.0
    %4325 = vmatpush1.msra.mxu0 0.0
    %4326 = vmatprep.subr.mxu0 0.0
    %4327 = vmatpush1.msra.mxu0 0.0
    %4328 = vmatprep.mubr.f32.mxu0 0.0
    %v4329 = vand.u32 %v4035, 4294901760
    %v4330 = vsub.f32 %v4035, %v4329
    %v4331 = vand.u32 %v4330, 4294901760
    %4332 = vmatmul.mubr.f32.gmra.mrb[0].mxu0 %v4331
    %v4333 = vpop.f32.mrb[0].mxu0
    %v4334 = vadd.f32 %v4260, %v4333
    %v4335 = vpop.f32.mrb[0].mxu0
    %4336 = vdwg.mxu0
    %4337 = vmatprep.subr.mxu0 0.0
    %v4338 = vand.u32 %v4032, 4294901760
    %v4339 = vsub.f32 %v4032, %v4338
    %v4340 = vand.u32 %v4339, 4294901760
    %4341 = vmatpush1.msra.mxu0 %v4340
    %4342 = vmatprep.subr.mxu0 0.0
    %4343 = vmatpush1.msra.mxu0 0.0
    %4344 = vmatprep.subr.mxu0 0.0
    %4345 = vmatpush1.msra.mxu0 0.0
    %4346 = vmatprep.subr.mxu0 0.0
    %4347 = vmatpush1.msra.mxu0 0.0
    %4348 = vmatprep.subr.mxu0 0.0
    %4349 = vmatpush1.msra.mxu0 0.0
    %4350 = vmatprep.subr.mxu0 0.0
    %4351 = vmatpush1.msra.mxu0 0.0
    %4352 = vmatprep.subr.mxu0 0.0
    %4353 = vmatpush1.msra.mxu0 0.0
    %4354 = vmatprep.subr.mxu0 0.0
    %4355 = vmatpush1.msra.mxu0 0.0
    %4356 = vmatprep.subr.mxu0 0.0
    %4357 = vmatpush1.msra.mxu0 0.0
    %4358 = vmatprep.subr.mxu0 0.0
    %4359 = vmatpush1.msra.mxu0 0.0
    %4360 = vmatprep.subr.mxu0 0.0
    %4361 = vmatpush1.msra.mxu0 0.0
    %4362 = vmatprep.subr.mxu0 0.0
    %4363 = vmatpush1.msra.mxu0 0.0
    %4364 = vmatprep.subr.mxu0 0.0
    %4365 = vmatpush1.msra.mxu0 0.0
    %4366 = vmatprep.subr.mxu0 0.0
    %4367 = vmatpush1.msra.mxu0 0.0
    %4368 = vmatprep.subr.mxu0 0.0
    %4369 = vmatpush1.msra.mxu0 0.0
    %4370 = vmatprep.subr.mxu0 0.0
    %4371 = vmatpush1.msra.mxu0 0.0
    %4372 = vmatprep.subr.mxu0 0.0
    %4373 = vmatpush1.msra.mxu0 0.0
    %4374 = vmatprep.subr.mxu0 0.0
    %4375 = vmatpush1.msra.mxu0 0.0
    %4376 = vmatprep.subr.mxu0 0.0
    %4377 = vmatpush1.msra.mxu0 0.0
    %4378 = vmatprep.subr.mxu0 0.0
    %4379 = vmatpush1.msra.mxu0 0.0
    %4380 = vmatprep.subr.mxu0 0.0
    %4381 = vmatpush1.msra.mxu0 0.0
    %4382 = vmatprep.subr.mxu0 0.0
    %4383 = vmatpush1.msra.mxu0 0.0
    %4384 = vmatprep.subr.mxu0 0.0
    %4385 = vmatpush1.msra.mxu0 0.0
    %4386 = vmatprep.subr.mxu0 0.0
    %4387 = vmatpush1.msra.mxu0 0.0
    %4388 = vmatprep.subr.mxu0 0.0
    %4389 = vmatpush1.msra.mxu0 0.0
    %4390 = vmatprep.subr.mxu0 0.0
    %4391 = vmatpush1.msra.mxu0 0.0
    %4392 = vmatprep.subr.mxu0 0.0
    %4393 = vmatpush1.msra.mxu0 0.0
    %4394 = vmatprep.subr.mxu0 0.0
    %4395 = vmatpush1.msra.mxu0 0.0
    %4396 = vmatprep.subr.mxu0 0.0
    %4397 = vmatpush1.msra.mxu0 0.0
    %4398 = vmatprep.subr.mxu0 0.0
    %4399 = vmatpush1.msra.mxu0 0.0
    %4400 = vmatprep.subr.mxu0 0.0
    %4401 = vmatpush1.msra.mxu0 0.0
    %4402 = vmatprep.subr.mxu0 0.0
    %4403 = vmatpush1.msra.mxu0 0.0
    %4404 = vmatprep.mubr.f32.mxu0 0.0
    %v4405 = vand.u32 %v4035, 4294901760
    %4406 = vmatmul.mubr.f32.gmra.mrb[0].mxu0 %v4405
    %v4407 = vpop.f32.mrb[0].mxu0
    %v4408 = vadd.f32 %v4334, %v4407
    %v4409 = vpop.f32.mrb[0].mxu0
    %4410 = vdwg.mxu0
    %4411 = vmatprep.subr.mxu0 0.0
    %v4412 = vand.u32 %v4032, 4294901760
    %4413 = vmatpush1.msra.mxu0 %v4412
    %4414 = vmatprep.subr.mxu0 0.0
    %4415 = vmatpush1.msra.mxu0 0.0
    %4416 = vmatprep.subr.mxu0 0.0
    %4417 = vmatpush1.msra.mxu0 0.0
    %4418 = vmatprep.subr.mxu0 0.0
    %4419 = vmatpush1.msra.mxu0 0.0
    %4420 = vmatprep.subr.mxu0 0.0
    %4421 = vmatpush1.msra.mxu0 0.0
    %4422 = vmatprep.subr.mxu0 0.0
    %4423 = vmatpush1.msra.mxu0 0.0
    %4424 = vmatprep.subr.mxu0 0.0
    %4425 = vmatpush1.msra.mxu0 0.0
    %4426 = vmatprep.subr.mxu0 0.0
    %4427 = vmatpush1.msra.mxu0 0.0
    %4428 = vmatprep.subr.mxu0 0.0
    %4429 = vmatpush1.msra.mxu0 0.0
    %4430 = vmatprep.subr.mxu0 0.0
    %4431 = vmatpush1.msra.mxu0 0.0
    %4432 = vmatprep.subr.mxu0 0.0
    %4433 = vmatpush1.msra.mxu0 0.0
    %4434 = vmatprep.subr.mxu0 0.0
    %4435 = vmatpush1.msra.mxu0 0.0
    %4436 = vmatprep.subr.mxu0 0.0
    %4437 = vmatpush1.msra.mxu0 0.0
    %4438 = vmatprep.subr.mxu0 0.0
    %4439 = vmatpush1.msra.mxu0 0.0
    %4440 = vmatprep.subr.mxu0 0.0
    %4441 = vmatpush1.msra.mxu0 0.0
    %4442 = vmatprep.subr.mxu0 0.0
    %4443 = vmatpush1.msra.mxu0 0.0
    %4444 = vmatprep.subr.mxu0 0.0
    %4445 = vmatpush1.msra.mxu0 0.0
    %4446 = vmatprep.subr.mxu0 0.0
    %4447 = vmatpush1.msra.mxu0 0.0
    %4448 = vmatprep.subr.mxu0 0.0
    %4449 = vmatpush1.msra.mxu0 0.0
    %4450 = vmatprep.subr.mxu0 0.0
    %4451 = vmatpush1.msra.mxu0 0.0
    %4452 = vmatprep.subr.mxu0 0.0
    %4453 = vmatpush1.msra.mxu0 0.0
    %4454 = vmatprep.subr.mxu0 0.0
    %4455 = vmatpush1.msra.mxu0 0.0
    %4456 = vmatprep.subr.mxu0 0.0
    %4457 = vmatpush1.msra.mxu0 0.0
    %4458 = vmatprep.subr.mxu0 0.0
    %4459 = vmatpush1.msra.mxu0 0.0
    %4460 = vmatprep.subr.mxu0 0.0
    %4461 = vmatpush1.msra.mxu0 0.0
    %4462 = vmatprep.subr.mxu0 0.0
    %4463 = vmatpush1.msra.mxu0 0.0
    %4464 = vmatprep.subr.mxu0 0.0
    %4465 = vmatpush1.msra.mxu0 0.0
    %4466 = vmatprep.subr.mxu0 0.0
    %4467 = vmatpush1.msra.mxu0 0.0
    %4468 = vmatprep.subr.mxu0 0.0
    %4469 = vmatpush1.msra.mxu0 0.0
    %4470 = vmatprep.subr.mxu0 0.0
    %4471 = vmatpush1.msra.mxu0 0.0
    %4472 = vmatprep.subr.mxu0 0.0
    %4473 = vmatpush1.msra.mxu0 0.0
    %4474 = vmatprep.subr.mxu0 0.0
    %4475 = vmatpush1.msra.mxu0 0.0
    %4476 = vmatprep.mubr.f32.mxu0 0.0
    %v4477 = vand.u32 %v4035, 4294901760
    %4478 = vmatmul.mubr.f32.gmra.mrb[0].mxu0 %v4477
    %v4479 = vpop.f32.mrb[0].mxu0
    %v4480 = vadd.f32 %v4408, %v4479
    %v4481 = vpop.f32.mrb[0].mxu0
    %4482 = vdwg.mxu0
    %4485 = vrot.lane.b32.xlu0 %v4028, 16
    %v4486 = vpop.permute.xlu0 %4485
    %4487 = vrot.lane.b32.xlu0 %v4480, 16
    %v4488 = vpop.permute.xlu0 %4487
    %v4491 = vsel %vm805, %v3124, %v4486
    %v4492 = vsel %vm805, %v3576, %v4488
    %v4493 = vld [vmem:[#allocation6 + $0x20] sm:$0xff]
    %v4494 = vld [vmem:[#allocation6 + $0x28] sm:$0xff]
    %v4495 = vld [vmem:[#allocation6 + $0x30] sm:$0xff]
    %v4496 = vld [vmem:[#allocation6 + $0x38] sm:$0xff]
    %v4497 = vld [vmem:[%s5 + $0x3] sm:$0x1]
    %v4498 = vlaneseq
    %v4499 = vshrl.u32 %v4498, 7
    %v4500 = vsub.s32 0, %v4499
    %v4501 = vrot.slane %v4497, %v4500
    %v4503 = vsel %vm186, %v4491, 0
    %v4506 = vsel %vm186, %v4492, 0
    %4508 = vmatprep.subr.mxu0 0.0
    %v4509 = vand.u32 %v4493, 4294901760
    %4510 = vmatpush1.msra.mxu0 %v4509
    %4511 = vmatprep.subr.mxu0 0.0
    %v4512 = vand.u32 %v4494, 4294901760
    %4513 = vmatpush1.msra.mxu0 %v4512
    %4514 = vmatprep.subr.mxu0 0.0
    %v4515 = vand.u32 %v4495, 4294901760
    %4516 = vmatpush1.msra.mxu0 %v4515
    %4517 = vmatprep.subr.mxu0 0.0
    %v4518 = vand.u32 %v4496, 4294901760
    %4519 = vmatpush1.msra.mxu0 %v4518
    %4520 = vmatprep.subr.mxu0 0.0
    %4521 = vmatpush1.msra.mxu0 0.0
    %4522 = vmatprep.subr.mxu0 0.0
    %4523 = vmatpush1.msra.mxu0 0.0
    %4524 = vmatprep.subr.mxu0 0.0
    %4525 = vmatpush1.msra.mxu0 0.0
    %4526 = vmatprep.subr.mxu0 0.0
    %4527 = vmatpush1.msra.mxu0 0.0
    %4528 = vmatprep.subr.mxu0 0.0
    %4529 = vmatpush1.msra.mxu0 0.0
    %4530 = vmatprep.subr.mxu0 0.0
    %4531 = vmatpush1.msra.mxu0 0.0
    %4532 = vmatprep.subr.mxu0 0.0
    %4533 = vmatpush1.msra.mxu0 0.0
    %4534 = vmatprep.subr.mxu0 0.0
    %4535 = vmatpush1.msra.mxu0 0.0
    %4536 = vmatprep.subr.mxu0 0.0
    %4537 = vmatpush1.msra.mxu0 0.0
    %4538 = vmatprep.subr.mxu0 0.0
    %4539 = vmatpush1.msra.mxu0 0.0
    %4540 = vmatprep.subr.mxu0 0.0
    %4541 = vmatpush1.msra.mxu0 0.0
    %4542 = vmatprep.subr.mxu0 0.0
    %4543 = vmatpush1.msra.mxu0 0.0
    %4544 = vmatprep.subr.mxu0 0.0
    %4545 = vmatpush1.msra.mxu0 0.0
    %4546 = vmatprep.subr.mxu0 0.0
    %4547 = vmatpush1.msra.mxu0 0.0
    %4548 = vmatprep.subr.mxu0 0.0
    %4549 = vmatpush1.msra.mxu0 0.0
    %4550 = vmatprep.subr.mxu0 0.0
    %4551 = vmatpush1.msra.mxu0 0.0
    %4552 = vmatprep.subr.mxu0 0.0
    %4553 = vmatpush1.msra.mxu0 0.0
    %4554 = vmatprep.subr.mxu0 0.0
    %4555 = vmatpush1.msra.mxu0 0.0
    %4556 = vmatprep.subr.mxu0 0.0
    %4557 = vmatpush1.msra.mxu0 0.0
    %4558 = vmatprep.subr.mxu0 0.0
    %4559 = vmatpush1.msra.mxu0 0.0
    %4560 = vmatprep.subr.mxu0 0.0
    %4561 = vmatpush1.msra.mxu0 0.0
    %4562 = vmatprep.subr.mxu0 0.0
    %4563 = vmatpush1.msra.mxu0 0.0
    %4564 = vmatprep.subr.mxu0 0.0
    %4565 = vmatpush1.msra.mxu0 0.0
    %4566 = vmatprep.subr.mxu0 0.0
    %4567 = vmatpush1.msra.mxu0 0.0
    %4568 = vmatprep.subr.mxu0 0.0
    %4569 = vmatpush1.msra.mxu0 0.0
    %4570 = vmatprep.subr.mxu0 0.0
    %4571 = vmatpush1.msra.mxu0 0.0
    %4572 = vmatprep.subr.mxu0 0.0
    %4573 = vmatpush1.msra.mxu0 0.0
    %4574 = vmatprep.subr.mxu0 0.0
    %4575 = vmatpush1.msra.mxu0 0.0
    %4576 = vmatprep.mubr.f32.mxu0 0.0
    %v4577 = vand.u32 %v4503, 4294901760
    %v4578 = vsub.f32 %v4503, %v4577
    %v4579 = vand.u32 %v4578, 4294901760
    %v4580 = vsub.f32 %v4578, %v4579
    %v4581 = vand.u32 %v4580, 4294901760
    %4582 = vmatmul.mubr.f32.gmra.mrb[0].mxu0 %v4581
    %v4583 = vpop.f32.mrb[0].mxu0
    %v4584 = vadd.f32 %v4501, %v4583
    %v4585 = vpop.f32.mrb[0].mxu0
    %4586 = vmatprep.mubr.f32.mxu0 0.0
    %v4587 = vand.u32 %v4506, 4294901760
    %v4588 = vsub.f32 %v4506, %v4587
    %v4589 = vand.u32 %v4588, 4294901760
    %v4590 = vsub.f32 %v4588, %v4589
    %v4591 = vand.u32 %v4590, 4294901760
    %4592 = vmatmul.mubr.f32.gmra.mrb[0].mxu0 %v4591
    %v4593 = vpop.f32.mrb[0].mxu0
    %v4594 = vadd.f32 %v4501, %v4593
    %v4595 = vpop.f32.mrb[0].mxu0
    %4596 = vdwg.mxu0
    %4597 = vmatprep.subr.mxu0 0.0
    %v4598 = vand.u32 %v4493, 4294901760
    %v4599 = vsub.f32 %v4493, %v4598
    %v4600 = vand.u32 %v4599, 4294901760
    %v4601 = vsub.f32 %v4599, %v4600
    %v4602 = vand.u32 %v4601, 4294901760
    %4603 = vmatpush1.msra.mxu0 %v4602
    %4604 = vmatprep.subr.mxu0 0.0
    %v4605 = vand.u32 %v4494, 4294901760
    %v4606 = vsub.f32 %v4494, %v4605
    %v4607 = vand.u32 %v4606, 4294901760
    %v4608 = vsub.f32 %v4606, %v4607
    %v4609 = vand.u32 %v4608, 4294901760
    %4610 = vmatpush1.msra.mxu0 %v4609
    %4611 = vmatprep.subr.mxu0 0.0
    %v4612 = vand.u32 %v4495, 4294901760
    %v4613 = vsub.f32 %v4495, %v4612
    %v4614 = vand.u32 %v4613, 4294901760
    %v4615 = vsub.f32 %v4613, %v4614
    %v4616 = vand.u32 %v4615, 4294901760
    %4617 = vmatpush1.msra.mxu0 %v4616
    %4618 = vmatprep.subr.mxu0 0.0
    %v4619 = vand.u32 %v4496, 4294901760
    %v4620 = vsub.f32 %v4496, %v4619
    %v4621 = vand.u32 %v4620, 4294901760
    %v4622 = vsub.f32 %v4620, %v4621
    %v4623 = vand.u32 %v4622, 4294901760
    %4624 = vmatpush1.msra.mxu0 %v4623
    %4625 = vmatprep.subr.mxu0 0.0
    %4626 = vmatpush1.msra.mxu0 0.0
    %4627 = vmatprep.subr.mxu0 0.0
    %4628 = vmatpush1.msra.mxu0 0.0
    %4629 = vmatprep.subr.mxu0 0.0
    %4630 = vmatpush1.msra.mxu0 0.0
    %4631 = vmatprep.subr.mxu0 0.0
    %4632 = vmatpush1.msra.mxu0 0.0
    %4633 = vmatprep.subr.mxu0 0.0
    %4634 = vmatpush1.msra.mxu0 0.0
    %4635 = vmatprep.subr.mxu0 0.0
    %4636 = vmatpush1.msra.mxu0 0.0
    %4637 = vmatprep.subr.mxu0 0.0
    %4638 = vmatpush1.msra.mxu0 0.0
    %4639 = vmatprep.subr.mxu0 0.0
    %4640 = vmatpush1.msra.mxu0 0.0
    %4641 = vmatprep.subr.mxu0 0.0
    %4642 = vmatpush1.msra.mxu0 0.0
    %4643 = vmatprep.subr.mxu0 0.0
    %4644 = vmatpush1.msra.mxu0 0.0
    %4645 = vmatprep.subr.mxu0 0.0
    %4646 = vmatpush1.msra.mxu0 0.0
    %4647 = vmatprep.subr.mxu0 0.0
    %4648 = vmatpush1.msra.mxu0 0.0
    %4649 = vmatprep.subr.mxu0 0.0
    %4650 = vmatpush1.msra.mxu0 0.0
    %4651 = vmatprep.subr.mxu0 0.0
    %4652 = vmatpush1.msra.mxu0 0.0
    %4653 = vmatprep.subr.mxu0 0.0
    %4654 = vmatpush1.msra.mxu0 0.0
    %4655 = vmatprep.subr.mxu0 0.0
    %4656 = vmatpush1.msra.mxu0 0.0
    %4657 = vmatprep.subr.mxu0 0.0
    %4658 = vmatpush1.msra.mxu0 0.0
    %4659 = vmatprep.subr.mxu0 0.0
    %4660 = vmatpush1.msra.mxu0 0.0
    %4661 = vmatprep.subr.mxu0 0.0
    %4662 = vmatpush1.msra.mxu0 0.0
    %4663 = vmatprep.subr.mxu0 0.0
    %4664 = vmatpush1.msra.mxu0 0.0
    %4665 = vmatprep.subr.mxu0 0.0
    %4666 = vmatpush1.msra.mxu0 0.0
    %4667 = vmatprep.subr.mxu0 0.0
    %4668 = vmatpush1.msra.mxu0 0.0
    %4669 = vmatprep.subr.mxu0 0.0
    %4670 = vmatpush1.msra.mxu0 0.0
    %4671 = vmatprep.subr.mxu0 0.0
    %4672 = vmatpush1.msra.mxu0 0.0
    %4673 = vmatprep.subr.mxu0 0.0
    %4674 = vmatpush1.msra.mxu0 0.0
    %4675 = vmatprep.subr.mxu0 0.0
    %4676 = vmatpush1.msra.mxu0 0.0
    %4677 = vmatprep.subr.mxu0 0.0
    %4678 = vmatpush1.msra.mxu0 0.0
    %4679 = vmatprep.subr.mxu0 0.0
    %4680 = vmatpush1.msra.mxu0 0.0
    %4681 = vmatprep.mubr.f32.mxu0 0.0
    %v4682 = vand.u32 %v4503, 4294901760
    %4683 = vmatmul.mubr.f32.gmra.mrb[0].mxu0 %v4682
    %v4684 = vpop.f32.mrb[0].mxu0
    %v4685 = vadd.f32 %v4584, %v4684
    %v4686 = vpop.f32.mrb[0].mxu0
    %4687 = vmatprep.mubr.f32.mxu0 0.0
    %v4688 = vand.u32 %v4506, 4294901760
    %4689 = vmatmul.mubr.f32.gmra.mrb[0].mxu0 %v4688
    %v4690 = vpop.f32.mrb[0].mxu0
    %v4691 = vadd.f32 %v4594, %v4690
    %v4692 = vpop.f32.mrb[0].mxu0
    %4693 = vdwg.mxu0
    %4694 = vmatprep.subr.mxu0 0.0
    %v4695 = vand.u32 %v4493, 4294901760
    %v4696 = vsub.f32 %v4493, %v4695
    %4697 = vmatpush1.msra.mxu0 %v4696
    %4698 = vmatprep.subr.mxu0 0.0
    %v4699 = vand.u32 %v4494, 4294901760
    %v4700 = vsub.f32 %v4494, %v4699
    %4701 = vmatpush1.msra.mxu0 %v4700
    %4702 = vmatprep.subr.mxu0 0.0
    %v4703 = vand.u32 %v4495, 4294901760
    %v4704 = vsub.f32 %v4495, %v4703
    %4705 = vmatpush1.msra.mxu0 %v4704
    %4706 = vmatprep.subr.mxu0 0.0
    %v4707 = vand.u32 %v4496, 4294901760
    %v4708 = vsub.f32 %v4496, %v4707
    %4709 = vmatpush1.msra.mxu0 %v4708
    %4710 = vmatprep.subr.mxu0 0.0
    %4711 = vmatpush1.msra.mxu0 0.0
    %4712 = vmatprep.subr.mxu0 0.0
    %4713 = vmatpush1.msra.mxu0 0.0
    %4714 = vmatprep.subr.mxu0 0.0
    %4715 = vmatpush1.msra.mxu0 0.0
    %4716 = vmatprep.subr.mxu0 0.0
    %4717 = vmatpush1.msra.mxu0 0.0
    %4718 = vmatprep.subr.mxu0 0.0
    %4719 = vmatpush1.msra.mxu0 0.0
    %4720 = vmatprep.subr.mxu0 0.0
    %4721 = vmatpush1.msra.mxu0 0.0
    %4722 = vmatprep.subr.mxu0 0.0
    %4723 = vmatpush1.msra.mxu0 0.0
    %4724 = vmatprep.subr.mxu0 0.0
    %4725 = vmatpush1.msra.mxu0 0.0
    %4726 = vmatprep.subr.mxu0 0.0
    %4727 = vmatpush1.msra.mxu0 0.0
    %4728 = vmatprep.subr.mxu0 0.0
    %4729 = vmatpush1.msra.mxu0 0.0
    %4730 = vmatprep.subr.mxu0 0.0
    %4731 = vmatpush1.msra.mxu0 0.0
    %4732 = vmatprep.subr.mxu0 0.0
    %4733 = vmatpush1.msra.mxu0 0.0
    %4734 = vmatprep.subr.mxu0 0.0
    %4735 = vmatpush1.msra.mxu0 0.0
    %4736 = vmatprep.subr.mxu0 0.0
    %4737 = vmatpush1.msra.mxu0 0.0
    %4738 = vmatprep.subr.mxu0 0.0
    %4739 = vmatpush1.msra.mxu0 0.0
    %4740 = vmatprep.subr.mxu0 0.0
    %4741 = vmatpush1.msra.mxu0 0.0
    %4742 = vmatprep.subr.mxu0 0.0
    %4743 = vmatpush1.msra.mxu0 0.0
    %4744 = vmatprep.subr.mxu0 0.0
    %4745 = vmatpush1.msra.mxu0 0.0
    %4746 = vmatprep.subr.mxu0 0.0
    %4747 = vmatpush1.msra.mxu0 0.0
    %4748 = vmatprep.subr.mxu0 0.0
    %4749 = vmatpush1.msra.mxu0 0.0
    %4750 = vmatprep.subr.mxu0 0.0
    %4751 = vmatpush1.msra.mxu0 0.0
    %4752 = vmatprep.subr.mxu0 0.0
    %4753 = vmatpush1.msra.mxu0 0.0
    %4754 = vmatprep.subr.mxu0 0.0
    %4755 = vmatpush1.msra.mxu0 0.0
    %4756 = vmatprep.subr.mxu0 0.0
    %4757 = vmatpush1.msra.mxu0 0.0
    %4758 = vmatprep.subr.mxu0 0.0
    %4759 = vmatpush1.msra.mxu0 0.0
    %4760 = vmatprep.subr.mxu0 0.0
    %4761 = vmatpush1.msra.mxu0 0.0
    %4762 = vmatprep.subr.mxu0 0.0
    %4763 = vmatpush1.msra.mxu0 0.0
    %4764 = vmatprep.subr.mxu0 0.0
    %4765 = vmatpush1.msra.mxu0 0.0
    %4766 = vmatprep.mubr.f32.mxu0 0.0
    %v4767 = vand.u32 %v4503, 4294901760
    %v4768 = vsub.f32 %v4503, %v4767
    %4769 = vmatmul.mubr.f32.gmra.mrb[0].mxu0 %v4768
    %v4770 = vpop.f32.mrb[0].mxu0
    %v4771 = vadd.f32 %v4685, %v4770
    %v4772 = vpop.f32.mrb[0].mxu0
    %4773 = vmatprep.mubr.f32.mxu0 0.0
    %v4774 = vand.u32 %v4506, 4294901760
    %v4775 = vsub.f32 %v4506, %v4774
    %4776 = vmatmul.mubr.f32.gmra.mrb[0].mxu0 %v4775
    %v4777 = vpop.f32.mrb[0].mxu0
    %v4778 = vadd.f32 %v4691, %v4777
    %v4779 = vpop.f32.mrb[0].mxu0
    %4780 = vdwg.mxu0
    %4781 = vmatprep.subr.mxu0 0.0
    %v4782 = vand.u32 %v4493, 4294901760
    %4783 = vmatpush1.msra.mxu0 %v4782
    %4784 = vmatprep.subr.mxu0 0.0
    %v4785 = vand.u32 %v4494, 4294901760
    %4786 = vmatpush1.msra.mxu0 %v4785
    %4787 = vmatprep.subr.mxu0 0.0
    %v4788 = vand.u32 %v4495, 4294901760
    %4789 = vmatpush1.msra.mxu0 %v4788
    %4790 = vmatprep.subr.mxu0 0.0
    %v4791 = vand.u32 %v4496, 4294901760
    %4792 = vmatpush1.msra.mxu0 %v4791
    %4793 = vmatprep.subr.mxu0 0.0
    %4794 = vmatpush1.msra.mxu0 0.0
    %4795 = vmatprep.subr.mxu0 0.0
    %4796 = vmatpush1.msra.mxu0 0.0
    %4797 = vmatprep.subr.mxu0 0.0
    %4798 = vmatpush1.msra.mxu0 0.0
    %4799 = vmatprep.subr.mxu0 0.0
    %4800 = vmatpush1.msra.mxu0 0.0
    %4801 = vmatprep.subr.mxu0 0.0
    %4802 = vmatpush1.msra.mxu0 0.0
    %4803 = vmatprep.subr.mxu0 0.0
    %4804 = vmatpush1.msra.mxu0 0.0
    %4805 = vmatprep.subr.mxu0 0.0
    %4806 = vmatpush1.msra.mxu0 0.0
    %4807 = vmatprep.subr.mxu0 0.0
    %4808 = vmatpush1.msra.mxu0 0.0
    %4809 = vmatprep.subr.mxu0 0.0
    %4810 = vmatpush1.msra.mxu0 0.0
    %4811 = vmatprep.subr.mxu0 0.0
    %4812 = vmatpush1.msra.mxu0 0.0
    %4813 = vmatprep.subr.mxu0 0.0
    %4814 = vmatpush1.msra.mxu0 0.0
    %4815 = vmatprep.subr.mxu0 0.0
    %4816 = vmatpush1.msra.mxu0 0.0
    %4817 = vmatprep.subr.mxu0 0.0
    %4818 = vmatpush1.msra.mxu0 0.0
    %4819 = vmatprep.subr.mxu0 0.0
    %4820 = vmatpush1.msra.mxu0 0.0
    %4821 = vmatprep.subr.mxu0 0.0
    %4822 = vmatpush1.msra.mxu0 0.0
    %4823 = vmatprep.subr.mxu0 0.0
    %4824 = vmatpush1.msra.mxu0 0.0
    %4825 = vmatprep.subr.mxu0 0.0
    %4826 = vmatpush1.msra.mxu0 0.0
    %4827 = vmatprep.subr.mxu0 0.0
    %4828 = vmatpush1.msra.mxu0 0.0
    %4829 = vmatprep.subr.mxu0 0.0
    %4830 = vmatpush1.msra.mxu0 0.0
    %4831 = vmatprep.subr.mxu0 0.0
    %4832 = vmatpush1.msra.mxu0 0.0
    %4833 = vmatprep.subr.mxu0 0.0
    %4834 = vmatpush1.msra.mxu0 0.0
    %4835 = vmatprep.subr.mxu0 0.0
    %4836 = vmatpush1.msra.mxu0 0.0
    %4837 = vmatprep.subr.mxu0 0.0
    %4838 = vmatpush1.msra.mxu0 0.0
    %4839 = vmatprep.subr.mxu0 0.0
    %4840 = vmatpush1.msra.mxu0 0.0
    %4841 = vmatprep.subr.mxu0 0.0
    %4842 = vmatpush1.msra.mxu0 0.0
    %4843 = vmatprep.subr.mxu0 0.0
    %4844 = vmatpush1.msra.mxu0 0.0
    %4845 = vmatprep.subr.mxu0 0.0
    %4846 = vmatpush1.msra.mxu0 0.0
    %4847 = vmatprep.subr.mxu0 0.0
    %4848 = vmatpush1.msra.mxu0 0.0
    %4849 = vmatprep.mubr.f32.mxu0 0.0
    %v4850 = vand.u32 %v4503, 4294901760
    %v4851 = vsub.f32 %v4503, %v4850
    %v4852 = vand.u32 %v4851, 4294901760
    %4853 = vmatmul.mubr.f32.gmra.mrb[0].mxu0 %v4852
    %v4854 = vpop.f32.mrb[0].mxu0
    %v4855 = vadd.f32 %v4771, %v4854
    %v4856 = vpop.f32.mrb[0].mxu0
    %4857 = vmatprep.mubr.f32.mxu0 0.0
    %v4858 = vand.u32 %v4506, 4294901760
    %v4859 = vsub.f32 %v4506, %v4858
    %v4860 = vand.u32 %v4859, 4294901760
    %4861 = vmatmul.mubr.f32.gmra.mrb[0].mxu0 %v4860
    %v4862 = vpop.f32.mrb[0].mxu0
    %v4863 = vadd.f32 %v4778, %v4862
    %v4864 = vpop.f32.mrb[0].mxu0
    %4865 = vdwg.mxu0
    %4866 = vmatprep.subr.mxu0 0.0
    %v4867 = vand.u32 %v4493, 4294901760
    %v4868 = vsub.f32 %v4493, %v4867
    %v4869 = vand.u32 %v4868, 4294901760
    %4870 = vmatpush1.msra.mxu0 %v4869
    %4871 = vmatprep.subr.mxu0 0.0
    %v4872 = vand.u32 %v4494, 4294901760
    %v4873 = vsub.f32 %v4494, %v4872
    %v4874 = vand.u32 %v4873, 4294901760
    %4875 = vmatpush1.msra.mxu0 %v4874
    %4876 = vmatprep.subr.mxu0 0.0
    %v4877 = vand.u32 %v4495, 4294901760
    %v4878 = vsub.f32 %v4495, %v4877
    %v4879 = vand.u32 %v4878, 4294901760
    %4880 = vmatpush1.msra.mxu0 %v4879
    %4881 = vmatprep.subr.mxu0 0.0
    %v4882 = vand.u32 %v4496, 4294901760
    %v4883 = vsub.f32 %v4496, %v4882
    %v4884 = vand.u32 %v4883, 4294901760
    %4885 = vmatpush1.msra.mxu0 %v4884
    %4886 = vmatprep.subr.mxu0 0.0
    %4887 = vmatpush1.msra.mxu0 0.0
    %4888 = vmatprep.subr.mxu0 0.0
    %4889 = vmatpush1.msra.mxu0 0.0
    %4890 = vmatprep.subr.mxu0 0.0
    %4891 = vmatpush1.msra.mxu0 0.0
    %4892 = vmatprep.subr.mxu0 0.0
    %4893 = vmatpush1.msra.mxu0 0.0
    %4894 = vmatprep.subr.mxu0 0.0
    %4895 = vmatpush1.msra.mxu0 0.0
    %4896 = vmatprep.subr.mxu0 0.0
    %4897 = vmatpush1.msra.mxu0 0.0
    %4898 = vmatprep.subr.mxu0 0.0
    %4899 = vmatpush1.msra.mxu0 0.0
    %4900 = vmatprep.subr.mxu0 0.0
    %4901 = vmatpush1.msra.mxu0 0.0
    %4902 = vmatprep.subr.mxu0 0.0
    %4903 = vmatpush1.msra.mxu0 0.0
    %4904 = vmatprep.subr.mxu0 0.0
    %4905 = vmatpush1.msra.mxu0 0.0
    %4906 = vmatprep.subr.mxu0 0.0
    %4907 = vmatpush1.msra.mxu0 0.0
    %4908 = vmatprep.subr.mxu0 0.0
    %4909 = vmatpush1.msra.mxu0 0.0
    %4910 = vmatprep.subr.mxu0 0.0
    %4911 = vmatpush1.msra.mxu0 0.0
    %4912 = vmatprep.subr.mxu0 0.0
    %4913 = vmatpush1.msra.mxu0 0.0
    %4914 = vmatprep.subr.mxu0 0.0
    %4915 = vmatpush1.msra.mxu0 0.0
    %4916 = vmatprep.subr.mxu0 0.0
    %4917 = vmatpush1.msra.mxu0 0.0
    %4918 = vmatprep.subr.mxu0 0.0
    %4919 = vmatpush1.msra.mxu0 0.0
    %4920 = vmatprep.subr.mxu0 0.0
    %4921 = vmatpush1.msra.mxu0 0.0
    %4922 = vmatprep.subr.mxu0 0.0
    %4923 = vmatpush1.msra.mxu0 0.0
    %4924 = vmatprep.subr.mxu0 0.0
    %4925 = vmatpush1.msra.mxu0 0.0
    %4926 = vmatprep.subr.mxu0 0.0
    %4927 = vmatpush1.msra.mxu0 0.0
    %4928 = vmatprep.subr.mxu0 0.0
    %4929 = vmatpush1.msra.mxu0 0.0
    %4930 = vmatprep.subr.mxu0 0.0
    %4931 = vmatpush1.msra.mxu0 0.0
    %4932 = vmatprep.subr.mxu0 0.0
    %4933 = vmatpush1.msra.mxu0 0.0
    %4934 = vmatprep.subr.mxu0 0.0
    %4935 = vmatpush1.msra.mxu0 0.0
    %4936 = vmatprep.subr.mxu0 0.0
    %4937 = vmatpush1.msra.mxu0 0.0
    %4938 = vmatprep.subr.mxu0 0.0
    %4939 = vmatpush1.msra.mxu0 0.0
    %4940 = vmatprep.subr.mxu0 0.0
    %4941 = vmatpush1.msra.mxu0 0.0
    %4942 = vmatprep.mubr.f32.mxu0 0.0
    %v4943 = vand.u32 %v4503, 4294901760
    %4944 = vmatmul.mubr.f32.gmra.mrb[0].mxu0 %v4943
    %v4945 = vpop.f32.mrb[0].mxu0
    %v4946 = vadd.f32 %v4855, %v4945
    %v4947 = vpop.f32.mrb[0].mxu0
    %4948 = vmatprep.mubr.f32.mxu0 0.0
    %v4949 = vand.u32 %v4506, 4294901760
    %4950 = vmatmul.mubr.f32.gmra.mrb[0].mxu0 %v4949
    %v4951 = vpop.f32.mrb[0].mxu0
    %v4952 = vadd.f32 %v4863, %v4951
    %v4953 = vpop.f32.mrb[0].mxu0
    %4954 = vdwg.mxu0
    %4955 = vmatprep.subr.mxu0 0.0
    %v4956 = vand.u32 %v4493, 4294901760
    %4957 = vmatpush1.msra.mxu0 %v4956
    %4958 = vmatprep.subr.mxu0 0.0
    %v4959 = vand.u32 %v4494, 4294901760
    %4960 = vmatpush1.msra.mxu0 %v4959
    %4961 = vmatprep.subr.mxu0 0.0
    %v4962 = vand.u32 %v4495, 4294901760
    %4963 = vmatpush1.msra.mxu0 %v4962
    %4964 = vmatprep.subr.mxu0 0.0
    %v4965 = vand.u32 %v4496, 4294901760
    %4966 = vmatpush1.msra.mxu0 %v4965
    %4967 = vmatprep.subr.mxu0 0.0
    %4968 = vmatpush1.msra.mxu0 0.0
    %4969 = vmatprep.subr.mxu0 0.0
    %4970 = vmatpush1.msra.mxu0 0.0
    %4971 = vmatprep.subr.mxu0 0.0
    %4972 = vmatpush1.msra.mxu0 0.0
    %4973 = vmatprep.subr.mxu0 0.0
    %4974 = vmatpush1.msra.mxu0 0.0
    %4975 = vmatprep.subr.mxu0 0.0
    %4976 = vmatpush1.msra.mxu0 0.0
    %4977 = vmatprep.subr.mxu0 0.0
    %4978 = vmatpush1.msra.mxu0 0.0
    %4979 = vmatprep.subr.mxu0 0.0
    %4980 = vmatpush1.msra.mxu0 0.0
    %4981 = vmatprep.subr.mxu0 0.0
    %4982 = vmatpush1.msra.mxu0 0.0
    %4983 = vmatprep.subr.mxu0 0.0
    %4984 = vmatpush1.msra.mxu0 0.0
    %4985 = vmatprep.subr.mxu0 0.0
    %4986 = vmatpush1.msra.mxu0 0.0
    %4987 = vmatprep.subr.mxu0 0.0
    %4988 = vmatpush1.msra.mxu0 0.0
    %4989 = vmatprep.subr.mxu0 0.0
    %4990 = vmatpush1.msra.mxu0 0.0
    %4991 = vmatprep.subr.mxu0 0.0
    %4992 = vmatpush1.msra.mxu0 0.0
    %4993 = vmatprep.subr.mxu0 0.0
    %4994 = vmatpush1.msra.mxu0 0.0
    %4995 = vmatprep.subr.mxu0 0.0
    %4996 = vmatpush1.msra.mxu0 0.0
    %4997 = vmatprep.subr.mxu0 0.0
    %4998 = vmatpush1.msra.mxu0 0.0
    %4999 = vmatprep.subr.mxu0 0.0
    %5000 = vmatpush1.msra.mxu0 0.0
    %5001 = vmatprep.subr.mxu0 0.0
    %5002 = vmatpush1.msra.mxu0 0.0
    %5003 = vmatprep.subr.mxu0 0.0
    %5004 = vmatpush1.msra.mxu0 0.0
    %5005 = vmatprep.subr.mxu0 0.0
    %5006 = vmatpush1.msra.mxu0 0.0
    %5007 = vmatprep.subr.mxu0 0.0
    %5008 = vmatpush1.msra.mxu0 0.0
    %5009 = vmatprep.subr.mxu0 0.0
    %5010 = vmatpush1.msra.mxu0 0.0
    %5011 = vmatprep.subr.mxu0 0.0
    %5012 = vmatpush1.msra.mxu0 0.0
    %5013 = vmatprep.subr.mxu0 0.0
    %5014 = vmatpush1.msra.mxu0 0.0
    %5015 = vmatprep.subr.mxu0 0.0
    %5016 = vmatpush1.msra.mxu0 0.0
    %5017 = vmatprep.subr.mxu0 0.0
    %5018 = vmatpush1.msra.mxu0 0.0
    %5019 = vmatprep.subr.mxu0 0.0
    %5020 = vmatpush1.msra.mxu0 0.0
    %5021 = vmatprep.subr.mxu0 0.0
    %5022 = vmatpush1.msra.mxu0 0.0
    %5023 = vmatprep.mubr.f32.mxu0 0.0
    %v5024 = vand.u32 %v4503, 4294901760
    %5025 = vmatmul.mubr.f32.gmra.mrb[0].mxu0 %v5024
    %v5026 = vpop.f32.mrb[0].mxu0
    %v5027 = vadd.f32 %v4946, %v5026
    %v5028 = vpop.f32.mrb[0].mxu0
    %5029 = vmatprep.mubr.f32.mxu0 0.0
    %v5030 = vand.u32 %v4506, 4294901760
    %5031 = vmatmul.mubr.f32.gmra.mrb[0].mxu0 %v5030
    %v5032 = vpop.f32.mrb[0].mxu0
    %v5033 = vadd.f32 %v4952, %v5032
    %v5034 = vpop.f32.mrb[0].mxu0
    %5035 = vdwg.mxu0
    %v5036 = vadd.f32 %v226, %v5027
    %v5037 = vadd.f32 %v227, %v5033
    %v5038 = vsel %vm186, %v5036, 0.0
    %5039 = vadd.xlane.f32.xlu0 %v5038
    %v5040 = vpop.xlane.xlu0 %5039
    %v5041 = vsel %vm186, %v5037, 0.0
    %5042 = vadd.xlane.f32.xlu0 %v5041
    %v5043 = vpop.xlane.xlu0 %5042
    %v5044 = vmul.f32 %v5040, %v193
    %v5045 = vmul.f32 %v5043, %v193
    %v5046 = vsub.f32 %v5036, %v5044
    %v5047 = vsub.f32 %v5037, %v5045
    %v5048 = vmul.f32 %v5046, %v5046
    %v5049 = vmul.f32 %v5047, %v5047
    %v5050 = vsel %vm186, %v5048, 0.0
    %5051 = vadd.xlane.f32.xlu0 %v5050
    %v5052 = vpop.xlane.xlu0 %5051
    %v5053 = vsel %vm186, %v5049, 0.0
    %5054 = vadd.xlane.f32.xlu0 %v5053
    %v5055 = vpop.xlane.xlu0 %5054
    %v5056 = vmul.f32 %v5052, %v193
    %v5057 = vmul.f32 %v5055, %v193
    %v5058 = vadd.f32 %v5056, 1e-12
    %v5059 = vadd.f32 %v5057, 1e-12
    %v5060 = vrsqrt.pop %v5058
    %v5061 = vrsqrt.pop %v5059
    %v5062 = vmul.f32 %v5046, %v5060
    %v5063 = vmul.f32 %v5047, %v5061
    %v5064 = vld [vmem:[%s5 + $0x4] sm:$0x1]
    %v5065 = vlaneseq
    %v5066 = vshrl.u32 %v5065, 7
    %v5067 = vsub.s32 0, %v5066
    %v5068 = vrot.slane %v5064, %v5067
    %v5069 = vmul.f32 %v5062, %v5068
    %v5070 = vmul.f32 %v5063, %v5068
    %v5071 = vld [vmem:[%s5 + $0x5] sm:$0x1]
    %v5072 = vlaneseq
    %v5073 = vshrl.u32 %v5072, 7
    %v5074 = vsub.s32 0, %v5073
    %v5075 = vrot.slane %v5071, %v5074
    %v5076 = vadd.f32 %v5069, %v5075
    %v5077 = vadd.f32 %v5070, %v5075
    %v5078 = vld [vmem:[#allocation6 + $0x40] sm:$0xff]
    %v5079 = vld [vmem:[#allocation6 + $0x48] sm:$0xff]
    %v5080 = vld [vmem:[#allocation6 + $0x50] sm:$0xff]
    %v5081 = vld [vmem:[#allocation6 + $0x58] sm:$0xff]
    %v5082 = vld [vmem:[%s5 + $0x6] sm:$0x1]
    %v5083 = vlaneseq
    %v5084 = vshrl.u32 %v5083, 7
    %v5085 = vsub.s32 0, %v5084
    %v5086 = vrot.slane %v5082, %v5085
    %v5088 = vsel %vm186, %v5076, 0
    %v5091 = vsel %vm186, %v5077, 0
    %5093 = vmatprep.subr.mxu0 0.0
    %v5094 = vand.u32 %v5078, 4294901760
    %5095 = vmatpush1.msra.mxu0 %v5094
    %5096 = vmatprep.subr.mxu0 0.0
    %v5097 = vand.u32 %v5079, 4294901760
    %5098 = vmatpush1.msra.mxu0 %v5097
    %5099 = vmatprep.subr.mxu0 0.0
    %v5100 = vand.u32 %v5080, 4294901760
    %5101 = vmatpush1.msra.mxu0 %v5100
    %5102 = vmatprep.subr.mxu0 0.0
    %v5103 = vand.u32 %v5081, 4294901760
    %5104 = vmatpush1.msra.mxu0 %v5103
    %5105 = vmatprep.subr.mxu0 0.0
    %5106 = vmatpush1.msra.mxu0 0.0
    %5107 = vmatprep.subr.mxu0 0.0
    %5108 = vmatpush1.msra.mxu0 0.0
    %5109 = vmatprep.subr.mxu0 0.0
    %5110 = vmatpush1.msra.mxu0 0.0
    %5111 = vmatprep.subr.mxu0 0.0
    %5112 = vmatpush1.msra.mxu0 0.0
    %5113 = vmatprep.subr.mxu0 0.0
    %5114 = vmatpush1.msra.mxu0 0.0
    %5115 = vmatprep.subr.mxu0 0.0
    %5116 = vmatpush1.msra.mxu0 0.0
    %5117 = vmatprep.subr.mxu0 0.0
    %5118 = vmatpush1.msra.mxu0 0.0
    %5119 = vmatprep.subr.mxu0 0.0
    %5120 = vmatpush1.msra.mxu0 0.0
    %5121 = vmatprep.subr.mxu0 0.0
    %5122 = vmatpush1.msra.mxu0 0.0
    %5123 = vmatprep.subr.mxu0 0.0
    %5124 = vmatpush1.msra.mxu0 0.0
    %5125 = vmatprep.subr.mxu0 0.0
    %5126 = vmatpush1.msra.mxu0 0.0
    %5127 = vmatprep.subr.mxu0 0.0
    %5128 = vmatpush1.msra.mxu0 0.0
    %5129 = vmatprep.subr.mxu0 0.0
    %5130 = vmatpush1.msra.mxu0 0.0
    %5131 = vmatprep.subr.mxu0 0.0
    %5132 = vmatpush1.msra.mxu0 0.0
    %5133 = vmatprep.subr.mxu0 0.0
    %5134 = vmatpush1.msra.mxu0 0.0
    %5135 = vmatprep.subr.mxu0 0.0
    %5136 = vmatpush1.msra.mxu0 0.0
    %5137 = vmatprep.subr.mxu0 0.0
    %5138 = vmatpush1.msra.mxu0 0.0
    %5139 = vmatprep.subr.mxu0 0.0
    %5140 = vmatpush1.msra.mxu0 0.0
    %5141 = vmatprep.subr.mxu0 0.0
    %5142 = vmatpush1.msra.mxu0 0.0
    %5143 = vmatprep.subr.mxu0 0.0
    %5144 = vmatpush1.msra.mxu0 0.0
    %5145 = vmatprep.subr.mxu0 0.0
    %5146 = vmatpush1.msra.mxu0 0.0
    %5147 = vmatprep.subr.mxu0 0.0
    %5148 = vmatpush1.msra.mxu0 0.0
    %5149 = vmatprep.subr.mxu0 0.0
    %5150 = vmatpush1.msra.mxu0 0.0
    %5151 = vmatprep.subr.mxu0 0.0
    %5152 = vmatpush1.msra.mxu0 0.0
    %5153 = vmatprep.subr.mxu0 0.0
    %5154 = vmatpush1.msra.mxu0 0.0
    %5155 = vmatprep.subr.mxu0 0.0
    %5156 = vmatpush1.msra.mxu0 0.0
    %5157 = vmatprep.subr.mxu0 0.0
    %5158 = vmatpush1.msra.mxu0 0.0
    %5159 = vmatprep.subr.mxu0 0.0
    %5160 = vmatpush1.msra.mxu0 0.0
    %5161 = vmatprep.mubr.f32.mxu0 0.0
    %v5162 = vand.u32 %v5088, 4294901760
    %v5163 = vsub.f32 %v5088, %v5162
    %v5164 = vand.u32 %v5163, 4294901760
    %v5165 = vsub.f32 %v5163, %v5164
    %v5166 = vand.u32 %v5165, 4294901760
    %5167 = vmatmul.mubr.f32.gmra.mrb[0].mxu0 %v5166
    %v5168 = vpop.f32.mrb[0].mxu0
    %v5169 = vadd.f32 %v5086, %v5168
    %v5170 = vpop.f32.mrb[0].mxu0
    %5171 = vmatprep.mubr.f32.mxu0 0.0
    %v5172 = vand.u32 %v5091, 4294901760
    %v5173 = vsub.f32 %v5091, %v5172
    %v5174 = vand.u32 %v5173, 4294901760
    %v5175 = vsub.f32 %v5173, %v5174
    %v5176 = vand.u32 %v5175, 4294901760
    %5177 = vmatmul.mubr.f32.gmra.mrb[0].mxu0 %v5176
    %v5178 = vpop.f32.mrb[0].mxu0
    %v5179 = vadd.f32 %v5086, %v5178
    %v5180 = vpop.f32.mrb[0].mxu0
    %5181 = vdwg.mxu0
    %5182 = vmatprep.subr.mxu0 0.0
    %v5183 = vand.u32 %v5078, 4294901760
    %v5184 = vsub.f32 %v5078, %v5183
    %v5185 = vand.u32 %v5184, 4294901760
    %v5186 = vsub.f32 %v5184, %v5185
    %v5187 = vand.u32 %v5186, 4294901760
    %5188 = vmatpush1.msra.mxu0 %v5187
    %5189 = vmatprep.subr.mxu0 0.0
    %v5190 = vand.u32 %v5079, 4294901760
    %v5191 = vsub.f32 %v5079, %v5190
    %v5192 = vand.u32 %v5191, 4294901760
    %v5193 = vsub.f32 %v5191, %v5192
    %v5194 = vand.u32 %v5193, 4294901760
    %5195 = vmatpush1.msra.mxu0 %v5194
    %5196 = vmatprep.subr.mxu0 0.0
    %v5197 = vand.u32 %v5080, 4294901760
    %v5198 = vsub.f32 %v5080, %v5197
    %v5199 = vand.u32 %v5198, 4294901760
    %v5200 = vsub.f32 %v5198, %v5199
    %v5201 = vand.u32 %v5200, 4294901760
    %5202 = vmatpush1.msra.mxu0 %v5201
    %5203 = vmatprep.subr.mxu0 0.0
    %v5204 = vand.u32 %v5081, 4294901760
    %v5205 = vsub.f32 %v5081, %v5204
    %v5206 = vand.u32 %v5205, 4294901760
    %v5207 = vsub.f32 %v5205, %v5206
    %v5208 = vand.u32 %v5207, 4294901760
    %5209 = vmatpush1.msra.mxu0 %v5208
    %5210 = vmatprep.subr.mxu0 0.0
    %5211 = vmatpush1.msra.mxu0 0.0
    %5212 = vmatprep.subr.mxu0 0.0
    %5213 = vmatpush1.msra.mxu0 0.0
    %5214 = vmatprep.subr.mxu0 0.0
    %5215 = vmatpush1.msra.mxu0 0.0
    %5216 = vmatprep.subr.mxu0 0.0
    %5217 = vmatpush1.msra.mxu0 0.0
    %5218 = vmatprep.subr.mxu0 0.0
    %5219 = vmatpush1.msra.mxu0 0.0
    %5220 = vmatprep.subr.mxu0 0.0
    %5221 = vmatpush1.msra.mxu0 0.0
    %5222 = vmatprep.subr.mxu0 0.0
    %5223 = vmatpush1.msra.mxu0 0.0
    %5224 = vmatprep.subr.mxu0 0.0
    %5225 = vmatpush1.msra.mxu0 0.0
    %5226 = vmatprep.subr.mxu0 0.0
    %5227 = vmatpush1.msra.mxu0 0.0
    %5228 = vmatprep.subr.mxu0 0.0
    %5229 = vmatpush1.msra.mxu0 0.0
    %5230 = vmatprep.subr.mxu0 0.0
    %5231 = vmatpush1.msra.mxu0 0.0
    %5232 = vmatprep.subr.mxu0 0.0
    %5233 = vmatpush1.msra.mxu0 0.0
    %5234 = vmatprep.subr.mxu0 0.0
    %5235 = vmatpush1.msra.mxu0 0.0
    %5236 = vmatprep.subr.mxu0 0.0
    %5237 = vmatpush1.msra.mxu0 0.0
    %5238 = vmatprep.subr.mxu0 0.0
    %5239 = vmatpush1.msra.mxu0 0.0
    %5240 = vmatprep.subr.mxu0 0.0
    %5241 = vmatpush1.msra.mxu0 0.0
    %5242 = vmatprep.subr.mxu0 0.0
    %5243 = vmatpush1.msra.mxu0 0.0
    %5244 = vmatprep.subr.mxu0 0.0
    %5245 = vmatpush1.msra.mxu0 0.0
    %5246 = vmatprep.subr.mxu0 0.0
    %5247 = vmatpush1.msra.mxu0 0.0
    %5248 = vmatprep.subr.mxu0 0.0
    %5249 = vmatpush1.msra.mxu0 0.0
    %5250 = vmatprep.subr.mxu0 0.0
    %5251 = vmatpush1.msra.mxu0 0.0
    %5252 = vmatprep.subr.mxu0 0.0
    %5253 = vmatpush1.msra.mxu0 0.0
    %5254 = vmatprep.subr.mxu0 0.0
    %5255 = vmatpush1.msra.mxu0 0.0
    %5256 = vmatprep.subr.mxu0 0.0
    %5257 = vmatpush1.msra.mxu0 0.0
    %5258 = vmatprep.subr.mxu0 0.0
    %5259 = vmatpush1.msra.mxu0 0.0
    %5260 = vmatprep.subr.mxu0 0.0
    %5261 = vmatpush1.msra.mxu0 0.0
    %5262 = vmatprep.subr.mxu0 0.0
    %5263 = vmatpush1.msra.mxu0 0.0
    %5264 = vmatprep.subr.mxu0 0.0
    %5265 = vmatpush1.msra.mxu0 0.0
    %5266 = vmatprep.mubr.f32.mxu0 0.0
    %v5267 = vand.u32 %v5088, 4294901760
    %5268 = vmatmul.mubr.f32.gmra.mrb[0].mxu0 %v5267
    %v5269 = vpop.f32.mrb[0].mxu0
    %v5270 = vadd.f32 %v5169, %v5269
    %v5271 = vpop.f32.mrb[0].mxu0
    %5272 = vmatprep.mubr.f32.mxu0 0.0
    %v5273 = vand.u32 %v5091, 4294901760
    %5274 = vmatmul.mubr.f32.gmra.mrb[0].mxu0 %v5273
    %v5275 = vpop.f32.mrb[0].mxu0
    %v5276 = vadd.f32 %v5179, %v5275
    %v5277 = vpop.f32.mrb[0].mxu0
    %5278 = vdwg.mxu0
    %5279 = vmatprep.subr.mxu0 0.0
    %v5280 = vand.u32 %v5078, 4294901760
    %v5281 = vsub.f32 %v5078, %v5280
    %5282 = vmatpush1.msra.mxu0 %v5281
    %5283 = vmatprep.subr.mxu0 0.0
    %v5284 = vand.u32 %v5079, 4294901760
    %v5285 = vsub.f32 %v5079, %v5284
    %5286 = vmatpush1.msra.mxu0 %v5285
    %5287 = vmatprep.subr.mxu0 0.0
    %v5288 = vand.u32 %v5080, 4294901760
    %v5289 = vsub.f32 %v5080, %v5288
    %5290 = vmatpush1.msra.mxu0 %v5289
    %5291 = vmatprep.subr.mxu0 0.0
    %v5292 = vand.u32 %v5081, 4294901760
    %v5293 = vsub.f32 %v5081, %v5292
    %5294 = vmatpush1.msra.mxu0 %v5293
    %5295 = vmatprep.subr.mxu0 0.0
    %5296 = vmatpush1.msra.mxu0 0.0
    %5297 = vmatprep.subr.mxu0 0.0
    %5298 = vmatpush1.msra.mxu0 0.0
    %5299 = vmatprep.subr.mxu0 0.0
    %5300 = vmatpush1.msra.mxu0 0.0
    %5301 = vmatprep.subr.mxu0 0.0
    %5302 = vmatpush1.msra.mxu0 0.0
    %5303 = vmatprep.subr.mxu0 0.0
    %5304 = vmatpush1.msra.mxu0 0.0
    %5305 = vmatprep.subr.mxu0 0.0
    %5306 = vmatpush1.msra.mxu0 0.0
    %5307 = vmatprep.subr.mxu0 0.0
    %5308 = vmatpush1.msra.mxu0 0.0
    %5309 = vmatprep.subr.mxu0 0.0
    %5310 = vmatpush1.msra.mxu0 0.0
    %5311 = vmatprep.subr.mxu0 0.0
    %5312 = vmatpush1.msra.mxu0 0.0
    %5313 = vmatprep.subr.mxu0 0.0
    %5314 = vmatpush1.msra.mxu0 0.0
    %5315 = vmatprep.subr.mxu0 0.0
    %5316 = vmatpush1.msra.mxu0 0.0
    %5317 = vmatprep.subr.mxu0 0.0
    %5318 = vmatpush1.msra.mxu0 0.0
    %5319 = vmatprep.subr.mxu0 0.0
    %5320 = vmatpush1.msra.mxu0 0.0
    %5321 = vmatprep.subr.mxu0 0.0
    %5322 = vmatpush1.msra.mxu0 0.0
    %5323 = vmatprep.subr.mxu0 0.0
    %5324 = vmatpush1.msra.mxu0 0.0
    %5325 = vmatprep.subr.mxu0 0.0
    %5326 = vmatpush1.msra.mxu0 0.0
    %5327 = vmatprep.subr.mxu0 0.0
    %5328 = vmatpush1.msra.mxu0 0.0
    %5329 = vmatprep.subr.mxu0 0.0
    %5330 = vmatpush1.msra.mxu0 0.0
    %5331 = vmatprep.subr.mxu0 0.0
    %5332 = vmatpush1.msra.mxu0 0.0
    %5333 = vmatprep.subr.mxu0 0.0
    %5334 = vmatpush1.msra.mxu0 0.0
    %5335 = vmatprep.subr.mxu0 0.0
    %5336 = vmatpush1.msra.mxu0 0.0
    %5337 = vmatprep.subr.mxu0 0.0
    %5338 = vmatpush1.msra.mxu0 0.0
    %5339 = vmatprep.subr.mxu0 0.0
    %5340 = vmatpush1.msra.mxu0 0.0
    %5341 = vmatprep.subr.mxu0 0.0
    %5342 = vmatpush1.msra.mxu0 0.0
    %5343 = vmatprep.subr.mxu0 0.0
    %5344 = vmatpush1.msra.mxu0 0.0
    %5345 = vmatprep.subr.mxu0 0.0
    %5346 = vmatpush1.msra.mxu0 0.0
    %5347 = vmatprep.subr.mxu0 0.0
    %5348 = vmatpush1.msra.mxu0 0.0
    %5349 = vmatprep.subr.mxu0 0.0
    %5350 = vmatpush1.msra.mxu0 0.0
    %5351 = vmatprep.mubr.f32.mxu0 0.0
    %v5352 = vand.u32 %v5088, 4294901760
    %v5353 = vsub.f32 %v5088, %v5352
    %5354 = vmatmul.mubr.f32.gmra.mrb[0].mxu0 %v5353
    %v5355 = vpop.f32.mrb[0].mxu0
    %v5356 = vadd.f32 %v5270, %v5355
    %v5357 = vpop.f32.mrb[0].mxu0
    %5358 = vmatprep.mubr.f32.mxu0 0.0
    %v5359 = vand.u32 %v5091, 4294901760
    %v5360 = vsub.f32 %v5091, %v5359
    %5361 = vmatmul.mubr.f32.gmra.mrb[0].mxu0 %v5360
    %v5362 = vpop.f32.mrb[0].mxu0
    %v5363 = vadd.f32 %v5276, %v5362
    %v5364 = vpop.f32.mrb[0].mxu0
    %5365 = vdwg.mxu0
    %5366 = vmatprep.subr.mxu0 0.0
    %v5367 = vand.u32 %v5078, 4294901760
    %5368 = vmatpush1.msra.mxu0 %v5367
    %5369 = vmatprep.subr.mxu0 0.0
    %v5370 = vand.u32 %v5079, 4294901760
    %5371 = vmatpush1.msra.mxu0 %v5370
    %5372 = vmatprep.subr.mxu0 0.0
    %v5373 = vand.u32 %v5080, 4294901760
    %5374 = vmatpush1.msra.mxu0 %v5373
    %5375 = vmatprep.subr.mxu0 0.0
    %v5376 = vand.u32 %v5081, 4294901760
    %5377 = vmatpush1.msra.mxu0 %v5376
    %5378 = vmatprep.subr.mxu0 0.0
    %5379 = vmatpush1.msra.mxu0 0.0
    %5380 = vmatprep.subr.mxu0 0.0
    %5381 = vmatpush1.msra.mxu0 0.0
    %5382 = vmatprep.subr.mxu0 0.0
    %5383 = vmatpush1.msra.mxu0 0.0
    %5384 = vmatprep.subr.mxu0 0.0
    %5385 = vmatpush1.msra.mxu0 0.0
    %5386 = vmatprep.subr.mxu0 0.0
    %5387 = vmatpush1.msra.mxu0 0.0
    %5388 = vmatprep.subr.mxu0 0.0
    %5389 = vmatpush1.msra.mxu0 0.0
    %5390 = vmatprep.subr.mxu0 0.0
    %5391 = vmatpush1.msra.mxu0 0.0
    %5392 = vmatprep.subr.mxu0 0.0
    %5393 = vmatpush1.msra.mxu0 0.0
    %5394 = vmatprep.subr.mxu0 0.0
    %5395 = vmatpush1.msra.mxu0 0.0
    %5396 = vmatprep.subr.mxu0 0.0
    %5397 = vmatpush1.msra.mxu0 0.0
    %5398 = vmatprep.subr.mxu0 0.0
    %5399 = vmatpush1.msra.mxu0 0.0
    %5400 = vmatprep.subr.mxu0 0.0
    %5401 = vmatpush1.msra.mxu0 0.0
    %5402 = vmatprep.subr.mxu0 0.0
    %5403 = vmatpush1.msra.mxu0 0.0
    %5404 = vmatprep.subr.mxu0 0.0
    %5405 = vmatpush1.msra.mxu0 0.0
    %5406 = vmatprep.subr.mxu0 0.0
    %5407 = vmatpush1.msra.mxu0 0.0
    %5408 = vmatprep.subr.mxu0 0.0
    %5409 = vmatpush1.msra.mxu0 0.0
    %5410 = vmatprep.subr.mxu0 0.0
    %5411 = vmatpush1.msra.mxu0 0.0
    %5412 = vmatprep.subr.mxu0 0.0
    %5413 = vmatpush1.msra.mxu0 0.0
    %5414 = vmatprep.subr.mxu0 0.0
    %5415 = vmatpush1.msra.mxu0 0.0
    %5416 = vmatprep.subr.mxu0 0.0
    %5417 = vmatpush1.msra.mxu0 0.0
    %5418 = vmatprep.subr.mxu0 0.0
    %5419 = vmatpush1.msra.mxu0 0.0
    %5420 = vmatprep.subr.mxu0 0.0
    %5421 = vmatpush1.msra.mxu0 0.0
    %5422 = vmatprep.subr.mxu0 0.0
    %5423 = vmatpush1.msra.mxu0 0.0
    %5424 = vmatprep.subr.mxu0 0.0
    %5425 = vmatpush1.msra.mxu0 0.0
    %5426 = vmatprep.subr.mxu0 0.0
    %5427 = vmatpush1.msra.mxu0 0.0
    %5428 = vmatprep.subr.mxu0 0.0
    %5429 = vmatpush1.msra.mxu0 0.0
    %5430 = vmatprep.subr.mxu0 0.0
    %5431 = vmatpush1.msra.mxu0 0.0
    %5432 = vmatprep.subr.mxu0 0.0
    %5433 = vmatpush1.msra.mxu0 0.0
    %5434 = vmatprep.mubr.f32.mxu0 0.0
    %v5435 = vand.u32 %v5088, 4294901760
    %v5436 = vsub.f32 %v5088, %v5435
    %v5437 = vand.u32 %v5436, 4294901760
    %5438 = vmatmul.mubr.f32.gmra.mrb[0].mxu0 %v5437
    %v5439 = vpop.f32.mrb[0].mxu0
    %v5440 = vadd.f32 %v5356, %v5439
    %v5441 = vpop.f32.mrb[0].mxu0
    %5442 = vmatprep.mubr.f32.mxu0 0.0
    %v5443 = vand.u32 %v5091, 4294901760
    %v5444 = vsub.f32 %v5091, %v5443
    %v5445 = vand.u32 %v5444, 4294901760
    %5446 = vmatmul.mubr.f32.gmra.mrb[0].mxu0 %v5445
    %v5447 = vpop.f32.mrb[0].mxu0
    %v5448 = vadd.f32 %v5363, %v5447
    %v5449 = vpop.f32.mrb[0].mxu0
    %5450 = vdwg.mxu0
    %5451 = vmatprep.subr.mxu0 0.0
    %v5452 = vand.u32 %v5078, 4294901760
    %v5453 = vsub.f32 %v5078, %v5452
    %v5454 = vand.u32 %v5453, 4294901760
    %5455 = vmatpush1.msra.mxu0 %v5454
    %5456 = vmatprep.subr.mxu0 0.0
    %v5457 = vand.u32 %v5079, 4294901760
    %v5458 = vsub.f32 %v5079, %v5457
    %v5459 = vand.u32 %v5458, 4294901760
    %5460 = vmatpush1.msra.mxu0 %v5459
    %5461 = vmatprep.subr.mxu0 0.0
    %v5462 = vand.u32 %v5080, 4294901760
    %v5463 = vsub.f32 %v5080, %v5462
    %v5464 = vand.u32 %v5463, 4294901760
    %5465 = vmatpush1.msra.mxu0 %v5464
    %5466 = vmatprep.subr.mxu0 0.0
    %v5467 = vand.u32 %v5081, 4294901760
    %v5468 = vsub.f32 %v5081, %v5467
    %v5469 = vand.u32 %v5468, 4294901760
    %5470 = vmatpush1.msra.mxu0 %v5469
    %5471 = vmatprep.subr.mxu0 0.0
    %5472 = vmatpush1.msra.mxu0 0.0
    %5473 = vmatprep.subr.mxu0 0.0
    %5474 = vmatpush1.msra.mxu0 0.0
    %5475 = vmatprep.subr.mxu0 0.0
    %5476 = vmatpush1.msra.mxu0 0.0
    %5477 = vmatprep.subr.mxu0 0.0
    %5478 = vmatpush1.msra.mxu0 0.0
    %5479 = vmatprep.subr.mxu0 0.0
    %5480 = vmatpush1.msra.mxu0 0.0
    %5481 = vmatprep.subr.mxu0 0.0
    %5482 = vmatpush1.msra.mxu0 0.0
    %5483 = vmatprep.subr.mxu0 0.0
    %5484 = vmatpush1.msra.mxu0 0.0
    %5485 = vmatprep.subr.mxu0 0.0
    %5486 = vmatpush1.msra.mxu0 0.0
    %5487 = vmatprep.subr.mxu0 0.0
    %5488 = vmatpush1.msra.mxu0 0.0
    %5489 = vmatprep.subr.mxu0 0.0
    %5490 = vmatpush1.msra.mxu0 0.0
    %5491 = vmatprep.subr.mxu0 0.0
    %5492 = vmatpush1.msra.mxu0 0.0
    %5493 = vmatprep.subr.mxu0 0.0
    %5494 = vmatpush1.msra.mxu0 0.0
    %5495 = vmatprep.subr.mxu0 0.0
    %5496 = vmatpush1.msra.mxu0 0.0
    %5497 = vmatprep.subr.mxu0 0.0
    %5498 = vmatpush1.msra.mxu0 0.0
    %5499 = vmatprep.subr.mxu0 0.0
    %5500 = vmatpush1.msra.mxu0 0.0
    %5501 = vmatprep.subr.mxu0 0.0
    %5502 = vmatpush1.msra.mxu0 0.0
    %5503 = vmatprep.subr.mxu0 0.0
    %5504 = vmatpush1.msra.mxu0 0.0
    %5505 = vmatprep.subr.mxu0 0.0
    %5506 = vmatpush1.msra.mxu0 0.0
    %5507 = vmatprep.subr.mxu0 0.0
    %5508 = vmatpush1.msra.mxu0 0.0
    %5509 = vmatprep.subr.mxu0 0.0
    %5510 = vmatpush1.msra.mxu0 0.0
    %5511 = vmatprep.subr.mxu0 0.0
    %5512 = vmatpush1.msra.mxu0 0.0
    %5513 = vmatprep.subr.mxu0 0.0
    %5514 = vmatpush1.msra.mxu0 0.0
    %5515 = vmatprep.subr.mxu0 0.0
    %5516 = vmatpush1.msra.mxu0 0.0
    %5517 = vmatprep.subr.mxu0 0.0
    %5518 = vmatpush1.msra.mxu0 0.0
    %5519 = vmatprep.subr.mxu0 0.0
    %5520 = vmatpush1.msra.mxu0 0.0
    %5521 = vmatprep.subr.mxu0 0.0
    %5522 = vmatpush1.msra.mxu0 0.0
    %5523 = vmatprep.subr.mxu0 0.0
    %5524 = vmatpush1.msra.mxu0 0.0
    %5525 = vmatprep.subr.mxu0 0.0
    %5526 = vmatpush1.msra.mxu0 0.0
    %5527 = vmatprep.mubr.f32.mxu0 0.0
    %v5528 = vand.u32 %v5088, 4294901760
    %5529 = vmatmul.mubr.f32.gmra.mrb[0].mxu0 %v5528
    %v5530 = vpop.f32.mrb[0].mxu0
    %v5531 = vadd.f32 %v5440, %v5530
    %v5532 = vpop.f32.mrb[0].mxu0
    %5533 = vmatprep.mubr.f32.mxu0 0.0
    %v5534 = vand.u32 %v5091, 4294901760
    %5535 = vmatmul.mubr.f32.gmra.mrb[0].mxu0 %v5534
    %v5536 = vpop.f32.mrb[0].mxu0
    %v5537 = vadd.f32 %v5448, %v5536
    %v5538 = vpop.f32.mrb[0].mxu0
    %5539 = vdwg.mxu0
    %5540 = vmatprep.subr.mxu0 0.0
    %v5541 = vand.u32 %v5078, 4294901760
    %5542 = vmatpush1.msra.mxu0 %v5541
    %5543 = vmatprep.subr.mxu0 0.0
    %v5544 = vand.u32 %v5079, 4294901760
    %5545 = vmatpush1.msra.mxu0 %v5544
    %5546 = vmatprep.subr.mxu0 0.0
    %v5547 = vand.u32 %v5080, 4294901760
    %5548 = vmatpush1.msra.mxu0 %v5547
    %5549 = vmatprep.subr.mxu0 0.0
    %v5550 = vand.u32 %v5081, 4294901760
    %5551 = vmatpush1.msra.mxu0 %v5550
    %5552 = vmatprep.subr.mxu0 0.0
    %5553 = vmatpush1.msra.mxu0 0.0
    %5554 = vmatprep.subr.mxu0 0.0
    %5555 = vmatpush1.msra.mxu0 0.0
    %5556 = vmatprep.subr.mxu0 0.0
    %5557 = vmatpush1.msra.mxu0 0.0
    %5558 = vmatprep.subr.mxu0 0.0
    %5559 = vmatpush1.msra.mxu0 0.0
    %5560 = vmatprep.subr.mxu0 0.0
    %5561 = vmatpush1.msra.mxu0 0.0
    %5562 = vmatprep.subr.mxu0 0.0
    %5563 = vmatpush1.msra.mxu0 0.0
    %5564 = vmatprep.subr.mxu0 0.0
    %5565 = vmatpush1.msra.mxu0 0.0
    %5566 = vmatprep.subr.mxu0 0.0
    %5567 = vmatpush1.msra.mxu0 0.0
    %5568 = vmatprep.subr.mxu0 0.0
    %5569 = vmatpush1.msra.mxu0 0.0
    %5570 = vmatprep.subr.mxu0 0.0
    %5571 = vmatpush1.msra.mxu0 0.0
    %5572 = vmatprep.subr.mxu0 0.0
    %5573 = vmatpush1.msra.mxu0 0.0
    %5574 = vmatprep.subr.mxu0 0.0
    %5575 = vmatpush1.msra.mxu0 0.0
    %5576 = vmatprep.subr.mxu0 0.0
    %5577 = vmatpush1.msra.mxu0 0.0
    %5578 = vmatprep.subr.mxu0 0.0
    %5579 = vmatpush1.msra.mxu0 0.0
    %5580 = vmatprep.subr.mxu0 0.0
    %5581 = vmatpush1.msra.mxu0 0.0
    %5582 = vmatprep.subr.mxu0 0.0
    %5583 = vmatpush1.msra.mxu0 0.0
    %5584 = vmatprep.subr.mxu0 0.0
    %5585 = vmatpush1.msra.mxu0 0.0
    %5586 = vmatprep.subr.mxu0 0.0
    %5587 = vmatpush1.msra.mxu0 0.0
    %5588 = vmatprep.subr.mxu0 0.0
    %5589 = vmatpush1.msra.mxu0 0.0
    %5590 = vmatprep.subr.mxu0 0.0
    %5591 = vmatpush1.msra.mxu0 0.0
    %5592 = vmatprep.subr.mxu0 0.0
    %5593 = vmatpush1.msra.mxu0 0.0
    %5594 = vmatprep.subr.mxu0 0.0
    %5595 = vmatpush1.msra.mxu0 0.0
    %5596 = vmatprep.subr.mxu0 0.0
    %5597 = vmatpush1.msra.mxu0 0.0
    %5598 = vmatprep.subr.mxu0 0.0
    %5599 = vmatpush1.msra.mxu0 0.0
    %5600 = vmatprep.subr.mxu0 0.0
    %5601 = vmatpush1.msra.mxu0 0.0
    %5602 = vmatprep.subr.mxu0 0.0
    %5603 = vmatpush1.msra.mxu0 0.0
    %5604 = vmatprep.subr.mxu0 0.0
    %5605 = vmatpush1.msra.mxu0 0.0
    %5606 = vmatprep.subr.mxu0 0.0
    %5607 = vmatpush1.msra.mxu0 0.0
    %5608 = vmatprep.mubr.f32.mxu0 0.0
    %v5609 = vand.u32 %v5088, 4294901760
    %5610 = vmatmul.mubr.f32.gmra.mrb[0].mxu0 %v5609
    %v5611 = vpop.f32.mrb[0].mxu0
    %v5612 = vadd.f32 %v5531, %v5611
    %v5613 = vpop.f32.mrb[0].mxu0
    %5614 = vmatprep.mubr.f32.mxu0 0.0
    %v5615 = vand.u32 %v5091, 4294901760
    %5616 = vmatmul.mubr.f32.gmra.mrb[0].mxu0 %v5615
    %v5617 = vpop.f32.mrb[0].mxu0
    %v5618 = vadd.f32 %v5537, %v5617
    %v5619 = vpop.f32.mrb[0].mxu0
    %5620 = vdwg.mxu0
    %v5621 = vmul.f32 %v5612, 0.5
    %v5622 = vmul.f32 %v5618, 0.5
    %v5623 = vmul.f32 %v5612, 0.044715
    %v5624 = vmul.f32 %v5618, 0.044715
    %v5625 = vmul.f32 %v5623, %v5612
    %v5626 = vmul.f32 %v5624, %v5618
    %v5627 = vmul.f32 %v5625, %v5612
    %v5628 = vmul.f32 %v5626, %v5618
    %v5629 = vadd.f32 %v5612, %v5627
    %v5630 = vadd.f32 %v5618, %v5628
    %v5631 = vmul.f32 %v5629, 0.7978846
    %v5632 = vmul.f32 %v5630, 0.7978846
    %v5633 = vtanh.pop %v5631
    %v5634 = vtanh.pop %v5632
    %v5635 = vadd.f32 %v5633, 1.0
    %v5636 = vadd.f32 %v5634, 1.0
    %v5637 = vmul.f32 %v5621, %v5635
    %v5638 = vmul.f32 %v5622, %v5636
    %v5639 = vld [vmem:[#allocation6 + $0x60] sm:$0xff]
    %v5640 = vld [vmem:[#allocation6 + $0x68] sm:$0xff]
    %v5641 = vld [vmem:[#allocation6 + $0x70] sm:$0xff]
    %v5642 = vld [vmem:[#allocation6 + $0x78] sm:$0xff]
    %v5643 = vld [vmem:[#allocation6 + $0x80] sm:$0xff]
    %v5644 = vld [vmem:[#allocation6 + $0x88] sm:$0xff]
    %v5645 = vld [vmem:[#allocation6 + $0x90] sm:$0xff]
    %v5646 = vld [vmem:[#allocation6 + $0x98] sm:$0xff]
    %v5647 = vld [vmem:[%s5 + $0x7] sm:$0x1]
    %v5648 = vlaneseq
    %v5649 = vshrl.u32 %v5648, 7
    %v5650 = vsub.s32 0, %v5649
    %v5651 = vrot.slane %v5647, %v5650
    %vm5652 = vcmask 523264
    %v5654 = vsel %vm5652, %v5637, 0
    %v5657 = vsel %vm5652, %v5638, 0
    %5659 = vmatprep.subr.mxu0 0.0
    %v5660 = vand.u32 %v5639, 4294901760
    %5661 = vmatpush1.msra.mxu0 %v5660
    %5662 = vmatprep.subr.mxu0 0.0
    %v5663 = vand.u32 %v5640, 4294901760
    %5664 = vmatpush1.msra.mxu0 %v5663
    %5665 = vmatprep.subr.mxu0 0.0
    %v5666 = vand.u32 %v5641, 4294901760
    %5667 = vmatpush1.msra.mxu0 %v5666
    %5668 = vmatprep.subr.mxu0 0.0
    %v5669 = vand.u32 %v5642, 4294901760
    %5670 = vmatpush1.msra.mxu0 %v5669
    %5671 = vmatprep.subr.mxu0 0.0
    %v5672 = vand.u32 %v5643, 4294901760
    %5673 = vmatpush1.msra.mxu0 %v5672
    %5674 = vmatprep.subr.mxu0 0.0
    %v5675 = vand.u32 %v5644, 4294901760
    %5676 = vmatpush1.msra.mxu0 %v5675
    %5677 = vmatprep.subr.mxu0 0.0
    %v5678 = vand.u32 %v5645, 4294901760
    %5679 = vmatpush1.msra.mxu0 %v5678
    %5680 = vmatprep.subr.mxu0 0.0
    %v5681 = vand.u32 %v5646, 4294901760
    %5682 = vmatpush1.msra.mxu0 %v5681
    %5683 = vmatprep.subr.mxu0 0.0
    %5684 = vmatpush1.msra.mxu0 0.0
    %5685 = vmatprep.subr.mxu0 0.0
    %5686 = vmatpush1.msra.mxu0 0.0
    %5687 = vmatprep.subr.mxu0 0.0
    %5688 = vmatpush1.msra.mxu0 0.0
    %5689 = vmatprep.subr.mxu0 0.0
    %5690 = vmatpush1.msra.mxu0 0.0
    %5691 = vmatprep.subr.mxu0 0.0
    %5692 = vmatpush1.msra.mxu0 0.0
    %5693 = vmatprep.subr.mxu0 0.0
    %5694 = vmatpush1.msra.mxu0 0.0
    %5695 = vmatprep.subr.mxu0 0.0
    %5696 = vmatpush1.msra.mxu0 0.0
    %5697 = vmatprep.subr.mxu0 0.0
    %5698 = vmatpush1.msra.mxu0 0.0
    %5699 = vmatprep.subr.mxu0 0.0
    %5700 = vmatpush1.msra.mxu0 0.0
    %5701 = vmatprep.subr.mxu0 0.0
    %5702 = vmatpush1.msra.mxu0 0.0
    %5703 = vmatprep.subr.mxu0 0.0
    %5704 = vmatpush1.msra.mxu0 0.0
    %5705 = vmatprep.subr.mxu0 0.0
    %5706 = vmatpush1.msra.mxu0 0.0
    %5707 = vmatprep.subr.mxu0 0.0
    %5708 = vmatpush1.msra.mxu0 0.0
    %5709 = vmatprep.subr.mxu0 0.0
    %5710 = vmatpush1.msra.mxu0 0.0
    %5711 = vmatprep.subr.mxu0 0.0
    %5712 = vmatpush1.msra.mxu0 0.0
    %5713 = vmatprep.subr.mxu0 0.0
    %5714 = vmatpush1.msra.mxu0 0.0
    %5715 = vmatprep.subr.mxu0 0.0
    %5716 = vmatpush1.msra.mxu0 0.0
    %5717 = vmatprep.subr.mxu0 0.0
    %5718 = vmatpush1.msra.mxu0 0.0
    %5719 = vmatprep.subr.mxu0 0.0
    %5720 = vmatpush1.msra.mxu0 0.0
    %5721 = vmatprep.subr.mxu0 0.0
    %5722 = vmatpush1.msra.mxu0 0.0
    %5723 = vmatprep.subr.mxu0 0.0
    %5724 = vmatpush1.msra.mxu0 0.0
    %5725 = vmatprep.subr.mxu0 0.0
    %5726 = vmatpush1.msra.mxu0 0.0
    %5727 = vmatprep.subr.mxu0 0.0
    %5728 = vmatpush1.msra.mxu0 0.0
    %5729 = vmatprep.subr.mxu0 0.0
    %5730 = vmatpush1.msra.mxu0 0.0
    %5731 = vmatprep.mubr.f32.mxu0 0.0
    %v5732 = vand.u32 %v5654, 4294901760
    %v5733 = vsub.f32 %v5654, %v5732
    %v5734 = vand.u32 %v5733, 4294901760
    %v5735 = vsub.f32 %v5733, %v5734
    %v5736 = vand.u32 %v5735, 4294901760
    %5737 = vmatmul.mubr.f32.gmra.mrb[0].mxu0 %v5736
    %v5738 = vpop.f32.mrb[0].mxu0
    %v5739 = vadd.f32 %v5651, %v5738
    %v5740 = vpop.f32.mrb[0].mxu0
    %5741 = vmatprep.mubr.f32.mxu0 0.0
    %v5742 = vand.u32 %v5657, 4294901760
    %v5743 = vsub.f32 %v5657, %v5742
    %v5744 = vand.u32 %v5743, 4294901760
    %v5745 = vsub.f32 %v5743, %v5744
    %v5746 = vand.u32 %v5745, 4294901760
    %5747 = vmatmul.mubr.f32.gmra.mrb[0].mxu0 %v5746
    %v5748 = vpop.f32.mrb[0].mxu0
    %v5749 = vadd.f32 %v5651, %v5748
    %v5750 = vpop.f32.mrb[0].mxu0
    %5751 = vdwg.mxu0
    %5752 = vmatprep.subr.mxu0 0.0
    %v5753 = vand.u32 %v5639, 4294901760
    %v5754 = vsub.f32 %v5639, %v5753
    %v5755 = vand.u32 %v5754, 4294901760
    %v5756 = vsub.f32 %v5754, %v5755
    %v5757 = vand.u32 %v5756, 4294901760
    %5758 = vmatpush1.msra.mxu0 %v5757
    %5759 = vmatprep.subr.mxu0 0.0
    %v5760 = vand.u32 %v5640, 4294901760
    %v5761 = vsub.f32 %v5640, %v5760
    %v5762 = vand.u32 %v5761, 4294901760
    %v5763 = vsub.f32 %v5761, %v5762
    %v5764 = vand.u32 %v5763, 4294901760
    %5765 = vmatpush1.msra.mxu0 %v5764
    %5766 = vmatprep.subr.mxu0 0.0
    %v5767 = vand.u32 %v5641, 4294901760
    %v5768 = vsub.f32 %v5641, %v5767
    %v5769 = vand.u32 %v5768, 4294901760
    %v5770 = vsub.f32 %v5768, %v5769
    %v5771 = vand.u32 %v5770, 4294901760
    %5772 = vmatpush1.msra.mxu0 %v5771
    %5773 = vmatprep.subr.mxu0 0.0
    %v5774 = vand.u32 %v5642, 4294901760
    %v5775 = vsub.f32 %v5642, %v5774
    %v5776 = vand.u32 %v5775, 4294901760
    %v5777 = vsub.f32 %v5775, %v5776
    %v5778 = vand.u32 %v5777, 4294901760
    %5779 = vmatpush1.msra.mxu0 %v5778
    %5780 = vmatprep.subr.mxu0 0.0
    %v5781 = vand.u32 %v5643, 4294901760
    %v5782 = vsub.f32 %v5643, %v5781
    %v5783 = vand.u32 %v5782, 4294901760
    %v5784 = vsub.f32 %v5782, %v5783
    %v5785 = vand.u32 %v5784, 4294901760
    %5786 = vmatpush1.msra.mxu0 %v5785
    %5787 = vmatprep.subr.mxu0 0.0
    %v5788 = vand.u32 %v5644, 4294901760
    %v5789 = vsub.f32 %v5644, %v5788
    %v5790 = vand.u32 %v5789, 4294901760
    %v5791 = vsub.f32 %v5789, %v5790
    %v5792 = vand.u32 %v5791, 4294901760
    %5793 = vmatpush1.msra.mxu0 %v5792
    %5794 = vmatprep.subr.mxu0 0.0
    %v5795 = vand.u32 %v5645, 4294901760
    %v5796 = vsub.f32 %v5645, %v5795
    %v5797 = vand.u32 %v5796, 4294901760
    %v5798 = vsub.f32 %v5796, %v5797
    %v5799 = vand.u32 %v5798, 4294901760
    %5800 = vmatpush1.msra.mxu0 %v5799
    %5801 = vmatprep.subr.mxu0 0.0
    %v5802 = vand.u32 %v5646, 4294901760
    %v5803 = vsub.f32 %v5646, %v5802
    %v5804 = vand.u32 %v5803, 4294901760
    %v5805 = vsub.f32 %v5803, %v5804
    %v5806 = vand.u32 %v5805, 4294901760
    %5807 = vmatpush1.msra.mxu0 %v5806
    %5808 = vmatprep.subr.mxu0 0.0
    %5809 = vmatpush1.msra.mxu0 0.0
    %5810 = vmatprep.subr.mxu0 0.0
    %5811 = vmatpush1.msra.mxu0 0.0
    %5812 = vmatprep.subr.mxu0 0.0
    %5813 = vmatpush1.msra.mxu0 0.0
    %5814 = vmatprep.subr.mxu0 0.0
    %5815 = vmatpush1.msra.mxu0 0.0
    %5816 = vmatprep.subr.mxu0 0.0
    %5817 = vmatpush1.msra.mxu0 0.0
    %5818 = vmatprep.subr.mxu0 0.0
    %5819 = vmatpush1.msra.mxu0 0.0
    %5820 = vmatprep.subr.mxu0 0.0
    %5821 = vmatpush1.msra.mxu0 0.0
    %5822 = vmatprep.subr.mxu0 0.0
    %5823 = vmatpush1.msra.mxu0 0.0
    %5824 = vmatprep.subr.mxu0 0.0
    %5825 = vmatpush1.msra.mxu0 0.0
    %5826 = vmatprep.subr.mxu0 0.0
    %5827 = vmatpush1.msra.mxu0 0.0
    %5828 = vmatprep.subr.mxu0 0.0
    %5829 = vmatpush1.msra.mxu0 0.0
    %5830 = vmatprep.subr.mxu0 0.0
    %5831 = vmatpush1.msra.mxu0 0.0
    %5832 = vmatprep.subr.mxu0 0.0
    %5833 = vmatpush1.msra.mxu0 0.0
    %5834 = vmatprep.subr.mxu0 0.0
    %5835 = vmatpush1.msra.mxu0 0.0
    %5836 = vmatprep.subr.mxu0 0.0
    %5837 = vmatpush1.msra.mxu0 0.0
    %5838 = vmatprep.subr.mxu0 0.0
    %5839 = vmatpush1.msra.mxu0 0.0
    %5840 = vmatprep.subr.mxu0 0.0
    %5841 = vmatpush1.msra.mxu0 0.0
    %5842 = vmatprep.subr.mxu0 0.0
    %5843 = vmatpush1.msra.mxu0 0.0
    %5844 = vmatprep.subr.mxu0 0.0
    %5845 = vmatpush1.msra.mxu0 0.0
    %5846 = vmatprep.subr.mxu0 0.0
    %5847 = vmatpush1.msra.mxu0 0.0
    %5848 = vmatprep.subr.mxu0 0.0
    %5849 = vmatpush1.msra.mxu0 0.0
    %5850 = vmatprep.subr.mxu0 0.0
    %5851 = vmatpush1.msra.mxu0 0.0
    %5852 = vmatprep.subr.mxu0 0.0
    %5853 = vmatpush1.msra.mxu0 0.0
    %5854 = vmatprep.subr.mxu0 0.0
    %5855 = vmatpush1.msra.mxu0 0.0
    %5856 = vmatprep.mubr.f32.mxu0 0.0
    %v5857 = vand.u32 %v5654, 4294901760
    %5858 = vmatmul.mubr.f32.gmra.mrb[0].mxu0 %v5857
    %v5859 = vpop.f32.mrb[0].mxu0
    %v5860 = vadd.f32 %v5739, %v5859
    %v5861 = vpop.f32.mrb[0].mxu0
    %5862 = vmatprep.mubr.f32.mxu0 0.0
    %v5863 = vand.u32 %v5657, 4294901760
    %5864 = vmatmul.mubr.f32.gmra.mrb[0].mxu0 %v5863
    %v5865 = vpop.f32.mrb[0].mxu0
    %v5866 = vadd.f32 %v5749, %v5865
    %v5867 = vpop.f32.mrb[0].mxu0
    %5868 = vdwg.mxu0
    %5869 = vmatprep.subr.mxu0 0.0
    %v5870 = vand.u32 %v5639, 4294901760
    %v5871 = vsub.f32 %v5639, %v5870
    %5872 = vmatpush1.msra.mxu0 %v5871
    %5873 = vmatprep.subr.mxu0 0.0
    %v5874 = vand.u32 %v5640, 4294901760
    %v5875 = vsub.f32 %v5640, %v5874
    %5876 = vmatpush1.msra.mxu0 %v5875
    %5877 = vmatprep.subr.mxu0 0.0
    %v5878 = vand.u32 %v5641, 4294901760
    %v5879 = vsub.f32 %v5641, %v5878
    %5880 = vmatpush1.msra.mxu0 %v5879
    %5881 = vmatprep.subr.mxu0 0.0
    %v5882 = vand.u32 %v5642, 4294901760
    %v5883 = vsub.f32 %v5642, %v5882
    %5884 = vmatpush1.msra.mxu0 %v5883
    %5885 = vmatprep.subr.mxu0 0.0
    %v5886 = vand.u32 %v5643, 4294901760
    %v5887 = vsub.f32 %v5643, %v5886
    %5888 = vmatpush1.msra.mxu0 %v5887
    %5889 = vmatprep.subr.mxu0 0.0
    %v5890 = vand.u32 %v5644, 4294901760
    %v5891 = vsub.f32 %v5644, %v5890
    %5892 = vmatpush1.msra.mxu0 %v5891
    %5893 = vmatprep.subr.mxu0 0.0
    %v5894 = vand.u32 %v5645, 4294901760
    %v5895 = vsub.f32 %v5645, %v5894
    %5896 = vmatpush1.msra.mxu0 %v5895
    %5897 = vmatprep.subr.mxu0 0.0
    %v5898 = vand.u32 %v5646, 4294901760
    %v5899 = vsub.f32 %v5646, %v5898
    %5900 = vmatpush1.msra.mxu0 %v5899
    %5901 = vmatprep.subr.mxu0 0.0
    %5902 = vmatpush1.msra.mxu0 0.0
    %5903 = vmatprep.subr.mxu0 0.0
    %5904 = vmatpush1.msra.mxu0 0.0
    %5905 = vmatprep.subr.mxu0 0.0
    %5906 = vmatpush1.msra.mxu0 0.0
    %5907 = vmatprep.subr.mxu0 0.0
    %5908 = vmatpush1.msra.mxu0 0.0
    %5909 = vmatprep.subr.mxu0 0.0
    %5910 = vmatpush1.msra.mxu0 0.0
    %5911 = vmatprep.subr.mxu0 0.0
    %5912 = vmatpush1.msra.mxu0 0.0
    %5913 = vmatprep.subr.mxu0 0.0
    %5914 = vmatpush1.msra.mxu0 0.0
    %5915 = vmatprep.subr.mxu0 0.0
    %5916 = vmatpush1.msra.mxu0 0.0
    %5917 = vmatprep.subr.mxu0 0.0
    %5918 = vmatpush1.msra.mxu0 0.0
    %5919 = vmatprep.subr.mxu0 0.0
    %5920 = vmatpush1.msra.mxu0 0.0
    %5921 = vmatprep.subr.mxu0 0.0
    %5922 = vmatpush1.msra.mxu0 0.0
    %5923 = vmatprep.subr.mxu0 0.0
    %5924 = vmatpush1.msra.mxu0 0.0
    %5925 = vmatprep.subr.mxu0 0.0
    %5926 = vmatpush1.msra.mxu0 0.0
    %5927 = vmatprep.subr.mxu0 0.0
    %5928 = vmatpush1.msra.mxu0 0.0
    %5929 = vmatprep.subr.mxu0 0.0
    %5930 = vmatpush1.msra.mxu0 0.0
    %5931 = vmatprep.subr.mxu0 0.0
    %5932 = vmatpush1.msra.mxu0 0.0
    %5933 = vmatprep.subr.mxu0 0.0
    %5934 = vmatpush1.msra.mxu0 0.0
    %5935 = vmatprep.subr.mxu0 0.0
    %5936 = vmatpush1.msra.mxu0 0.0
    %5937 = vmatprep.subr.mxu0 0.0
    %5938 = vmatpush1.msra.mxu0 0.0
    %5939 = vmatprep.subr.mxu0 0.0
    %5940 = vmatpush1.msra.mxu0 0.0
    %5941 = vmatprep.subr.mxu0 0.0
    %5942 = vmatpush1.msra.mxu0 0.0
    %5943 = vmatprep.subr.mxu0 0.0
    %5944 = vmatpush1.msra.mxu0 0.0
    %5945 = vmatprep.subr.mxu0 0.0
    %5946 = vmatpush1.msra.mxu0 0.0
    %5947 = vmatprep.subr.mxu0 0.0
    %5948 = vmatpush1.msra.mxu0 0.0
    %5949 = vmatprep.mubr.f32.mxu0 0.0
    %v5950 = vand.u32 %v5654, 4294901760
    %v5951 = vsub.f32 %v5654, %v5950
    %5952 = vmatmul.mubr.f32.gmra.mrb[0].mxu0 %v5951
    %v5953 = vpop.f32.mrb[0].mxu0
    %v5954 = vadd.f32 %v5860, %v5953
    %v5955 = vpop.f32.mrb[0].mxu0
    %5956 = vmatprep.mubr.f32.mxu0 0.0
    %v5957 = vand.u32 %v5657, 4294901760
    %v5958 = vsub.f32 %v5657, %v5957
    %5959 = vmatmul.mubr.f32.gmra.mrb[0].mxu0 %v5958
    %v5960 = vpop.f32.mrb[0].mxu0
    %v5961 = vadd.f32 %v5866, %v5960
    %v5962 = vpop.f32.mrb[0].mxu0
    %5963 = vdwg.mxu0
    %5964 = vmatprep.subr.mxu0 0.0
    %v5965 = vand.u32 %v5639, 4294901760
    %5966 = vmatpush1.msra.mxu0 %v5965
    %5967 = vmatprep.subr.mxu0 0.0
    %v5968 = vand.u32 %v5640, 4294901760
    %5969 = vmatpush1.msra.mxu0 %v5968
    %5970 = vmatprep.subr.mxu0 0.0
    %v5971 = vand.u32 %v5641, 4294901760
    %5972 = vmatpush1.msra.mxu0 %v5971
    %5973 = vmatprep.subr.mxu0 0.0
    %v5974 = vand.u32 %v5642, 4294901760
    %5975 = vmatpush1.msra.mxu0 %v5974
    %5976 = vmatprep.subr.mxu0 0.0
    %v5977 = vand.u32 %v5643, 4294901760
    %5978 = vmatpush1.msra.mxu0 %v5977
    %5979 = vmatprep.subr.mxu0 0.0
    %v5980 = vand.u32 %v5644, 4294901760
    %5981 = vmatpush1.msra.mxu0 %v5980
    %5982 = vmatprep.subr.mxu0 0.0
    %v5983 = vand.u32 %v5645, 4294901760
    %5984 = vmatpush1.msra.mxu0 %v5983
    %5985 = vmatprep.subr.mxu0 0.0
    %v5986 = vand.u32 %v5646, 4294901760
    %5987 = vmatpush1.msra.mxu0 %v5986
    %5988 = vmatprep.subr.mxu0 0.0
    %5989 = vmatpush1.msra.mxu0 0.0
    %5990 = vmatprep.subr.mxu0 0.0
    %5991 = vmatpush1.msra.mxu0 0.0
    %5992 = vmatprep.subr.mxu0 0.0
    %5993 = vmatpush1.msra.mxu0 0.0
    %5994 = vmatprep.subr.mxu0 0.0
    %5995 = vmatpush1.msra.mxu0 0.0
    %5996 = vmatprep.subr.mxu0 0.0
    %5997 = vmatpush1.msra.mxu0 0.0
    %5998 = vmatprep.subr.mxu0 0.0
    %5999 = vmatpush1.msra.mxu0 0.0
    %6000 = vmatprep.subr.mxu0 0.0
    %6001 = vmatpush1.msra.mxu0 0.0
    %6002 = vmatprep.subr.mxu0 0.0
    %6003 = vmatpush1.msra.mxu0 0.0
    %6004 = vmatprep.subr.mxu0 0.0
    %6005 = vmatpush1.msra.mxu0 0.0
    %6006 = vmatprep.subr.mxu0 0.0
    %6007 = vmatpush1.msra.mxu0 0.0
    %6008 = vmatprep.subr.mxu0 0.0
    %6009 = vmatpush1.msra.mxu0 0.0
    %6010 = vmatprep.subr.mxu0 0.0
    %6011 = vmatpush1.msra.mxu0 0.0
    %6012 = vmatprep.subr.mxu0 0.0
    %6013 = vmatpush1.msra.mxu0 0.0
    %6014 = vmatprep.subr.mxu0 0.0
    %6015 = vmatpush1.msra.mxu0 0.0
    %6016 = vmatprep.subr.mxu0 0.0
    %6017 = vmatpush1.msra.mxu0 0.0
    %6018 = vmatprep.subr.mxu0 0.0
    %6019 = vmatpush1.msra.mxu0 0.0
    %6020 = vmatprep.subr.mxu0 0.0
    %6021 = vmatpush1.msra.mxu0 0.0
    %6022 = vmatprep.subr.mxu0 0.0
    %6023 = vmatpush1.msra.mxu0 0.0
    %6024 = vmatprep.subr.mxu0 0.0
    %6025 = vmatpush1.msra.mxu0 0.0
    %6026 = vmatprep.subr.mxu0 0.0
    %6027 = vmatpush1.msra.mxu0 0.0
    %6028 = vmatprep.subr.mxu0 0.0
    %6029 = vmatpush1.msra.mxu0 0.0
    %6030 = vmatprep.subr.mxu0 0.0
    %6031 = vmatpush1.msra.mxu0 0.0
    %6032 = vmatprep.subr.mxu0 0.0
    %6033 = vmatpush1.msra.mxu0 0.0
    %6034 = vmatprep.subr.mxu0 0.0
    %6035 = vmatpush1.msra.mxu0 0.0
    %6036 = vmatprep.mubr.f32.mxu0 0.0
    %v6037 = vand.u32 %v5654, 4294901760
    %v6038 = vsub.f32 %v5654, %v6037
    %v6039 = vand.u32 %v6038, 4294901760
    %6040 = vmatmul.mubr.f32.gmra.mrb[0].mxu0 %v6039
    %v6041 = vpop.f32.mrb[0].mxu0
    %v6042 = vadd.f32 %v5954, %v6041
    %v6043 = vpop.f32.mrb[0].mxu0
    %6044 = vmatprep.mubr.f32.mxu0 0.0
    %v6045 = vand.u32 %v5657, 4294901760
    %v6046 = vsub.f32 %v5657, %v6045
    %v6047 = vand.u32 %v6046, 4294901760
    %6048 = vmatmul.mubr.f32.gmra.mrb[0].mxu0 %v6047
    %v6049 = vpop.f32.mrb[0].mxu0
    %v6050 = vadd.f32 %v5961, %v6049
    %v6051 = vpop.f32.mrb[0].mxu0
    %6052 = vdwg.mxu0
    %6053 = vmatprep.subr.mxu0 0.0
    %v6054 = vand.u32 %v5639, 4294901760
    %v6055 = vsub.f32 %v5639, %v6054
    %v6056 = vand.u32 %v6055, 4294901760
    %6057 = vmatpush1.msra.mxu0 %v6056
    %6058 = vmatprep.subr.mxu0 0.0
    %v6059 = vand.u32 %v5640, 4294901760
    %v6060 = vsub.f32 %v5640, %v6059
    %v6061 = vand.u32 %v6060, 4294901760
    %6062 = vmatpush1.msra.mxu0 %v6061
    %6063 = vmatprep.subr.mxu0 0.0
    %v6064 = vand.u32 %v5641, 4294901760
    %v6065 = vsub.f32 %v5641, %v6064
    %v6066 = vand.u32 %v6065, 4294901760
    %6067 = vmatpush1.msra.mxu0 %v6066
    %6068 = vmatprep.subr.mxu0 0.0
    %v6069 = vand.u32 %v5642, 4294901760
    %v6070 = vsub.f32 %v5642, %v6069
    %v6071 = vand.u32 %v6070, 4294901760
    %6072 = vmatpush1.msra.mxu0 %v6071
    %6073 = vmatprep.subr.mxu0 0.0
    %v6074 = vand.u32 %v5643, 4294901760
    %v6075 = vsub.f32 %v5643, %v6074
    %v6076 = vand.u32 %v6075, 4294901760
    %6077 = vmatpush1.msra.mxu0 %v6076
    %6078 = vmatprep.subr.mxu0 0.0
    %v6079 = vand.u32 %v5644, 4294901760
    %v6080 = vsub.f32 %v5644, %v6079
    %v6081 = vand.u32 %v6080, 4294901760
    %6082 = vmatpush1.msra.mxu0 %v6081
    %6083 = vmatprep.subr.mxu0 0.0
    %v6084 = vand.u32 %v5645, 4294901760
    %v6085 = vsub.f32 %v5645, %v6084
    %v6086 = vand.u32 %v6085, 4294901760
    %6087 = vmatpush1.msra.mxu0 %v6086
    %6088 = vmatprep.subr.mxu0 0.0
    %v6089 = vand.u32 %v5646, 4294901760
    %v6090 = vsub.f32 %v5646, %v6089
    %v6091 = vand.u32 %v6090, 4294901760
    %6092 = vmatpush1.msra.mxu0 %v6091
    %6093 = vmatprep.subr.mxu0 0.0
    %6094 = vmatpush1.msra.mxu0 0.0
    %6095 = vmatprep.subr.mxu0 0.0
    %6096 = vmatpush1.msra.mxu0 0.0
    %6097 = vmatprep.subr.mxu0 0.0
    %6098 = vmatpush1.msra.mxu0 0.0
    %6099 = vmatprep.subr.mxu0 0.0
    %6100 = vmatpush1.msra.mxu0 0.0
    %6101 = vmatprep.subr.mxu0 0.0
    %6102 = vmatpush1.msra.mxu0 0.0
    %6103 = vmatprep.subr.mxu0 0.0
    %6104 = vmatpush1.msra.mxu0 0.0
    %6105 = vmatprep.subr.mxu0 0.0
    %6106 = vmatpush1.msra.mxu0 0.0
    %6107 = vmatprep.subr.mxu0 0.0
    %6108 = vmatpush1.msra.mxu0 0.0
    %6109 = vmatprep.subr.mxu0 0.0
    %6110 = vmatpush1.msra.mxu0 0.0
    %6111 = vmatprep.subr.mxu0 0.0
    %6112 = vmatpush1.msra.mxu0 0.0
    %6113 = vmatprep.subr.mxu0 0.0
    %6114 = vmatpush1.msra.mxu0 0.0
    %6115 = vmatprep.subr.mxu0 0.0
    %6116 = vmatpush1.msra.mxu0 0.0
    %6117 = vmatprep.subr.mxu0 0.0
    %6118 = vmatpush1.msra.mxu0 0.0
    %6119 = vmatprep.subr.mxu0 0.0
    %6120 = vmatpush1.msra.mxu0 0.0
    %6121 = vmatprep.subr.mxu0 0.0
    %6122 = vmatpush1.msra.mxu0 0.0
    %6123 = vmatprep.subr.mxu0 0.0
    %6124 = vmatpush1.msra.mxu0 0.0
    %6125 = vmatprep.subr.mxu0 0.0
    %6126 = vmatpush1.msra.mxu0 0.0
    %6127 = vmatprep.subr.mxu0 0.0
    %6128 = vmatpush1.msra.mxu0 0.0
    %6129 = vmatprep.subr.mxu0 0.0
    %6130 = vmatpush1.msra.mxu0 0.0
    %6131 = vmatprep.subr.mxu0 0.0
    %6132 = vmatpush1.msra.mxu0 0.0
    %6133 = vmatprep.subr.mxu0 0.0
    %6134 = vmatpush1.msra.mxu0 0.0
    %6135 = vmatprep.subr.mxu0 0.0
    %6136 = vmatpush1.msra.mxu0 0.0
    %6137 = vmatprep.subr.mxu0 0.0
    %6138 = vmatpush1.msra.mxu0 0.0
    %6139 = vmatprep.subr.mxu0 0.0
    %6140 = vmatpush1.msra.mxu0 0.0
    %6141 = vmatprep.mubr.f32.mxu0 0.0
    %v6142 = vand.u32 %v5654, 4294901760
    %6143 = vmatmul.mubr.f32.gmra.mrb[0].mxu0 %v6142
    %v6144 = vpop.f32.mrb[0].mxu0
    %v6145 = vadd.f32 %v6042, %v6144
    %v6146 = vpop.f32.mrb[0].mxu0
    %6147 = vmatprep.mubr.f32.mxu0 0.0
    %v6148 = vand.u32 %v5657, 4294901760
    %6149 = vmatmul.mubr.f32.gmra.mrb[0].mxu0 %v6148
    %v6150 = vpop.f32.mrb[0].mxu0
    %v6151 = vadd.f32 %v6050, %v6150
    %v6152 = vpop.f32.mrb[0].mxu0
    %6153 = vdwg.mxu0
    %6154 = vmatprep.subr.mxu0 0.0
    %v6155 = vand.u32 %v5639, 4294901760
    %6156 = vmatpush1.msra.mxu0 %v6155
    %6157 = vmatprep.subr.mxu0 0.0
    %v6158 = vand.u32 %v5640, 4294901760
    %6159 = vmatpush1.msra.mxu0 %v6158
    %6160 = vmatprep.subr.mxu0 0.0
    %v6161 = vand.u32 %v5641, 4294901760
    %6162 = vmatpush1.msra.mxu0 %v6161
    %6163 = vmatprep.subr.mxu0 0.0
    %v6164 = vand.u32 %v5642, 4294901760
    %6165 = vmatpush1.msra.mxu0 %v6164
    %6166 = vmatprep.subr.mxu0 0.0
    %v6167 = vand.u32 %v5643, 4294901760
    %6168 = vmatpush1.msra.mxu0 %v6167
    %6169 = vmatprep.subr.mxu0 0.0
    %v6170 = vand.u32 %v5644, 4294901760
    %6171 = vmatpush1.msra.mxu0 %v6170
    %6172 = vmatprep.subr.mxu0 0.0
    %v6173 = vand.u32 %v5645, 4294901760
    %6174 = vmatpush1.msra.mxu0 %v6173
    %6175 = vmatprep.subr.mxu0 0.0
    %v6176 = vand.u32 %v5646, 4294901760
    %6177 = vmatpush1.msra.mxu0 %v6176
    %6178 = vmatprep.subr.mxu0 0.0
    %6179 = vmatpush1.msra.mxu0 0.0
    %6180 = vmatprep.subr.mxu0 0.0
    %6181 = vmatpush1.msra.mxu0 0.0
    %6182 = vmatprep.subr.mxu0 0.0
    %6183 = vmatpush1.msra.mxu0 0.0
    %6184 = vmatprep.subr.mxu0 0.0
    %6185 = vmatpush1.msra.mxu0 0.0
    %6186 = vmatprep.subr.mxu0 0.0
    %6187 = vmatpush1.msra.mxu0 0.0
    %6188 = vmatprep.subr.mxu0 0.0
    %6189 = vmatpush1.msra.mxu0 0.0
    %6190 = vmatprep.subr.mxu0 0.0
    %6191 = vmatpush1.msra.mxu0 0.0
    %6192 = vmatprep.subr.mxu0 0.0
    %6193 = vmatpush1.msra.mxu0 0.0
    %6194 = vmatprep.subr.mxu0 0.0
    %6195 = vmatpush1.msra.mxu0 0.0
    %6196 = vmatprep.subr.mxu0 0.0
    %6197 = vmatpush1.msra.mxu0 0.0
    %6198 = vmatprep.subr.mxu0 0.0
    %6199 = vmatpush1.msra.mxu0 0.0
    %6200 = vmatprep.subr.mxu0 0.0
    %6201 = vmatpush1.msra.mxu0 0.0
    %6202 = vmatprep.subr.mxu0 0.0
    %6203 = vmatpush1.msra.mxu0 0.0
    %6204 = vmatprep.subr.mxu0 0.0
    %6205 = vmatpush1.msra.mxu0 0.0
    %6206 = vmatprep.subr.mxu0 0.0
    %6207 = vmatpush1.msra.mxu0 0.0
    %6208 = vmatprep.subr.mxu0 0.0
    %6209 = vmatpush1.msra.mxu0 0.0
    %6210 = vmatprep.subr.mxu0 0.0
    %6211 = vmatpush1.msra.mxu0 0.0
    %6212 = vmatprep.subr.mxu0 0.0
    %6213 = vmatpush1.msra.mxu0 0.0
    %6214 = vmatprep.subr.mxu0 0.0
    %6215 = vmatpush1.msra.mxu0 0.0
    %6216 = vmatprep.subr.mxu0 0.0
    %6217 = vmatpush1.msra.mxu0 0.0
    %6218 = vmatprep.subr.mxu0 0.0
    %6219 = vmatpush1.msra.mxu0 0.0
    %6220 = vmatprep.subr.mxu0 0.0
    %6221 = vmatpush1.msra.mxu0 0.0
    %6222 = vmatprep.subr.mxu0 0.0
    %6223 = vmatpush1.msra.mxu0 0.0
    %6224 = vmatprep.subr.mxu0 0.0
    %6225 = vmatpush1.msra.mxu0 0.0
    %6226 = vmatprep.mubr.f32.mxu0 0.0
    %v6227 = vand.u32 %v5654, 4294901760
    %6228 = vmatmul.mubr.f32.gmra.mrb[0].mxu0 %v6227
    %v6229 = vpop.f32.mrb[0].mxu0
    %v6230 = vadd.f32 %v6145, %v6229
    %v6231 = vpop.f32.mrb[0].mxu0
    %6232 = vmatprep.mubr.f32.mxu0 0.0
    %v6233 = vand.u32 %v5657, 4294901760
    %6234 = vmatmul.mubr.f32.gmra.mrb[0].mxu0 %v6233
    %v6235 = vpop.f32.mrb[0].mxu0
    %v6236 = vadd.f32 %v6151, %v6235
    %v6237 = vpop.f32.mrb[0].mxu0
    %6238 = vdwg.mxu0
    %v6239 = vadd.f32 %v5076, %v6230
    %v6240 = vadd.f32 %v5077, %v6236
    %v6241 = vsel %vm186, %v6239, 0.0
    %6242 = vadd.xlane.f32.xlu0 %v6241
    %v6243 = vpop.xlane.xlu0 %6242
    %v6244 = vsel %vm186, %v6240, 0.0
    %6245 = vadd.xlane.f32.xlu0 %v6244
    %v6246 = vpop.xlane.xlu0 %6245
    %v6247 = vmul.f32 %v6243, %v193
    %v6248 = vmul.f32 %v6246, %v193
    %v6249 = vsub.f32 %v6239, %v6247
    %v6250 = vsub.f32 %v6240, %v6248
    %v6251 = vmul.f32 %v6249, %v6249
    %v6252 = vmul.f32 %v6250, %v6250
    %v6253 = vsel %vm186, %v6251, 0.0
    %6254 = vadd.xlane.f32.xlu0 %v6253
    %v6255 = vpop.xlane.xlu0 %6254
    %v6256 = vsel %vm186, %v6252, 0.0
    %6257 = vadd.xlane.f32.xlu0 %v6256
    %v6258 = vpop.xlane.xlu0 %6257
    %v6259 = vmul.f32 %v6255, %v193
    %v6260 = vmul.f32 %v6258, %v193
    %v6261 = vadd.f32 %v6259, 1e-12
    %v6262 = vadd.f32 %v6260, 1e-12
    %v6263 = vrsqrt.pop %v6261
    %v6264 = vrsqrt.pop %v6262
    %v6265 = vmul.f32 %v6249, %v6263
    %v6266 = vmul.f32 %v6250, %v6264
    %v6267 = vld [vmem:[%s5 + $0x8] sm:$0x1]
    %v6268 = vlaneseq
    %v6269 = vshrl.u32 %v6268, 7
    %v6270 = vsub.s32 0, %v6269
    %v6271 = vrot.slane %v6267, %v6270
    %v6272 = vmul.f32 %v6265, %v6271
    %v6273 = vmul.f32 %v6266, %v6271
    %v6274 = vld [vmem:[%s5 + $0x9] sm:$0x1]
    %v6275 = vlaneseq
    %v6276 = vshrl.u32 %v6275, 7
    %v6277 = vsub.s32 0, %v6276
    %v6278 = vrot.slane %v6274, %v6277
    %v6279 = vadd.f32 %v6272, %v6278
    %v6280 = vadd.f32 %v6273, %v6278
    %v6281 = vld [vmem:[#allocation6 + $0xa0] sm:$0xff]
    %v6282 = vld [vmem:[#allocation6 + $0xa8] sm:$0xff]
    %v6283 = vld [vmem:[#allocation6 + $0xb0] sm:$0xff]
    %v6284 = vld [vmem:[#allocation6 + $0xb8] sm:$0xff]
    %v6285 = vld [vmem:[%s5 + $0xa] sm:$0x1]
    %v6286 = vlaneseq
    %v6287 = vshrl.u32 %v6286, 7
    %v6288 = vsub.s32 0, %v6287
    %v6289 = vrot.slane %v6285, %v6288
    %v6292 = vrot.slane %v6280, 7
    %vm6293 = vcmask 1041409
    %v6294 = vsel %vm6293, %v6292, %v6279
    %v6295 = vsel %vm186, %v6294, 0
    %6297 = vmatprep.subr.mxu0 0.0
    %v6298 = vand.u32 %v6281, 4294901760
    %6299 = vmatpush1.msra.mxu0 %v6298
    %6300 = vmatprep.subr.mxu0 0.0
    %v6301 = vand.u32 %v6282, 4294901760
    %6302 = vmatpush1.msra.mxu0 %v6301
    %6303 = vmatprep.subr.mxu0 0.0
    %v6304 = vand.u32 %v6283, 4294901760
    %6305 = vmatpush1.msra.mxu0 %v6304
    %6306 = vmatprep.subr.mxu0 0.0
    %v6307 = vand.u32 %v6284, 4294901760
    %6308 = vmatpush1.msra.mxu0 %v6307
    %6309 = vmatprep.subr.mxu0 0.0
    %6310 = vmatpush1.msra.mxu0 0.0
    %6311 = vmatprep.subr.mxu0 0.0
    %6312 = vmatpush1.msra.mxu0 0.0
    %6313 = vmatprep.subr.mxu0 0.0
    %6314 = vmatpush1.msra.mxu0 0.0
    %6315 = vmatprep.subr.mxu0 0.0
    %6316 = vmatpush1.msra.mxu0 0.0
    %6317 = vmatprep.subr.mxu0 0.0
    %6318 = vmatpush1.msra.mxu0 0.0
    %6319 = vmatprep.subr.mxu0 0.0
    %6320 = vmatpush1.msra.mxu0 0.0
    %6321 = vmatprep.subr.mxu0 0.0
    %6322 = vmatpush1.msra.mxu0 0.0
    %6323 = vmatprep.subr.mxu0 0.0
    %6324 = vmatpush1.msra.mxu0 0.0
    %6325 = vmatprep.subr.mxu0 0.0
    %6326 = vmatpush1.msra.mxu0 0.0
    %6327 = vmatprep.subr.mxu0 0.0
    %6328 = vmatpush1.msra.mxu0 0.0
    %6329 = vmatprep.subr.mxu0 0.0
    %6330 = vmatpush1.msra.mxu0 0.0
    %6331 = vmatprep.subr.mxu0 0.0
    %6332 = vmatpush1.msra.mxu0 0.0
    %6333 = vmatprep.subr.mxu0 0.0
    %6334 = vmatpush1.msra.mxu0 0.0
    %6335 = vmatprep.subr.mxu0 0.0
    %6336 = vmatpush1.msra.mxu0 0.0
    %6337 = vmatprep.subr.mxu0 0.0
    %6338 = vmatpush1.msra.mxu0 0.0
    %6339 = vmatprep.subr.mxu0 0.0
    %6340 = vmatpush1.msra.mxu0 0.0
    %6341 = vmatprep.subr.mxu0 0.0
    %6342 = vmatpush1.msra.mxu0 0.0
    %6343 = vmatprep.subr.mxu0 0.0
    %6344 = vmatpush1.msra.mxu0 0.0
    %6345 = vmatprep.subr.mxu0 0.0
    %6346 = vmatpush1.msra.mxu0 0.0
    %6347 = vmatprep.subr.mxu0 0.0
    %6348 = vmatpush1.msra.mxu0 0.0
    %6349 = vmatprep.subr.mxu0 0.0
    %6350 = vmatpush1.msra.mxu0 0.0
    %6351 = vmatprep.subr.mxu0 0.0
    %6352 = vmatpush1.msra.mxu0 0.0
    %6353 = vmatprep.subr.mxu0 0.0
    %6354 = vmatpush1.msra.mxu0 0.0
    %6355 = vmatprep.subr.mxu0 0.0
    %6356 = vmatpush1.msra.mxu0 0.0
    %6357 = vmatprep.subr.mxu0 0.0
    %6358 = vmatpush1.msra.mxu0 0.0
    %6359 = vmatprep.subr.mxu0 0.0
    %6360 = vmatpush1.msra.mxu0 0.0
    %6361 = vmatprep.subr.mxu0 0.0
    %6362 = vmatpush1.msra.mxu0 0.0
    %6363 = vmatprep.subr.mxu0 0.0
    %6364 = vmatpush1.msra.mxu0 0.0
    %6365 = vmatprep.mubr.f32.mxu0 0.0
    %v6366 = vand.u32 %v6295, 4294901760
    %v6367 = vsub.f32 %v6295, %v6366
    %v6368 = vand.u32 %v6367, 4294901760
    %v6369 = vsub.f32 %v6367, %v6368
    %v6370 = vand.u32 %v6369, 4294901760
    %6371 = vmatmul.mubr.f32.gmra.mrb[0].mxu0 %v6370
    %v6372 = vpop.f32.mrb[0].mxu0
    %v6373 = vadd.f32 %v6289, %v6372
    %v6374 = vpop.f32.mrb[0].mxu0
    %6375 = vdwg.mxu0
    %6376 = vmatprep.subr.mxu0 0.0
    %v6377 = vand.u32 %v6281, 4294901760
    %v6378 = vsub.f32 %v6281, %v6377
    %v6379 = vand.u32 %v6378, 4294901760
    %v6380 = vsub.f32 %v6378, %v6379
    %v6381 = vand.u32 %v6380, 4294901760
    %6382 = vmatpush1.msra.mxu0 %v6381
    %6383 = vmatprep.subr.mxu0 0.0
    %v6384 = vand.u32 %v6282, 4294901760
    %v6385 = vsub.f32 %v6282, %v6384
    %v6386 = vand.u32 %v6385, 4294901760
    %v6387 = vsub.f32 %v6385, %v6386
    %v6388 = vand.u32 %v6387, 4294901760
    %6389 = vmatpush1.msra.mxu0 %v6388
    %6390 = vmatprep.subr.mxu0 0.0
    %v6391 = vand.u32 %v6283, 4294901760
    %v6392 = vsub.f32 %v6283, %v6391
    %v6393 = vand.u32 %v6392, 4294901760
    %v6394 = vsub.f32 %v6392, %v6393
    %v6395 = vand.u32 %v6394, 4294901760
    %6396 = vmatpush1.msra.mxu0 %v6395
    %6397 = vmatprep.subr.mxu0 0.0
    %v6398 = vand.u32 %v6284, 4294901760
    %v6399 = vsub.f32 %v6284, %v6398
    %v6400 = vand.u32 %v6399, 4294901760
    %v6401 = vsub.f32 %v6399, %v6400
    %v6402 = vand.u32 %v6401, 4294901760
    %6403 = vmatpush1.msra.mxu0 %v6402
    %6404 = vmatprep.subr.mxu0 0.0
    %6405 = vmatpush1.msra.mxu0 0.0
    %6406 = vmatprep.subr.mxu0 0.0
    %6407 = vmatpush1.msra.mxu0 0.0
    %6408 = vmatprep.subr.mxu0 0.0
    %6409 = vmatpush1.msra.mxu0 0.0
    %6410 = vmatprep.subr.mxu0 0.0
    %6411 = vmatpush1.msra.mxu0 0.0
    %6412 = vmatprep.subr.mxu0 0.0
    %6413 = vmatpush1.msra.mxu0 0.0
    %6414 = vmatprep.subr.mxu0 0.0
    %6415 = vmatpush1.msra.mxu0 0.0
    %6416 = vmatprep.subr.mxu0 0.0
    %6417 = vmatpush1.msra.mxu0 0.0
    %6418 = vmatprep.subr.mxu0 0.0
    %6419 = vmatpush1.msra.mxu0 0.0
    %6420 = vmatprep.subr.mxu0 0.0
    %6421 = vmatpush1.msra.mxu0 0.0
    %6422 = vmatprep.subr.mxu0 0.0
    %6423 = vmatpush1.msra.mxu0 0.0
    %6424 = vmatprep.subr.mxu0 0.0
    %6425 = vmatpush1.msra.mxu0 0.0
    %6426 = vmatprep.subr.mxu0 0.0
    %6427 = vmatpush1.msra.mxu0 0.0
    %6428 = vmatprep.subr.mxu0 0.0
    %6429 = vmatpush1.msra.mxu0 0.0
    %6430 = vmatprep.subr.mxu0 0.0
    %6431 = vmatpush1.msra.mxu0 0.0
    %6432 = vmatprep.subr.mxu0 0.0
    %6433 = vmatpush1.msra.mxu0 0.0
    %6434 = vmatprep.subr.mxu0 0.0
    %6435 = vmatpush1.msra.mxu0 0.0
    %6436 = vmatprep.subr.mxu0 0.0
    %6437 = vmatpush1.msra.mxu0 0.0
    %6438 = vmatprep.subr.mxu0 0.0
    %6439 = vmatpush1.msra.mxu0 0.0
    %6440 = vmatprep.subr.mxu0 0.0
    %6441 = vmatpush1.msra.mxu0 0.0
    %6442 = vmatprep.subr.mxu0 0.0
    %6443 = vmatpush1.msra.mxu0 0.0
    %6444 = vmatprep.subr.mxu0 0.0
    %6445 = vmatpush1.msra.mxu0 0.0
    %6446 = vmatprep.subr.mxu0 0.0
    %6447 = vmatpush1.msra.mxu0 0.0
    %6448 = vmatprep.subr.mxu0 0.0
    %6449 = vmatpush1.msra.mxu0 0.0
    %6450 = vmatprep.subr.mxu0 0.0
    %6451 = vmatpush1.msra.mxu0 0.0
    %6452 = vmatprep.subr.mxu0 0.0
    %6453 = vmatpush1.msra.mxu0 0.0
    %6454 = vmatprep.subr.mxu0 0.0
    %6455 = vmatpush1.msra.mxu0 0.0
    %6456 = vmatprep.subr.mxu0 0.0
    %6457 = vmatpush1.msra.mxu0 0.0
    %6458 = vmatprep.subr.mxu0 0.0
    %6459 = vmatpush1.msra.mxu0 0.0
    %6460 = vmatprep.mubr.f32.mxu0 0.0
    %v6461 = vand.u32 %v6295, 4294901760
    %6462 = vmatmul.mubr.f32.gmra.mrb[0].mxu0 %v6461
    %v6463 = vpop.f32.mrb[0].mxu0
    %v6464 = vadd.f32 %v6373, %v6463
    %v6465 = vpop.f32.mrb[0].mxu0
    %6466 = vdwg.mxu0
    %6467 = vmatprep.subr.mxu0 0.0
    %v6468 = vand.u32 %v6281, 4294901760
    %v6469 = vsub.f32 %v6281, %v6468
    %6470 = vmatpush1.msra.mxu0 %v6469
    %6471 = vmatprep.subr.mxu0 0.0
    %v6472 = vand.u32 %v6282, 4294901760
    %v6473 = vsub.f32 %v6282, %v6472
    %6474 = vmatpush1.msra.mxu0 %v6473
    %6475 = vmatprep.subr.mxu0 0.0
    %v6476 = vand.u32 %v6283, 4294901760
    %v6477 = vsub.f32 %v6283, %v6476
    %6478 = vmatpush1.msra.mxu0 %v6477
    %6479 = vmatprep.subr.mxu0 0.0
    %v6480 = vand.u32 %v6284, 4294901760
    %v6481 = vsub.f32 %v6284, %v6480
    %6482 = vmatpush1.msra.mxu0 %v6481
    %6483 = vmatprep.subr.mxu0 0.0
    %6484 = vmatpush1.msra.mxu0 0.0
    %6485 = vmatprep.subr.mxu0 0.0
    %6486 = vmatpush1.msra.mxu0 0.0
    %6487 = vmatprep.subr.mxu0 0.0
    %6488 = vmatpush1.msra.mxu0 0.0
    %6489 = vmatprep.subr.mxu0 0.0
    %6490 = vmatpush1.msra.mxu0 0.0
    %6491 = vmatprep.subr.mxu0 0.0
    %6492 = vmatpush1.msra.mxu0 0.0
    %6493 = vmatprep.subr.mxu0 0.0
    %6494 = vmatpush1.msra.mxu0 0.0
    %6495 = vmatprep.subr.mxu0 0.0
    %6496 = vmatpush1.msra.mxu0 0.0
    %6497 = vmatprep.subr.mxu0 0.0
    %6498 = vmatpush1.msra.mxu0 0.0
    %6499 = vmatprep.subr.mxu0 0.0
    %6500 = vmatpush1.msra.mxu0 0.0
    %6501 = vmatprep.subr.mxu0 0.0
    %6502 = vmatpush1.msra.mxu0 0.0
    %6503 = vmatprep.subr.mxu0 0.0
    %6504 = vmatpush1.msra.mxu0 0.0
    %6505 = vmatprep.subr.mxu0 0.0
    %6506 = vmatpush1.msra.mxu0 0.0
    %6507 = vmatprep.subr.mxu0 0.0
    %6508 = vmatpush1.msra.mxu0 0.0
    %6509 = vmatprep.subr.mxu0 0.0
    %6510 = vmatpush1.msra.mxu0 0.0
    %6511 = vmatprep.subr.mxu0 0.0
    %6512 = vmatpush1.msra.mxu0 0.0
    %6513 = vmatprep.subr.mxu0 0.0
    %6514 = vmatpush1.msra.mxu0 0.0
    %6515 = vmatprep.subr.mxu0 0.0
    %6516 = vmatpush1.msra.mxu0 0.0
    %6517 = vmatprep.subr.mxu0 0.0
    %6518 = vmatpush1.msra.mxu0 0.0
    %6519 = vmatprep.subr.mxu0 0.0
    %6520 = vmatpush1.msra.mxu0 0.0
    %6521 = vmatprep.subr.mxu0 0.0
    %6522 = vmatpush1.msra.mxu0 0.0
    %6523 = vmatprep.subr.mxu0 0.0
    %6524 = vmatpush1.msra.mxu0 0.0
    %6525 = vmatprep.subr.mxu0 0.0
    %6526 = vmatpush1.msra.mxu0 0.0
    %6527 = vmatprep.subr.mxu0 0.0
    %6528 = vmatpush1.msra.mxu0 0.0
    %6529 = vmatprep.subr.mxu0 0.0
    %6530 = vmatpush1.msra.mxu0 0.0
    %6531 = vmatprep.subr.mxu0 0.0
    %6532 = vmatpush1.msra.mxu0 0.0
    %6533 = vmatprep.subr.mxu0 0.0
    %6534 = vmatpush1.msra.mxu0 0.0
    %6535 = vmatprep.subr.mxu0 0.0
    %6536 = vmatpush1.msra.mxu0 0.0
    %6537 = vmatprep.subr.mxu0 0.0
    %6538 = vmatpush1.msra.mxu0 0.0
    %6539 = vmatprep.mubr.f32.mxu0 0.0
    %v6540 = vand.u32 %v6295, 4294901760
    %v6541 = vsub.f32 %v6295, %v6540
    %6542 = vmatmul.mubr.f32.gmra.mrb[0].mxu0 %v6541
    %v6543 = vpop.f32.mrb[0].mxu0
    %v6544 = vadd.f32 %v6464, %v6543
    %v6545 = vpop.f32.mrb[0].mxu0
    %6546 = vdwg.mxu0
    %6547 = vmatprep.subr.mxu0 0.0
    %v6548 = vand.u32 %v6281, 4294901760
    %6549 = vmatpush1.msra.mxu0 %v6548
    %6550 = vmatprep.subr.mxu0 0.0
    %v6551 = vand.u32 %v6282, 4294901760
    %6552 = vmatpush1.msra.mxu0 %v6551
    %6553 = vmatprep.subr.mxu0 0.0
    %v6554 = vand.u32 %v6283, 4294901760
    %6555 = vmatpush1.msra.mxu0 %v6554
    %6556 = vmatprep.subr.mxu0 0.0
    %v6557 = vand.u32 %v6284, 4294901760
    %6558 = vmatpush1.msra.mxu0 %v6557
    %6559 = vmatprep.subr.mxu0 0.0
    %6560 = vmatpush1.msra.mxu0 0.0
    %6561 = vmatprep.subr.mxu0 0.0
    %6562 = vmatpush1.msra.mxu0 0.0
    %6563 = vmatprep.subr.mxu0 0.0
    %6564 = vmatpush1.msra.mxu0 0.0
    %6565 = vmatprep.subr.mxu0 0.0
    %6566 = vmatpush1.msra.mxu0 0.0
    %6567 = vmatprep.subr.mxu0 0.0
    %6568 = vmatpush1.msra.mxu0 0.0
    %6569 = vmatprep.subr.mxu0 0.0
    %6570 = vmatpush1.msra.mxu0 0.0
    %6571 = vmatprep.subr.mxu0 0.0
    %6572 = vmatpush1.msra.mxu0 0.0
    %6573 = vmatprep.subr.mxu0 0.0
    %6574 = vmatpush1.msra.mxu0 0.0
    %6575 = vmatprep.subr.mxu0 0.0
    %6576 = vmatpush1.msra.mxu0 0.0
    %6577 = vmatprep.subr.mxu0 0.0
    %6578 = vmatpush1.msra.mxu0 0.0
    %6579 = vmatprep.subr.mxu0 0.0
    %6580 = vmatpush1.msra.mxu0 0.0
    %6581 = vmatprep.subr.mxu0 0.0
    %6582 = vmatpush1.msra.mxu0 0.0
    %6583 = vmatprep.subr.mxu0 0.0
    %6584 = vmatpush1.msra.mxu0 0.0
    %6585 = vmatprep.subr.mxu0 0.0
    %6586 = vmatpush1.msra.mxu0 0.0
    %6587 = vmatprep.subr.mxu0 0.0
    %6588 = vmatpush1.msra.mxu0 0.0
    %6589 = vmatprep.subr.mxu0 0.0
    %6590 = vmatpush1.msra.mxu0 0.0
    %6591 = vmatprep.subr.mxu0 0.0
    %6592 = vmatpush1.msra.mxu0 0.0
    %6593 = vmatprep.subr.mxu0 0.0
    %6594 = vmatpush1.msra.mxu0 0.0
    %6595 = vmatprep.subr.mxu0 0.0
    %6596 = vmatpush1.msra.mxu0 0.0
    %6597 = vmatprep.subr.mxu0 0.0
    %6598 = vmatpush1.msra.mxu0 0.0
    %6599 = vmatprep.subr.mxu0 0.0
    %6600 = vmatpush1.msra.mxu0 0.0
    %6601 = vmatprep.subr.mxu0 0.0
    %6602 = vmatpush1.msra.mxu0 0.0
    %6603 = vmatprep.subr.mxu0 0.0
    %6604 = vmatpush1.msra.mxu0 0.0
    %6605 = vmatprep.subr.mxu0 0.0
    %6606 = vmatpush1.msra.mxu0 0.0
    %6607 = vmatprep.subr.mxu0 0.0
    %6608 = vmatpush1.msra.mxu0 0.0
    %6609 = vmatprep.subr.mxu0 0.0
    %6610 = vmatpush1.msra.mxu0 0.0
    %6611 = vmatprep.subr.mxu0 0.0
    %6612 = vmatpush1.msra.mxu0 0.0
    %6613 = vmatprep.subr.mxu0 0.0
    %6614 = vmatpush1.msra.mxu0 0.0
    %6615 = vmatprep.mubr.f32.mxu0 0.0
    %v6616 = vand.u32 %v6295, 4294901760
    %v6617 = vsub.f32 %v6295, %v6616
    %v6618 = vand.u32 %v6617, 4294901760
    %6619 = vmatmul.mubr.f32.gmra.mrb[0].mxu0 %v6618
    %v6620 = vpop.f32.mrb[0].mxu0
    %v6621 = vadd.f32 %v6544, %v6620
    %v6622 = vpop.f32.mrb[0].mxu0
    %6623 = vdwg.mxu0
    %6624 = vmatprep.subr.mxu0 0.0
    %v6625 = vand.u32 %v6281, 4294901760
    %v6626 = vsub.f32 %v6281, %v6625
    %v6627 = vand.u32 %v6626, 4294901760
    %6628 = vmatpush1.msra.mxu0 %v6627
    %6629 = vmatprep.subr.mxu0 0.0
    %v6630 = vand.u32 %v6282, 4294901760
    %v6631 = vsub.f32 %v6282, %v6630
    %v6632 = vand.u32 %v6631, 4294901760
    %6633 = vmatpush1.msra.mxu0 %v6632
    %6634 = vmatprep.subr.mxu0 0.0
    %v6635 = vand.u32 %v6283, 4294901760
    %v6636 = vsub.f32 %v6283, %v6635
    %v6637 = vand.u32 %v6636, 4294901760
    %6638 = vmatpush1.msra.mxu0 %v6637
    %6639 = vmatprep.subr.mxu0 0.0
    %v6640 = vand.u32 %v6284, 4294901760
    %v6641 = vsub.f32 %v6284, %v6640
    %v6642 = vand.u32 %v6641, 4294901760
    %6643 = vmatpush1.msra.mxu0 %v6642
    %6644 = vmatprep.subr.mxu0 0.0
    %6645 = vmatpush1.msra.mxu0 0.0
    %6646 = vmatprep.subr.mxu0 0.0
    %6647 = vmatpush1.msra.mxu0 0.0
    %6648 = vmatprep.subr.mxu0 0.0
    %6649 = vmatpush1.msra.mxu0 0.0
    %6650 = vmatprep.subr.mxu0 0.0
    %6651 = vmatpush1.msra.mxu0 0.0
    %6652 = vmatprep.subr.mxu0 0.0
    %6653 = vmatpush1.msra.mxu0 0.0
    %6654 = vmatprep.subr.mxu0 0.0
    %6655 = vmatpush1.msra.mxu0 0.0
    %6656 = vmatprep.subr.mxu0 0.0
    %6657 = vmatpush1.msra.mxu0 0.0
    %6658 = vmatprep.subr.mxu0 0.0
    %6659 = vmatpush1.msra.mxu0 0.0
    %6660 = vmatprep.subr.mxu0 0.0
    %6661 = vmatpush1.msra.mxu0 0.0
    %6662 = vmatprep.subr.mxu0 0.0
    %6663 = vmatpush1.msra.mxu0 0.0
    %6664 = vmatprep.subr.mxu0 0.0
    %6665 = vmatpush1.msra.mxu0 0.0
    %6666 = vmatprep.subr.mxu0 0.0
    %6667 = vmatpush1.msra.mxu0 0.0
    %6668 = vmatprep.subr.mxu0 0.0
    %6669 = vmatpush1.msra.mxu0 0.0
    %6670 = vmatprep.subr.mxu0 0.0
    %6671 = vmatpush1.msra.mxu0 0.0
    %6672 = vmatprep.subr.mxu0 0.0
    %6673 = vmatpush1.msra.mxu0 0.0
    %6674 = vmatprep.subr.mxu0 0.0
    %6675 = vmatpush1.msra.mxu0 0.0
    %6676 = vmatprep.subr.mxu0 0.0
    %6677 = vmatpush1.msra.mxu0 0.0
    %6678 = vmatprep.subr.mxu0 0.0
    %6679 = vmatpush1.msra.mxu0 0.0
    %6680 = vmatprep.subr.mxu0 0.0
    %6681 = vmatpush1.msra.mxu0 0.0
    %6682 = vmatprep.subr.mxu0 0.0
    %6683 = vmatpush1.msra.mxu0 0.0
    %6684 = vmatprep.subr.mxu0 0.0
    %6685 = vmatpush1.msra.mxu0 0.0
    %6686 = vmatprep.subr.mxu0 0.0
    %6687 = vmatpush1.msra.mxu0 0.0
    %6688 = vmatprep.subr.mxu0 0.0
    %6689 = vmatpush1.msra.mxu0 0.0
    %6690 = vmatprep.subr.mxu0 0.0
    %6691 = vmatpush1.msra.mxu0 0.0
    %6692 = vmatprep.subr.mxu0 0.0
    %6693 = vmatpush1.msra.mxu0 0.0
    %6694 = vmatprep.subr.mxu0 0.0
    %6695 = vmatpush1.msra.mxu0 0.0
    %6696 = vmatprep.subr.mxu0 0.0
    %6697 = vmatpush1.msra.mxu0 0.0
    %6698 = vmatprep.subr.mxu0 0.0
    %6699 = vmatpush1.msra.mxu0 0.0
    %6700 = vmatprep.mubr.f32.mxu0 0.0
    %v6701 = vand.u32 %v6295, 4294901760
    %6702 = vmatmul.mubr.f32.gmra.mrb[0].mxu0 %v6701
    %v6703 = vpop.f32.mrb[0].mxu0
    %v6704 = vadd.f32 %v6621, %v6703
    %v6705 = vpop.f32.mrb[0].mxu0
    %6706 = vdwg.mxu0
    %6707 = vmatprep.subr.mxu0 0.0
    %v6708 = vand.u32 %v6281, 4294901760
    %6709 = vmatpush1.msra.mxu0 %v6708
    %6710 = vmatprep.subr.mxu0 0.0
    %v6711 = vand.u32 %v6282, 4294901760
    %6712 = vmatpush1.msra.mxu0 %v6711
    %6713 = vmatprep.subr.mxu0 0.0
    %v6714 = vand.u32 %v6283, 4294901760
    %6715 = vmatpush1.msra.mxu0 %v6714
    %6716 = vmatprep.subr.mxu0 0.0
    %v6717 = vand.u32 %v6284, 4294901760
    %6718 = vmatpush1.msra.mxu0 %v6717
    %6719 = vmatprep.subr.mxu0 0.0
    %6720 = vmatpush1.msra.mxu0 0.0
    %6721 = vmatprep.subr.mxu0 0.0
    %6722 = vmatpush1.msra.mxu0 0.0
    %6723 = vmatprep.subr.mxu0 0.0
    %6724 = vmatpush1.msra.mxu0 0.0
    %6725 = vmatprep.subr.mxu0 0.0
    %6726 = vmatpush1.msra.mxu0 0.0
    %6727 = vmatprep.subr.mxu0 0.0
    %6728 = vmatpush1.msra.mxu0 0.0
    %6729 = vmatprep.subr.mxu0 0.0
    %6730 = vmatpush1.msra.mxu0 0.0
    %6731 = vmatprep.subr.mxu0 0.0
    %6732 = vmatpush1.msra.mxu0 0.0
    %6733 = vmatprep.subr.mxu0 0.0
    %6734 = vmatpush1.msra.mxu0 0.0
    %6735 = vmatprep.subr.mxu0 0.0
    %6736 = vmatpush1.msra.mxu0 0.0
    %6737 = vmatprep.subr.mxu0 0.0
    %6738 = vmatpush1.msra.mxu0 0.0
    %6739 = vmatprep.subr.mxu0 0.0
    %6740 = vmatpush1.msra.mxu0 0.0
    %6741 = vmatprep.subr.mxu0 0.0
    %6742 = vmatpush1.msra.mxu0 0.0
    %6743 = vmatprep.subr.mxu0 0.0
    %6744 = vmatpush1.msra.mxu0 0.0
    %6745 = vmatprep.subr.mxu0 0.0
    %6746 = vmatpush1.msra.mxu0 0.0
    %6747 = vmatprep.subr.mxu0 0.0
    %6748 = vmatpush1.msra.mxu0 0.0
    %6749 = vmatprep.subr.mxu0 0.0
    %6750 = vmatpush1.msra.mxu0 0.0
    %6751 = vmatprep.subr.mxu0 0.0
    %6752 = vmatpush1.msra.mxu0 0.0
    %6753 = vmatprep.subr.mxu0 0.0
    %6754 = vmatpush1.msra.mxu0 0.0
    %6755 = vmatprep.subr.mxu0 0.0
    %6756 = vmatpush1.msra.mxu0 0.0
    %6757 = vmatprep.subr.mxu0 0.0
    %6758 = vmatpush1.msra.mxu0 0.0
    %6759 = vmatprep.subr.mxu0 0.0
    %6760 = vmatpush1.msra.mxu0 0.0
    %6761 = vmatprep.subr.mxu0 0.0
    %6762 = vmatpush1.msra.mxu0 0.0
    %6763 = vmatprep.subr.mxu0 0.0
    %6764 = vmatpush1.msra.mxu0 0.0
    %6765 = vmatprep.subr.mxu0 0.0
    %6766 = vmatpush1.msra.mxu0 0.0
    %6767 = vmatprep.subr.mxu0 0.0
    %6768 = vmatpush1.msra.mxu0 0.0
    %6769 = vmatprep.subr.mxu0 0.0
    %6770 = vmatpush1.msra.mxu0 0.0
    %6771 = vmatprep.subr.mxu0 0.0
    %6772 = vmatpush1.msra.mxu0 0.0
    %6773 = vmatprep.subr.mxu0 0.0
    %6774 = vmatpush1.msra.mxu0 0.0
    %6775 = vmatprep.mubr.f32.mxu0 0.0
    %v6776 = vand.u32 %v6295, 4294901760
    %6777 = vmatmul.mubr.f32.gmra.mrb[0].mxu0 %v6776
    %v6778 = vpop.f32.mrb[0].mxu0
    %v6779 = vadd.f32 %v6704, %v6778
    %v6780 = vpop.f32.mrb[0].mxu0
    %6781 = vdwg.mxu0
    %v6782 = vtanh.pop %v6779
    %v6783 = vld [vmem:[%s2] sm:$0x3]
    %v6784 = vld [vmem:[%s5 + $0xb] sm:$0x1]
    %6786 = vset.pattern.permute.xlu0 0
    %6787 = vperm.xlu0 %6786, %v6783
    %v6788 = vpop.permute.xlu0 %6787
    %v6790 = vlaneseq
    %v6791 = vshrl.u32 %v6790, 7
    %v6792 = vsub.s32 0, %v6791
    %v6793 = vrot.slane %v6784, %v6792
    %v6794 = vmul.f32 %v6788, %v6793
    %v6795 = vld [vmem:[%s5 + $0xc] sm:$0x1]
    %6796 = vset.pattern.permute.xlu0 1
    %6797 = vperm.xlu0 %6796, %v6783
    %v6798 = vpop.permute.xlu0 %6797
    %v6800 = vlaneseq
    %v6801 = vshrl.u32 %v6800, 7
    %v6802 = vsub.s32 0, %v6801
    %v6803 = vrot.slane %v6795, %v6802
    %v6804 = vmul.f32 %v6798, %v6803
    %v6805 = vadd.f32 %v6794, %v6804
    %v6806 = vld [vmem:[%s5 + $0xd] sm:$0x1]
    %v6807 = vlaneseq
    %v6808 = vshrl.u32 %v6807, 7
    %v6809 = vsub.s32 0, %v6808
    %v6810 = vrot.slane %v6806, %v6809
    %v6811 = vadd.f32 %v6805, %v6810
    %v6812 = vmax.f32 %v6811, 0.0
    %v6813 = vld [vmem:[#allocation6 + $0xc0] sm:$0xff]
    %v6814 = vld [vmem:[#allocation6 + $0xc8] sm:$0xff]
    %v6815 = vld [vmem:[#allocation6 + $0xd0] sm:$0xff]
    %v6816 = vld [vmem:[#allocation6 + $0xd8] sm:$0xff]
    %v6817 = vld [vmem:[#allocation6 + $0xe0] sm:$0xff]
    %v6818 = vld [vmem:[#allocation6 + $0xe8] sm:$0xff]
    %v6819 = vld [vmem:[#allocation6 + $0xf0] sm:$0xff]
    %v6820 = vld [vmem:[#allocation6 + $0xf8] sm:$0xff]
    %v6821 = vld [vmem:[%s5 + $0xe] sm:$0x1]
    %v6822 = vlaneseq
    %v6823 = vshrl.u32 %v6822, 7
    %v6824 = vsub.s32 0, %v6823
    %v6825 = vrot.slane %v6821, %v6824
    %v6827 = vsel %vm5652, %v6812, 0
    %6829 = vmatprep.subr.mxu0 0.0
    %v6830 = vand.u32 %v6813, 4294901760
    %6831 = vmatpush1.msra.mxu0 %v6830
    %6832 = vmatprep.subr.mxu0 0.0
    %v6833 = vand.u32 %v6814, 4294901760
    %6834 = vmatpush1.msra.mxu0 %v6833
    %6835 = vmatprep.subr.mxu0 0.0
    %v6836 = vand.u32 %v6815, 4294901760
    %6837 = vmatpush1.msra.mxu0 %v6836
    %6838 = vmatprep.subr.mxu0 0.0
    %v6839 = vand.u32 %v6816, 4294901760
    %6840 = vmatpush1.msra.mxu0 %v6839
    %6841 = vmatprep.subr.mxu0 0.0
    %v6842 = vand.u32 %v6817, 4294901760
    %6843 = vmatpush1.msra.mxu0 %v6842
    %6844 = vmatprep.subr.mxu0 0.0
    %v6845 = vand.u32 %v6818, 4294901760
    %6846 = vmatpush1.msra.mxu0 %v6845
    %6847 = vmatprep.subr.mxu0 0.0
    %v6848 = vand.u32 %v6819, 4294901760
    %6849 = vmatpush1.msra.mxu0 %v6848
    %6850 = vmatprep.subr.mxu0 0.0
    %v6851 = vand.u32 %v6820, 4294901760
    %6852 = vmatpush1.msra.mxu0 %v6851
    %6853 = vmatprep.subr.mxu0 0.0
    %6854 = vmatpush1.msra.mxu0 0.0
    %6855 = vmatprep.subr.mxu0 0.0
    %6856 = vmatpush1.msra.mxu0 0.0
    %6857 = vmatprep.subr.mxu0 0.0
    %6858 = vmatpush1.msra.mxu0 0.0
    %6859 = vmatprep.subr.mxu0 0.0
    %6860 = vmatpush1.msra.mxu0 0.0
    %6861 = vmatprep.subr.mxu0 0.0
    %6862 = vmatpush1.msra.mxu0 0.0
    %6863 = vmatprep.subr.mxu0 0.0
    %6864 = vmatpush1.msra.mxu0 0.0
    %6865 = vmatprep.subr.mxu0 0.0
    %6866 = vmatpush1.msra.mxu0 0.0
    %6867 = vmatprep.subr.mxu0 0.0
    %6868 = vmatpush1.msra.mxu0 0.0
    %6869 = vmatprep.subr.mxu0 0.0
    %6870 = vmatpush1.msra.mxu0 0.0
    %6871 = vmatprep.subr.mxu0 0.0
    %6872 = vmatpush1.msra.mxu0 0.0
    %6873 = vmatprep.subr.mxu0 0.0
    %6874 = vmatpush1.msra.mxu0 0.0
    %6875 = vmatprep.subr.mxu0 0.0
    %6876 = vmatpush1.msra.mxu0 0.0
    %6877 = vmatprep.subr.mxu0 0.0
    %6878 = vmatpush1.msra.mxu0 0.0
    %6879 = vmatprep.subr.mxu0 0.0
    %6880 = vmatpush1.msra.mxu0 0.0
    %6881 = vmatprep.subr.mxu0 0.0
    %6882 = vmatpush1.msra.mxu0 0.0
    %6883 = vmatprep.subr.mxu0 0.0
    %6884 = vmatpush1.msra.mxu0 0.0
    %6885 = vmatprep.subr.mxu0 0.0
    %6886 = vmatpush1.msra.mxu0 0.0
    %6887 = vmatprep.subr.mxu0 0.0
    %6888 = vmatpush1.msra.mxu0 0.0
    %6889 = vmatprep.subr.mxu0 0.0
    %6890 = vmatpush1.msra.mxu0 0.0
    %6891 = vmatprep.subr.mxu0 0.0
    %6892 = vmatpush1.msra.mxu0 0.0
    %6893 = vmatprep.subr.mxu0 0.0
    %6894 = vmatpush1.msra.mxu0 0.0
    %6895 = vmatprep.subr.mxu0 0.0
    %6896 = vmatpush1.msra.mxu0 0.0
    %6897 = vmatprep.subr.mxu0 0.0
    %6898 = vmatpush1.msra.mxu0 0.0
    %6899 = vmatprep.subr.mxu0 0.0
    %6900 = vmatpush1.msra.mxu0 0.0
    %6901 = vmatprep.mubr.f32.mxu0 0.0
    %v6902 = vand.u32 %v6827, 4294901760
    %v6903 = vsub.f32 %v6827, %v6902
    %v6904 = vand.u32 %v6903, 4294901760
    %v6905 = vsub.f32 %v6903, %v6904
    %v6906 = vand.u32 %v6905, 4294901760
    %6907 = vmatmul.mubr.f32.gmra.mrb[0].mxu0 %v6906
    %v6908 = vpop.f32.mrb[0].mxu0
    %v6909 = vadd.f32 %v6825, %v6908
    %v6910 = vpop.f32.mrb[0].mxu0
    %6911 = vdwg.mxu0
    %6912 = vmatprep.subr.mxu0 0.0
    %v6913 = vand.u32 %v6813, 4294901760
    %v6914 = vsub.f32 %v6813, %v6913
    %v6915 = vand.u32 %v6914, 4294901760
    %v6916 = vsub.f32 %v6914, %v6915
    %v6917 = vand.u32 %v6916, 4294901760
    %6918 = vmatpush1.msra.mxu0 %v6917
    %6919 = vmatprep.subr.mxu0 0.0
    %v6920 = vand.u32 %v6814, 4294901760
    %v6921 = vsub.f32 %v6814, %v6920
    %v6922 = vand.u32 %v6921, 4294901760
    %v6923 = vsub.f32 %v6921, %v6922
    %v6924 = vand.u32 %v6923, 4294901760
    %6925 = vmatpush1.msra.mxu0 %v6924
    %6926 = vmatprep.subr.mxu0 0.0
    %v6927 = vand.u32 %v6815, 4294901760
    %v6928 = vsub.f32 %v6815, %v6927
    %v6929 = vand.u32 %v6928, 4294901760
    %v6930 = vsub.f32 %v6928, %v6929
    %v6931 = vand.u32 %v6930, 4294901760
    %6932 = vmatpush1.msra.mxu0 %v6931
    %6933 = vmatprep.subr.mxu0 0.0
    %v6934 = vand.u32 %v6816, 4294901760
    %v6935 = vsub.f32 %v6816, %v6934
    %v6936 = vand.u32 %v6935, 4294901760
    %v6937 = vsub.f32 %v6935, %v6936
    %v6938 = vand.u32 %v6937, 4294901760
    %6939 = vmatpush1.msra.mxu0 %v6938
    %6940 = vmatprep.subr.mxu0 0.0
    %v6941 = vand.u32 %v6817, 4294901760
    %v6942 = vsub.f32 %v6817, %v6941
    %v6943 = vand.u32 %v6942, 4294901760
    %v6944 = vsub.f32 %v6942, %v6943
    %v6945 = vand.u32 %v6944, 4294901760
    %6946 = vmatpush1.msra.mxu0 %v6945
    %6947 = vmatprep.subr.mxu0 0.0
    %v6948 = vand.u32 %v6818, 4294901760
    %v6949 = vsub.f32 %v6818, %v6948
    %v6950 = vand.u32 %v6949, 4294901760
    %v6951 = vsub.f32 %v6949, %v6950
    %v6952 = vand.u32 %v6951, 4294901760
    %6953 = vmatpush1.msra.mxu0 %v6952
    %6954 = vmatprep.subr.mxu0 0.0
    %v6955 = vand.u32 %v6819, 4294901760
    %v6956 = vsub.f32 %v6819, %v6955
    %v6957 = vand.u32 %v6956, 4294901760
    %v6958 = vsub.f32 %v6956, %v6957
    %v6959 = vand.u32 %v6958, 4294901760
    %6960 = vmatpush1.msra.mxu0 %v6959
    %6961 = vmatprep.subr.mxu0 0.0
    %v6962 = vand.u32 %v6820, 4294901760
    %v6963 = vsub.f32 %v6820, %v6962
    %v6964 = vand.u32 %v6963, 4294901760
    %v6965 = vsub.f32 %v6963, %v6964
    %v6966 = vand.u32 %v6965, 4294901760
    %6967 = vmatpush1.msra.mxu0 %v6966
    %6968 = vmatprep.subr.mxu0 0.0
    %6969 = vmatpush1.msra.mxu0 0.0
    %6970 = vmatprep.subr.mxu0 0.0
    %6971 = vmatpush1.msra.mxu0 0.0
    %6972 = vmatprep.subr.mxu0 0.0
    %6973 = vmatpush1.msra.mxu0 0.0
    %6974 = vmatprep.subr.mxu0 0.0
    %6975 = vmatpush1.msra.mxu0 0.0
    %6976 = vmatprep.subr.mxu0 0.0
    %6977 = vmatpush1.msra.mxu0 0.0
    %6978 = vmatprep.subr.mxu0 0.0
    %6979 = vmatpush1.msra.mxu0 0.0
    %6980 = vmatprep.subr.mxu0 0.0
    %6981 = vmatpush1.msra.mxu0 0.0
    %6982 = vmatprep.subr.mxu0 0.0
    %6983 = vmatpush1.msra.mxu0 0.0
    %6984 = vmatprep.subr.mxu0 0.0
    %6985 = vmatpush1.msra.mxu0 0.0
    %6986 = vmatprep.subr.mxu0 0.0
    %6987 = vmatpush1.msra.mxu0 0.0
    %6988 = vmatprep.subr.mxu0 0.0
    %6989 = vmatpush1.msra.mxu0 0.0
    %6990 = vmatprep.subr.mxu0 0.0
    %6991 = vmatpush1.msra.mxu0 0.0
    %6992 = vmatprep.subr.mxu0 0.0
    %6993 = vmatpush1.msra.mxu0 0.0
    %6994 = vmatprep.subr.mxu0 0.0
    %6995 = vmatpush1.msra.mxu0 0.0
    %6996 = vmatprep.subr.mxu0 0.0
    %6997 = vmatpush1.msra.mxu0 0.0
    %6998 = vmatprep.subr.mxu0 0.0
    %6999 = vmatpush1.msra.mxu0 0.0
    %7000 = vmatprep.subr.mxu0 0.0
    %7001 = vmatpush1.msra.mxu0 0.0
    %7002 = vmatprep.subr.mxu0 0.0
    %7003 = vmatpush1.msra.mxu0 0.0
    %7004 = vmatprep.subr.mxu0 0.0
    %7005 = vmatpush1.msra.mxu0 0.0
    %7006 = vmatprep.subr.mxu0 0.0
    %7007 = vmatpush1.msra.mxu0 0.0
    %7008 = vmatprep.subr.mxu0 0.0
    %7009 = vmatpush1.msra.mxu0 0.0
    %7010 = vmatprep.subr.mxu0 0.0
    %7011 = vmatpush1.msra.mxu0 0.0
    %7012 = vmatprep.subr.mxu0 0.0
    %7013 = vmatpush1.msra.mxu0 0.0
    %7014 = vmatprep.subr.mxu0 0.0
    %7015 = vmatpush1.msra.mxu0 0.0
    %7016 = vmatprep.mubr.f32.mxu0 0.0
    %v7017 = vand.u32 %v6827, 4294901760
    %7018 = vmatmul.mubr.f32.gmra.mrb[0].mxu0 %v7017
    %v7019 = vpop.f32.mrb[0].mxu0
    %v7020 = vadd.f32 %v6909, %v7019
    %v7021 = vpop.f32.mrb[0].mxu0
    %7022 = vdwg.mxu0
    %7023 = vmatprep.subr.mxu0 0.0
    %v7024 = vand.u32 %v6813, 4294901760
    %v7025 = vsub.f32 %v6813, %v7024
    %7026 = vmatpush1.msra.mxu0 %v7025
    %7027 = vmatprep.subr.mxu0 0.0
    %v7028 = vand.u32 %v6814, 4294901760
    %v7029 = vsub.f32 %v6814, %v7028
    %7030 = vmatpush1.msra.mxu0 %v7029
    %7031 = vmatprep.subr.mxu0 0.0
    %v7032 = vand.u32 %v6815, 4294901760
    %v7033 = vsub.f32 %v6815, %v7032
    %7034 = vmatpush1.msra.mxu0 %v7033
    %7035 = vmatprep.subr.mxu0 0.0
    %v7036 = vand.u32 %v6816, 4294901760
    %v7037 = vsub.f32 %v6816, %v7036
    %7038 = vmatpush1.msra.mxu0 %v7037
    %7039 = vmatprep.subr.mxu0 0.0
    %v7040 = vand.u32 %v6817, 4294901760
    %v7041 = vsub.f32 %v6817, %v7040
    %7042 = vmatpush1.msra.mxu0 %v7041
    %7043 = vmatprep.subr.mxu0 0.0
    %v7044 = vand.u32 %v6818, 4294901760
    %v7045 = vsub.f32 %v6818, %v7044
    %7046 = vmatpush1.msra.mxu0 %v7045
    %7047 = vmatprep.subr.mxu0 0.0
    %v7048 = vand.u32 %v6819, 4294901760
    %v7049 = vsub.f32 %v6819, %v7048
    %7050 = vmatpush1.msra.mxu0 %v7049
    %7051 = vmatprep.subr.mxu0 0.0
    %v7052 = vand.u32 %v6820, 4294901760
    %v7053 = vsub.f32 %v6820, %v7052
    %7054 = vmatpush1.msra.mxu0 %v7053
    %7055 = vmatprep.subr.mxu0 0.0
    %7056 = vmatpush1.msra.mxu0 0.0
    %7057 = vmatprep.subr.mxu0 0.0
    %7058 = vmatpush1.msra.mxu0 0.0
    %7059 = vmatprep.subr.mxu0 0.0
    %7060 = vmatpush1.msra.mxu0 0.0
    %7061 = vmatprep.subr.mxu0 0.0
    %7062 = vmatpush1.msra.mxu0 0.0
    %7063 = vmatprep.subr.mxu0 0.0
    %7064 = vmatpush1.msra.mxu0 0.0
    %7065 = vmatprep.subr.mxu0 0.0
    %7066 = vmatpush1.msra.mxu0 0.0
    %7067 = vmatprep.subr.mxu0 0.0
    %7068 = vmatpush1.msra.mxu0 0.0
    %7069 = vmatprep.subr.mxu0 0.0
    %7070 = vmatpush1.msra.mxu0 0.0
    %7071 = vmatprep.subr.mxu0 0.0
    %7072 = vmatpush1.msra.mxu0 0.0
    %7073 = vmatprep.subr.mxu0 0.0
    %7074 = vmatpush1.msra.mxu0 0.0
    %7075 = vmatprep.subr.mxu0 0.0
    %7076 = vmatpush1.msra.mxu0 0.0
    %7077 = vmatprep.subr.mxu0 0.0
    %7078 = vmatpush1.msra.mxu0 0.0
    %7079 = vmatprep.subr.mxu0 0.0
    %7080 = vmatpush1.msra.mxu0 0.0
    %7081 = vmatprep.subr.mxu0 0.0
    %7082 = vmatpush1.msra.mxu0 0.0
    %7083 = vmatprep.subr.mxu0 0.0
    %7084 = vmatpush1.msra.mxu0 0.0
    %7085 = vmatprep.subr.mxu0 0.0
    %7086 = vmatpush1.msra.mxu0 0.0
    %7087 = vmatprep.subr.mxu0 0.0
    %7088 = vmatpush1.msra.mxu0 0.0
    %7089 = vmatprep.subr.mxu0 0.0
    %7090 = vmatpush1.msra.mxu0 0.0
    %7091 = vmatprep.subr.mxu0 0.0
    %7092 = vmatpush1.msra.mxu0 0.0
    %7093 = vmatprep.subr.mxu0 0.0
    %7094 = vmatpush1.msra.mxu0 0.0
    %7095 = vmatprep.subr.mxu0 0.0
    %7096 = vmatpush1.msra.mxu0 0.0
    %7097 = vmatprep.subr.mxu0 0.0
    %7098 = vmatpush1.msra.mxu0 0.0
    %7099 = vmatprep.subr.mxu0 0.0
    %7100 = vmatpush1.msra.mxu0 0.0
    %7101 = vmatprep.subr.mxu0 0.0
    %7102 = vmatpush1.msra.mxu0 0.0
    %7103 = vmatprep.mubr.f32.mxu0 0.0
    %v7104 = vand.u32 %v6827, 4294901760
    %v7105 = vsub.f32 %v6827, %v7104
    %7106 = vmatmul.mubr.f32.gmra.mrb[0].mxu0 %v7105
    %v7107 = vpop.f32.mrb[0].mxu0
    %v7108 = vadd.f32 %v7020, %v7107
    %v7109 = vpop.f32.mrb[0].mxu0
    %7110 = vdwg.mxu0
    %7111 = vmatprep.subr.mxu0 0.0
    %v7112 = vand.u32 %v6813, 4294901760
    %7113 = vmatpush1.msra.mxu0 %v7112
    %7114 = vmatprep.subr.mxu0 0.0
    %v7115 = vand.u32 %v6814, 4294901760
    %7116 = vmatpush1.msra.mxu0 %v7115
    %7117 = vmatprep.subr.mxu0 0.0
    %v7118 = vand.u32 %v6815, 4294901760
    %7119 = vmatpush1.msra.mxu0 %v7118
    %7120 = vmatprep.subr.mxu0 0.0
    %v7121 = vand.u32 %v6816, 4294901760
    %7122 = vmatpush1.msra.mxu0 %v7121
    %7123 = vmatprep.subr.mxu0 0.0
    %v7124 = vand.u32 %v6817, 4294901760
    %7125 = vmatpush1.msra.mxu0 %v7124
    %7126 = vmatprep.subr.mxu0 0.0
    %v7127 = vand.u32 %v6818, 4294901760
    %7128 = vmatpush1.msra.mxu0 %v7127
    %7129 = vmatprep.subr.mxu0 0.0
    %v7130 = vand.u32 %v6819, 4294901760
    %7131 = vmatpush1.msra.mxu0 %v7130
    %7132 = vmatprep.subr.mxu0 0.0
    %v7133 = vand.u32 %v6820, 4294901760
    %7134 = vmatpush1.msra.mxu0 %v7133
    %7135 = vmatprep.subr.mxu0 0.0
    %7136 = vmatpush1.msra.mxu0 0.0
    %7137 = vmatprep.subr.mxu0 0.0
    %7138 = vmatpush1.msra.mxu0 0.0
    %7139 = vmatprep.subr.mxu0 0.0
    %7140 = vmatpush1.msra.mxu0 0.0
    %7141 = vmatprep.subr.mxu0 0.0
    %7142 = vmatpush1.msra.mxu0 0.0
    %7143 = vmatprep.subr.mxu0 0.0
    %7144 = vmatpush1.msra.mxu0 0.0
    %7145 = vmatprep.subr.mxu0 0.0
    %7146 = vmatpush1.msra.mxu0 0.0
    %7147 = vmatprep.subr.mxu0 0.0
    %7148 = vmatpush1.msra.mxu0 0.0
    %7149 = vmatprep.subr.mxu0 0.0
    %7150 = vmatpush1.msra.mxu0 0.0
    %7151 = vmatprep.subr.mxu0 0.0
    %7152 = vmatpush1.msra.mxu0 0.0
    %7153 = vmatprep.subr.mxu0 0.0
    %7154 = vmatpush1.msra.mxu0 0.0
    %7155 = vmatprep.subr.mxu0 0.0
    %7156 = vmatpush1.msra.mxu0 0.0
    %7157 = vmatprep.subr.mxu0 0.0
    %7158 = vmatpush1.msra.mxu0 0.0
    %7159 = vmatprep.subr.mxu0 0.0
    %7160 = vmatpush1.msra.mxu0 0.0
    %7161 = vmatprep.subr.mxu0 0.0
    %7162 = vmatpush1.msra.mxu0 0.0
    %7163 = vmatprep.subr.mxu0 0.0
    %7164 = vmatpush1.msra.mxu0 0.0
    %7165 = vmatprep.subr.mxu0 0.0
    %7166 = vmatpush1.msra.mxu0 0.0
    %7167 = vmatprep.subr.mxu0 0.0
    %7168 = vmatpush1.msra.mxu0 0.0
    %7169 = vmatprep.subr.mxu0 0.0
    %7170 = vmatpush1.msra.mxu0 0.0
    %7171 = vmatprep.subr.mxu0 0.0
    %7172 = vmatpush1.msra.mxu0 0.0
    %7173 = vmatprep.subr.mxu0 0.0
    %7174 = vmatpush1.msra.mxu0 0.0
    %7175 = vmatprep.subr.mxu0 0.0
    %7176 = vmatpush1.msra.mxu0 0.0
    %7177 = vmatprep.subr.mxu0 0.0
    %7178 = vmatpush1.msra.mxu0 0.0
    %7179 = vmatprep.subr.mxu0 0.0
    %7180 = vmatpush1.msra.mxu0 0.0
    %7181 = vmatprep.subr.mxu0 0.0
    %7182 = vmatpush1.msra.mxu0 0.0
    %7183 = vmatprep.mubr.f32.mxu0 0.0
    %v7184 = vand.u32 %v6827, 4294901760
    %v7185 = vsub.f32 %v6827, %v7184
    %v7186 = vand.u32 %v7185, 4294901760
    %7187 = vmatmul.mubr.f32.gmra.mrb[0].mxu0 %v7186
    %v7188 = vpop.f32.mrb[0].mxu0
    %v7189 = vadd.f32 %v7108, %v7188
    %v7190 = vpop.f32.mrb[0].mxu0
    %7191 = vdwg.mxu0
    %7192 = vmatprep.subr.mxu0 0.0
    %v7193 = vand.u32 %v6813, 4294901760
    %v7194 = vsub.f32 %v6813, %v7193
    %v7195 = vand.u32 %v7194, 4294901760
    %7196 = vmatpush1.msra.mxu0 %v7195
    %7197 = vmatprep.subr.mxu0 0.0
    %v7198 = vand.u32 %v6814, 4294901760
    %v7199 = vsub.f32 %v6814, %v7198
    %v7200 = vand.u32 %v7199, 4294901760
    %7201 = vmatpush1.msra.mxu0 %v7200
    %7202 = vmatprep.subr.mxu0 0.0
    %v7203 = vand.u32 %v6815, 4294901760
    %v7204 = vsub.f32 %v6815, %v7203
    %v7205 = vand.u32 %v7204, 4294901760
    %7206 = vmatpush1.msra.mxu0 %v7205
    %7207 = vmatprep.subr.mxu0 0.0
    %v7208 = vand.u32 %v6816, 4294901760
    %v7209 = vsub.f32 %v6816, %v7208
    %v7210 = vand.u32 %v7209, 4294901760
    %7211 = vmatpush1.msra.mxu0 %v7210
    %7212 = vmatprep.subr.mxu0 0.0
    %v7213 = vand.u32 %v6817, 4294901760
    %v7214 = vsub.f32 %v6817, %v7213
    %v7215 = vand.u32 %v7214, 4294901760
    %7216 = vmatpush1.msra.mxu0 %v7215
    %7217 = vmatprep.subr.mxu0 0.0
    %v7218 = vand.u32 %v6818, 4294901760
    %v7219 = vsub.f32 %v6818, %v7218
    %v7220 = vand.u32 %v7219, 4294901760
    %7221 = vmatpush1.msra.mxu0 %v7220
    %7222 = vmatprep.subr.mxu0 0.0
    %v7223 = vand.u32 %v6819, 4294901760
    %v7224 = vsub.f32 %v6819, %v7223
    %v7225 = vand.u32 %v7224, 4294901760
    %7226 = vmatpush1.msra.mxu0 %v7225
    %7227 = vmatprep.subr.mxu0 0.0
    %v7228 = vand.u32 %v6820, 4294901760
    %v7229 = vsub.f32 %v6820, %v7228
    %v7230 = vand.u32 %v7229, 4294901760
    %7231 = vmatpush1.msra.mxu0 %v7230
    %7232 = vmatprep.subr.mxu0 0.0
    %7233 = vmatpush1.msra.mxu0 0.0
    %7234 = vmatprep.subr.mxu0 0.0
    %7235 = vmatpush1.msra.mxu0 0.0
    %7236 = vmatprep.subr.mxu0 0.0
    %7237 = vmatpush1.msra.mxu0 0.0
    %7238 = vmatprep.subr.mxu0 0.0
    %7239 = vmatpush1.msra.mxu0 0.0
    %7240 = vmatprep.subr.mxu0 0.0
    %7241 = vmatpush1.msra.mxu0 0.0
    %7242 = vmatprep.subr.mxu0 0.0
    %7243 = vmatpush1.msra.mxu0 0.0
    %7244 = vmatprep.subr.mxu0 0.0
    %7245 = vmatpush1.msra.mxu0 0.0
    %7246 = vmatprep.subr.mxu0 0.0
    %7247 = vmatpush1.msra.mxu0 0.0
    %7248 = vmatprep.subr.mxu0 0.0
    %7249 = vmatpush1.msra.mxu0 0.0
    %7250 = vmatprep.subr.mxu0 0.0
    %7251 = vmatpush1.msra.mxu0 0.0
    %7252 = vmatprep.subr.mxu0 0.0
    %7253 = vmatpush1.msra.mxu0 0.0
    %7254 = vmatprep.subr.mxu0 0.0
    %7255 = vmatpush1.msra.mxu0 0.0
    %7256 = vmatprep.subr.mxu0 0.0
    %7257 = vmatpush1.msra.mxu0 0.0
    %7258 = vmatprep.subr.mxu0 0.0
    %7259 = vmatpush1.msra.mxu0 0.0
    %7260 = vmatprep.subr.mxu0 0.0
    %7261 = vmatpush1.msra.mxu0 0.0
    %7262 = vmatprep.subr.mxu0 0.0
    %7263 = vmatpush1.msra.mxu0 0.0
    %7264 = vmatprep.subr.mxu0 0.0
    %7265 = vmatpush1.msra.mxu0 0.0
    %7266 = vmatprep.subr.mxu0 0.0
    %7267 = vmatpush1.msra.mxu0 0.0
    %7268 = vmatprep.subr.mxu0 0.0
    %7269 = vmatpush1.msra.mxu0 0.0
    %7270 = vmatprep.subr.mxu0 0.0
    %7271 = vmatpush1.msra.mxu0 0.0
    %7272 = vmatprep.subr.mxu0 0.0
    %7273 = vmatpush1.msra.mxu0 0.0
    %7274 = vmatprep.subr.mxu0 0.0
    %7275 = vmatpush1.msra.mxu0 0.0
    %7276 = vmatprep.subr.mxu0 0.0
    %7277 = vmatpush1.msra.mxu0 0.0
    %7278 = vmatprep.subr.mxu0 0.0
    %7279 = vmatpush1.msra.mxu0 0.0
    %7280 = vmatprep.mubr.f32.mxu0 0.0
    %v7281 = vand.u32 %v6827, 4294901760
    %7282 = vmatmul.mubr.f32.gmra.mrb[0].mxu0 %v7281
    %v7283 = vpop.f32.mrb[0].mxu0
    %v7284 = vadd.f32 %v7189, %v7283
    %v7285 = vpop.f32.mrb[0].mxu0
    %7286 = vdwg.mxu0
    %7287 = vmatprep.subr.mxu0 0.0
    %v7288 = vand.u32 %v6813, 4294901760
    %7289 = vmatpush1.msra.mxu0 %v7288
    %7290 = vmatprep.subr.mxu0 0.0
    %v7291 = vand.u32 %v6814, 4294901760
    %7292 = vmatpush1.msra.mxu0 %v7291
    %7293 = vmatprep.subr.mxu0 0.0
    %v7294 = vand.u32 %v6815, 4294901760
    %7295 = vmatpush1.msra.mxu0 %v7294
    %7296 = vmatprep.subr.mxu0 0.0
    %v7297 = vand.u32 %v6816, 4294901760
    %7298 = vmatpush1.msra.mxu0 %v7297
    %7299 = vmatprep.subr.mxu0 0.0
    %v7300 = vand.u32 %v6817, 4294901760
    %7301 = vmatpush1.msra.mxu0 %v7300
    %7302 = vmatprep.subr.mxu0 0.0
    %v7303 = vand.u32 %v6818, 4294901760
    %7304 = vmatpush1.msra.mxu0 %v7303
    %7305 = vmatprep.subr.mxu0 0.0
    %v7306 = vand.u32 %v6819, 4294901760
    %7307 = vmatpush1.msra.mxu0 %v7306
    %7308 = vmatprep.subr.mxu0 0.0
    %v7309 = vand.u32 %v6820, 4294901760
    %7310 = vmatpush1.msra.mxu0 %v7309
    %7311 = vmatprep.subr.mxu0 0.0
    %7312 = vmatpush1.msra.mxu0 0.0
    %7313 = vmatprep.subr.mxu0 0.0
    %7314 = vmatpush1.msra.mxu0 0.0
    %7315 = vmatprep.subr.mxu0 0.0
    %7316 = vmatpush1.msra.mxu0 0.0
    %7317 = vmatprep.subr.mxu0 0.0
    %7318 = vmatpush1.msra.mxu0 0.0
    %7319 = vmatprep.subr.mxu0 0.0
    %7320 = vmatpush1.msra.mxu0 0.0
    %7321 = vmatprep.subr.mxu0 0.0
    %7322 = vmatpush1.msra.mxu0 0.0
    %7323 = vmatprep.subr.mxu0 0.0
    %7324 = vmatpush1.msra.mxu0 0.0
    %7325 = vmatprep.subr.mxu0 0.0
    %7326 = vmatpush1.msra.mxu0 0.0
    %7327 = vmatprep.subr.mxu0 0.0
    %7328 = vmatpush1.msra.mxu0 0.0
    %7329 = vmatprep.subr.mxu0 0.0
    %7330 = vmatpush1.msra.mxu0 0.0
    %7331 = vmatprep.subr.mxu0 0.0
    %7332 = vmatpush1.msra.mxu0 0.0
    %7333 = vmatprep.subr.mxu0 0.0
    %7334 = vmatpush1.msra.mxu0 0.0
    %7335 = vmatprep.subr.mxu0 0.0
    %7336 = vmatpush1.msra.mxu0 0.0
    %7337 = vmatprep.subr.mxu0 0.0
    %7338 = vmatpush1.msra.mxu0 0.0
    %7339 = vmatprep.subr.mxu0 0.0
    %7340 = vmatpush1.msra.mxu0 0.0
    %7341 = vmatprep.subr.mxu0 0.0
    %7342 = vmatpush1.msra.mxu0 0.0
    %7343 = vmatprep.subr.mxu0 0.0
    %7344 = vmatpush1.msra.mxu0 0.0
    %7345 = vmatprep.subr.mxu0 0.0
    %7346 = vmatpush1.msra.mxu0 0.0
    %7347 = vmatprep.subr.mxu0 0.0
    %7348 = vmatpush1.msra.mxu0 0.0
    %7349 = vmatprep.subr.mxu0 0.0
    %7350 = vmatpush1.msra.mxu0 0.0
    %7351 = vmatprep.subr.mxu0 0.0
    %7352 = vmatpush1.msra.mxu0 0.0
    %7353 = vmatprep.subr.mxu0 0.0
    %7354 = vmatpush1.msra.mxu0 0.0
    %7355 = vmatprep.subr.mxu0 0.0
    %7356 = vmatpush1.msra.mxu0 0.0
    %7357 = vmatprep.subr.mxu0 0.0
    %7358 = vmatpush1.msra.mxu0 0.0
    %7359 = vmatprep.mubr.f32.mxu0 0.0
    %v7360 = vand.u32 %v6827, 4294901760
    %7361 = vmatmul.mubr.f32.gmra.mrb[0].mxu0 %v7360
    %v7362 = vpop.f32.mrb[0].mxu0
    %v7363 = vadd.f32 %v7284, %v7362
    %v7364 = vpop.f32.mrb[0].mxu0
    %7365 = vdwg.mxu0
    %7367 = vrot.lane.b32.xlu0 %v7363, 32
    %v7368 = vpop.permute.xlu0 %7367
    %v7370 = vsel %vm186, %v6782, %v7368
    %v7371 = vld [vmem:[#allocation6 + $0x100] sm:$0xff]
    %v7372 = vld [vmem:[#allocation6 + $0x108] sm:$0xff]
    %v7373 = vld [vmem:[#allocation6 + $0x110] sm:$0xff]
    %v7374 = vld [vmem:[#allocation6 + $0x118] sm:$0xff]
    %v7375 = vld [vmem:[#allocation6 + $0x120] sm:$0xff]
    %v7376 = vld [vmem:[#allocation6 + $0x128] sm:$0xff]
    %v7377 = vld [vmem:[#allocation6 + $0x130] sm:$0xff]
    %v7378 = vld [vmem:[#allocation6 + $0x138] sm:$0xff]
    %v7379 = vld [vmem:[%s5 + $0xf] sm:$0x1]
    %v7380 = vlaneseq
    %v7381 = vshrl.u32 %v7380, 7
    %v7382 = vsub.s32 0, %v7381
    %v7383 = vrot.slane %v7379, %v7382
    %v7385 = vsel %vm5652, %v7370, 0
    %7387 = vmatprep.subr.mxu0 0.0
    %v7388 = vand.u32 %v7371, 4294901760
    %7389 = vmatpush1.msra.mxu0 %v7388
    %7390 = vmatprep.subr.mxu0 0.0
    %v7391 = vand.u32 %v7372, 4294901760
    %7392 = vmatpush1.msra.mxu0 %v7391
    %7393 = vmatprep.subr.mxu0 0.0
    %v7394 = vand.u32 %v7373, 4294901760
    %7395 = vmatpush1.msra.mxu0 %v7394
    %7396 = vmatprep.subr.mxu0 0.0
    %v7397 = vand.u32 %v7374, 4294901760
    %7398 = vmatpush1.msra.mxu0 %v7397
    %7399 = vmatprep.subr.mxu0 0.0
    %v7400 = vand.u32 %v7375, 4294901760
    %7401 = vmatpush1.msra.mxu0 %v7400
    %7402 = vmatprep.subr.mxu0 0.0
    %v7403 = vand.u32 %v7376, 4294901760
    %7404 = vmatpush1.msra.mxu0 %v7403
    %7405 = vmatprep.subr.mxu0 0.0
    %v7406 = vand.u32 %v7377, 4294901760
    %7407 = vmatpush1.msra.mxu0 %v7406
    %7408 = vmatprep.subr.mxu0 0.0
    %v7409 = vand.u32 %v7378, 4294901760
    %7410 = vmatpush1.msra.mxu0 %v7409
    %7411 = vmatprep.subr.mxu0 0.0
    %7412 = vmatpush1.msra.mxu0 0.0
    %7413 = vmatprep.subr.mxu0 0.0
    %7414 = vmatpush1.msra.mxu0 0.0
    %7415 = vmatprep.subr.mxu0 0.0
    %7416 = vmatpush1.msra.mxu0 0.0
    %7417 = vmatprep.subr.mxu0 0.0
    %7418 = vmatpush1.msra.mxu0 0.0
    %7419 = vmatprep.subr.mxu0 0.0
    %7420 = vmatpush1.msra.mxu0 0.0
    %7421 = vmatprep.subr.mxu0 0.0
    %7422 = vmatpush1.msra.mxu0 0.0
    %7423 = vmatprep.subr.mxu0 0.0
    %7424 = vmatpush1.msra.mxu0 0.0
    %7425 = vmatprep.subr.mxu0 0.0
    %7426 = vmatpush1.msra.mxu0 0.0
    %7427 = vmatprep.subr.mxu0 0.0
    %7428 = vmatpush1.msra.mxu0 0.0
    %7429 = vmatprep.subr.mxu0 0.0
    %7430 = vmatpush1.msra.mxu0 0.0
    %7431 = vmatprep.subr.mxu0 0.0
    %7432 = vmatpush1.msra.mxu0 0.0
    %7433 = vmatprep.subr.mxu0 0.0
    %7434 = vmatpush1.msra.mxu0 0.0
    %7435 = vmatprep.subr.mxu0 0.0
    %7436 = vmatpush1.msra.mxu0 0.0
    %7437 = vmatprep.subr.mxu0 0.0
    %7438 = vmatpush1.msra.mxu0 0.0
    %7439 = vmatprep.subr.mxu0 0.0
    %7440 = vmatpush1.msra.mxu0 0.0
    %7441 = vmatprep.subr.mxu0 0.0
    %7442 = vmatpush1.msra.mxu0 0.0
    %7443 = vmatprep.subr.mxu0 0.0
    %7444 = vmatpush1.msra.mxu0 0.0
    %7445 = vmatprep.subr.mxu0 0.0
    %7446 = vmatpush1.msra.mxu0 0.0
    %7447 = vmatprep.subr.mxu0 0.0
    %7448 = vmatpush1.msra.mxu0 0.0
    %7449 = vmatprep.subr.mxu0 0.0
    %7450 = vmatpush1.msra.mxu0 0.0
    %7451 = vmatprep.subr.mxu0 0.0
    %7452 = vmatpush1.msra.mxu0 0.0
    %7453 = vmatprep.subr.mxu0 0.0
    %7454 = vmatpush1.msra.mxu0 0.0
    %7455 = vmatprep.subr.mxu0 0.0
    %7456 = vmatpush1.msra.mxu0 0.0
    %7457 = vmatprep.subr.mxu0 0.0
    %7458 = vmatpush1.msra.mxu0 0.0
    %7459 = vmatprep.mubr.f32.mxu0 0.0
    %v7460 = vand.u32 %v7385, 4294901760
    %v7461 = vsub.f32 %v7385, %v7460
    %v7462 = vand.u32 %v7461, 4294901760
    %v7463 = vsub.f32 %v7461, %v7462
    %v7464 = vand.u32 %v7463, 4294901760
    %7465 = vmatmul.mubr.f32.gmra.mrb[0].mxu0 %v7464
    %v7466 = vpop.f32.mrb[0].mxu0
    %v7467 = vadd.f32 %v7383, %v7466
    %v7468 = vpop.f32.mrb[0].mxu0
    %7469 = vdwg.mxu0
    %7470 = vmatprep.subr.mxu0 0.0
    %v7471 = vand.u32 %v7371, 4294901760
    %v7472 = vsub.f32 %v7371, %v7471
    %v7473 = vand.u32 %v7472, 4294901760
    %v7474 = vsub.f32 %v7472, %v7473
    %v7475 = vand.u32 %v7474, 4294901760
    %7476 = vmatpush1.msra.mxu0 %v7475
    %7477 = vmatprep.subr.mxu0 0.0
    %v7478 = vand.u32 %v7372, 4294901760
    %v7479 = vsub.f32 %v7372, %v7478
    %v7480 = vand.u32 %v7479, 4294901760
    %v7481 = vsub.f32 %v7479, %v7480
    %v7482 = vand.u32 %v7481, 4294901760
    %7483 = vmatpush1.msra.mxu0 %v7482
    %7484 = vmatprep.subr.mxu0 0.0
    %v7485 = vand.u32 %v7373, 4294901760
    %v7486 = vsub.f32 %v7373, %v7485
    %v7487 = vand.u32 %v7486, 4294901760
    %v7488 = vsub.f32 %v7486, %v7487
    %v7489 = vand.u32 %v7488, 4294901760
    %7490 = vmatpush1.msra.mxu0 %v7489
    %7491 = vmatprep.subr.mxu0 0.0
    %v7492 = vand.u32 %v7374, 4294901760
    %v7493 = vsub.f32 %v7374, %v7492
    %v7494 = vand.u32 %v7493, 4294901760
    %v7495 = vsub.f32 %v7493, %v7494
    %v7496 = vand.u32 %v7495, 4294901760
    %7497 = vmatpush1.msra.mxu0 %v7496
    %7498 = vmatprep.subr.mxu0 0.0
    %v7499 = vand.u32 %v7375, 4294901760
    %v7500 = vsub.f32 %v7375, %v7499
    %v7501 = vand.u32 %v7500, 4294901760
    %v7502 = vsub.f32 %v7500, %v7501
    %v7503 = vand.u32 %v7502, 4294901760
    %7504 = vmatpush1.msra.mxu0 %v7503
    %7505 = vmatprep.subr.mxu0 0.0
    %v7506 = vand.u32 %v7376, 4294901760
    %v7507 = vsub.f32 %v7376, %v7506
    %v7508 = vand.u32 %v7507, 4294901760
    %v7509 = vsub.f32 %v7507, %v7508
    %v7510 = vand.u32 %v7509, 4294901760
    %7511 = vmatpush1.msra.mxu0 %v7510
    %7512 = vmatprep.subr.mxu0 0.0
    %v7513 = vand.u32 %v7377, 4294901760
    %v7514 = vsub.f32 %v7377, %v7513
    %v7515 = vand.u32 %v7514, 4294901760
    %v7516 = vsub.f32 %v7514, %v7515
    %v7517 = vand.u32 %v7516, 4294901760
    %7518 = vmatpush1.msra.mxu0 %v7517
    %7519 = vmatprep.subr.mxu0 0.0
    %v7520 = vand.u32 %v7378, 4294901760
    %v7521 = vsub.f32 %v7378, %v7520
    %v7522 = vand.u32 %v7521, 4294901760
    %v7523 = vsub.f32 %v7521, %v7522
    %v7524 = vand.u32 %v7523, 4294901760
    %7525 = vmatpush1.msra.mxu0 %v7524
    %7526 = vmatprep.subr.mxu0 0.0
    %7527 = vmatpush1.msra.mxu0 0.0
    %7528 = vmatprep.subr.mxu0 0.0
    %7529 = vmatpush1.msra.mxu0 0.0
    %7530 = vmatprep.subr.mxu0 0.0
    %7531 = vmatpush1.msra.mxu0 0.0
    %7532 = vmatprep.subr.mxu0 0.0
    %7533 = vmatpush1.msra.mxu0 0.0
    %7534 = vmatprep.subr.mxu0 0.0
    %7535 = vmatpush1.msra.mxu0 0.0
    %7536 = vmatprep.subr.mxu0 0.0
    %7537 = vmatpush1.msra.mxu0 0.0
    %7538 = vmatprep.subr.mxu0 0.0
    %7539 = vmatpush1.msra.mxu0 0.0
    %7540 = vmatprep.subr.mxu0 0.0
    %7541 = vmatpush1.msra.mxu0 0.0
    %7542 = vmatprep.subr.mxu0 0.0
    %7543 = vmatpush1.msra.mxu0 0.0
    %7544 = vmatprep.subr.mxu0 0.0
    %7545 = vmatpush1.msra.mxu0 0.0
    %7546 = vmatprep.subr.mxu0 0.0
    %7547 = vmatpush1.msra.mxu0 0.0
    %7548 = vmatprep.subr.mxu0 0.0
    %7549 = vmatpush1.msra.mxu0 0.0
    %7550 = vmatprep.subr.mxu0 0.0
    %7551 = vmatpush1.msra.mxu0 0.0
    %7552 = vmatprep.subr.mxu0 0.0
    %7553 = vmatpush1.msra.mxu0 0.0
    %7554 = vmatprep.subr.mxu0 0.0
    %7555 = vmatpush1.msra.mxu0 0.0
    %7556 = vmatprep.subr.mxu0 0.0
    %7557 = vmatpush1.msra.mxu0 0.0
    %7558 = vmatprep.subr.mxu0 0.0
    %7559 = vmatpush1.msra.mxu0 0.0
    %7560 = vmatprep.subr.mxu0 0.0
    %7561 = vmatpush1.msra.mxu0 0.0
    %7562 = vmatprep.subr.mxu0 0.0
    %7563 = vmatpush1.msra.mxu0 0.0
    %7564 = vmatprep.subr.mxu0 0.0
    %7565 = vmatpush1.msra.mxu0 0.0
    %7566 = vmatprep.subr.mxu0 0.0
    %7567 = vmatpush1.msra.mxu0 0.0
    %7568 = vmatprep.subr.mxu0 0.0
    %7569 = vmatpush1.msra.mxu0 0.0
    %7570 = vmatprep.subr.mxu0 0.0
    %7571 = vmatpush1.msra.mxu0 0.0
    %7572 = vmatprep.subr.mxu0 0.0
    %7573 = vmatpush1.msra.mxu0 0.0
    %7574 = vmatprep.mubr.f32.mxu0 0.0
    %v7575 = vand.u32 %v7385, 4294901760
    %7576 = vmatmul.mubr.f32.gmra.mrb[0].mxu0 %v7575
    %v7577 = vpop.f32.mrb[0].mxu0
    %v7578 = vadd.f32 %v7467, %v7577
    %v7579 = vpop.f32.mrb[0].mxu0
    %7580 = vdwg.mxu0
    %7581 = vmatprep.subr.mxu0 0.0
    %v7582 = vand.u32 %v7371, 4294901760
    %v7583 = vsub.f32 %v7371, %v7582
    %7584 = vmatpush1.msra.mxu0 %v7583
    %7585 = vmatprep.subr.mxu0 0.0
    %v7586 = vand.u32 %v7372, 4294901760
    %v7587 = vsub.f32 %v7372, %v7586
    %7588 = vmatpush1.msra.mxu0 %v7587
    %7589 = vmatprep.subr.mxu0 0.0
    %v7590 = vand.u32 %v7373, 4294901760
    %v7591 = vsub.f32 %v7373, %v7590
    %7592 = vmatpush1.msra.mxu0 %v7591
    %7593 = vmatprep.subr.mxu0 0.0
    %v7594 = vand.u32 %v7374, 4294901760
    %v7595 = vsub.f32 %v7374, %v7594
    %7596 = vmatpush1.msra.mxu0 %v7595
    %7597 = vmatprep.subr.mxu0 0.0
    %v7598 = vand.u32 %v7375, 4294901760
    %v7599 = vsub.f32 %v7375, %v7598
    %7600 = vmatpush1.msra.mxu0 %v7599
    %7601 = vmatprep.subr.mxu0 0.0
    %v7602 = vand.u32 %v7376, 4294901760
    %v7603 = vsub.f32 %v7376, %v7602
    %7604 = vmatpush1.msra.mxu0 %v7603
    %7605 = vmatprep.subr.mxu0 0.0
    %v7606 = vand.u32 %v7377, 4294901760
    %v7607 = vsub.f32 %v7377, %v7606
    %7608 = vmatpush1.msra.mxu0 %v7607
    %7609 = vmatprep.subr.mxu0 0.0
    %v7610 = vand.u32 %v7378, 4294901760
    %v7611 = vsub.f32 %v7378, %v7610
    %7612 = vmatpush1.msra.mxu0 %v7611
    %7613 = vmatprep.subr.mxu0 0.0
    %7614 = vmatpush1.msra.mxu0 0.0
    %7615 = vmatprep.subr.mxu0 0.0
    %7616 = vmatpush1.msra.mxu0 0.0
    %7617 = vmatprep.subr.mxu0 0.0
    %7618 = vmatpush1.msra.mxu0 0.0
    %7619 = vmatprep.subr.mxu0 0.0
    %7620 = vmatpush1.msra.mxu0 0.0
    %7621 = vmatprep.subr.mxu0 0.0
    %7622 = vmatpush1.msra.mxu0 0.0
    %7623 = vmatprep.subr.mxu0 0.0
    %7624 = vmatpush1.msra.mxu0 0.0
    %7625 = vmatprep.subr.mxu0 0.0
    %7626 = vmatpush1.msra.mxu0 0.0
    %7627 = vmatprep.subr.mxu0 0.0
    %7628 = vmatpush1.msra.mxu0 0.0
    %7629 = vmatprep.subr.mxu0 0.0
    %7630 = vmatpush1.msra.mxu0 0.0
    %7631 = vmatprep.subr.mxu0 0.0
    %7632 = vmatpush1.msra.mxu0 0.0
    %7633 = vmatprep.subr.mxu0 0.0
    %7634 = vmatpush1.msra.mxu0 0.0
    %7635 = vmatprep.subr.mxu0 0.0
    %7636 = vmatpush1.msra.mxu0 0.0
    %7637 = vmatprep.subr.mxu0 0.0
    %7638 = vmatpush1.msra.mxu0 0.0
    %7639 = vmatprep.subr.mxu0 0.0
    %7640 = vmatpush1.msra.mxu0 0.0
    %7641 = vmatprep.subr.mxu0 0.0
    %7642 = vmatpush1.msra.mxu0 0.0
    %7643 = vmatprep.subr.mxu0 0.0
    %7644 = vmatpush1.msra.mxu0 0.0
    %7645 = vmatprep.subr.mxu0 0.0
    %7646 = vmatpush1.msra.mxu0 0.0
    %7647 = vmatprep.subr.mxu0 0.0
    %7648 = vmatpush1.msra.mxu0 0.0
    %7649 = vmatprep.subr.mxu0 0.0
    %7650 = vmatpush1.msra.mxu0 0.0
    %7651 = vmatprep.subr.mxu0 0.0
    %7652 = vmatpush1.msra.mxu0 0.0
    %7653 = vmatprep.subr.mxu0 0.0
    %7654 = vmatpush1.msra.mxu0 0.0
    %7655 = vmatprep.subr.mxu0 0.0
    %7656 = vmatpush1.msra.mxu0 0.0
    %7657 = vmatprep.subr.mxu0 0.0
    %7658 = vmatpush1.msra.mxu0 0.0
    %7659 = vmatprep.subr.mxu0 0.0
    %7660 = vmatpush1.msra.mxu0 0.0
    %7661 = vmatprep.mubr.f32.mxu0 0.0
    %v7662 = vand.u32 %v7385, 4294901760
    %v7663 = vsub.f32 %v7385, %v7662
    %7664 = vmatmul.mubr.f32.gmra.mrb[0].mxu0 %v7663
    %v7665 = vpop.f32.mrb[0].mxu0
    %v7666 = vadd.f32 %v7578, %v7665
    %v7667 = vpop.f32.mrb[0].mxu0
    %7668 = vdwg.mxu0
    %7669 = vmatprep.subr.mxu0 0.0
    %v7670 = vand.u32 %v7371, 4294901760
    %7671 = vmatpush1.msra.mxu0 %v7670
    %7672 = vmatprep.subr.mxu0 0.0
    %v7673 = vand.u32 %v7372, 4294901760
    %7674 = vmatpush1.msra.mxu0 %v7673
    %7675 = vmatprep.subr.mxu0 0.0
    %v7676 = vand.u32 %v7373, 4294901760
    %7677 = vmatpush1.msra.mxu0 %v7676
    %7678 = vmatprep.subr.mxu0 0.0
    %v7679 = vand.u32 %v7374, 4294901760
    %7680 = vmatpush1.msra.mxu0 %v7679
    %7681 = vmatprep.subr.mxu0 0.0
    %v7682 = vand.u32 %v7375, 4294901760
    %7683 = vmatpush1.msra.mxu0 %v7682
    %7684 = vmatprep.subr.mxu0 0.0
    %v7685 = vand.u32 %v7376, 4294901760
    %7686 = vmatpush1.msra.mxu0 %v7685
    %7687 = vmatprep.subr.mxu0 0.0
    %v7688 = vand.u32 %v7377, 4294901760
    %7689 = vmatpush1.msra.mxu0 %v7688
    %7690 = vmatprep.subr.mxu0 0.0
    %v7691 = vand.u32 %v7378, 4294901760
    %7692 = vmatpush1.msra.mxu0 %v7691
    %7693 = vmatprep.subr.mxu0 0.0
    %7694 = vmatpush1.msra.mxu0 0.0
    %7695 = vmatprep.subr.mxu0 0.0
    %7696 = vmatpush1.msra.mxu0 0.0
    %7697 = vmatprep.subr.mxu0 0.0
    %7698 = vmatpush1.msra.mxu0 0.0
    %7699 = vmatprep.subr.mxu0 0.0
    %7700 = vmatpush1.msra.mxu0 0.0
    %7701 = vmatprep.subr.mxu0 0.0
    %7702 = vmatpush1.msra.mxu0 0.0
    %7703 = vmatprep.subr.mxu0 0.0
    %7704 = vmatpush1.msra.mxu0 0.0
    %7705 = vmatprep.subr.mxu0 0.0
    %7706 = vmatpush1.msra.mxu0 0.0
    %7707 = vmatprep.subr.mxu0 0.0
    %7708 = vmatpush1.msra.mxu0 0.0
    %7709 = vmatprep.subr.mxu0 0.0
    %7710 = vmatpush1.msra.mxu0 0.0
    %7711 = vmatprep.subr.mxu0 0.0
    %7712 = vmatpush1.msra.mxu0 0.0
    %7713 = vmatprep.subr.mxu0 0.0
    %7714 = vmatpush1.msra.mxu0 0.0
    %7715 = vmatprep.subr.mxu0 0.0
    %7716 = vmatpush1.msra.mxu0 0.0
    %7717 = vmatprep.subr.mxu0 0.0
    %7718 = vmatpush1.msra.mxu0 0.0
    %7719 = vmatprep.subr.mxu0 0.0
    %7720 = vmatpush1.msra.mxu0 0.0
    %7721 = vmatprep.subr.mxu0 0.0
    %7722 = vmatpush1.msra.mxu0 0.0
    %7723 = vmatprep.subr.mxu0 0.0
    %7724 = vmatpush1.msra.mxu0 0.0
    %7725 = vmatprep.subr.mxu0 0.0
    %7726 = vmatpush1.msra.mxu0 0.0
    %7727 = vmatprep.subr.mxu0 0.0
    %7728 = vmatpush1.msra.mxu0 0.0
    %7729 = vmatprep.subr.mxu0 0.0
    %7730 = vmatpush1.msra.mxu0 0.0
    %7731 = vmatprep.subr.mxu0 0.0
    %7732 = vmatpush1.msra.mxu0 0.0
    %7733 = vmatprep.subr.mxu0 0.0
    %7734 = vmatpush1.msra.mxu0 0.0
    %7735 = vmatprep.subr.mxu0 0.0
    %7736 = vmatpush1.msra.mxu0 0.0
    %7737 = vmatprep.subr.mxu0 0.0
    %7738 = vmatpush1.msra.mxu0 0.0
    %7739 = vmatprep.subr.mxu0 0.0
    %7740 = vmatpush1.msra.mxu0 0.0
    %7741 = vmatprep.mubr.f32.mxu0 0.0
    %v7742 = vand.u32 %v7385, 4294901760
    %v7743 = vsub.f32 %v7385, %v7742
    %v7744 = vand.u32 %v7743, 4294901760
    %7745 = vmatmul.mubr.f32.gmra.mrb[0].mxu0 %v7744
    %v7746 = vpop.f32.mrb[0].mxu0
    %v7747 = vadd.f32 %v7666, %v7746
    %v7748 = vpop.f32.mrb[0].mxu0
    %7749 = vdwg.mxu0
    %7750 = vmatprep.subr.mxu0 0.0
    %v7751 = vand.u32 %v7371, 4294901760
    %v7752 = vsub.f32 %v7371, %v7751
    %v7753 = vand.u32 %v7752, 4294901760
    %7754 = vmatpush1.msra.mxu0 %v7753
    %7755 = vmatprep.subr.mxu0 0.0
    %v7756 = vand.u32 %v7372, 4294901760
    %v7757 = vsub.f32 %v7372, %v7756
    %v7758 = vand.u32 %v7757, 4294901760
    %7759 = vmatpush1.msra.mxu0 %v7758
    %7760 = vmatprep.subr.mxu0 0.0
    %v7761 = vand.u32 %v7373, 4294901760
    %v7762 = vsub.f32 %v7373, %v7761
    %v7763 = vand.u32 %v7762, 4294901760
    %7764 = vmatpush1.msra.mxu0 %v7763
    %7765 = vmatprep.subr.mxu0 0.0
    %v7766 = vand.u32 %v7374, 4294901760
    %v7767 = vsub.f32 %v7374, %v7766
    %v7768 = vand.u32 %v7767, 4294901760
    %7769 = vmatpush1.msra.mxu0 %v7768
    %7770 = vmatprep.subr.mxu0 0.0
    %v7771 = vand.u32 %v7375, 4294901760
    %v7772 = vsub.f32 %v7375, %v7771
    %v7773 = vand.u32 %v7772, 4294901760
    %7774 = vmatpush1.msra.mxu0 %v7773
    %7775 = vmatprep.subr.mxu0 0.0
    %v7776 = vand.u32 %v7376, 4294901760
    %v7777 = vsub.f32 %v7376, %v7776
    %v7778 = vand.u32 %v7777, 4294901760
    %7779 = vmatpush1.msra.mxu0 %v7778
    %7780 = vmatprep.subr.mxu0 0.0
    %v7781 = vand.u32 %v7377, 4294901760
    %v7782 = vsub.f32 %v7377, %v7781
    %v7783 = vand.u32 %v7782, 4294901760
    %7784 = vmatpush1.msra.mxu0 %v7783
    %7785 = vmatprep.subr.mxu0 0.0
    %v7786 = vand.u32 %v7378, 4294901760
    %v7787 = vsub.f32 %v7378, %v7786
    %v7788 = vand.u32 %v7787, 4294901760
    %7789 = vmatpush1.msra.mxu0 %v7788
    %7790 = vmatprep.subr.mxu0 0.0
    %7791 = vmatpush1.msra.mxu0 0.0
    %7792 = vmatprep.subr.mxu0 0.0
    %7793 = vmatpush1.msra.mxu0 0.0
    %7794 = vmatprep.subr.mxu0 0.0
    %7795 = vmatpush1.msra.mxu0 0.0
    %7796 = vmatprep.subr.mxu0 0.0
    %7797 = vmatpush1.msra.mxu0 0.0
    %7798 = vmatprep.subr.mxu0 0.0
    %7799 = vmatpush1.msra.mxu0 0.0
    %7800 = vmatprep.subr.mxu0 0.0
    %7801 = vmatpush1.msra.mxu0 0.0
    %7802 = vmatprep.subr.mxu0 0.0
    %7803 = vmatpush1.msra.mxu0 0.0
    %7804 = vmatprep.subr.mxu0 0.0
    %7805 = vmatpush1.msra.mxu0 0.0
    %7806 = vmatprep.subr.mxu0 0.0
    %7807 = vmatpush1.msra.mxu0 0.0
    %7808 = vmatprep.subr.mxu0 0.0
    %7809 = vmatpush1.msra.mxu0 0.0
    %7810 = vmatprep.subr.mxu0 0.0
    %7811 = vmatpush1.msra.mxu0 0.0
    %7812 = vmatprep.subr.mxu0 0.0
    %7813 = vmatpush1.msra.mxu0 0.0
    %7814 = vmatprep.subr.mxu0 0.0
    %7815 = vmatpush1.msra.mxu0 0.0
    %7816 = vmatprep.subr.mxu0 0.0
    %7817 = vmatpush1.msra.mxu0 0.0
    %7818 = vmatprep.subr.mxu0 0.0
    %7819 = vmatpush1.msra.mxu0 0.0
    %7820 = vmatprep.subr.mxu0 0.0
    %7821 = vmatpush1.msra.mxu0 0.0
    %7822 = vmatprep.subr.mxu0 0.0
    %7823 = vmatpush1.msra.mxu0 0.0
    %7824 = vmatprep.subr.mxu0 0.0
    %7825 = vmatpush1.msra.mxu0 0.0
    %7826 = vmatprep.subr.mxu0 0.0
    %7827 = vmatpush1.msra.mxu0 0.0
    %7828 = vmatprep.subr.mxu0 0.0
    %7829 = vmatpush1.msra.mxu0 0.0
    %7830 = vmatprep.subr.mxu0 0.0
    %7831 = vmatpush1.msra.mxu0 0.0
    %7832 = vmatprep.subr.mxu0 0.0
    %7833 = vmatpush1.msra.mxu0 0.0
    %7834 = vmatprep.subr.mxu0 0.0
    %7835 = vmatpush1.msra.mxu0 0.0
    %7836 = vmatprep.subr.mxu0 0.0
    %7837 = vmatpush1.msra.mxu0 0.0
    %7838 = vmatprep.mubr.f32.mxu0 0.0
    %v7839 = vand.u32 %v7385, 4294901760
    %7840 = vmatmul.mubr.f32.gmra.mrb[0].mxu0 %v7839
    %v7841 = vpop.f32.mrb[0].mxu0
    %v7842 = vadd.f32 %v7747, %v7841
    %v7843 = vpop.f32.mrb[0].mxu0
    %7844 = vdwg.mxu0
    %7845 = vmatprep.subr.mxu0 0.0
    %v7846 = vand.u32 %v7371, 4294901760
    %7847 = vmatpush1.msra.mxu0 %v7846
    %7848 = vmatprep.subr.mxu0 0.0
    %v7849 = vand.u32 %v7372, 4294901760
    %7850 = vmatpush1.msra.mxu0 %v7849
    %7851 = vmatprep.subr.mxu0 0.0
    %v7852 = vand.u32 %v7373, 4294901760
    %7853 = vmatpush1.msra.mxu0 %v7852
    %7854 = vmatprep.subr.mxu0 0.0
    %v7855 = vand.u32 %v7374, 4294901760
    %7856 = vmatpush1.msra.mxu0 %v7855
    %7857 = vmatprep.subr.mxu0 0.0
    %v7858 = vand.u32 %v7375, 4294901760
    %7859 = vmatpush1.msra.mxu0 %v7858
    %7860 = vmatprep.subr.mxu0 0.0
    %v7861 = vand.u32 %v7376, 4294901760
    %7862 = vmatpush1.msra.mxu0 %v7861
    %7863 = vmatprep.subr.mxu0 0.0
    %v7864 = vand.u32 %v7377, 4294901760
    %7865 = vmatpush1.msra.mxu0 %v7864
    %7866 = vmatprep.subr.mxu0 0.0
    %v7867 = vand.u32 %v7378, 4294901760
    %7868 = vmatpush1.msra.mxu0 %v7867
    %7869 = vmatprep.subr.mxu0 0.0
    %7870 = vmatpush1.msra.mxu0 0.0
    %7871 = vmatprep.subr.mxu0 0.0
    %7872 = vmatpush1.msra.mxu0 0.0
    %7873 = vmatprep.subr.mxu0 0.0
    %7874 = vmatpush1.msra.mxu0 0.0
    %7875 = vmatprep.subr.mxu0 0.0
    %7876 = vmatpush1.msra.mxu0 0.0
    %7877 = vmatprep.subr.mxu0 0.0
    %7878 = vmatpush1.msra.mxu0 0.0
    %7879 = vmatprep.subr.mxu0 0.0
    %7880 = vmatpush1.msra.mxu0 0.0
    %7881 = vmatprep.subr.mxu0 0.0
    %7882 = vmatpush1.msra.mxu0 0.0
    %7883 = vmatprep.subr.mxu0 0.0
    %7884 = vmatpush1.msra.mxu0 0.0
    %7885 = vmatprep.subr.mxu0 0.0
    %7886 = vmatpush1.msra.mxu0 0.0
    %7887 = vmatprep.subr.mxu0 0.0
    %7888 = vmatpush1.msra.mxu0 0.0
    %7889 = vmatprep.subr.mxu0 0.0
    %7890 = vmatpush1.msra.mxu0 0.0
    %7891 = vmatprep.subr.mxu0 0.0
    %7892 = vmatpush1.msra.mxu0 0.0
    %7893 = vmatprep.subr.mxu0 0.0
    %7894 = vmatpush1.msra.mxu0 0.0
    %7895 = vmatprep.subr.mxu0 0.0
    %7896 = vmatpush1.msra.mxu0 0.0
    %7897 = vmatprep.subr.mxu0 0.0
    %7898 = vmatpush1.msra.mxu0 0.0
    %7899 = vmatprep.subr.mxu0 0.0
    %7900 = vmatpush1.msra.mxu0 0.0
    %7901 = vmatprep.subr.mxu0 0.0
    %7902 = vmatpush1.msra.mxu0 0.0
    %7903 = vmatprep.subr.mxu0 0.0
    %7904 = vmatpush1.msra.mxu0 0.0
    %7905 = vmatprep.subr.mxu0 0.0
    %7906 = vmatpush1.msra.mxu0 0.0
    %7907 = vmatprep.subr.mxu0 0.0
    %7908 = vmatpush1.msra.mxu0 0.0
    %7909 = vmatprep.subr.mxu0 0.0
    %7910 = vmatpush1.msra.mxu0 0.0
    %7911 = vmatprep.subr.mxu0 0.0
    %7912 = vmatpush1.msra.mxu0 0.0
    %7913 = vmatprep.subr.mxu0 0.0
    %7914 = vmatpush1.msra.mxu0 0.0
    %7915 = vmatprep.subr.mxu0 0.0
    %7916 = vmatpush1.msra.mxu0 0.0
    %7917 = vmatprep.mubr.f32.mxu0 0.0
    %v7918 = vand.u32 %v7385, 4294901760
    %7919 = vmatmul.mubr.f32.gmra.mrb[0].mxu0 %v7918
    %v7920 = vpop.f32.mrb[0].mxu0
    %v7921 = vadd.f32 %v7842, %v7920
    %v7922 = vpop.f32.mrb[0].mxu0
    %7923 = vdwg.mxu0
    %v7924 = vmax.f32 %v7921, 0.0
    %v7925 = vld [vmem:[#allocation6 + $0x140] sm:$0xff]
    %v7926 = vld [vmem:[#allocation6 + $0x148] sm:$0xff]
    %v7927 = vld [vmem:[#allocation6 + $0x150] sm:$0xff]
    %v7928 = vld [vmem:[#allocation6 + $0x158] sm:$0xff]
    %v7929 = vld [vmem:[#allocation6 + $0x160] sm:$0xff]
    %v7930 = vld [vmem:[#allocation6 + $0x168] sm:$0xff]
    %v7931 = vld [vmem:[#allocation6 + $0x170] sm:$0xff]
    %v7932 = vld [vmem:[#allocation6 + $0x178] sm:$0xff]
    %v7933 = vld [vmem:[%s5 + $0x10] sm:$0x1]
    %v7934 = vlaneseq
    %v7935 = vshrl.u32 %v7934, 7
    %v7936 = vsub.s32 0, %v7935
    %v7937 = vrot.slane %v7933, %v7936
    %v7939 = vsel %vm5652, %v7924, 0
    %7941 = vmatprep.subr.mxu0 0.0
    %v7942 = vand.u32 %v7925, 4294901760
    %7943 = vmatpush1.msra.mxu0 %v7942
    %7944 = vmatprep.subr.mxu0 0.0
    %v7945 = vand.u32 %v7926, 4294901760
    %7946 = vmatpush1.msra.mxu0 %v7945
    %7947 = vmatprep.subr.mxu0 0.0
    %v7948 = vand.u32 %v7927, 4294901760
    %7949 = vmatpush1.msra.mxu0 %v7948
    %7950 = vmatprep.subr.mxu0 0.0
    %v7951 = vand.u32 %v7928, 4294901760
    %7952 = vmatpush1.msra.mxu0 %v7951
    %7953 = vmatprep.subr.mxu0 0.0
    %v7954 = vand.u32 %v7929, 4294901760
    %7955 = vmatpush1.msra.mxu0 %v7954
    %7956 = vmatprep.subr.mxu0 0.0
    %v7957 = vand.u32 %v7930, 4294901760
    %7958 = vmatpush1.msra.mxu0 %v7957
    %7959 = vmatprep.subr.mxu0 0.0
    %v7960 = vand.u32 %v7931, 4294901760
    %7961 = vmatpush1.msra.mxu0 %v7960
    %7962 = vmatprep.subr.mxu0 0.0
    %v7963 = vand.u32 %v7932, 4294901760
    %7964 = vmatpush1.msra.mxu0 %v7963
    %7965 = vmatprep.subr.mxu0 0.0
    %7966 = vmatpush1.msra.mxu0 0.0
    %7967 = vmatprep.subr.mxu0 0.0
    %7968 = vmatpush1.msra.mxu0 0.0
    %7969 = vmatprep.subr.mxu0 0.0
    %7970 = vmatpush1.msra.mxu0 0.0
    %7971 = vmatprep.subr.mxu0 0.0
    %7972 = vmatpush1.msra.mxu0 0.0
    %7973 = vmatprep.subr.mxu0 0.0
    %7974 = vmatpush1.msra.mxu0 0.0
    %7975 = vmatprep.subr.mxu0 0.0
    %7976 = vmatpush1.msra.mxu0 0.0
    %7977 = vmatprep.subr.mxu0 0.0
    %7978 = vmatpush1.msra.mxu0 0.0
    %7979 = vmatprep.subr.mxu0 0.0
    %7980 = vmatpush1.msra.mxu0 0.0
    %7981 = vmatprep.subr.mxu0 0.0
    %7982 = vmatpush1.msra.mxu0 0.0
    %7983 = vmatprep.subr.mxu0 0.0
    %7984 = vmatpush1.msra.mxu0 0.0
    %7985 = vmatprep.subr.mxu0 0.0
    %7986 = vmatpush1.msra.mxu0 0.0
    %7987 = vmatprep.subr.mxu0 0.0
    %7988 = vmatpush1.msra.mxu0 0.0
    %7989 = vmatprep.subr.mxu0 0.0
    %7990 = vmatpush1.msra.mxu0 0.0
    %7991 = vmatprep.subr.mxu0 0.0
    %7992 = vmatpush1.msra.mxu0 0.0
    %7993 = vmatprep.subr.mxu0 0.0
    %7994 = vmatpush1.msra.mxu0 0.0
    %7995 = vmatprep.subr.mxu0 0.0
    %7996 = vmatpush1.msra.mxu0 0.0
    %7997 = vmatprep.subr.mxu0 0.0
    %7998 = vmatpush1.msra.mxu0 0.0
    %7999 = vmatprep.subr.mxu0 0.0
    %8000 = vmatpush1.msra.mxu0 0.0
    %8001 = vmatprep.subr.mxu0 0.0
    %8002 = vmatpush1.msra.mxu0 0.0
    %8003 = vmatprep.subr.mxu0 0.0
    %8004 = vmatpush1.msra.mxu0 0.0
    %8005 = vmatprep.subr.mxu0 0.0
    %8006 = vmatpush1.msra.mxu0 0.0
    %8007 = vmatprep.subr.mxu0 0.0
    %8008 = vmatpush1.msra.mxu0 0.0
    %8009 = vmatprep.subr.mxu0 0.0
    %8010 = vmatpush1.msra.mxu0 0.0
    %8011 = vmatprep.subr.mxu0 0.0
    %8012 = vmatpush1.msra.mxu0 0.0
    %8013 = vmatprep.mubr.f32.mxu0 0.0
    %v8014 = vand.u32 %v7939, 4294901760
    %v8015 = vsub.f32 %v7939, %v8014
    %v8016 = vand.u32 %v8015, 4294901760
    %v8017 = vsub.f32 %v8015, %v8016
    %v8018 = vand.u32 %v8017, 4294901760
    %8019 = vmatmul.mubr.f32.gmra.mrb[0].mxu0 %v8018
    %v8020 = vpop.f32.mrb[0].mxu0
    %v8021 = vadd.f32 %v7937, %v8020
    %v8022 = vpop.f32.mrb[0].mxu0
    %8023 = vdwg.mxu0
    %8024 = vmatprep.subr.mxu0 0.0
    %v8025 = vand.u32 %v7925, 4294901760
    %v8026 = vsub.f32 %v7925, %v8025
    %v8027 = vand.u32 %v8026, 4294901760
    %v8028 = vsub.f32 %v8026, %v8027
    %v8029 = vand.u32 %v8028, 4294901760
    %8030 = vmatpush1.msra.mxu0 %v8029
    %8031 = vmatprep.subr.mxu0 0.0
    %v8032 = vand.u32 %v7926, 4294901760
    %v8033 = vsub.f32 %v7926, %v8032
    %v8034 = vand.u32 %v8033, 4294901760
    %v8035 = vsub.f32 %v8033, %v8034
    %v8036 = vand.u32 %v8035, 4294901760
    %8037 = vmatpush1.msra.mxu0 %v8036
    %8038 = vmatprep.subr.mxu0 0.0
    %v8039 = vand.u32 %v7927, 4294901760
    %v8040 = vsub.f32 %v7927, %v8039
    %v8041 = vand.u32 %v8040, 4294901760
    %v8042 = vsub.f32 %v8040, %v8041
    %v8043 = vand.u32 %v8042, 4294901760
    %8044 = vmatpush1.msra.mxu0 %v8043
    %8045 = vmatprep.subr.mxu0 0.0
    %v8046 = vand.u32 %v7928, 4294901760
    %v8047 = vsub.f32 %v7928, %v8046
    %v8048 = vand.u32 %v8047, 4294901760
    %v8049 = vsub.f32 %v8047, %v8048
    %v8050 = vand.u32 %v8049, 4294901760
    %8051 = vmatpush1.msra.mxu0 %v8050
    %8052 = vmatprep.subr.mxu0 0.0
    %v8053 = vand.u32 %v7929, 4294901760
    %v8054 = vsub.f32 %v7929, %v8053
    %v8055 = vand.u32 %v8054, 4294901760
    %v8056 = vsub.f32 %v8054, %v8055
    %v8057 = vand.u32 %v8056, 4294901760
    %8058 = vmatpush1.msra.mxu0 %v8057
    %8059 = vmatprep.subr.mxu0 0.0
    %v8060 = vand.u32 %v7930, 4294901760
    %v8061 = vsub.f32 %v7930, %v8060
    %v8062 = vand.u32 %v8061, 4294901760
    %v8063 = vsub.f32 %v8061, %v8062
    %v8064 = vand.u32 %v8063, 4294901760
    %8065 = vmatpush1.msra.mxu0 %v8064
    %8066 = vmatprep.subr.mxu0 0.0
    %v8067 = vand.u32 %v7931, 4294901760
    %v8068 = vsub.f32 %v7931, %v8067
    %v8069 = vand.u32 %v8068, 4294901760
    %v8070 = vsub.f32 %v8068, %v8069
    %v8071 = vand.u32 %v8070, 4294901760
    %8072 = vmatpush1.msra.mxu0 %v8071
    %8073 = vmatprep.subr.mxu0 0.0
    %v8074 = vand.u32 %v7932, 4294901760
    %v8075 = vsub.f32 %v7932, %v8074
    %v8076 = vand.u32 %v8075, 4294901760
    %v8077 = vsub.f32 %v8075, %v8076
    %v8078 = vand.u32 %v8077, 4294901760
    %8079 = vmatpush1.msra.mxu0 %v8078
    %8080 = vmatprep.subr.mxu0 0.0
    %8081 = vmatpush1.msra.mxu0 0.0
    %8082 = vmatprep.subr.mxu0 0.0
    %8083 = vmatpush1.msra.mxu0 0.0
    %8084 = vmatprep.subr.mxu0 0.0
    %8085 = vmatpush1.msra.mxu0 0.0
    %8086 = vmatprep.subr.mxu0 0.0
    %8087 = vmatpush1.msra.mxu0 0.0
    %8088 = vmatprep.subr.mxu0 0.0
    %8089 = vmatpush1.msra.mxu0 0.0
    %8090 = vmatprep.subr.mxu0 0.0
    %8091 = vmatpush1.msra.mxu0 0.0
    %8092 = vmatprep.subr.mxu0 0.0
    %8093 = vmatpush1.msra.mxu0 0.0
    %8094 = vmatprep.subr.mxu0 0.0
    %8095 = vmatpush1.msra.mxu0 0.0
    %8096 = vmatprep.subr.mxu0 0.0
    %8097 = vmatpush1.msra.mxu0 0.0
    %8098 = vmatprep.subr.mxu0 0.0
    %8099 = vmatpush1.msra.mxu0 0.0
    %8100 = vmatprep.subr.mxu0 0.0
    %8101 = vmatpush1.msra.mxu0 0.0
    %8102 = vmatprep.subr.mxu0 0.0
    %8103 = vmatpush1.msra.mxu0 0.0
    %8104 = vmatprep.subr.mxu0 0.0
    %8105 = vmatpush1.msra.mxu0 0.0
    %8106 = vmatprep.subr.mxu0 0.0
    %8107 = vmatpush1.msra.mxu0 0.0
    %8108 = vmatprep.subr.mxu0 0.0
    %8109 = vmatpush1.msra.mxu0 0.0
    %8110 = vmatprep.subr.mxu0 0.0
    %8111 = vmatpush1.msra.mxu0 0.0
    %8112 = vmatprep.subr.mxu0 0.0
    %8113 = vmatpush1.msra.mxu0 0.0
    %8114 = vmatprep.subr.mxu0 0.0
    %8115 = vmatpush1.msra.mxu0 0.0
    %8116 = vmatprep.subr.mxu0 0.0
    %8117 = vmatpush1.msra.mxu0 0.0
    %8118 = vmatprep.subr.mxu0 0.0
    %8119 = vmatpush1.msra.mxu0 0.0
    %8120 = vmatprep.subr.mxu0 0.0
    %8121 = vmatpush1.msra.mxu0 0.0
    %8122 = vmatprep.subr.mxu0 0.0
    %8123 = vmatpush1.msra.mxu0 0.0
    %8124 = vmatprep.subr.mxu0 0.0
    %8125 = vmatpush1.msra.mxu0 0.0
    %8126 = vmatprep.subr.mxu0 0.0
    %8127 = vmatpush1.msra.mxu0 0.0
    %8128 = vmatprep.mubr.f32.mxu0 0.0
    %v8129 = vand.u32 %v7939, 4294901760
    %8130 = vmatmul.mubr.f32.gmra.mrb[0].mxu0 %v8129
    %v8131 = vpop.f32.mrb[0].mxu0
    %v8132 = vadd.f32 %v8021, %v8131
    %v8133 = vpop.f32.mrb[0].mxu0
    %8134 = vdwg.mxu0
    %8135 = vmatprep.subr.mxu0 0.0
    %v8136 = vand.u32 %v7925, 4294901760
    %v8137 = vsub.f32 %v7925, %v8136
    %8138 = vmatpush1.msra.mxu0 %v8137
    %8139 = vmatprep.subr.mxu0 0.0
    %v8140 = vand.u32 %v7926, 4294901760
    %v8141 = vsub.f32 %v7926, %v8140
    %8142 = vmatpush1.msra.mxu0 %v8141
    %8143 = vmatprep.subr.mxu0 0.0
    %v8144 = vand.u32 %v7927, 4294901760
    %v8145 = vsub.f32 %v7927, %v8144
    %8146 = vmatpush1.msra.mxu0 %v8145
    %8147 = vmatprep.subr.mxu0 0.0
    %v8148 = vand.u32 %v7928, 4294901760
    %v8149 = vsub.f32 %v7928, %v8148
    %8150 = vmatpush1.msra.mxu0 %v8149
    %8151 = vmatprep.subr.mxu0 0.0
    %v8152 = vand.u32 %v7929, 4294901760
    %v8153 = vsub.f32 %v7929, %v8152
    %8154 = vmatpush1.msra.mxu0 %v8153
    %8155 = vmatprep.subr.mxu0 0.0
    %v8156 = vand.u32 %v7930, 4294901760
    %v8157 = vsub.f32 %v7930, %v8156
    %8158 = vmatpush1.msra.mxu0 %v8157
    %8159 = vmatprep.subr.mxu0 0.0
    %v8160 = vand.u32 %v7931, 4294901760
    %v8161 = vsub.f32 %v7931, %v8160
    %8162 = vmatpush1.msra.mxu0 %v8161
    %8163 = vmatprep.subr.mxu0 0.0
    %v8164 = vand.u32 %v7932, 4294901760
    %v8165 = vsub.f32 %v7932, %v8164
    %8166 = vmatpush1.msra.mxu0 %v8165
    %8167 = vmatprep.subr.mxu0 0.0
    %8168 = vmatpush1.msra.mxu0 0.0
    %8169 = vmatprep.subr.mxu0 0.0
    %8170 = vmatpush1.msra.mxu0 0.0
    %8171 = vmatprep.subr.mxu0 0.0
    %8172 = vmatpush1.msra.mxu0 0.0
    %8173 = vmatprep.subr.mxu0 0.0
    %8174 = vmatpush1.msra.mxu0 0.0
    %8175 = vmatprep.subr.mxu0 0.0
    %8176 = vmatpush1.msra.mxu0 0.0
    %8177 = vmatprep.subr.mxu0 0.0
    %8178 = vmatpush1.msra.mxu0 0.0
    %8179 = vmatprep.subr.mxu0 0.0
    %8180 = vmatpush1.msra.mxu0 0.0
    %8181 = vmatprep.subr.mxu0 0.0
    %8182 = vmatpush1.msra.mxu0 0.0
    %8183 = vmatprep.subr.mxu0 0.0
    %8184 = vmatpush1.msra.mxu0 0.0
    %8185 = vmatprep.subr.mxu0 0.0
    %8186 = vmatpush1.msra.mxu0 0.0
    %8187 = vmatprep.subr.mxu0 0.0
    %8188 = vmatpush1.msra.mxu0 0.0
    %8189 = vmatprep.subr.mxu0 0.0
    %8190 = vmatpush1.msra.mxu0 0.0
    %8191 = vmatprep.subr.mxu0 0.0
    %8192 = vmatpush1.msra.mxu0 0.0
    %8193 = vmatprep.subr.mxu0 0.0
    %8194 = vmatpush1.msra.mxu0 0.0
    %8195 = vmatprep.subr.mxu0 0.0
    %8196 = vmatpush1.msra.mxu0 0.0
    %8197 = vmatprep.subr.mxu0 0.0
    %8198 = vmatpush1.msra.mxu0 0.0
    %8199 = vmatprep.subr.mxu0 0.0
    %8200 = vmatpush1.msra.mxu0 0.0
    %8201 = vmatprep.subr.mxu0 0.0
    %8202 = vmatpush1.msra.mxu0 0.0
    %8203 = vmatprep.subr.mxu0 0.0
    %8204 = vmatpush1.msra.mxu0 0.0
    %8205 = vmatprep.subr.mxu0 0.0
    %8206 = vmatpush1.msra.mxu0 0.0
    %8207 = vmatprep.subr.mxu0 0.0
    %8208 = vmatpush1.msra.mxu0 0.0
    %8209 = vmatprep.subr.mxu0 0.0
    %8210 = vmatpush1.msra.mxu0 0.0
    %8211 = vmatprep.subr.mxu0 0.0
    %8212 = vmatpush1.msra.mxu0 0.0
    %8213 = vmatprep.subr.mxu0 0.0
    %8214 = vmatpush1.msra.mxu0 0.0
    %8215 = vmatprep.mubr.f32.mxu0 0.0
    %v8216 = vand.u32 %v7939, 4294901760
    %v8217 = vsub.f32 %v7939, %v8216
    %8218 = vmatmul.mubr.f32.gmra.mrb[0].mxu0 %v8217
    %v8219 = vpop.f32.mrb[0].mxu0
    %v8220 = vadd.f32 %v8132, %v8219
    %v8221 = vpop.f32.mrb[0].mxu0
    %8222 = vdwg.mxu0
    %8223 = vmatprep.subr.mxu0 0.0
    %v8224 = vand.u32 %v7925, 4294901760
    %8225 = vmatpush1.msra.mxu0 %v8224
    %8226 = vmatprep.subr.mxu0 0.0
    %v8227 = vand.u32 %v7926, 4294901760
    %8228 = vmatpush1.msra.mxu0 %v8227
    %8229 = vmatprep.subr.mxu0 0.0
    %v8230 = vand.u32 %v7927, 4294901760
    %8231 = vmatpush1.msra.mxu0 %v8230
    %8232 = vmatprep.subr.mxu0 0.0
    %v8233 = vand.u32 %v7928, 4294901760
    %8234 = vmatpush1.msra.mxu0 %v8233
    %8235 = vmatprep.subr.mxu0 0.0
    %v8236 = vand.u32 %v7929, 4294901760
    %8237 = vmatpush1.msra.mxu0 %v8236
    %8238 = vmatprep.subr.mxu0 0.0
    %v8239 = vand.u32 %v7930, 4294901760
    %8240 = vmatpush1.msra.mxu0 %v8239
    %8241 = vmatprep.subr.mxu0 0.0
    %v8242 = vand.u32 %v7931, 4294901760
    %8243 = vmatpush1.msra.mxu0 %v8242
    %8244 = vmatprep.subr.mxu0 0.0
    %v8245 = vand.u32 %v7932, 4294901760
    %8246 = vmatpush1.msra.mxu0 %v8245
    %8247 = vmatprep.subr.mxu0 0.0
    %8248 = vmatpush1.msra.mxu0 0.0
    %8249 = vmatprep.subr.mxu0 0.0
    %8250 = vmatpush1.msra.mxu0 0.0
    %8251 = vmatprep.subr.mxu0 0.0
    %8252 = vmatpush1.msra.mxu0 0.0
    %8253 = vmatprep.subr.mxu0 0.0
    %8254 = vmatpush1.msra.mxu0 0.0
    %8255 = vmatprep.subr.mxu0 0.0
    %8256 = vmatpush1.msra.mxu0 0.0
    %8257 = vmatprep.subr.mxu0 0.0
    %8258 = vmatpush1.msra.mxu0 0.0
    %8259 = vmatprep.subr.mxu0 0.0
    %8260 = vmatpush1.msra.mxu0 0.0
    %8261 = vmatprep.subr.mxu0 0.0
    %8262 = vmatpush1.msra.mxu0 0.0
    %8263 = vmatprep.subr.mxu0 0.0
    %8264 = vmatpush1.msra.mxu0 0.0
    %8265 = vmatprep.subr.mxu0 0.0
    %8266 = vmatpush1.msra.mxu0 0.0
    %8267 = vmatprep.subr.mxu0 0.0
    %8268 = vmatpush1.msra.mxu0 0.0
    %8269 = vmatprep.subr.mxu0 0.0
    %8270 = vmatpush1.msra.mxu0 0.0
    %8271 = vmatprep.subr.mxu0 0.0
    %8272 = vmatpush1.msra.mxu0 0.0
    %8273 = vmatprep.subr.mxu0 0.0
    %8274 = vmatpush1.msra.mxu0 0.0
    %8275 = vmatprep.subr.mxu0 0.0
    %8276 = vmatpush1.msra.mxu0 0.0
    %8277 = vmatprep.subr.mxu0 0.0
    %8278 = vmatpush1.msra.mxu0 0.0
    %8279 = vmatprep.subr.mxu0 0.0
    %8280 = vmatpush1.msra.mxu0 0.0
    %8281 = vmatprep.subr.mxu0 0.0
    %8282 = vmatpush1.msra.mxu0 0.0
    %8283 = vmatprep.subr.mxu0 0.0
    %8284 = vmatpush1.msra.mxu0 0.0
    %8285 = vmatprep.subr.mxu0 0.0
    %8286 = vmatpush1.msra.mxu0 0.0
    %8287 = vmatprep.subr.mxu0 0.0
    %8288 = vmatpush1.msra.mxu0 0.0
    %8289 = vmatprep.subr.mxu0 0.0
    %8290 = vmatpush1.msra.mxu0 0.0
    %8291 = vmatprep.subr.mxu0 0.0
    %8292 = vmatpush1.msra.mxu0 0.0
    %8293 = vmatprep.subr.mxu0 0.0
    %8294 = vmatpush1.msra.mxu0 0.0
    %8295 = vmatprep.mubr.f32.mxu0 0.0
    %v8296 = vand.u32 %v7939, 4294901760
    %v8297 = vsub.f32 %v7939, %v8296
    %v8298 = vand.u32 %v8297, 4294901760
    %8299 = vmatmul.mubr.f32.gmra.mrb[0].mxu0 %v8298
    %v8300 = vpop.f32.mrb[0].mxu0
    %v8301 = vadd.f32 %v8220, %v8300
    %v8302 = vpop.f32.mrb[0].mxu0
    %8303 = vdwg.mxu0
    %8304 = vmatprep.subr.mxu0 0.0
    %v8305 = vand.u32 %v7925, 4294901760
    %v8306 = vsub.f32 %v7925, %v8305
    %v8307 = vand.u32 %v8306, 4294901760
    %8308 = vmatpush1.msra.mxu0 %v8307
    %8309 = vmatprep.subr.mxu0 0.0
    %v8310 = vand.u32 %v7926, 4294901760
    %v8311 = vsub.f32 %v7926, %v8310
    %v8312 = vand.u32 %v8311, 4294901760
    %8313 = vmatpush1.msra.mxu0 %v8312
    %8314 = vmatprep.subr.mxu0 0.0
    %v8315 = vand.u32 %v7927, 4294901760
    %v8316 = vsub.f32 %v7927, %v8315
    %v8317 = vand.u32 %v8316, 4294901760
    %8318 = vmatpush1.msra.mxu0 %v8317
    %8319 = vmatprep.subr.mxu0 0.0
    %v8320 = vand.u32 %v7928, 4294901760
    %v8321 = vsub.f32 %v7928, %v8320
    %v8322 = vand.u32 %v8321, 4294901760
    %8323 = vmatpush1.msra.mxu0 %v8322
    %8324 = vmatprep.subr.mxu0 0.0
    %v8325 = vand.u32 %v7929, 4294901760
    %v8326 = vsub.f32 %v7929, %v8325
    %v8327 = vand.u32 %v8326, 4294901760
    %8328 = vmatpush1.msra.mxu0 %v8327
    %8329 = vmatprep.subr.mxu0 0.0
    %v8330 = vand.u32 %v7930, 4294901760
    %v8331 = vsub.f32 %v7930, %v8330
    %v8332 = vand.u32 %v8331, 4294901760
    %8333 = vmatpush1.msra.mxu0 %v8332
    %8334 = vmatprep.subr.mxu0 0.0
    %v8335 = vand.u32 %v7931, 4294901760
    %v8336 = vsub.f32 %v7931, %v8335
    %v8337 = vand.u32 %v8336, 4294901760
    %8338 = vmatpush1.msra.mxu0 %v8337
    %8339 = vmatprep.subr.mxu0 0.0
    %v8340 = vand.u32 %v7932, 4294901760
    %v8341 = vsub.f32 %v7932, %v8340
    %v8342 = vand.u32 %v8341, 4294901760
    %8343 = vmatpush1.msra.mxu0 %v8342
    %8344 = vmatprep.subr.mxu0 0.0
    %8345 = vmatpush1.msra.mxu0 0.0
    %8346 = vmatprep.subr.mxu0 0.0
    %8347 = vmatpush1.msra.mxu0 0.0
    %8348 = vmatprep.subr.mxu0 0.0
    %8349 = vmatpush1.msra.mxu0 0.0
    %8350 = vmatprep.subr.mxu0 0.0
    %8351 = vmatpush1.msra.mxu0 0.0
    %8352 = vmatprep.subr.mxu0 0.0
    %8353 = vmatpush1.msra.mxu0 0.0
    %8354 = vmatprep.subr.mxu0 0.0
    %8355 = vmatpush1.msra.mxu0 0.0
    %8356 = vmatprep.subr.mxu0 0.0
    %8357 = vmatpush1.msra.mxu0 0.0
    %8358 = vmatprep.subr.mxu0 0.0
    %8359 = vmatpush1.msra.mxu0 0.0
    %8360 = vmatprep.subr.mxu0 0.0
    %8361 = vmatpush1.msra.mxu0 0.0
    %8362 = vmatprep.subr.mxu0 0.0
    %8363 = vmatpush1.msra.mxu0 0.0
    %8364 = vmatprep.subr.mxu0 0.0
    %8365 = vmatpush1.msra.mxu0 0.0
    %8366 = vmatprep.subr.mxu0 0.0
    %8367 = vmatpush1.msra.mxu0 0.0
    %8368 = vmatprep.subr.mxu0 0.0
    %8369 = vmatpush1.msra.mxu0 0.0
    %8370 = vmatprep.subr.mxu0 0.0
    %8371 = vmatpush1.msra.mxu0 0.0
    %8372 = vmatprep.subr.mxu0 0.0
    %8373 = vmatpush1.msra.mxu0 0.0
    %8374 = vmatprep.subr.mxu0 0.0
    %8375 = vmatpush1.msra.mxu0 0.0
    %8376 = vmatprep.subr.mxu0 0.0
    %8377 = vmatpush1.msra.mxu0 0.0
    %8378 = vmatprep.subr.mxu0 0.0
    %8379 = vmatpush1.msra.mxu0 0.0
    %8380 = vmatprep.subr.mxu0 0.0
    %8381 = vmatpush1.msra.mxu0 0.0
    %8382 = vmatprep.subr.mxu0 0.0
    %8383 = vmatpush1.msra.mxu0 0.0
    %8384 = vmatprep.subr.mxu0 0.0
    %8385 = vmatpush1.msra.mxu0 0.0
    %8386 = vmatprep.subr.mxu0 0.0
    %8387 = vmatpush1.msra.mxu0 0.0
    %8388 = vmatprep.subr.mxu0 0.0
    %8389 = vmatpush1.msra.mxu0 0.0
    %8390 = vmatprep.subr.mxu0 0.0
    %8391 = vmatpush1.msra.mxu0 0.0
    %8392 = vmatprep.mubr.f32.mxu0 0.0
    %v8393 = vand.u32 %v7939, 4294901760
    %8394 = vmatmul.mubr.f32.gmra.mrb[0].mxu0 %v8393
    %v8395 = vpop.f32.mrb[0].mxu0
    %v8396 = vadd.f32 %v8301, %v8395
    %v8397 = vpop.f32.mrb[0].mxu0
    %8398 = vdwg.mxu0
    %8399 = vmatprep.subr.mxu0 0.0
    %v8400 = vand.u32 %v7925, 4294901760
    %8401 = vmatpush1.msra.mxu0 %v8400
    %8402 = vmatprep.subr.mxu0 0.0
    %v8403 = vand.u32 %v7926, 4294901760
    %8404 = vmatpush1.msra.mxu0 %v8403
    %8405 = vmatprep.subr.mxu0 0.0
    %v8406 = vand.u32 %v7927, 4294901760
    %8407 = vmatpush1.msra.mxu0 %v8406
    %8408 = vmatprep.subr.mxu0 0.0
    %v8409 = vand.u32 %v7928, 4294901760
    %8410 = vmatpush1.msra.mxu0 %v8409
    %8411 = vmatprep.subr.mxu0 0.0
    %v8412 = vand.u32 %v7929, 4294901760
    %8413 = vmatpush1.msra.mxu0 %v8412
    %8414 = vmatprep.subr.mxu0 0.0
    %v8415 = vand.u32 %v7930, 4294901760
    %8416 = vmatpush1.msra.mxu0 %v8415
    %8417 = vmatprep.subr.mxu0 0.0
    %v8418 = vand.u32 %v7931, 4294901760
    %8419 = vmatpush1.msra.mxu0 %v8418
    %8420 = vmatprep.subr.mxu0 0.0
    %v8421 = vand.u32 %v7932, 4294901760
    %8422 = vmatpush1.msra.mxu0 %v8421
    %8423 = vmatprep.subr.mxu0 0.0
    %8424 = vmatpush1.msra.mxu0 0.0
    %8425 = vmatprep.subr.mxu0 0.0
    %8426 = vmatpush1.msra.mxu0 0.0
    %8427 = vmatprep.subr.mxu0 0.0
    %8428 = vmatpush1.msra.mxu0 0.0
    %8429 = vmatprep.subr.mxu0 0.0
    %8430 = vmatpush1.msra.mxu0 0.0
    %8431 = vmatprep.subr.mxu0 0.0
    %8432 = vmatpush1.msra.mxu0 0.0
    %8433 = vmatprep.subr.mxu0 0.0
    %8434 = vmatpush1.msra.mxu0 0.0
    %8435 = vmatprep.subr.mxu0 0.0
    %8436 = vmatpush1.msra.mxu0 0.0
    %8437 = vmatprep.subr.mxu0 0.0
    %8438 = vmatpush1.msra.mxu0 0.0
    %8439 = vmatprep.subr.mxu0 0.0
    %8440 = vmatpush1.msra.mxu0 0.0
    %8441 = vmatprep.subr.mxu0 0.0
    %8442 = vmatpush1.msra.mxu0 0.0
    %8443 = vmatprep.subr.mxu0 0.0
    %8444 = vmatpush1.msra.mxu0 0.0
    %8445 = vmatprep.subr.mxu0 0.0
    %8446 = vmatpush1.msra.mxu0 0.0
    %8447 = vmatprep.subr.mxu0 0.0
    %8448 = vmatpush1.msra.mxu0 0.0
    %8449 = vmatprep.subr.mxu0 0.0
    %8450 = vmatpush1.msra.mxu0 0.0
    %8451 = vmatprep.subr.mxu0 0.0
    %8452 = vmatpush1.msra.mxu0 0.0
    %8453 = vmatprep.subr.mxu0 0.0
    %8454 = vmatpush1.msra.mxu0 0.0
    %8455 = vmatprep.subr.mxu0 0.0
    %8456 = vmatpush1.msra.mxu0 0.0
    %8457 = vmatprep.subr.mxu0 0.0
    %8458 = vmatpush1.msra.mxu0 0.0
    %8459 = vmatprep.subr.mxu0 0.0
    %8460 = vmatpush1.msra.mxu0 0.0
    %8461 = vmatprep.subr.mxu0 0.0
    %8462 = vmatpush1.msra.mxu0 0.0
    %8463 = vmatprep.subr.mxu0 0.0
    %8464 = vmatpush1.msra.mxu0 0.0
    %8465 = vmatprep.subr.mxu0 0.0
    %8466 = vmatpush1.msra.mxu0 0.0
    %8467 = vmatprep.subr.mxu0 0.0
    %8468 = vmatpush1.msra.mxu0 0.0
    %8469 = vmatprep.subr.mxu0 0.0
    %8470 = vmatpush1.msra.mxu0 0.0
    %8471 = vmatprep.mubr.f32.mxu0 0.0
    %v8472 = vand.u32 %v7939, 4294901760
    %8473 = vmatmul.mubr.f32.gmra.mrb[0].mxu0 %v8472
    %v8474 = vpop.f32.mrb[0].mxu0
    %v8475 = vadd.f32 %v8396, %v8474
    %v8476 = vpop.f32.mrb[0].mxu0
    %8477 = vdwg.mxu0
    %8478 = vst [vmem:[#allocation7] sm:$0x3] %v8475
    // Predicated region
    $region34: #{review_model_forward.1} parent=1 // pred_check
      _
    $region35: #{review_model_forward.1} parent=1 // pred_check_branch
      %8480 = sbr.rel (0) target = $region37
    $region36: #{review_model_forward.1} parent=1 // pred_region
      %s8482 = ssub.s32 32, 32
      %8483 = vsyncadd [#allocation4], %s8482
      %s8485 = sshll.u32 [#allocation7], 4
      %s8486 = int_to_ptr.vmem [resolvable:$true] %s8485
      %8488 = dma.vmem_to_hbm [thread:$0]  %s8486, 32, %s6, [#allocation4]
    $region37: #{review_model_forward.1} parent=1 // pred_fallthru
      _
    // Predicated region
    $region38: #{review_model_forward.1} parent=1 // pred_check
      _
    $region39: #{review_model_forward.1} parent=1 // pred_check_branch
      %8490 = sbr.rel (0) target = $region41
    $region40: #{review_model_forward.1} parent=1 // pred_region
      %8491 = dma.done [#allocation4], 32
    $region41: #{review_model_forward.1} parent=1 // pred_fallthru
      _
    %8492 = vsyncpa [#allocation3], 1
    %8493 = vsyncpa [#allocation4], 1
    %8494 = vsyncpa [#allocation5], 1

</llo_original>
